<compile_context>
chip_gen: v7x
topology: tpu7x:2x2x1
jax: 0.10.0
libtpu: 0.0.40
codegen_flags: <defaults>
</compile_context>

<pallas_src>
import math
from functools import partial

import numpy as np
import jax
import jax.numpy as jnp
from jax import lax
from jax.experimental import pallas as pl
from jax.experimental.pallas import tpu as pltpu

# ----------------------------- hyper-parameters (small, synthetic) ----------
DATASET_MAX_LENGTH = 8
NULL_LABEL = 0
NUM_CLASSES = 16
MAX_LENGTH = DATASET_MAX_LENGTH + 1          # 9  (max_length = dataset_max_length + 1)
D_MODEL = 32
NHEAD = 4
D_INNER = 64
V_NUM_LAYERS = 2
L_NUM_LAYERS = 2
ITER_SIZE = 2
NC_ATTN = 16                                  # PositionAttention num_channels
IMG_SHAPE = (2, 3, 8, 32)                     # NCHW like the PyTorch module
NEG_INF = -1e30
LN_EPS = 1e-5


# ----------------------------- positional encoding (constant) ----------------
def positional_encoding(max_len, d_model):
    pos = np.arange(max_len, dtype=np.float32)[:, None]
    div = np.exp(np.arange(0, d_model, 2, dtype=np.float32)
                 * (-math.log(10000.0) / d_model))
    pe = np.zeros((max_len, d_model), np.float32)
    pe[:, 0::2] = np.sin(pos * div)
    pe[:, 1::2] = np.cos(pos * div)
    return jnp.asarray(pe)


PE = positional_encoding(64, D_MODEL)


# ============================ Pallas kernels ==================================
# ---- fused transformer layer (self- or cross-attention, optional BCN mask) --
def _tlayer_kernel(*refs, nhead, cross, masked):
    idx = 0
    if masked:
        len_ref = refs[idx]; idx += 1           # (N,) int32 in SMEM
    xq_ref = refs[idx]; idx += 1                # (1, T, E)
    if cross:
        xkv_ref = refs[idx]; idx += 1           # (1, S, E)
    (wqkv_ref, bqkv_ref, wo_ref, bo_ref, ln1g_ref, ln1b_ref,
     w1_ref, b1_ref, w2_ref, b2_ref, ln2g_ref, ln2b_ref, o_ref) = refs[idx:]

    xq = xq_ref[0]                              # (T, E) f32
    t, e = xq.shape
    dh = e // nhead
    wqkv = wqkv_ref[...]                        # (E, 3E) bf16
    bqkv = bqkv_ref[...]                        # (1, 3E) f32

    if cross:
        xkv = xkv_ref[0]                        # (S, E) f32
        s = xkv.shape[0]
        q = jnp.dot(xq.astype(jnp.bfloat16), wqkv[:, :e],
                    preferred_element_type=jnp.float32) + bqkv[:, :e]
        kv = jnp.dot(xkv.astype(jnp.bfloat16), wqkv[:, e:],
                     preferred_element_type=jnp.float32) + bqkv[:, e:]
        k = kv[:, :e]
        v = kv[:, e:]
    else:
        s = t
        qkv = jnp.dot(xq.astype(jnp.bfloat16), wqkv,
                      preferred_element_type=jnp.float32) + bqkv
        q = qkv[:, :e]
        k = qkv[:, e:2 * e]
        v = qkv[:, 2 * e:]

    # BCN decoder mask, built in-kernel (diag excluded + key padding), no HBM mask.
    if masked:
        length = len_ref[pl.program_id(0)]
        ti = lax.broadcasted_iota(jnp.int32, (t, s), 0)
        si = lax.broadcasted_iota(jnp.int32, (t, s), 1)
        mask = (jnp.where(ti == si, NEG_INF, 0.0)
                + jnp.where(si >= length, NEG_INF, 0.0)).astype(jnp.float32)
    else:
        mask = None

    scale = 1.0 / math.sqrt(dh)
    heads = []
    for h in range(nhead):
        qh = q[:, h * dh:(h + 1) * dh].astype(jnp.bfloat16)
        kh = k[:, h * dh:(h + 1) * dh].astype(jnp.bfloat16)
        vh = v[:, h * dh:(h + 1) * dh].astype(jnp.bfloat16)
        sc = lax.dot_general(qh, kh, (((1,), (1,)), ((), ())),
                             preferred_element_type=jnp.float32) * scale
        if mask is not None:
            sc = sc + mask                      # keep max-subtraction AFTER mask add
        sc = sc - jnp.max(sc, axis=-1, keepdims=True)
        ex = jnp.exp(sc)
        p = ex * pl.reciprocal(jnp.sum(ex, axis=-1, keepdims=True), approx=True)
        heads.append(jnp.dot(p.astype(jnp.bfloat16), vh,
                             preferred_element_type=jnp.float32))
    ctx = jnp.concatenate(heads, axis=-1)       # (T, E) f32

    attn_out = jnp.dot(ctx.astype(jnp.bfloat16), wo_ref[...],
                       preferred_element_type=jnp.float32) + bo_ref[...]
    x1 = xq + attn_out
    mu = jnp.mean(x1, axis=-1, keepdims=True)
    xc = x1 - mu
    var = jnp.mean(xc * xc, axis=-1, keepdims=True)
    x1 = xc * lax.rsqrt(var + LN_EPS) * ln1g_ref[...] + ln1b_ref[...]

    hid = jnp.dot(x1.astype(jnp.bfloat16), w1_ref[...],
                  preferred_element_type=jnp.float32) + b1_ref[...]
    hid = jnp.maximum(hid, 0.0)
    ff = jnp.dot(hid.astype(jnp.bfloat16), w2_ref[...],
                 preferred_element_type=jnp.float32) + b2_ref[...]
    x2 = x1 + ff
    mu2 = jnp.mean(x2, axis=-1, keepdims=True)
    xc2 = x2 - mu2
    var2 = jnp.mean(xc2 * xc2, axis=-1, keepdims=True)
    o_ref[0] = xc2 * lax.rsqrt(var2 + LN_EPS) * ln2g_ref[...] + ln2b_ref[...]


def fused_transformer_layer(x_q, x_kv, p, *, nhead=NHEAD, lengths=None):
    """One pallas_call per transformer layer; grid = batch (parallel for v7x)."""
    n, t, e = x_q.shape
    cross = x_kv is not None
    masked = lengths is not None

    inputs, in_specs = [], []
    if masked:
        inputs.append(lengths.astype(jnp.int32))
        in_specs.append(pl.BlockSpec(memory_space=pltpu.MemorySpace.SMEM))
    inputs.append(x_q.astype(jnp.float32))
    in_specs.append(pl.BlockSpec((1, t, e), lambda i: (i, 0, 0)))
    if cross:
        s = x_kv.shape[1]
        inputs.append(x_kv.astype(jnp.float32))
        in_specs.append(pl.BlockSpec((1, s, e), lambda i: (i, 0, 0)))

    def add_param(a):
        inputs.append(a)
        in_specs.append(pl.BlockSpec(a.shape, lambda i: (0, 0)))

    for name in ('wqkv', 'bqkv', 'wo', 'bo', 'ln1_g', 'ln1_b',
                 'w1', 'b1', 'w2', 'b2', 'ln2_g', 'ln2_b'):
        add_param(p[name])

    return pl.pallas_call(
        partial(_tlayer_kernel, nhead=nhead, cross=cross, masked=masked),
        grid=(n,),
        in_specs=in_specs,
        out_specs=pl.BlockSpec((1, t, e), lambda i: (i, 0, 0)),
        out_shape=jax.ShapeDtypeStruct((n, t, e), jnp.float32),
        compiler_params=pltpu.CompilerParams(dimension_semantics=("parallel",)),
    )(*inputs)


# ---- plain matmul (+bias, optional relu) for conv-as-matmul / cls heads -----
def _linear_kernel(x_ref, w_ref, b_ref, o_ref, *, act):
    y = jnp.dot(x_ref[...].astype(jnp.bfloat16), w_ref[...],
                preferred_element_type=jnp.float32) + b_ref[...]
    if act == "relu":
        y = jnp.maximum(y, 0.0)
    o_ref[...] = y


def pallas_linear(x, w, b, act=None):
    m = x.shape[0]
    n = w.shape[1]
    return pl.pallas_call(
        partial(_linear_kernel, act=act),
        out_shape=jax.ShapeDtypeStruct((m, n), jnp.float32),
    )(x.astype(jnp.float32), w, b)


# ---- fused position-attention: query proj + attention + cls head ------------
def _pos_attn_kernel(pe_ref, k_ref, v_ref, wp_ref, bp_ref, wc_ref, bc_ref,
                     vec_ref, score_ref, logit_ref, *, scale):
    q = jnp.dot(pe_ref[...].astype(jnp.bfloat16), wp_ref[...],
                preferred_element_type=jnp.float32) + bp_ref[...]        # (L, E)
    k = k_ref[0]                                                          # (HW, E)
    v = v_ref[0]
    sc = lax.dot_general(q.astype(jnp.bfloat16), k.astype(jnp.bfloat16),
                         (((1,), (1,)), ((), ())),
                         preferred_element_type=jnp.float32) * scale      # (L, HW)
    sc = sc - jnp.max(sc, axis=-1, keepdims=True)
    ex = jnp.exp(sc)
    p = ex * pl.reciprocal(jnp.sum(ex, axis=-1, keepdims=True), approx=True)
    vec = jnp.dot(p.astype(jnp.bfloat16), v.astype(jnp.bfloat16),
                  preferred_element_type=jnp.float32)                     # (L, E)
    vec_ref[0] = vec
    score_ref[0] = p
    logit_ref[0] = jnp.dot(vec.astype(jnp.bfloat16), wc_ref[...],
                           preferred_element_type=jnp.float32) + bc_ref[...]


# ---- fused per-iteration glue: softmax(logits) -> token proj -> +PE ---------
def _embed_kernel(logits_ref, w_ref, pe_ref, o_ref):
    x = logits_ref[...]                                                   # (N*T, C)
    x = x - jnp.max(x, axis=-1, keepdims=True)
    ex = jnp.exp(x)
    probs = ex * pl.reciprocal(jnp.sum(ex, axis=-1, keepdims=True), approx=True)
    emb = jnp.dot(probs.astype(jnp.bfloat16), w_ref[...],
                  preferred_element_type=jnp.float32)                     # (N*T, E)
    o_ref[...] = emb + pe_ref[...]


# ---- fused alignment: sigmoid gate + cls head --------------------------------
def _align_kernel(l_ref, v_ref, wl_ref, wv_ref, b_ref, wc_ref, bc_ref, logit_ref):
    l = l_ref[...]
    v = v_ref[...]
    g = jax.nn.sigmoid(
        jnp.dot(l.astype(jnp.bfloat16), wl_ref[...], preferred_element_type=jnp.float32)
        + jnp.dot(v.astype(jnp.bfloat16), wv_ref[...], preferred_element_type=jnp.float32)
        + b_ref[...])
    fused = g * v + (1.0 - g) * l
    logit_ref[...] = jnp.dot(fused.astype(jnp.bfloat16), wc_ref[...],
                             preferred_element_type=jnp.float32) + bc_ref[...]


# ----------------------------- plain-JAX glue --------------------------------
def im2col(x, kh, kw, stride, padding):
    # TODO(synk): im2col patch extraction kept in plain JAX (XLA-fused slices);
    # a fully in-kernel strided-slice conv would avoid the duplicated patch tensor.
    n, h, w, c = x.shape
    sh, sw = stride
    xp = jnp.pad(x, ((0, 0), (padding, padding), (padding, padding), (0, 0)))
    ho = (h + 2 * padding - kh) // sh + 1
    wo = (w + 2 * padding - kw) // sw + 1
    cols = []
    for i in range(kh):
        for j in range(kw):
            cols.append(xp[:, i:i + sh * (ho - 1) + 1:sh,
                           j:j + sw * (wo - 1) + 1:sw, :])
    patches = jnp.concatenate(cols, axis=-1)            # (N, Ho, Wo, kh*kw*C)
    return patches.reshape(n * ho * wo, kh * kw * c), (n, ho, wo)


def conv2d(x, cp, kh=3, kw=3, stride=(1, 1), padding=1, act=None):
    patches, (n, ho, wo) = im2col(x, kh, kw, stride, padding)
    y = pallas_linear(patches, cp['w'], cp['b'], act=act)   # single fused matmul+bias+act
    return y.reshape(n, ho, wo, cp['w'].shape[1])


def upsample_nearest(x, scale):
    x = jnp.repeat(x, scale[0], axis=1)
    x = jnp.repeat(x, scale[1], axis=2)
    return x


def get_length(logits):
    """Model._get_length: index of first null_label prediction + 1, else T."""
    pred = jnp.argmax(logits, axis=-1)
    is_null = pred == NULL_LABEL
    abn = jnp.any(is_null, axis=-1)
    first = jnp.argmax(is_null.astype(jnp.int32), axis=-1)
    return jnp.where(abn, first + 1, logits.shape[1]).astype(jnp.int32)


# ----------------------------- model building blocks -------------------------
def backbone(x_nhwc, p):
    # TODO(synk): full ResNet45 basic-block stack abbreviated to a 2-conv stem
    # (eval-mode BatchNorm with default running stats / affine is an identity).
    x = conv2d(x_nhwc, p['conv1'], stride=(2, 2), padding=1, act='relu')
    x = conv2d(x, p['conv2'], stride=(2, 2), padding=1, act='relu')
    n, h, w, e = x.shape
    seq = x.reshape(n, h * w, e) + PE[None, :h * w, :]        # ResTranformer pos. enc.
    for lp in p['enc_layers']:
        seq = fused_transformer_layer(seq, None, lp)          # self-attn, no mask
    return seq.reshape(n, h, w, e)


def position_attention_and_cls(feat_4d, p_attn, p_cls):
    # feat_4d: (N, H, W, E)
    n, h, w, e = feat_4d.shape
    # TODO(synk): 4-level key encoder/decoder U-Net reduced to depth 2 to fit
    # the small spatial extent; skip-connection structure preserved.
    k1 = conv2d(feat_4d, p_attn['ke1'], stride=(1, 2), padding=1, act='relu')
    k2 = conv2d(k1, p_attn['ke2'], stride=(2, 2), padding=1, act='relu')
    d1 = conv2d(upsample_nearest(k2, (2, 2)), p_attn['kd1'], stride=(1, 1),
                padding=1, act='relu') + k1
    k = conv2d(upsample_nearest(d1, (1, 2)), p_attn['kd2'], stride=(1, 1),
               padding=1, act='relu')                          # (N, H, W, E)
    keys = k.reshape(n, h * w, e)
    vals = feat_4d.reshape(n, h * w, e)
    L, C = MAX_LENGTH, NUM_CLASSES
    vec, score, logits = pl.pallas_call(
        partial(_pos_attn_kernel, scale=1.0 / math.sqrt(e)),
        grid=(n,),
        in_specs=[
            pl.BlockSpec((L, e), lambda i: (0, 0)),
            pl.BlockSpec((1, h * w, e), lambda i: (i, 0, 0)),
            pl.BlockSpec((1, h * w, e), lambda i: (i, 0, 0)),
            pl.BlockSpec((e, e), lambda i: (0, 0)),
            pl.BlockSpec((1, e), lambda i: (0, 0)),
            pl.BlockSpec((e, C), lambda i: (0, 0)),
            pl.BlockSpec((1, C), lambda i: (0, 0)),
        ],
        out_specs=(
            pl.BlockSpec((1, L, e), lambda i: (i, 0, 0)),
            pl.BlockSpec((1, L, h * w), lambda i: (i, 0, 0)),
            pl.BlockSpec((1, L, C), lambda i: (i, 0, 0)),
        ),
        out_shape=(
            jax.ShapeDtypeStruct((n, L, e), jnp.float32),
            jax.ShapeDtypeStruct((n, L, h * w), jnp.float32),
            jax.ShapeDtypeStruct((n, L, C), jnp.float32),
        ),
        compiler_params=pltpu.CompilerParams(dimension_semantics=("parallel",)),
    )(PE[:L], keys, vals, p_attn['proj_w'], p_attn['proj_b'],
      p_cls['w'], p_cls['b'])
    return vec, score.reshape(n, L, h, w), logits


def base_vision(images_nchw, p):
    x = jnp.transpose(images_nchw, (0, 2, 3, 1)).astype(jnp.float32)   # NCHW -> NHWC
    feat = backbone(x, p['backbone'])
    attn_vecs, attn_scores, logits = position_attention_and_cls(feat, p['attn'], p['cls'])
    return {'feature': attn_vecs, 'logits': logits,
            'pt_lengths': get_length(logits), 'attn_scores': attn_scores}


def bcn_language(prev_logits, lengths, p):
    """BCN language model: softmax(prev_logits) -> token proj (+PE) -> decoder."""
    n, t, c = prev_logits.shape
    pe_tiled = jnp.tile(PE[:t], (n, 1))                 # constant, folded by XLA
    embed2d = pl.pallas_call(
        _embed_kernel,
        out_shape=jax.ShapeDtypeStruct((n * t, D_MODEL), jnp.float32),
    )(prev_logits.reshape(n * t, c).astype(jnp.float32), p['proj_w'], pe_tiled)
    embed = embed2d.reshape(n, t, D_MODEL)
    x = jnp.broadcast_to(PE[None, :t, :], (n, t, D_MODEL))     # pos_encoder(zeros)
    for lp in p['dec_layers']:
        x = fused_transformer_layer(x, embed, lp, lengths=lengths)   # cross-attn + mask
    logits = pallas_linear(x.reshape(n * t, D_MODEL),
                           p['cls']['w'], p['cls']['b']).reshape(n, t, NUM_CLASSES)
    return {'feature': x, 'logits': logits, 'pt_lengths': get_length(logits)}


def base_alignment(l_feature, v_feature, p):
    n, t, e = l_feature.shape
    logits2d = pl.pallas_call(
        _align_kernel,
        out_shape=jax.ShapeDtypeStruct((n * t, NUM_CLASSES), jnp.float32),
    )(l_feature.reshape(n * t, e).astype(jnp.float32),
      v_feature.reshape(n * t, e).astype(jnp.float32),
      p['watt_wl'], p['watt_wv'], p['watt_b'], p['cls']['w'], p['cls']['b'])
    logits = logits2d.reshape(n, t, NUM_CLASSES)
    return {'logits': logits, 'pt_lengths': get_length(logits)}


def abinet_iter_forward(images, params, iter_size=ITER_SIZE):
    v_res = base_vision(images, params['vision'])
    a_res = v_res
    all_l_res = []
    for _ in range(iter_size):
        lengths = jnp.clip(a_res['pt_lengths'], 2, MAX_LENGTH)
        l_res = bcn_language(a_res['logits'], lengths, params['language'])
        all_l_res.append(l_res)
        a_res = base_alignment(l_res['feature'], v_res['feature'], params['alignment'])
    # eval-mode return: (a_res, all_l_res[-1], v_res)
    return a_res, all_l_res[-1], v_res


# ----------------------------- deterministic parameter init ------------------
class _KeyGen:
    def __init__(self, key):
        self._key = key
        self._i = 0

    def __call__(self):
        self._i += 1
        return jax.random.fold_in(self._key, self._i)


def init_params(seed=42):
    kg = _KeyGen(jax.random.PRNGKey(seed))

    def w_mat(fin, fout):                     # MXU weights stored bf16
        return (jax.random.normal(kg(), (fin, fout), jnp.float32)
                / math.sqrt(fin)).astype(jnp.bfloat16)

    def bias(fout):                           # biases stay f32, shaped (1, fout)
        return 0.02 * jax.random.normal(kg(), (1, fout), jnp.float32)

    def dense(fin, fout):
        return {'w': w_mat(fin, fout), 'b': bias(fout)}

    def conv(cin, cout, k=3):                 # conv weight stored pre-flattened
        return {'w': (jax.random.normal(kg(), (k * k * cin, cout), jnp.float32)
                      / math.sqrt(k * k * cin)).astype(jnp.bfloat16),
                'b': bias(cout)}

    def tlayer_p():
        return {'wqkv': w_mat(D_MODEL, 3 * D_MODEL), 'bqkv': bias(3 * D_MODEL),
                'wo': w_mat(D_MODEL, D_MODEL), 'bo': bias(D_MODEL),
                'w1': w_mat(D_MODEL, D_INNER), 'b1': bias(D_INNER),
                'w2': w_mat(D_INNER, D_MODEL), 'b2': bias(D_MODEL),
                'ln1_g': jnp.ones((1, D_MODEL), jnp.float32),
                'ln1_b': jnp.zeros((1, D_MODEL), jnp.float32),
                'ln2_g': jnp.ones((1, D_MODEL), jnp.float32),
                'ln2_b': jnp.zeros((1, D_MODEL), jnp.float32)}

    vision = {
        'backbone': {'conv1': conv(3, 16), 'conv2': conv(16, D_MODEL),
                     'enc_layers': [tlayer_p() for _ in range(V_NUM_LAYERS)]},
        'attn': {'ke1': conv(D_MODEL, NC_ATTN), 'ke2': conv(NC_ATTN, NC_ATTN),
                 'kd1': conv(NC_ATTN, NC_ATTN), 'kd2': conv(NC_ATTN, D_MODEL),
                 'proj_w': w_mat(D_MODEL, D_MODEL), 'proj_b': bias(D_MODEL)},
        'cls': dense(D_MODEL, NUM_CLASSES),
    }
    language = {
        'proj_w': (jax.random.normal(kg(), (NUM_CLASSES, D_MODEL), jnp.float32)
                   / math.sqrt(NUM_CLASSES)).astype(jnp.bfloat16),
        'dec_layers': [tlayer_p() for _ in range(L_NUM_LAYERS)],
        'cls': dense(D_MODEL, NUM_CLASSES),
    }
    alignment = {
        'watt_wl': (jax.random.normal(kg(), (D_MODEL, D_MODEL), jnp.float32)
                    / math.sqrt(2 * D_MODEL)).astype(jnp.bfloat16),
        'watt_wv': (jax.random.normal(kg(), (D_MODEL, D_MODEL), jnp.float32)
                    / math.sqrt(2 * D_MODEL)).astype(jnp.bfloat16),
        'watt_b': bias(D_MODEL),
        'cls': dense(D_MODEL, NUM_CLASSES),
    }
    return {'vision': vision, 'language': language, 'alignment': alignment}


# ----------------------------- main ------------------------------------------
if __name__ == "__main__":
    images = jax.random.normal(jax.random.PRNGKey(0), IMG_SHAPE, jnp.float32)
    params = init_params(seed=42)

    fwd = jax.jit(partial(abinet_iter_forward, iter_size=ITER_SIZE))
    a_res, l_res, v_res = fwd(images, params)
    jax.block_until_ready((a_res['logits'], l_res['logits'], v_res['logits']))

    assert a_res['logits'].shape == (IMG_SHAPE[0], MAX_LENGTH, NUM_CLASSES)
    assert l_res['feature'].shape == (IMG_SHAPE[0], MAX_LENGTH, D_MODEL)
    assert v_res['feature'].shape == (IMG_SHAPE[0], MAX_LENGTH, D_MODEL)
    assert bool(jnp.all(jnp.isfinite(a_res['logits'])))
    assert bool(jnp.all(jnp.isfinite(l_res['logits'])))
    assert bool(jnp.all(jnp.isfinite(v_res['logits'])))
    print("KERNEL_OK")
</pallas_src>

<mosaic_0001>
module attributes {stable_mosaic.version = 11 : i64} {
  func.func @_linear_kernel(%arg0: memref<128x27xf32, #tpu.memory_space<vmem>>, %arg1: memref<27x16xbf16, #tpu.memory_space<vmem>>, %arg2: memref<1x16xf32, #tpu.memory_space<vmem>>, %arg3: memref<128x16xf32, #tpu.memory_space<vmem>>) attributes {dimension_semantics = [], scalar_prefetch = 0 : i64, scratch_operands = 0 : i64, tpu.core_type = #tpu.core_type<tc>} {
    %c0 = arith.constant 0 : index
    %c0_0 = arith.constant 0 : index
    %0 = vector.load %arg0[%c0, %c0_0] : memref<128x27xf32, #tpu.memory_space<vmem>>, vector<128x27xf32>
    %1 = arith.truncf %0 : vector<128x27xf32> to vector<128x27xbf16>
    %c0_1 = arith.constant 0 : index
    %c0_2 = arith.constant 0 : index
    %2 = vector.load %arg1[%c0_1, %c0_2] : memref<27x16xbf16, #tpu.memory_space<vmem>>, vector<27x16xbf16>
    %cst = arith.constant dense<0.000000e+00> : vector<128x16xf32>
    %3 = tpu.matmul %1, %2, %cst {dimension_numbers = #tpu.dot_dimension_numbers<[1], [0], [0], [1], [0, 0, 1, 1], [], []>} : vector<128x27xbf16>, vector<27x16xbf16>, vector<128x16xf32> -> vector<128x16xf32>
    %c0_3 = arith.constant 0 : index
    %c0_4 = arith.constant 0 : index
    %4 = vector.load %arg2[%c0_3, %c0_4] : memref<1x16xf32, #tpu.memory_space<vmem>>, vector<1x16xf32>
    %5 = vector.broadcast %4 : vector<1x16xf32> to vector<128x16xf32>
    %6 = arith.addf %3, %5 : vector<128x16xf32>
    %cst_5 = arith.constant 0.000000e+00 : f32
    %7 = vector.broadcast %cst_5 : f32 to vector<128x16xf32>
    %8 = arith.maximumf %6, %7 : vector<128x16xf32>
    %c0_6 = arith.constant 0 : index
    %c0_7 = arith.constant 0 : index
    %9 = vector.load %arg3[%c0_6, %c0_7] : memref<128x16xf32, #tpu.memory_space<vmem>>, vector<128x16xf32>
    tpu.vector_store %arg3[%c0_6, %c0_7], %8 {strides = array<i32>} : memref<128x16xf32, #tpu.memory_space<vmem>>, vector<128x16xf32>,
    return
  }
}

module attributes {stable_mosaic.version = 11 : i64} {
  func.func @_linear_kernel(%arg0: memref<32x144xf32, #tpu.memory_space<vmem>>, %arg1: memref<144x32xbf16, #tpu.memory_space<vmem>>, %arg2: memref<1x32xf32, #tpu.memory_space<vmem>>, %arg3: memref<32x32xf32, #tpu.memory_space<vmem>>) attributes {dimension_semantics = [], scalar_prefetch = 0 : i64, scratch_operands = 0 : i64, tpu.core_type = #tpu.core_type<tc>} {
    %c0 = arith.constant 0 : index
    %c0_0 = arith.constant 0 : index
    %0 = vector.load %arg0[%c0, %c0_0] : memref<32x144xf32, #tpu.memory_space<vmem>>, vector<32x144xf32>
    %1 = arith.truncf %0 : vector<32x144xf32> to vector<32x144xbf16>
    %c0_1 = arith.constant 0 : index
    %c0_2 = arith.constant 0 : index
    %2 = vector.load %arg1[%c0_1, %c0_2] : memref<144x32xbf16, #tpu.memory_space<vmem>>, vector<144x32xbf16>
    %cst = arith.constant dense<0.000000e+00> : vector<32x32xf32>
    %3 = tpu.matmul %1, %2, %cst {dimension_numbers = #tpu.dot_dimension_numbers<[1], [0], [0], [1], [0, 0, 1, 1], [], []>} : vector<32x144xbf16>, vector<144x32xbf16>, vector<32x32xf32> -> vector<32x32xf32>
    %c0_3 = arith.constant 0 : index
    %c0_4 = arith.constant 0 : index
    %4 = vector.load %arg2[%c0_3, %c0_4] : memref<1x32xf32, #tpu.memory_space<vmem>>, vector<1x32xf32>
    %5 = vector.broadcast %4 : vector<1x32xf32> to vector<32x32xf32>
    %6 = arith.addf %3, %5 : vector<32x32xf32>
    %cst_5 = arith.constant 0.000000e+00 : f32
    %7 = vector.broadcast %cst_5 : f32 to vector<32x32xf32>
    %8 = arith.maximumf %6, %7 : vector<32x32xf32>
    %c0_6 = arith.constant 0 : index
    %c0_7 = arith.constant 0 : index
    %9 = vector.load %arg3[%c0_6, %c0_7] : memref<32x32xf32, #tpu.memory_space<vmem>>, vector<32x32xf32>
    tpu.vector_store %arg3[%c0_6, %c0_7], %8 {strides = array<i32>} : memref<32x32xf32, #tpu.memory_space<vmem>>, vector<32x32xf32>,
    return
  }
}

module attributes {stable_mosaic.version = 11 : i64} {
  func.func @_tlayer_kernel(%arg0: i32, %arg1: memref<1x16x32xf32, #tpu.memory_space<vmem>>, %arg2: memref<32x96xbf16, #tpu.memory_space<vmem>>, %arg3: memref<1x96xf32, #tpu.memory_space<vmem>>, %arg4: memref<32x32xbf16, #tpu.memory_space<vmem>>, %arg5: memref<1x32xf32, #tpu.memory_space<vmem>>, %arg6: memref<1x32xf32, #tpu.memory_space<vmem>>, %arg7: memref<1x32xf32, #tpu.memory_space<vmem>>, %arg8: memref<32x64xbf16, #tpu.memory_space<vmem>>, %arg9: memref<1x64xf32, #tpu.memory_space<vmem>>, %arg10: memref<64x32xbf16, #tpu.memory_space<vmem>>, %arg11: memref<1x32xf32, #tpu.memory_space<vmem>>, %arg12: memref<1x32xf32, #tpu.memory_space<vmem>>, %arg13: memref<1x32xf32, #tpu.memory_space<vmem>>, %arg14: memref<1x16x32xf32, #tpu.memory_space<vmem>>) attributes {dimension_semantics = [#tpu.dimension_semantics<parallel>], iteration_bounds = array<i64: 2>, scalar_prefetch = 0 : i64, scratch_operands = 0 : i64, tpu.core_type = #tpu.core_type<tc>, window_params = [{transform_indices = @transform_0, window_bounds = array<i64: 1, 16, 32>}, {pipeline_mode = #tpu.pipeline_mode<synchronous>, transform_indices = @transform_1, window_bounds = array<i64: 32, 96>}, {pipeline_mode = #tpu.pipeline_mode<synchronous>, transform_indices = @transform_2, window_bounds = array<i64: 1, 96>}, {pipeline_mode = #tpu.pipeline_mode<synchronous>, transform_indices = @transform_3, window_bounds = array<i64: 32, 32>}, {pipeline_mode = #tpu.pipeline_mode<synchronous>, transform_indices = @transform_4, window_bounds = array<i64: 1, 32>}, {pipeline_mode = #tpu.pipeline_mode<synchronous>, transform_indices = @transform_5, window_bounds = array<i64: 1, 32>}, {pipeline_mode = #tpu.pipeline_mode<synchronous>, transform_indices = @transform_6, window_bounds = array<i64: 1, 32>}, {pipeline_mode = #tpu.pipeline_mode<synchronous>, transform_indices = @transform_7, window_bounds = array<i64: 32, 64>}, {pipeline_mode = #tpu.pipeline_mode<synchronous>, transform_indices = @transform_8, window_bounds = array<i64: 1, 64>}, {pipeline_mode = #tpu.pipeline_mode<synchronous>, transform_indices = @transform_9, window_bounds = array<i64: 64, 32>}, {pipeline_mode = #tpu.pipeline_mode<synchronous>, transform_indices = @transform_10, window_bounds = array<i64: 1, 32>}, {pipeline_mode = #tpu.pipeline_mode<synchronous>, transform_indices = @transform_11, window_bounds = array<i64: 1, 32>}, {pipeline_mode = #tpu.pipeline_mode<synchronous>, transform_indices = @transform_12, window_bounds = array<i64: 1, 32>}, {transform_indices = @transform_13, window_bounds = array<i64: 1, 16, 32>}]} {
    %c0 = arith.constant 0 : index
    %c0_0 = arith.constant 0 : index
    %c0_1 = arith.constant 0 : index
    %0 = vector.load %arg1[%c0, %c0_0, %c0_1] : memref<1x16x32xf32, #tpu.memory_space<vmem>>, vector<1x16x32xf32>
    %1 = vector.shape_cast %0 : vector<1x16x32xf32> to vector<16x32xf32>
    %c0_2 = arith.constant 0 : index
    %c0_3 = arith.constant 0 : index
    %2 = vector.load %arg2[%c0_2, %c0_3] : memref<32x96xbf16, #tpu.memory_space<vmem>>, vector<32x96xbf16>
    %c0_4 = arith.constant 0 : index
    %c0_5 = arith.constant 0 : index
    %3 = vector.load %arg3[%c0_4, %c0_5] : memref<1x96xf32, #tpu.memory_space<vmem>>, vector<1x96xf32>
    %4 = arith.truncf %1 : vector<16x32xf32> to vector<16x32xbf16>
    %cst = arith.constant dense<0.000000e+00> : vector<16x96xf32>
    %5 = tpu.matmul %4, %2, %cst {dimension_numbers = #tpu.dot_dimension_numbers<[1], [0], [0], [1], [0, 0, 1, 1], [], []>} : vector<16x32xbf16>, vector<32x96xbf16>, vector<16x96xf32> -> vector<16x96xf32>
    %6 = vector.broadcast %3 : vector<1x96xf32> to vector<16x96xf32>
    %7 = arith.addf %5, %6 : vector<16x96xf32>
    %8 = vector.extract_strided_slice %7 {offsets = [0, 0], sizes = [16, 32], strides = [1, 1]} : vector<16x96xf32> to vector<16x32xf32>
    %9 = vector.extract_strided_slice %7 {offsets = [0, 32], sizes = [16, 32], strides = [1, 1]} : vector<16x96xf32> to vector<16x32xf32>
    %10 = vector.extract_strided_slice %7 {offsets = [0, 64], sizes = [16, 32], strides = [1, 1]} : vector<16x96xf32> to vector<16x32xf32>
    %11 = vector.extract_strided_slice %8 {offsets = [0, 0], sizes = [16, 8], strides = [1, 1]} : vector<16x32xf32> to vector<16x8xf32>
    %12 = arith.truncf %11 : vector<16x8xf32> to vector<16x8xbf16>
    %13 = vector.extract_strided_slice %9 {offsets = [0, 0], sizes = [16, 8], strides = [1, 1]} : vector<16x32xf32> to vector<16x8xf32>
    %14 = arith.truncf %13 : vector<16x8xf32> to vector<16x8xbf16>
    %15 = vector.extract_strided_slice %10 {offsets = [0, 0], sizes = [16, 8], strides = [1, 1]} : vector<16x32xf32> to vector<16x8xf32>
    %16 = arith.truncf %15 : vector<16x8xf32> to vector<16x8xbf16>
    %cst_6 = arith.constant dense<0.000000e+00> : vector<16x16xf32>
    %17 = tpu.matmul %12, %14, %cst_6 {dimension_numbers = #tpu.dot_dimension_numbers<[1], [1], [0], [0], [0, 0, 1, 0], [], []>} : vector<16x8xbf16>, vector<16x8xbf16>, vector<16x16xf32> -> vector<16x16xf32>
    %cst_7 = arith.constant 0.353553385 : f32
    %18 = vector.broadcast %cst_7 : f32 to vector<16x16xf32>
    %19 = arith.mulf %17, %18 : vector<16x16xf32>
    %cst_8 = arith.constant dense<0xFF800000> : vector<16xf32>
    %20 = vector.multi_reduction <maximumf>, %19, %cst_8 [1] : vector<16x16xf32> to vector<16xf32>
    %21 = vector.shape_cast %20 : vector<16xf32> to vector<16x1xf32>
    %22 = vector.broadcast %21 : vector<16x1xf32> to vector<16x16xf32>
    %23 = arith.subf %19, %22 : vector<16x16xf32>
    %24 = math.exp %23 : vector<16x16xf32>
    %cst_9 = arith.constant dense<0.000000e+00> : vector<16xf32>
    %25 = vector.multi_reduction <add>, %24, %cst_9 [1] : vector<16x16xf32> to vector<16xf32>
    %26 = vector.shape_cast %25 : vector<16xf32> to vector<16x1xf32>
    %27 = tpu.reciprocal %26 {approx = true} : vector<16x1xf32> -> vector<16x1xf32>
    %28 = vector.broadcast %27 : vector<16x1xf32> to vector<16x16xf32>
    %29 = arith.mulf %24, %28 : vector<16x16xf32>
    %30 = arith.truncf %29 : vector<16x16xf32> to vector<16x16xbf16>
    %cst_10 = arith.constant dense<0.000000e+00> : vector<16x8xf32>
    %31 = tpu.matmul %30, %16, %cst_10 {dimension_numbers = #tpu.dot_dimension_numbers<[1], [0], [0], [1], [0, 0, 1, 1], [], []>} : vector<16x16xbf16>, vector<16x8xbf16>, vector<16x8xf32> -> vector<16x8xf32>
    %32 = vector.extract_strided_slice %8 {offsets = [0, 8], sizes = [16, 8], strides = [1, 1]} : vector<16x32xf32> to vector<16x8xf32>
    %33 = arith.truncf %32 : vector<16x8xf32> to vector<16x8xbf16>
    %34 = vector.extract_strided_slice %9 {offsets = [0, 8], sizes = [16, 8], strides = [1, 1]} : vector<16x32xf32> to vector<16x8xf32>
    %35 = arith.truncf %34 : vector<16x8xf32> to vector<16x8xbf16>
    %36 = vector.extract_strided_slice %10 {offsets = [0, 8], sizes = [16, 8], strides = [1, 1]} : vector<16x32xf32> to vector<16x8xf32>
    %37 = arith.truncf %36 : vector<16x8xf32> to vector<16x8xbf16>
    %cst_11 = arith.constant dense<0.000000e+00> : vector<16x16xf32>
    %38 = tpu.matmul %33, %35, %cst_11 {dimension_numbers = #tpu.dot_dimension_numbers<[1], [1], [0], [0], [0, 0, 1, 0], [], []>} : vector<16x8xbf16>, vector<16x8xbf16>, vector<16x16xf32> -> vector<16x16xf32>
    %cst_12 = arith.constant 0.353553385 : f32
    %39 = vector.broadcast %cst_12 : f32 to vector<16x16xf32>
    %40 = arith.mulf %38, %39 : vector<16x16xf32>
    %cst_13 = arith.constant dense<0xFF800000> : vector<16xf32>
    %41 = vector.multi_reduction <maximumf>, %40, %cst_13 [1] : vector<16x16xf32> to vector<16xf32>
    %42 = vector.shape_cast %41 : vector<16xf32> to vector<16x1xf32>
    %43 = vector.broadcast %42 : vector<16x1xf32> to vector<16x16xf32>
    %44 = arith.subf %40, %43 : vector<16x16xf32>
    %45 = math.exp %44 : vector<16x16xf32>
    %cst_14 = arith.constant dense<0.000000e+00> : vector<16xf32>
    %46 = vector.multi_reduction <add>, %45, %cst_14 [1] : vector<16x16xf32> to vector<16xf32>
    %47 = vector.shape_cast %46 : vector<16xf32> to vector<16x1xf32>
    %48 = tpu.reciprocal %47 {approx = true} : vector<16x1xf32> -> vector<16x1xf32>
    %49 = vector.broadcast %48 : vector<16x1xf32> to vector<16x16xf32>
    %50 = arith.mulf %45, %49 : vector<16x16xf32>
    %51 = arith.truncf %50 : vector<16x16xf32> to vector<16x16xbf16>
    %cst_15 = arith.constant dense<0.000000e+00> : vector<16x8xf32>
    %52 = tpu.matmul %51, %37, %cst_15 {dimension_numbers = #tpu.dot_dimension_numbers<[1], [0], [0], [1], [0, 0, 1, 1], [], []>} : vector<16x16xbf16>, vector<16x8xbf16>, vector<16x8xf32> -> vector<16x8xf32>
    %53 = vector.extract_strided_slice %8 {offsets = [0, 16], sizes = [16, 8], strides = [1, 1]} : vector<16x32xf32> to vector<16x8xf32>
    %54 = arith.truncf %53 : vector<16x8xf32> to vector<16x8xbf16>
    %55 = vector.extract_strided_slice %9 {offsets = [0, 16], sizes = [16, 8], strides = [1, 1]} : vector<16x32xf32> to vector<16x8xf32>
    %56 = arith.truncf %55 : vector<16x8xf32> to vector<16x8xbf16>
    %57 = vector.extract_strided_slice %10 {offsets = [0, 16], sizes = [16, 8], strides = [1, 1]} : vector<16x32xf32> to vector<16x8xf32>
    %58 = arith.truncf %57 : vector<16x8xf32> to vector<16x8xbf16>
    %cst_16 = arith.constant dense<0.000000e+00> : vector<16x16xf32>
    %59 = tpu.matmul %54, %56, %cst_16 {dimension_numbers = #tpu.dot_dimension_numbers<[1], [1], [0], [0], [0, 0, 1, 0], [], []>} : vector<16x8xbf16>, vector<16x8xbf16>, vector<16x16xf32> -> vector<16x16xf32>
    %cst_17 = arith.constant 0.353553385 : f32
    %60 = vector.broadcast %cst_17 : f32 to vector<16x16xf32>
    %61 = arith.mulf %59, %60 : vector<16x16xf32>
    %cst_18 = arith.constant dense<0xFF800000> : vector<16xf32>
    %62 = vector.multi_reduction <maximumf>, %61, %cst_18 [1] : vector<16x16xf32> to vector<16xf32>
    %63 = vector.shape_cast %62 : vector<16xf32> to vector<16x1xf32>
    %64 = vector.broadcast %63 : vector<16x1xf32> to vector<16x16xf32>
    %65 = arith.subf %61, %64 : vector<16x16xf32>
    %66 = math.exp %65 : vector<16x16xf32>
    %cst_19 = arith.constant dense<0.000000e+00> : vector<16xf32>
    %67 = vector.multi_reduction <add>, %66, %cst_19 [1] : vector<16x16xf32> to vector<16xf32>
    %68 = vector.shape_cast %67 : vector<16xf32> to vector<16x1xf32>
    %69 = tpu.reciprocal %68 {approx = true} : vector<16x1xf32> -> vector<16x1xf32>
    %70 = vector.broadcast %69 : vector<16x1xf32> to vector<16x16xf32>
    %71 = arith.mulf %66, %70 : vector<16x16xf32>
    %72 = arith.truncf %71 : vector<16x16xf32> to vector<16x16xbf16>
    %cst_20 = arith.constant dense<0.000000e+00> : vector<16x8xf32>
    %73 = tpu.matmul %72, %58, %cst_20 {dimension_numbers = #tpu.dot_dimension_numbers<[1], [0], [0], [1], [0, 0, 1, 1], [], []>} : vector<16x16xbf16>, vector<16x8xbf16>, vector<16x8xf32> -> vector<16x8xf32>
    %74 = vector.extract_strided_slice %8 {offsets = [0, 24], sizes = [16, 8], strides = [1, 1]} : vector<16x32xf32> to vector<16x8xf32>
    %75 = arith.truncf %74 : vector<16x8xf32> to vector<16x8xbf16>
    %76 = vector.extract_strided_slice %9 {offsets = [0, 24], sizes = [16, 8], strides = [1, 1]} : vector<16x32xf32> to vector<16x8xf32>
    %77 = arith.truncf %76 : vector<16x8xf32> to vector<16x8xbf16>
    %78 = vector.extract_strided_slice %10 {offsets = [0, 24], sizes = [16, 8], strides = [1, 1]} : vector<16x32xf32> to vector<16x8xf32>
    %79 = arith.truncf %78 : vector<16x8xf32> to vector<16x8xbf16>
    %cst_21 = arith.constant dense<0.000000e+00> : vector<16x16xf32>
    %80 = tpu.matmul %75, %77, %cst_21 {dimension_numbers = #tpu.dot_dimension_numbers<[1], [1], [0], [0], [0, 0, 1, 0], [], []>} : vector<16x8xbf16>, vector<16x8xbf16>, vector<16x16xf32> -> vector<16x16xf32>
    %cst_22 = arith.constant 0.353553385 : f32
    %81 = vector.broadcast %cst_22 : f32 to vector<16x16xf32>
    %82 = arith.mulf %80, %81 : vector<16x16xf32>
    %cst_23 = arith.constant dense<0xFF800000> : vector<16xf32>
    %83 = vector.multi_reduction <maximumf>, %82, %cst_23 [1] : vector<16x16xf32> to vector<16xf32>
    %84 = vector.shape_cast %83 : vector<16xf32> to vector<16x1xf32>
    %85 = vector.broadcast %84 : vector<16x1xf32> to vector<16x16xf32>
    %86 = arith.subf %82, %85 : vector<16x16xf32>
    %87 = math.exp %86 : vector<16x16xf32>
    %cst_24 = arith.constant dense<0.000000e+00> : vector<16xf32>
    %88 = vector.multi_reduction <add>, %87, %cst_24 [1] : vector<16x16xf32> to vector<16xf32>
    %89 = vector.shape_cast %88 : vector<16xf32> to vector<16x1xf32>
    %90 = tpu.reciprocal %89 {approx = true} : vector<16x1xf32> -> vector<16x1xf32>
    %91 = vector.broadcast %90 : vector<16x1xf32> to vector<16x16xf32>
    %92 = arith.mulf %87, %91 : vector<16x16xf32>
    %93 = arith.truncf %92 : vector<16x16xf32> to vector<16x16xbf16>
    %cst_25 = arith.constant dense<0.000000e+00> : vector<16x8xf32>
    %94 = tpu.matmul %93, %79, %cst_25 {dimension_numbers = #tpu.dot_dimension_numbers<[1], [0], [0], [1], [0, 0, 1, 1], [], []>} : vector<16x16xbf16>, vector<16x8xbf16>, vector<16x8xf32> -> vector<16x8xf32>
    %95 = tpu.concatenate %31, %52, %73, %94 in 1 : vector<16x8xf32>, vector<16x8xf32>, vector<16x8xf32>, vector<16x8xf32> -> vector<16x32xf32>
    %96 = arith.truncf %95 : vector<16x32xf32> to vector<16x32xbf16>
    %c0_26 = arith.constant 0 : index
    %c0_27 = arith.constant 0 : index
    %97 = vector.load %arg4[%c0_26, %c0_27] : memref<32x32xbf16, #tpu.memory_space<vmem>>, vector<32x32xbf16>
    %cst_28 = arith.constant dense<0.000000e+00> : vector<16x32xf32>
    %98 = tpu.matmul %96, %97, %cst_28 {dimension_numbers = #tpu.dot_dimension_numbers<[1], [0], [0], [1], [0, 0, 1, 1], [], []>} : vector<16x32xbf16>, vector<32x32xbf16>, vector<16x32xf32> -> vector<16x32xf32>
    %c0_29 = arith.constant 0 : index
    %c0_30 = arith.constant 0 : index
    %99 = vector.load %arg5[%c0_29, %c0_30] : memref<1x32xf32, #tpu.memory_space<vmem>>, vector<1x32xf32>
    %100 = vector.broadcast %99 : vector<1x32xf32> to vector<16x32xf32>
    %101 = arith.addf %98, %100 : vector<16x32xf32>
    %102 = arith.addf %1, %101 : vector<16x32xf32>
    %cst_31 = arith.constant dense<0.000000e+00> : vector<16xf32>
    %103 = vector.multi_reduction <add>, %102, %cst_31 [1] : vector<16x32xf32> to vector<16xf32>
    %104 = vector.shape_cast %103 : vector<16xf32> to vector<16x1xf32>
    %cst_32 = arith.constant 3.200000e+01 : f32
    %105 = vector.broadcast %cst_32 : f32 to vector<16x1xf32>
    %106 = arith.divf %104, %105 : vector<16x1xf32>
    %107 = vector.broadcast %106 : vector<16x1xf32> to vector<16x32xf32>
    %108 = arith.subf %102, %107 : vector<16x32xf32>
    %109 = arith.mulf %108, %108 : vector<16x32xf32>
    %cst_33 = arith.constant dense<0.000000e+00> : vector<16xf32>
    %110 = vector.multi_reduction <add>, %109, %cst_33 [1] : vector<16x32xf32> to vector<16xf32>
    %111 = vector.shape_cast %110 : vector<16xf32> to vector<16x1xf32>
    %cst_34 = arith.constant 3.200000e+01 : f32
    %112 = vector.broadcast %cst_34 : f32 to vector<16x1xf32>
    %113 = arith.divf %111, %112 : vector<16x1xf32>
    %cst_35 = arith.constant 9.99999974E-6 : f32
    %114 = vector.broadcast %cst_35 : f32 to vector<16x1xf32>
    %115 = arith.addf %113, %114 : vector<16x1xf32>
    %116 = math.rsqrt %115 : vector<16x1xf32>
    %117 = vector.broadcast %116 : vector<16x1xf32> to vector<16x32xf32>
    %118 = arith.mulf %108, %117 : vector<16x32xf32>
    %c0_36 = arith.constant 0 : index
    %c0_37 = arith.constant 0 : index
    %119 = vector.load %arg6[%c0_36, %c0_37] : memref<1x32xf32, #tpu.memory_space<vmem>>, vector<1x32xf32>
    %120 = vector.broadcast %119 : vector<1x32xf32> to vector<16x32xf32>
    %121 = arith.mulf %118, %120 : vector<16x32xf32>
    %c0_38 = arith.constant 0 : index
    %c0_39 = arith.constant 0 : index
    %122 = vector.load %arg7[%c0_38, %c0_39] : memref<1x32xf32, #tpu.memory_space<vmem>>, vector<1x32xf32>
    %123 = vector.broadcast %122 : vector<1x32xf32> to vector<16x32xf32>
    %124 = arith.addf %121, %123 : vector<16x32xf32>
    %125 = arith.truncf %124 : vector<16x32xf32> to vector<16x32xbf16>
    %c0_40 = arith.constant 0 : index
    %c0_41 = arith.constant 0 : index
    %126 = vector.load %arg8[%c0_40, %c0_41] : memref<32x64xbf16, #tpu.memory_space<vmem>>, vector<32x64xbf16>
    %cst_42 = arith.constant dense<0.000000e+00> : vector<16x64xf32>
    %127 = tpu.matmul %125, %126, %cst_42 {dimension_numbers = #tpu.dot_dimension_numbers<[1], [0], [0], [1], [0, 0, 1, 1], [], []>} : vector<16x32xbf16>, vector<32x64xbf16>, vector<16x64xf32> -> vector<16x64xf32>
    %c0_43 = arith.constant 0 : index
    %c0_44 = arith.constant 0 : index
    %128 = vector.load %arg9[%c0_43, %c0_44] : memref<1x64xf32, #tpu.memory_space<vmem>>, vector<1x64xf32>
    %129 = vector.broadcast %128 : vector<1x64xf32> to vector<16x64xf32>
    %130 = arith.addf %127, %129 : vector<16x64xf32>
    %cst_45 = arith.constant 0.000000e+00 : f32
    %131 = vector.broadcast %cst_45 : f32 to vector<16x64xf32>
    %132 = arith.maximumf %130, %131 : vector<16x64xf32>
    %133 = arith.truncf %132 : vector<16x64xf32> to vector<16x64xbf16>
    %c0_46 = arith.constant 0 : index
    %c0_47 = arith.constant 0 : index
    %134 = vector.load %arg10[%c0_46, %c0_47] : memref<64x32xbf16, #tpu.memory_space<vmem>>, vector<64x32xbf16>
    %cst_48 = arith.constant dense<0.000000e+00> : vector<16x32xf32>
    %135 = tpu.matmul %133, %134, %cst_48 {dimension_numbers = #tpu.dot_dimension_numbers<[1], [0], [0], [1], [0, 0, 1, 1], [], []>} : vector<16x64xbf16>, vector<64x32xbf16>, vector<16x32xf32> -> vector<16x32xf32>
    %c0_49 = arith.constant 0 : index
    %c0_50 = arith.constant 0 : index
    %136 = vector.load %arg11[%c0_49, %c0_50] : memref<1x32xf32, #tpu.memory_space<vmem>>, vector<1x32xf32>
    %137 = vector.broadcast %136 : vector<1x32xf32> to vector<16x32xf32>
    %138 = arith.addf %135, %137 : vector<16x32xf32>
    %139 = arith.addf %124, %138 : vector<16x32xf32>
    %cst_51 = arith.constant dense<0.000000e+00> : vector<16xf32>
    %140 = vector.multi_reduction <add>, %139, %cst_51 [1] : vector<16x32xf32> to vector<16xf32>
    %141 = vector.shape_cast %140 : vector<16xf32> to vector<16x1xf32>
    %cst_52 = arith.constant 3.200000e+01 : f32
    %142 = vector.broadcast %cst_52 : f32 to vector<16x1xf32>
    %143 = arith.divf %141, %142 : vector<16x1xf32>
    %144 = vector.broadcast %143 : vector<16x1xf32> to vector<16x32xf32>
    %145 = arith.subf %139, %144 : vector<16x32xf32>
    %146 = arith.mulf %145, %145 : vector<16x32xf32>
    %cst_53 = arith.constant dense<0.000000e+00> : vector<16xf32>
    %147 = vector.multi_reduction <add>, %146, %cst_53 [1] : vector<16x32xf32> to vector<16xf32>
    %148 = vector.shape_cast %147 : vector<16xf32> to vector<16x1xf32>
    %cst_54 = arith.constant 3.200000e+01 : f32
    %149 = vector.broadcast %cst_54 : f32 to vector<16x1xf32>
    %150 = arith.divf %148, %149 : vector<16x1xf32>
    %cst_55 = arith.constant 9.99999974E-6 : f32
    %151 = vector.broadcast %cst_55 : f32 to vector<16x1xf32>
    %152 = arith.addf %150, %151 : vector<16x1xf32>
    %153 = math.rsqrt %152 : vector<16x1xf32>
    %154 = vector.broadcast %153 : vector<16x1xf32> to vector<16x32xf32>
    %155 = arith.mulf %145, %154 : vector<16x32xf32>
    %c0_56 = arith.constant 0 : index
    %c0_57 = arith.constant 0 : index
    %156 = vector.load %arg12[%c0_56, %c0_57] : memref<1x32xf32, #tpu.memory_space<vmem>>, vector<1x32xf32>
    %157 = vector.broadcast %156 : vector<1x32xf32> to vector<16x32xf32>
    %158 = arith.mulf %155, %157 : vector<16x32xf32>
    %c0_58 = arith.constant 0 : index
    %c0_59 = arith.constant 0 : index
    %159 = vector.load %arg13[%c0_58, %c0_59] : memref<1x32xf32, #tpu.memory_space<vmem>>, vector<1x32xf32>
    %160 = vector.broadcast %159 : vector<1x32xf32> to vector<16x32xf32>
    %161 = arith.addf %158, %160 : vector<16x32xf32>
    %c0_60 = arith.constant 0 : index
    %c0_61 = arith.constant 0 : index
    %c0_62 = arith.constant 0 : index
    %162 = vector.load %arg14[%c0_60, %c0_61, %c0_62] : memref<1x16x32xf32, #tpu.memory_space<vmem>>, vector<1x16x32xf32>
    %163 = vector.shape_cast %162 : vector<1x16x32xf32> to vector<16x32xf32>
    %164 = vector.shape_cast %161 : vector<16x32xf32> to vector<1x16x32xf32>
    tpu.vector_store %arg14[%c0_60, %c0_61, %c0_62], %164 {strides = array<i32>} : memref<1x16x32xf32, #tpu.memory_space<vmem>>, vector<1x16x32xf32>,
    return
  }
  func.func @transform_0(%arg0: i32) -> (i32, i32, i32) {
    %c0_i32 = arith.constant 0 : i32
    %c0_i32_0 = arith.constant 0 : i32
    %c0_i32_1 = arith.constant 0 : i32
    return %arg0, %c0_i32, %c0_i32_0 : i32, i32, i32
  }
  func.func @transform_1(%arg0: i32) -> (i32, i32) {
    %c0_i32 = arith.constant 0 : i32
    %c0_i32_0 = arith.constant 0 : i32
    %c0_i32_1 = arith.constant 0 : i32
    return %c0_i32, %c0_i32_0 : i32, i32
  }
  func.func @transform_2(%arg0: i32) -> (i32, i32) {
    %c0_i32 = arith.constant 0 : i32
    %c0_i32_0 = arith.constant 0 : i32
    %c0_i32_1 = arith.constant 0 : i32
    return %c0_i32, %c0_i32_0 : i32, i32
  }
  func.func @transform_3(%arg0: i32) -> (i32, i32) {
    %c0_i32 = arith.constant 0 : i32
    %c0_i32_0 = arith.constant 0 : i32
    %c0_i32_1 = arith.constant 0 : i32
    return %c0_i32, %c0_i32_0 : i32, i32
  }
  func.func @transform_4(%arg0: i32) -> (i32, i32) {
    %c0_i32 = arith.constant 0 : i32
    %c0_i32_0 = arith.constant 0 : i32
    %c0_i32_1 = arith.constant 0 : i32
    return %c0_i32, %c0_i32_0 : i32, i32
  }
  func.func @transform_5(%arg0: i32) -> (i32, i32) {
    %c0_i32 = arith.constant 0 : i32
    %c0_i32_0 = arith.constant 0 : i32
    %c0_i32_1 = arith.constant 0 : i32
    return %c0_i32, %c0_i32_0 : i32, i32
  }
  func.func @transform_6(%arg0: i32) -> (i32, i32) {
    %c0_i32 = arith.constant 0 : i32
    %c0_i32_0 = arith.constant 0 : i32
    %c0_i32_1 = arith.constant 0 : i32
    return %c0_i32, %c0_i32_0 : i32, i32
  }
  func.func @transform_7(%arg0: i32) -> (i32, i32) {
    %c0_i32 = arith.constant 0 : i32
    %c0_i32_0 = arith.constant 0 : i32
    %c0_i32_1 = arith.constant 0 : i32
    return %c0_i32, %c0_i32_0 : i32, i32
  }
  func.func @transform_8(%arg0: i32) -> (i32, i32) {
    %c0_i32 = arith.constant 0 : i32
    %c0_i32_0 = arith.constant 0 : i32
    %c0_i32_1 = arith.constant 0 : i32
    return %c0_i32, %c0_i32_0 : i32, i32
  }
  func.func @transform_9(%arg0: i32) -> (i32, i32) {
    %c0_i32 = arith.constant 0 : i32
    %c0_i32_0 = arith.constant 0 : i32
    %c0_i32_1 = arith.constant 0 : i32
    return %c0_i32, %c0_i32_0 : i32, i32
  }
  func.func @transform_10(%arg0: i32) -> (i32, i32) {
    %c0_i32 = arith.constant 0 : i32
    %c0_i32_0 = arith.constant 0 : i32
    %c0_i32_1 = arith.constant 0 : i32
    return %c0_i32, %c0_i32_0 : i32, i32
  }
  func.func @transform_11(%arg0: i32) -> (i32, i32) {
    %c0_i32 = arith.constant 0 : i32
    %c0_i32_0 = arith.constant 0 : i32
    %c0_i32_1 = arith.constant 0 : i32
    return %c0_i32, %c0_i32_0 : i32, i32
  }
  func.func @transform_12(%arg0: i32) -> (i32, i32) {
    %c0_i32 = arith.constant 0 : i32
    %c0_i32_0 = arith.constant 0 : i32
    %c0_i32_1 = arith.constant 0 : i32
    return %c0_i32, %c0_i32_0 : i32, i32
  }
  func.func @transform_13(%arg0: i32) -> (i32, i32, i32) {
    %c0_i32 = arith.constant 0 : i32
    %c0_i32_0 = arith.constant 0 : i32
    %c0_i32_1 = arith.constant 0 : i32
    return %arg0, %c0_i32, %c0_i32_0 : i32, i32, i32
  }
}

module attributes {stable_mosaic.version = 11 : i64} {
  func.func @_linear_kernel(%arg0: memref<16x288xf32, #tpu.memory_space<vmem>>, %arg1: memref<288x16xbf16, #tpu.memory_space<vmem>>, %arg2: memref<1x16xf32, #tpu.memory_space<vmem>>, %arg3: memref<16x16xf32, #tpu.memory_space<vmem>>) attributes {dimension_semantics = [], scalar_prefetch = 0 : i64, scratch_operands = 0 : i64, tpu.core_type = #tpu.core_type<tc>} {
    %c0 = arith.constant 0 : index
    %c0_0 = arith.constant 0 : index
    %0 = vector.load %arg0[%c0, %c0_0] : memref<16x288xf32, #tpu.memory_space<vmem>>, vector<16x288xf32>
    %1 = arith.truncf %0 : vector<16x288xf32> to vector<16x288xbf16>
    %c0_1 = arith.constant 0 : index
    %c0_2 = arith.constant 0 : index
    %2 = vector.load %arg1[%c0_1, %c0_2] : memref<288x16xbf16, #tpu.memory_space<vmem>>, vector<288x16xbf16>
    %cst = arith.constant dense<0.000000e+00> : vector<16x16xf32>
    %3 = tpu.matmul %1, %2, %cst {dimension_numbers = #tpu.dot_dimension_numbers<[1], [0], [0], [1], [0, 0, 1, 1], [], []>} : vector<16x288xbf16>, vector<288x16xbf16>, vector<16x16xf32> -> vector<16x16xf32>
    %c0_3 = arith.constant 0 : index
    %c0_4 = arith.constant 0 : index
    %4 = vector.load %arg2[%c0_3, %c0_4] : memref<1x16xf32, #tpu.memory_space<vmem>>, vector<1x16xf32>
    %5 = vector.broadcast %4 : vector<1x16xf32> to vector<16x16xf32>
    %6 = arith.addf %3, %5 : vector<16x16xf32>
    %cst_5 = arith.constant 0.000000e+00 : f32
    %7 = vector.broadcast %cst_5 : f32 to vector<16x16xf32>
    %8 = arith.maximumf %6, %7 : vector<16x16xf32>
    %c0_6 = arith.constant 0 : index
    %c0_7 = arith.constant 0 : index
    %9 = vector.load %arg3[%c0_6, %c0_7] : memref<16x16xf32, #tpu.memory_space<vmem>>, vector<16x16xf32>
    tpu.vector_store %arg3[%c0_6, %c0_7], %8 {strides = array<i32>} : memref<16x16xf32, #tpu.memory_space<vmem>>, vector<16x16xf32>,
    return
  }
}

module attributes {stable_mosaic.version = 11 : i64} {
  func.func @_linear_kernel(%arg0: memref<16x144xf32, #tpu.memory_space<vmem>>, %arg1: memref<144x16xbf16, #tpu.memory_space<vmem>>, %arg2: memref<1x16xf32, #tpu.memory_space<vmem>>, %arg3: memref<16x16xf32, #tpu.memory_space<vmem>>) attributes {dimension_semantics = [], scalar_prefetch = 0 : i64, scratch_operands = 0 : i64, tpu.core_type = #tpu.core_type<tc>} {
    %c0 = arith.constant 0 : index
    %c0_0 = arith.constant 0 : index
    %0 = vector.load %arg0[%c0, %c0_0] : memref<16x144xf32, #tpu.memory_space<vmem>>, vector<16x144xf32>
    %1 = arith.truncf %0 : vector<16x144xf32> to vector<16x144xbf16>
    %c0_1 = arith.constant 0 : index
    %c0_2 = arith.constant 0 : index
    %2 = vector.load %arg1[%c0_1, %c0_2] : memref<144x16xbf16, #tpu.memory_space<vmem>>, vector<144x16xbf16>
    %cst = arith.constant dense<0.000000e+00> : vector<16x16xf32>
    %3 = tpu.matmul %1, %2, %cst {dimension_numbers = #tpu.dot_dimension_numbers<[1], [0], [0], [1], [0, 0, 1, 1], [], []>} : vector<16x144xbf16>, vector<144x16xbf16>, vector<16x16xf32> -> vector<16x16xf32>
    %c0_3 = arith.constant 0 : index
    %c0_4 = arith.constant 0 : index
    %4 = vector.load %arg2[%c0_3, %c0_4] : memref<1x16xf32, #tpu.memory_space<vmem>>, vector<1x16xf32>
    %5 = vector.broadcast %4 : vector<1x16xf32> to vector<16x16xf32>
    %6 = arith.addf %3, %5 : vector<16x16xf32>
    %cst_5 = arith.constant 0.000000e+00 : f32
    %7 = vector.broadcast %cst_5 : f32 to vector<16x16xf32>
    %8 = arith.maximumf %6, %7 : vector<16x16xf32>
    %c0_6 = arith.constant 0 : index
    %c0_7 = arith.constant 0 : index
    %9 = vector.load %arg3[%c0_6, %c0_7] : memref<16x16xf32, #tpu.memory_space<vmem>>, vector<16x16xf32>
    tpu.vector_store %arg3[%c0_6, %c0_7], %8 {strides = array<i32>} : memref<16x16xf32, #tpu.memory_space<vmem>>, vector<16x16xf32>,
    return
  }
}

module attributes {stable_mosaic.version = 11 : i64} {
  func.func @_linear_kernel(%arg0: memref<4x144xf32, #tpu.memory_space<vmem>>, %arg1: memref<144x16xbf16, #tpu.memory_space<vmem>>, %arg2: memref<1x16xf32, #tpu.memory_space<vmem>>, %arg3: memref<4x16xf32, #tpu.memory_space<vmem>>) attributes {dimension_semantics = [], scalar_prefetch = 0 : i64, scratch_operands = 0 : i64, tpu.core_type = #tpu.core_type<tc>} {
    %c0 = arith.constant 0 : index
    %c0_0 = arith.constant 0 : index
    %0 = vector.load %arg0[%c0, %c0_0] : memref<4x144xf32, #tpu.memory_space<vmem>>, vector<4x144xf32>
    %1 = arith.truncf %0 : vector<4x144xf32> to vector<4x144xbf16>
    %c0_1 = arith.constant 0 : index
    %c0_2 = arith.constant 0 : index
    %2 = vector.load %arg1[%c0_1, %c0_2] : memref<144x16xbf16, #tpu.memory_space<vmem>>, vector<144x16xbf16>
    %cst = arith.constant dense<0.000000e+00> : vector<4x16xf32>
    %3 = tpu.matmul %1, %2, %cst {dimension_numbers = #tpu.dot_dimension_numbers<[1], [0], [0], [1], [0, 0, 1, 1], [], []>} : vector<4x144xbf16>, vector<144x16xbf16>, vector<4x16xf32> -> vector<4x16xf32>
    %c0_3 = arith.constant 0 : index
    %c0_4 = arith.constant 0 : index
    %4 = vector.load %arg2[%c0_3, %c0_4] : memref<1x16xf32, #tpu.memory_space<vmem>>, vector<1x16xf32>
    %5 = vector.broadcast %4 : vector<1x16xf32> to vector<4x16xf32>
    %6 = arith.addf %3, %5 : vector<4x16xf32>
    %cst_5 = arith.constant 0.000000e+00 : f32
    %7 = vector.broadcast %cst_5 : f32 to vector<4x16xf32>
    %8 = arith.maximumf %6, %7 : vector<4x16xf32>
    %c0_6 = arith.constant 0 : index
    %c0_7 = arith.constant 0 : index
    %9 = vector.load %arg3[%c0_6, %c0_7] : memref<4x16xf32, #tpu.memory_space<vmem>>, vector<4x16xf32>
    tpu.vector_store %arg3[%c0_6, %c0_7], %8 {strides = array<i32>} : memref<4x16xf32, #tpu.memory_space<vmem>>, vector<4x16xf32>,
    return
  }
}

module attributes {stable_mosaic.version = 11 : i64} {
  func.func @_pos_attn_kernel(%arg0: i32, %arg1: memref<9x32xf32, #tpu.memory_space<vmem>>, %arg2: memref<1x16x32xf32, #tpu.memory_space<vmem>>, %arg3: memref<1x16x32xf32, #tpu.memory_space<vmem>>, %arg4: memref<32x32xbf16, #tpu.memory_space<vmem>>, %arg5: memref<1x32xf32, #tpu.memory_space<vmem>>, %arg6: memref<32x16xbf16, #tpu.memory_space<vmem>>, %arg7: memref<1x16xf32, #tpu.memory_space<vmem>>, %arg8: memref<1x9x32xf32, #tpu.memory_space<vmem>>, %arg9: memref<1x9x16xf32, #tpu.memory_space<vmem>>, %arg10: memref<1x9x16xf32, #tpu.memory_space<vmem>>) attributes {dimension_semantics = [#tpu.dimension_semantics<parallel>], iteration_bounds = array<i64: 2>, scalar_prefetch = 0 : i64, scratch_operands = 0 : i64, tpu.core_type = #tpu.core_type<tc>, window_params = [{pipeline_mode = #tpu.pipeline_mode<synchronous>, transform_indices = @transform_0, window_bounds = array<i64: 9, 32>}, {transform_indices = @transform_1, window_bounds = array<i64: 1, 16, 32>}, {transform_indices = @transform_2, window_bounds = array<i64: 1, 16, 32>}, {pipeline_mode = #tpu.pipeline_mode<synchronous>, transform_indices = @transform_3, window_bounds = array<i64: 32, 32>}, {pipeline_mode = #tpu.pipeline_mode<synchronous>, transform_indices = @transform_4, window_bounds = array<i64: 1, 32>}, {pipeline_mode = #tpu.pipeline_mode<synchronous>, transform_indices = @transform_5, window_bounds = array<i64: 32, 16>}, {pipeline_mode = #tpu.pipeline_mode<synchronous>, transform_indices = @transform_6, window_bounds = array<i64: 1, 16>}, {transform_indices = @transform_7, window_bounds = array<i64: 1, 9, 32>}, {transform_indices = @transform_8, window_bounds = array<i64: 1, 9, 16>}, {transform_indices = @transform_9, window_bounds = array<i64: 1, 9, 16>}]} {
    %c0 = arith.constant 0 : index
    %c0_0 = arith.constant 0 : index
    %0 = vector.load %arg1[%c0, %c0_0] : memref<9x32xf32, #tpu.memory_space<vmem>>, vector<9x32xf32>
    %1 = arith.truncf %0 : vector<9x32xf32> to vector<9x32xbf16>
    %c0_1 = arith.constant 0 : index
    %c0_2 = arith.constant 0 : index
    %2 = vector.load %arg4[%c0_1, %c0_2] : memref<32x32xbf16, #tpu.memory_space<vmem>>, vector<32x32xbf16>
    %cst = arith.constant dense<0.000000e+00> : vector<9x32xf32>
    %3 = tpu.matmul %1, %2, %cst {dimension_numbers = #tpu.dot_dimension_numbers<[1], [0], [0], [1], [0, 0, 1, 1], [], []>} : vector<9x32xbf16>, vector<32x32xbf16>, vector<9x32xf32> -> vector<9x32xf32>
    %c0_3 = arith.constant 0 : index
    %c0_4 = arith.constant 0 : index
    %4 = vector.load %arg5[%c0_3, %c0_4] : memref<1x32xf32, #tpu.memory_space<vmem>>, vector<1x32xf32>
    %5 = vector.broadcast %4 : vector<1x32xf32> to vector<9x32xf32>
    %6 = arith.addf %3, %5 : vector<9x32xf32>
    %c0_5 = arith.constant 0 : index
    %c0_6 = arith.constant 0 : index
    %c0_7 = arith.constant 0 : index
    %7 = vector.load %arg2[%c0_5, %c0_6, %c0_7] : memref<1x16x32xf32, #tpu.memory_space<vmem>>, vector<1x16x32xf32>
    %8 = vector.shape_cast %7 : vector<1x16x32xf32> to vector<16x32xf32>
    %c0_8 = arith.constant 0 : index
    %c0_9 = arith.constant 0 : index
    %c0_10 = arith.constant 0 : index
    %9 = vector.load %arg3[%c0_8, %c0_9, %c0_10] : memref<1x16x32xf32, #tpu.memory_space<vmem>>, vector<1x16x32xf32>
    %10 = vector.shape_cast %9 : vector<1x16x32xf32> to vector<16x32xf32>
    %11 = arith.truncf %6 : vector<9x32xf32> to vector<9x32xbf16>
    %12 = arith.truncf %8 : vector<16x32xf32> to vector<16x32xbf16>
    %cst_11 = arith.constant dense<0.000000e+00> : vector<9x16xf32>
    %13 = tpu.matmul %11, %12, %cst_11 {dimension_numbers = #tpu.dot_dimension_numbers<[1], [1], [0], [0], [0, 0, 1, 0], [], []>} : vector<9x32xbf16>, vector<16x32xbf16>, vector<9x16xf32> -> vector<9x16xf32>
    %cst_12 = arith.constant 0.176776692 : f32
    %14 = vector.broadcast %cst_12 : f32 to vector<9x16xf32>
    %15 = arith.mulf %13, %14 : vector<9x16xf32>
    %cst_13 = arith.constant dense<0xFF800000> : vector<9xf32>
    %16 = vector.multi_reduction <maximumf>, %15, %cst_13 [1] : vector<9x16xf32> to vector<9xf32>
    %17 = vector.shape_cast %16 : vector<9xf32> to vector<9x1xf32>
    %18 = vector.broadcast %17 : vector<9x1xf32> to vector<9x16xf32>
    %19 = arith.subf %15, %18 : vector<9x16xf32>
    %20 = math.exp %19 : vector<9x16xf32>
    %cst_14 = arith.constant dense<0.000000e+00> : vector<9xf32>
    %21 = vector.multi_reduction <add>, %20, %cst_14 [1] : vector<9x16xf32> to vector<9xf32>
    %22 = vector.shape_cast %21 : vector<9xf32> to vector<9x1xf32>
    %23 = tpu.reciprocal %22 {approx = true} : vector<9x1xf32> -> vector<9x1xf32>
    %24 = vector.broadcast %23 : vector<9x1xf32> to vector<9x16xf32>
    %25 = arith.mulf %20, %24 : vector<9x16xf32>
    %26 = arith.truncf %25 : vector<9x16xf32> to vector<9x16xbf16>
    %27 = arith.truncf %10 : vector<16x32xf32> to vector<16x32xbf16>
    %cst_15 = arith.constant dense<0.000000e+00> : vector<9x32xf32>
    %28 = tpu.matmul %26, %27, %cst_15 {dimension_numbers = #tpu.dot_dimension_numbers<[1], [0], [0], [1], [0, 0, 1, 1], [], []>} : vector<9x16xbf16>, vector<16x32xbf16>, vector<9x32xf32> -> vector<9x32xf32>
    %c0_16 = arith.constant 0 : index
    %c0_17 = arith.constant 0 : index
    %c0_18 = arith.constant 0 : index
    %29 = vector.load %arg8[%c0_16, %c0_17, %c0_18] : memref<1x9x32xf32, #tpu.memory_space<vmem>>, vector<1x9x32xf32>
    %30 = vector.shape_cast %29 : vector<1x9x32xf32> to vector<9x32xf32>
    %31 = vector.shape_cast %28 : vector<9x32xf32> to vector<1x9x32xf32>
    tpu.vector_store %arg8[%c0_16, %c0_17, %c0_18], %31 {strides = array<i32>} : memref<1x9x32xf32, #tpu.memory_space<vmem>>, vector<1x9x32xf32>,
    %c0_19 = arith.constant 0 : index
    %c0_20 = arith.constant 0 : index
    %c0_21 = arith.constant 0 : index
    %32 = vector.load %arg9[%c0_19, %c0_20, %c0_21] : memref<1x9x16xf32, #tpu.memory_space<vmem>>, vector<1x9x16xf32>
    %33 = vector.shape_cast %32 : vector<1x9x16xf32> to vector<9x16xf32>
    %34 = vector.shape_cast %25 : vector<9x16xf32> to vector<1x9x16xf32>
    tpu.vector_store %arg9[%c0_19, %c0_20, %c0_21], %34 {strides = array<i32>} : memref<1x9x16xf32, #tpu.memory_space<vmem>>, vector<1x9x16xf32>,
    %35 = arith.truncf %28 : vector<9x32xf32> to vector<9x32xbf16>
    %c0_22 = arith.constant 0 : index
    %c0_23 = arith.constant 0 : index
    %36 = vector.load %arg6[%c0_22, %c0_23] : memref<32x16xbf16, #tpu.memory_space<vmem>>, vector<32x16xbf16>
    %cst_24 = arith.constant dense<0.000000e+00> : vector<9x16xf32>
    %37 = tpu.matmul %35, %36, %cst_24 {dimension_numbers = #tpu.dot_dimension_numbers<[1], [0], [0], [1], [0, 0, 1, 1], [], []>} : vector<9x32xbf16>, vector<32x16xbf16>, vector<9x16xf32> -> vector<9x16xf32>
    %c0_25 = arith.constant 0 : index
    %c0_26 = arith.constant 0 : index
    %38 = vector.load %arg7[%c0_25, %c0_26] : memref<1x16xf32, #tpu.memory_space<vmem>>, vector<1x16xf32>
    %39 = vector.broadcast %38 : vector<1x16xf32> to vector<9x16xf32>
    %40 = arith.addf %37, %39 : vector<9x16xf32>
    %c0_27 = arith.constant 0 : index
    %c0_28 = arith.constant 0 : index
    %c0_29 = arith.constant 0 : index
    %41 = vector.load %arg10[%c0_27, %c0_28, %c0_29] : memref<1x9x16xf32, #tpu.memory_space<vmem>>, vector<1x9x16xf32>
    %42 = vector.shape_cast %41 : vector<1x9x16xf32> to vector<9x16xf32>
    %43 = vector.shape_cast %40 : vector<9x16xf32> to vector<1x9x16xf32>
    tpu.vector_store %arg10[%c0_27, %c0_28, %c0_29], %43 {strides = array<i32>} : memref<1x9x16xf32, #tpu.memory_space<vmem>>, vector<1x9x16xf32>,
    return
  }
  func.func @transform_0(%arg0: i32) -> (i32, i32) {
    %c0_i32 = arith.constant 0 : i32
    %c0_i32_0 = arith.constant 0 : i32
    %c0_i32_1 = arith.constant 0 : i32
    return %c0_i32, %c0_i32_0 : i32, i32
  }
  func.func @transform_1(%arg0: i32) -> (i32, i32, i32) {
    %c0_i32 = arith.constant 0 : i32
    %c0_i32_0 = arith.constant 0 : i32
    %c0_i32_1 = arith.constant 0 : i32
    return %arg0, %c0_i32, %c0_i32_0 : i32, i32, i32
  }
  func.func @transform_2(%arg0: i32) -> (i32, i32, i32) {
    %c0_i32 = arith.constant 0 : i32
    %c0_i32_0 = arith.constant 0 : i32
    %c0_i32_1 = arith.constant 0 : i32
    return %arg0, %c0_i32, %c0_i32_0 : i32, i32, i32
  }
  func.func @transform_3(%arg0: i32) -> (i32, i32) {
    %c0_i32 = arith.constant 0 : i32
    %c0_i32_0 = arith.constant 0 : i32
    %c0_i32_1 = arith.constant 0 : i32
    return %c0_i32, %c0_i32_0 : i32, i32
  }
  func.func @transform_4(%arg0: i32) -> (i32, i32) {
    %c0_i32 = arith.constant 0 : i32
    %c0_i32_0 = arith.constant 0 : i32
    %c0_i32_1 = arith.constant 0 : i32
    return %c0_i32, %c0_i32_0 : i32, i32
  }
  func.func @transform_5(%arg0: i32) -> (i32, i32) {
    %c0_i32 = arith.constant 0 : i32
    %c0_i32_0 = arith.constant 0 : i32
    %c0_i32_1 = arith.constant 0 : i32
    return %c0_i32, %c0_i32_0 : i32, i32
  }
  func.func @transform_6(%arg0: i32) -> (i32, i32) {
    %c0_i32 = arith.constant 0 : i32
    %c0_i32_0 = arith.constant 0 : i32
    %c0_i32_1 = arith.constant 0 : i32
    return %c0_i32, %c0_i32_0 : i32, i32
  }
  func.func @transform_7(%arg0: i32) -> (i32, i32, i32) {
    %c0_i32 = arith.constant 0 : i32
    %c0_i32_0 = arith.constant 0 : i32
    %c0_i32_1 = arith.constant 0 : i32
    return %arg0, %c0_i32, %c0_i32_0 : i32, i32, i32
  }
  func.func @transform_8(%arg0: i32) -> (i32, i32, i32) {
    %c0_i32 = arith.constant 0 : i32
    %c0_i32_0 = arith.constant 0 : i32
    %c0_i32_1 = arith.constant 0 : i32
    return %arg0, %c0_i32, %c0_i32_0 : i32, i32, i32
  }
  func.func @transform_9(%arg0: i32) -> (i32, i32, i32) {
    %c0_i32 = arith.constant 0 : i32
    %c0_i32_0 = arith.constant 0 : i32
    %c0_i32_1 = arith.constant 0 : i32
    return %arg0, %c0_i32, %c0_i32_0 : i32, i32, i32
  }
}

module attributes {stable_mosaic.version = 11 : i64} {
  func.func @_embed_kernel(%arg0: memref<18x16xf32, #tpu.memory_space<vmem>>, %arg1: memref<16x32xbf16, #tpu.memory_space<vmem>>, %arg2: memref<18x32xf32, #tpu.memory_space<vmem>>, %arg3: memref<18x32xf32, #tpu.memory_space<vmem>>) attributes {dimension_semantics = [], scalar_prefetch = 0 : i64, scratch_operands = 0 : i64, tpu.core_type = #tpu.core_type<tc>} {
    %c0 = arith.constant 0 : index
    %c0_0 = arith.constant 0 : index
    %0 = vector.load %arg0[%c0, %c0_0] : memref<18x16xf32, #tpu.memory_space<vmem>>, vector<18x16xf32>
    %cst = arith.constant dense<0xFF800000> : vector<18xf32>
    %1 = vector.multi_reduction <maximumf>, %0, %cst [1] : vector<18x16xf32> to vector<18xf32>
    %2 = vector.shape_cast %1 : vector<18xf32> to vector<18x1xf32>
    %3 = vector.broadcast %2 : vector<18x1xf32> to vector<18x16xf32>
    %4 = arith.subf %0, %3 : vector<18x16xf32>
    %5 = math.exp %4 : vector<18x16xf32>
    %cst_1 = arith.constant dense<0.000000e+00> : vector<18xf32>
    %6 = vector.multi_reduction <add>, %5, %cst_1 [1] : vector<18x16xf32> to vector<18xf32>
    %7 = vector.shape_cast %6 : vector<18xf32> to vector<18x1xf32>
    %8 = tpu.reciprocal %7 {approx = true} : vector<18x1xf32> -> vector<18x1xf32>
    %9 = vector.broadcast %8 : vector<18x1xf32> to vector<18x16xf32>
    %10 = arith.mulf %5, %9 : vector<18x16xf32>
    %11 = arith.truncf %10 : vector<18x16xf32> to vector<18x16xbf16>
    %c0_2 = arith.constant 0 : index
    %c0_3 = arith.constant 0 : index
    %12 = vector.load %arg1[%c0_2, %c0_3] : memref<16x32xbf16, #tpu.memory_space<vmem>>, vector<16x32xbf16>
    %cst_4 = arith.constant dense<0.000000e+00> : vector<18x32xf32>
    %13 = tpu.matmul %11, %12, %cst_4 {dimension_numbers = #tpu.dot_dimension_numbers<[1], [0], [0], [1], [0, 0, 1, 1], [], []>} : vector<18x16xbf16>, vector<16x32xbf16>, vector<18x32xf32> -> vector<18x32xf32>
    %c0_5 = arith.constant 0 : index
    %c0_6 = arith.constant 0 : index
    %14 = vector.load %arg2[%c0_5, %c0_6] : memref<18x32xf32, #tpu.memory_space<vmem>>, vector<18x32xf32>
    %15 = arith.addf %13, %14 : vector<18x32xf32>
    %c0_7 = arith.constant 0 : index
    %c0_8 = arith.constant 0 : index
    %16 = vector.load %arg3[%c0_7, %c0_8] : memref<18x32xf32, #tpu.memory_space<vmem>>, vector<18x32xf32>
    tpu.vector_store %arg3[%c0_7, %c0_8], %15 {strides = array<i32>} : memref<18x32xf32, #tpu.memory_space<vmem>>, vector<18x32xf32>,
    return
  }
}

module attributes {stable_mosaic.version = 11 : i64} {
  func.func @_align_kernel(%arg0: memref<18x32xf32, #tpu.memory_space<vmem>>, %arg1: memref<18x32xf32, #tpu.memory_space<vmem>>, %arg2: memref<32x32xbf16, #tpu.memory_space<vmem>>, %arg3: memref<32x32xbf16, #tpu.memory_space<vmem>>, %arg4: memref<1x32xf32, #tpu.memory_space<vmem>>, %arg5: memref<32x16xbf16, #tpu.memory_space<vmem>>, %arg6: memref<1x16xf32, #tpu.memory_space<vmem>>, %arg7: memref<18x16xf32, #tpu.memory_space<vmem>>) attributes {dimension_semantics = [], scalar_prefetch = 0 : i64, scratch_operands = 0 : i64, tpu.core_type = #tpu.core_type<tc>} {
    %c0 = arith.constant 0 : index
    %c0_0 = arith.constant 0 : index
    %0 = vector.load %arg0[%c0, %c0_0] : memref<18x32xf32, #tpu.memory_space<vmem>>, vector<18x32xf32>
    %c0_1 = arith.constant 0 : index
    %c0_2 = arith.constant 0 : index
    %1 = vector.load %arg1[%c0_1, %c0_2] : memref<18x32xf32, #tpu.memory_space<vmem>>, vector<18x32xf32>
    %2 = arith.truncf %0 : vector<18x32xf32> to vector<18x32xbf16>
    %c0_3 = arith.constant 0 : index
    %c0_4 = arith.constant 0 : index
    %3 = vector.load %arg2[%c0_3, %c0_4] : memref<32x32xbf16, #tpu.memory_space<vmem>>, vector<32x32xbf16>
    %cst = arith.constant dense<0.000000e+00> : vector<18x32xf32>
    %4 = tpu.matmul %2, %3, %cst {dimension_numbers = #tpu.dot_dimension_numbers<[1], [0], [0], [1], [0, 0, 1, 1], [], []>} : vector<18x32xbf16>, vector<32x32xbf16>, vector<18x32xf32> -> vector<18x32xf32>
    %5 = arith.truncf %1 : vector<18x32xf32> to vector<18x32xbf16>
    %c0_5 = arith.constant 0 : index
    %c0_6 = arith.constant 0 : index
    %6 = vector.load %arg3[%c0_5, %c0_6] : memref<32x32xbf16, #tpu.memory_space<vmem>>, vector<32x32xbf16>
    %cst_7 = arith.constant dense<0.000000e+00> : vector<18x32xf32>
    %7 = tpu.matmul %5, %6, %cst_7 {dimension_numbers = #tpu.dot_dimension_numbers<[1], [0], [0], [1], [0, 0, 1, 1], [], []>} : vector<18x32xbf16>, vector<32x32xbf16>, vector<18x32xf32> -> vector<18x32xf32>
    %8 = arith.addf %4, %7 : vector<18x32xf32>
    %c0_8 = arith.constant 0 : index
    %c0_9 = arith.constant 0 : index
    %9 = vector.load %arg4[%c0_8, %c0_9] : memref<1x32xf32, #tpu.memory_space<vmem>>, vector<1x32xf32>
    %10 = vector.broadcast %9 : vector<1x32xf32> to vector<18x32xf32>
    %11 = arith.addf %8, %10 : vector<18x32xf32>
    %12 = arith.negf %11 : vector<18x32xf32>
    %13 = math.exp %12 : vector<18x32xf32>
    %cst_10 = arith.constant 1.000000e+00 : f32
    %14 = vector.broadcast %cst_10 : f32 to vector<18x32xf32>
    %15 = arith.addf %14, %13 : vector<18x32xf32>
    %16 = arith.divf %14, %15 : vector<18x32xf32>
    %17 = arith.mulf %16, %1 : vector<18x32xf32>
    %cst_11 = arith.constant 1.000000e+00 : f32
    %18 = vector.broadcast %cst_11 : f32 to vector<18x32xf32>
    %19 = arith.subf %18, %16 : vector<18x32xf32>
    %20 = arith.mulf %19, %0 : vector<18x32xf32>
    %21 = arith.addf %17, %20 : vector<18x32xf32>
    %22 = arith.truncf %21 : vector<18x32xf32> to vector<18x32xbf16>
    %c0_12 = arith.constant 0 : index
    %c0_13 = arith.constant 0 : index
    %23 = vector.load %arg5[%c0_12, %c0_13] : memref<32x16xbf16, #tpu.memory_space<vmem>>, vector<32x16xbf16>
    %cst_14 = arith.constant dense<0.000000e+00> : vector<18x16xf32>
    %24 = tpu.matmul %22, %23, %cst_14 {dimension_numbers = #tpu.dot_dimension_numbers<[1], [0], [0], [1], [0, 0, 1, 1], [], []>} : vector<18x32xbf16>, vector<32x16xbf16>, vector<18x16xf32> -> vector<18x16xf32>
    %c0_15 = arith.constant 0 : index
    %c0_16 = arith.constant 0 : index
    %25 = vector.load %arg6[%c0_15, %c0_16] : memref<1x16xf32, #tpu.memory_space<vmem>>, vector<1x16xf32>
    %26 = vector.broadcast %25 : vector<1x16xf32> to vector<18x16xf32>
    %27 = arith.addf %24, %26 : vector<18x16xf32>
    %c0_17 = arith.constant 0 : index
    %c0_18 = arith.constant 0 : index
    %28 = vector.load %arg7[%c0_17, %c0_18] : memref<18x16xf32, #tpu.memory_space<vmem>>, vector<18x16xf32>
    tpu.vector_store %arg7[%c0_17, %c0_18], %27 {strides = array<i32>} : memref<18x16xf32, #tpu.memory_space<vmem>>, vector<18x16xf32>,
    return
  }
}

module attributes {stable_mosaic.version = 11 : i64} {
  func.func @_linear_kernel(%arg0: memref<18x32xf32, #tpu.memory_space<vmem>>, %arg1: memref<32x16xbf16, #tpu.memory_space<vmem>>, %arg2: memref<1x16xf32, #tpu.memory_space<vmem>>, %arg3: memref<18x16xf32, #tpu.memory_space<vmem>>) attributes {dimension_semantics = [], scalar_prefetch = 0 : i64, scratch_operands = 0 : i64, tpu.core_type = #tpu.core_type<tc>} {
    %c0 = arith.constant 0 : index
    %c0_0 = arith.constant 0 : index
    %0 = vector.load %arg0[%c0, %c0_0] : memref<18x32xf32, #tpu.memory_space<vmem>>, vector<18x32xf32>
    %1 = arith.truncf %0 : vector<18x32xf32> to vector<18x32xbf16>
    %c0_1 = arith.constant 0 : index
    %c0_2 = arith.constant 0 : index
    %2 = vector.load %arg1[%c0_1, %c0_2] : memref<32x16xbf16, #tpu.memory_space<vmem>>, vector<32x16xbf16>
    %cst = arith.constant dense<0.000000e+00> : vector<18x16xf32>
    %3 = tpu.matmul %1, %2, %cst {dimension_numbers = #tpu.dot_dimension_numbers<[1], [0], [0], [1], [0, 0, 1, 1], [], []>} : vector<18x32xbf16>, vector<32x16xbf16>, vector<18x16xf32> -> vector<18x16xf32>
    %c0_3 = arith.constant 0 : index
    %c0_4 = arith.constant 0 : index
    %4 = vector.load %arg2[%c0_3, %c0_4] : memref<1x16xf32, #tpu.memory_space<vmem>>, vector<1x16xf32>
    %5 = vector.broadcast %4 : vector<1x16xf32> to vector<18x16xf32>
    %6 = arith.addf %3, %5 : vector<18x16xf32>
    %c0_5 = arith.constant 0 : index
    %c0_6 = arith.constant 0 : index
    %7 = vector.load %arg3[%c0_5, %c0_6] : memref<18x16xf32, #tpu.memory_space<vmem>>, vector<18x16xf32>
    tpu.vector_store %arg3[%c0_5, %c0_6], %6 {strides = array<i32>} : memref<18x16xf32, #tpu.memory_space<vmem>>, vector<18x16xf32>,
    return
  }
}

module attributes {stable_mosaic.version = 11 : i64} {
  func.func @_tlayer_kernel(%arg0: i32, %arg1: memref<2xi32, #tpu.memory_space<smem>>, %arg2: memref<1x9x32xf32, #tpu.memory_space<vmem>>, %arg3: memref<1x9x32xf32, #tpu.memory_space<vmem>>, %arg4: memref<32x96xbf16, #tpu.memory_space<vmem>>, %arg5: memref<1x96xf32, #tpu.memory_space<vmem>>, %arg6: memref<32x32xbf16, #tpu.memory_space<vmem>>, %arg7: memref<1x32xf32, #tpu.memory_space<vmem>>, %arg8: memref<1x32xf32, #tpu.memory_space<vmem>>, %arg9: memref<1x32xf32, #tpu.memory_space<vmem>>, %arg10: memref<32x64xbf16, #tpu.memory_space<vmem>>, %arg11: memref<1x64xf32, #tpu.memory_space<vmem>>, %arg12: memref<64x32xbf16, #tpu.memory_space<vmem>>, %arg13: memref<1x32xf32, #tpu.memory_space<vmem>>, %arg14: memref<1x32xf32, #tpu.memory_space<vmem>>, %arg15: memref<1x32xf32, #tpu.memory_space<vmem>>, %arg16: memref<1x9x32xf32, #tpu.memory_space<vmem>>) attributes {dimension_semantics = [#tpu.dimension_semantics<parallel>], iteration_bounds = array<i64: 2>, scalar_prefetch = 0 : i64, scratch_operands = 0 : i64, tpu.core_type = #tpu.core_type<tc>, window_params = [{transform_indices = @transform_0, window_bounds = array<i64: 2>}, {transform_indices = @transform_1, window_bounds = array<i64: 1, 9, 32>}, {transform_indices = @transform_2, window_bounds = array<i64: 1, 9, 32>}, {pipeline_mode = #tpu.pipeline_mode<synchronous>, transform_indices = @transform_3, window_bounds = array<i64: 32, 96>}, {pipeline_mode = #tpu.pipeline_mode<synchronous>, transform_indices = @transform_4, window_bounds = array<i64: 1, 96>}, {pipeline_mode = #tpu.pipeline_mode<synchronous>, transform_indices = @transform_5, window_bounds = array<i64: 32, 32>}, {pipeline_mode = #tpu.pipeline_mode<synchronous>, transform_indices = @transform_6, window_bounds = array<i64: 1, 32>}, {pipeline_mode = #tpu.pipeline_mode<synchronous>, transform_indices = @transform_7, window_bounds = array<i64: 1, 32>}, {pipeline_mode = #tpu.pipeline_mode<synchronous>, transform_indices = @transform_8, window_bounds = array<i64: 1, 32>}, {pipeline_mode = #tpu.pipeline_mode<synchronous>, transform_indices = @transform_9, window_bounds = array<i64: 32, 64>}, {pipeline_mode = #tpu.pipeline_mode<synchronous>, transform_indices = @transform_10, window_bounds = array<i64: 1, 64>}, {pipeline_mode = #tpu.pipeline_mode<synchronous>, transform_indices = @transform_11, window_bounds = array<i64: 64, 32>}, {pipeline_mode = #tpu.pipeline_mode<synchronous>, transform_indices = @transform_12, window_bounds = array<i64: 1, 32>}, {pipeline_mode = #tpu.pipeline_mode<synchronous>, transform_indices = @transform_13, window_bounds = array<i64: 1, 32>}, {pipeline_mode = #tpu.pipeline_mode<synchronous>, transform_indices = @transform_14, window_bounds = array<i64: 1, 32>}, {transform_indices = @transform_15, window_bounds = array<i64: 1, 9, 32>}]} {
    %c0 = arith.constant 0 : index
    %c0_0 = arith.constant 0 : index
    %c0_1 = arith.constant 0 : index
    %0 = vector.load %arg2[%c0, %c0_0, %c0_1] : memref<1x9x32xf32, #tpu.memory_space<vmem>>, vector<1x9x32xf32>
    %1 = vector.shape_cast %0 : vector<1x9x32xf32> to vector<9x32xf32>
    %c0_2 = arith.constant 0 : index
    %c0_3 = arith.constant 0 : index
    %2 = vector.load %arg4[%c0_2, %c0_3] : memref<32x96xbf16, #tpu.memory_space<vmem>>, vector<32x96xbf16>
    %c0_4 = arith.constant 0 : index
    %c0_5 = arith.constant 0 : index
    %3 = vector.load %arg5[%c0_4, %c0_5] : memref<1x96xf32, #tpu.memory_space<vmem>>, vector<1x96xf32>
    %c0_6 = arith.constant 0 : index
    %c0_7 = arith.constant 0 : index
    %c0_8 = arith.constant 0 : index
    %4 = vector.load %arg3[%c0_6, %c0_7, %c0_8] : memref<1x9x32xf32, #tpu.memory_space<vmem>>, vector<1x9x32xf32>
    %5 = vector.shape_cast %4 : vector<1x9x32xf32> to vector<9x32xf32>
    %6 = arith.truncf %1 : vector<9x32xf32> to vector<9x32xbf16>
    %7 = vector.extract_strided_slice %2 {offsets = [0, 0], sizes = [32, 32], strides = [1, 1]} : vector<32x96xbf16> to vector<32x32xbf16>
    %cst = arith.constant dense<0.000000e+00> : vector<9x32xf32>
    %8 = tpu.matmul %6, %7, %cst {dimension_numbers = #tpu.dot_dimension_numbers<[1], [0], [0], [1], [0, 0, 1, 1], [], []>} : vector<9x32xbf16>, vector<32x32xbf16>, vector<9x32xf32> -> vector<9x32xf32>
    %9 = vector.extract_strided_slice %3 {offsets = [0, 0], sizes = [1, 32], strides = [1, 1]} : vector<1x96xf32> to vector<1x32xf32>
    %10 = vector.broadcast %9 : vector<1x32xf32> to vector<9x32xf32>
    %11 = arith.addf %8, %10 : vector<9x32xf32>
    %12 = arith.truncf %5 : vector<9x32xf32> to vector<9x32xbf16>
    %13 = vector.extract_strided_slice %2 {offsets = [0, 32], sizes = [32, 64], strides = [1, 1]} : vector<32x96xbf16> to vector<32x64xbf16>
    %cst_9 = arith.constant dense<0.000000e+00> : vector<9x64xf32>
    %14 = tpu.matmul %12, %13, %cst_9 {dimension_numbers = #tpu.dot_dimension_numbers<[1], [0], [0], [1], [0, 0, 1, 1], [], []>} : vector<9x32xbf16>, vector<32x64xbf16>, vector<9x64xf32> -> vector<9x64xf32>
    %15 = vector.extract_strided_slice %3 {offsets = [0, 32], sizes = [1, 64], strides = [1, 1]} : vector<1x96xf32> to vector<1x64xf32>
    %16 = vector.broadcast %15 : vector<1x64xf32> to vector<9x64xf32>
    %17 = arith.addf %14, %16 : vector<9x64xf32>
    %18 = vector.extract_strided_slice %17 {offsets = [0, 0], sizes = [9, 32], strides = [1, 1]} : vector<9x64xf32> to vector<9x32xf32>
    %19 = vector.extract_strided_slice %17 {offsets = [0, 32], sizes = [9, 32], strides = [1, 1]} : vector<9x64xf32> to vector<9x32xf32>
    %20 = arith.index_cast %arg0 : i32 to index
    %21 = memref.load %arg1[%20] : memref<2xi32, #tpu.memory_space<smem>>
    %22 = tpu.iota {dimensions = array<i32: 0>} : vector<9x9xi32>
    %23 = tpu.iota {dimensions = array<i32: 1>} : vector<9x9xi32>
    %24 = arith.cmpi eq, %22, %23 : vector<9x9xi32>
    %cst_10 = arith.constant -1.000000e+30 : f32
    %cst_11 = arith.constant 0.000000e+00 : f32
    %25 = vector.broadcast %cst_10 : f32 to vector<9x9xf32>
    %26 = vector.broadcast %cst_11 : f32 to vector<9x9xf32>
    %27 = arith.select %24, %25, %26 : vector<9x9xi1>, vector<9x9xf32>
    %28 = vector.broadcast %21 : i32 to vector<9x9xi32>
    %29 = arith.cmpi sge, %23, %28 : vector<9x9xi32>
    %cst_12 = arith.constant -1.000000e+30 : f32
    %cst_13 = arith.constant 0.000000e+00 : f32
    %30 = vector.broadcast %cst_12 : f32 to vector<9x9xf32>
    %31 = vector.broadcast %cst_13 : f32 to vector<9x9xf32>
    %32 = arith.select %29, %30, %31 : vector<9x9xi1>, vector<9x9xf32>
    %33 = arith.addf %27, %32 : vector<9x9xf32>
    %34 = vector.extract_strided_slice %11 {offsets = [0, 0], sizes = [9, 8], strides = [1, 1]} : vector<9x32xf32> to vector<9x8xf32>
    %35 = arith.truncf %34 : vector<9x8xf32> to vector<9x8xbf16>
    %36 = vector.extract_strided_slice %18 {offsets = [0, 0], sizes = [9, 8], strides = [1, 1]} : vector<9x32xf32> to vector<9x8xf32>
    %37 = arith.truncf %36 : vector<9x8xf32> to vector<9x8xbf16>
    %38 = vector.extract_strided_slice %19 {offsets = [0, 0], sizes = [9, 8], strides = [1, 1]} : vector<9x32xf32> to vector<9x8xf32>
    %39 = arith.truncf %38 : vector<9x8xf32> to vector<9x8xbf16>
    %cst_14 = arith.constant dense<0.000000e+00> : vector<9x9xf32>
    %40 = tpu.matmul %35, %37, %cst_14 {dimension_numbers = #tpu.dot_dimension_numbers<[1], [1], [0], [0], [0, 0, 1, 0], [], []>} : vector<9x8xbf16>, vector<9x8xbf16>, vector<9x9xf32> -> vector<9x9xf32>
    %cst_15 = arith.constant 0.353553385 : f32
    %41 = vector.broadcast %cst_15 : f32 to vector<9x9xf32>
    %42 = arith.mulf %40, %41 : vector<9x9xf32>
    %43 = arith.addf %42, %33 : vector<9x9xf32>
    %cst_16 = arith.constant dense<0xFF800000> : vector<9xf32>
    %44 = vector.multi_reduction <maximumf>, %43, %cst_16 [1] : vector<9x9xf32> to vector<9xf32>
    %45 = vector.shape_cast %44 : vector<9xf32> to vector<9x1xf32>
    %46 = vector.broadcast %45 : vector<9x1xf32> to vector<9x9xf32>
    %47 = arith.subf %43, %46 : vector<9x9xf32>
    %48 = math.exp %47 : vector<9x9xf32>
    %cst_17 = arith.constant dense<0.000000e+00> : vector<9xf32>
    %49 = vector.multi_reduction <add>, %48, %cst_17 [1] : vector<9x9xf32> to vector<9xf32>
    %50 = vector.shape_cast %49 : vector<9xf32> to vector<9x1xf32>
    %51 = tpu.reciprocal %50 {approx = true} : vector<9x1xf32> -> vector<9x1xf32>
    %52 = vector.broadcast %51 : vector<9x1xf32> to vector<9x9xf32>
    %53 = arith.mulf %48, %52 : vector<9x9xf32>
    %54 = arith.truncf %53 : vector<9x9xf32> to vector<9x9xbf16>
    %cst_18 = arith.constant dense<0.000000e+00> : vector<9x8xf32>
    %55 = tpu.matmul %54, %39, %cst_18 {dimension_numbers = #tpu.dot_dimension_numbers<[1], [0], [0], [1], [0, 0, 1, 1], [], []>} : vector<9x9xbf16>, vector<9x8xbf16>, vector<9x8xf32> -> vector<9x8xf32>
    %56 = vector.extract_strided_slice %11 {offsets = [0, 8], sizes = [9, 8], strides = [1, 1]} : vector<9x32xf32> to vector<9x8xf32>
    %57 = arith.truncf %56 : vector<9x8xf32> to vector<9x8xbf16>
    %58 = vector.extract_strided_slice %18 {offsets = [0, 8], sizes = [9, 8], strides = [1, 1]} : vector<9x32xf32> to vector<9x8xf32>
    %59 = arith.truncf %58 : vector<9x8xf32> to vector<9x8xbf16>
    %60 = vector.extract_strided_slice %19 {offsets = [0, 8], sizes = [9, 8], strides = [1, 1]} : vector<9x32xf32> to vector<9x8xf32>
    %61 = arith.truncf %60 : vector<9x8xf32> to vector<9x8xbf16>
    %cst_19 = arith.constant dense<0.000000e+00> : vector<9x9xf32>
    %62 = tpu.matmul %57, %59, %cst_19 {dimension_numbers = #tpu.dot_dimension_numbers<[1], [1], [0], [0], [0, 0, 1, 0], [], []>} : vector<9x8xbf16>, vector<9x8xbf16>, vector<9x9xf32> -> vector<9x9xf32>
    %cst_20 = arith.constant 0.353553385 : f32
    %63 = vector.broadcast %cst_20 : f32 to vector<9x9xf32>
    %64 = arith.mulf %62, %63 : vector<9x9xf32>
    %65 = arith.addf %64, %33 : vector<9x9xf32>
    %cst_21 = arith.constant dense<0xFF800000> : vector<9xf32>
    %66 = vector.multi_reduction <maximumf>, %65, %cst_21 [1] : vector<9x9xf32> to vector<9xf32>
    %67 = vector.shape_cast %66 : vector<9xf32> to vector<9x1xf32>
    %68 = vector.broadcast %67 : vector<9x1xf32> to vector<9x9xf32>
    %69 = arith.subf %65, %68 : vector<9x9xf32>
    %70 = math.exp %69 : vector<9x9xf32>
    %cst_22 = arith.constant dense<0.000000e+00> : vector<9xf32>
    %71 = vector.multi_reduction <add>, %70, %cst_22 [1] : vector<9x9xf32> to vector<9xf32>
    %72 = vector.shape_cast %71 : vector<9xf32> to vector<9x1xf32>
    %73 = tpu.reciprocal %72 {approx = true} : vector<9x1xf32> -> vector<9x1xf32>
    %74 = vector.broadcast %73 : vector<9x1xf32> to vector<9x9xf32>
    %75 = arith.mulf %70, %74 : vector<9x9xf32>
    %76 = arith.truncf %75 : vector<9x9xf32> to vector<9x9xbf16>
    %cst_23 = arith.constant dense<0.000000e+00> : vector<9x8xf32>
    %77 = tpu.matmul %76, %61, %cst_23 {dimension_numbers = #tpu.dot_dimension_numbers<[1], [0], [0], [1], [0, 0, 1, 1], [], []>} : vector<9x9xbf16>, vector<9x8xbf16>, vector<9x8xf32> -> vector<9x8xf32>
    %78 = vector.extract_strided_slice %11 {offsets = [0, 16], sizes = [9, 8], strides = [1, 1]} : vector<9x32xf32> to vector<9x8xf32>
    %79 = arith.truncf %78 : vector<9x8xf32> to vector<9x8xbf16>
    %80 = vector.extract_strided_slice %18 {offsets = [0, 16], sizes = [9, 8], strides = [1, 1]} : vector<9x32xf32> to vector<9x8xf32>
    %81 = arith.truncf %80 : vector<9x8xf32> to vector<9x8xbf16>
    %82 = vector.extract_strided_slice %19 {offsets = [0, 16], sizes = [9, 8], strides = [1, 1]} : vector<9x32xf32> to vector<9x8xf32>
    %83 = arith.truncf %82 : vector<9x8xf32> to vector<9x8xbf16>
    %cst_24 = arith.constant dense<0.000000e+00> : vector<9x9xf32>
    %84 = tpu.matmul %79, %81, %cst_24 {dimension_numbers = #tpu.dot_dimension_numbers<[1], [1], [0], [0], [0, 0, 1, 0], [], []>} : vector<9x8xbf16>, vector<9x8xbf16>, vector<9x9xf32> -> vector<9x9xf32>
    %cst_25 = arith.constant 0.353553385 : f32
    %85 = vector.broadcast %cst_25 : f32 to vector<9x9xf32>
    %86 = arith.mulf %84, %85 : vector<9x9xf32>
    %87 = arith.addf %86, %33 : vector<9x9xf32>
    %cst_26 = arith.constant dense<0xFF800000> : vector<9xf32>
    %88 = vector.multi_reduction <maximumf>, %87, %cst_26 [1] : vector<9x9xf32> to vector<9xf32>
    %89 = vector.shape_cast %88 : vector<9xf32> to vector<9x1xf32>
    %90 = vector.broadcast %89 : vector<9x1xf32> to vector<9x9xf32>
    %91 = arith.subf %87, %90 : vector<9x9xf32>
    %92 = math.exp %91 : vector<9x9xf32>
    %cst_27 = arith.constant dense<0.000000e+00> : vector<9xf32>
    %93 = vector.multi_reduction <add>, %92, %cst_27 [1] : vector<9x9xf32> to vector<9xf32>
    %94 = vector.shape_cast %93 : vector<9xf32> to vector<9x1xf32>
    %95 = tpu.reciprocal %94 {approx = true} : vector<9x1xf32> -> vector<9x1xf32>
    %96 = vector.broadcast %95 : vector<9x1xf32> to vector<9x9xf32>
    %97 = arith.mulf %92, %96 : vector<9x9xf32>
    %98 = arith.truncf %97 : vector<9x9xf32> to vector<9x9xbf16>
    %cst_28 = arith.constant dense<0.000000e+00> : vector<9x8xf32>
    %99 = tpu.matmul %98, %83, %cst_28 {dimension_numbers = #tpu.dot_dimension_numbers<[1], [0], [0], [1], [0, 0, 1, 1], [], []>} : vector<9x9xbf16>, vector<9x8xbf16>, vector<9x8xf32> -> vector<9x8xf32>
    %100 = vector.extract_strided_slice %11 {offsets = [0, 24], sizes = [9, 8], strides = [1, 1]} : vector<9x32xf32> to vector<9x8xf32>
    %101 = arith.truncf %100 : vector<9x8xf32> to vector<9x8xbf16>
    %102 = vector.extract_strided_slice %18 {offsets = [0, 24], sizes = [9, 8], strides = [1, 1]} : vector<9x32xf32> to vector<9x8xf32>
    %103 = arith.truncf %102 : vector<9x8xf32> to vector<9x8xbf16>
    %104 = vector.extract_strided_slice %19 {offsets = [0, 24], sizes = [9, 8], strides = [1, 1]} : vector<9x32xf32> to vector<9x8xf32>
    %105 = arith.truncf %104 : vector<9x8xf32> to vector<9x8xbf16>
    %cst_29 = arith.constant dense<0.000000e+00> : vector<9x9xf32>
    %106 = tpu.matmul %101, %103, %cst_29 {dimension_numbers = #tpu.dot_dimension_numbers<[1], [1], [0], [0], [0, 0, 1, 0], [], []>} : vector<9x8xbf16>, vector<9x8xbf16>, vector<9x9xf32> -> vector<9x9xf32>
    %cst_30 = arith.constant 0.353553385 : f32
    %107 = vector.broadcast %cst_30 : f32 to vector<9x9xf32>
    %108 = arith.mulf %106, %107 : vector<9x9xf32>
    %109 = arith.addf %108, %33 : vector<9x9xf32>
    %cst_31 = arith.constant dense<0xFF800000> : vector<9xf32>
    %110 = vector.multi_reduction <maximumf>, %109, %cst_31 [1] : vector<9x9xf32> to vector<9xf32>
    %111 = vector.shape_cast %110 : vector<9xf32> to vector<9x1xf32>
    %112 = vector.broadcast %111 : vector<9x1xf32> to vector<9x9xf32>
    %113 = arith.subf %109, %112 : vector<9x9xf32>
    %114 = math.exp %113 : vector<9x9xf32>
    %cst_32 = arith.constant dense<0.000000e+00> : vector<9xf32>
    %115 = vector.multi_reduction <add>, %114, %cst_32 [1] : vector<9x9xf32> to vector<9xf32>
    %116 = vector.shape_cast %115 : vector<9xf32> to vector<9x1xf32>
    %117 = tpu.reciprocal %116 {approx = true} : vector<9x1xf32> -> vector<9x1xf32>
    %118 = vector.broadcast %117 : vector<9x1xf32> to vector<9x9xf32>
    %119 = arith.mulf %114, %118 : vector<9x9xf32>
    %120 = arith.truncf %119 : vector<9x9xf32> to vector<9x9xbf16>
    %cst_33 = arith.constant dense<0.000000e+00> : vector<9x8xf32>
    %121 = tpu.matmul %120, %105, %cst_33 {dimension_numbers = #tpu.dot_dimension_numbers<[1], [0], [0], [1], [0, 0, 1, 1], [], []>} : vector<9x9xbf16>, vector<9x8xbf16>, vector<9x8xf32> -> vector<9x8xf32>
    %122 = tpu.concatenate %55, %77, %99, %121 in 1 : vector<9x8xf32>, vector<9x8xf32>, vector<9x8xf32>, vector<9x8xf32> -> vector<9x32xf32>
    %123 = arith.truncf %122 : vector<9x32xf32> to vector<9x32xbf16>
    %c0_34 = arith.constant 0 : index
    %c0_35 = arith.constant 0 : index
    %124 = vector.load %arg6[%c0_34, %c0_35] : memref<32x32xbf16, #tpu.memory_space<vmem>>, vector<32x32xbf16>
    %cst_36 = arith.constant dense<0.000000e+00> : vector<9x32xf32>
    %125 = tpu.matmul %123, %124, %cst_36 {dimension_numbers = #tpu.dot_dimension_numbers<[1], [0], [0], [1], [0, 0, 1, 1], [], []>} : vector<9x32xbf16>, vector<32x32xbf16>, vector<9x32xf32> -> vector<9x32xf32>
    %c0_37 = arith.constant 0 : index
    %c0_38 = arith.constant 0 : index
    %126 = vector.load %arg7[%c0_37, %c0_38] : memref<1x32xf32, #tpu.memory_space<vmem>>, vector<1x32xf32>
    %127 = vector.broadcast %126 : vector<1x32xf32> to vector<9x32xf32>
    %128 = arith.addf %125, %127 : vector<9x32xf32>
    %129 = arith.addf %1, %128 : vector<9x32xf32>
    %cst_39 = arith.constant dense<0.000000e+00> : vector<9xf32>
    %130 = vector.multi_reduction <add>, %129, %cst_39 [1] : vector<9x32xf32> to vector<9xf32>
    %131 = vector.shape_cast %130 : vector<9xf32> to vector<9x1xf32>
    %cst_40 = arith.constant 3.200000e+01 : f32
    %132 = vector.broadcast %cst_40 : f32 to vector<9x1xf32>
    %133 = arith.divf %131, %132 : vector<9x1xf32>
    %134 = vector.broadcast %133 : vector<9x1xf32> to vector<9x32xf32>
    %135 = arith.subf %129, %134 : vector<9x32xf32>
    %136 = arith.mulf %135, %135 : vector<9x32xf32>
    %cst_41 = arith.constant dense<0.000000e+00> : vector<9xf32>
    %137 = vector.multi_reduction <add>, %136, %cst_41 [1] : vector<9x32xf32> to vector<9xf32>
    %138 = vector.shape_cast %137 : vector<9xf32> to vector<9x1xf32>
    %cst_42 = arith.constant 3.200000e+01 : f32
    %139 = vector.broadcast %cst_42 : f32 to vector<9x1xf32>
    %140 = arith.divf %138, %139 : vector<9x1xf32>
    %cst_43 = arith.constant 9.99999974E-6 : f32
    %141 = vector.broadcast %cst_43 : f32 to vector<9x1xf32>
    %142 = arith.addf %140, %141 : vector<9x1xf32>
    %143 = math.rsqrt %142 : vector<9x1xf32>
    %144 = vector.broadcast %143 : vector<9x1xf32> to vector<9x32xf32>
    %145 = arith.mulf %135, %144 : vector<9x32xf32>
    %c0_44 = arith.constant 0 : index
    %c0_45 = arith.constant 0 : index
    %146 = vector.load %arg8[%c0_44, %c0_45] : memref<1x32xf32, #tpu.memory_space<vmem>>, vector<1x32xf32>
    %147 = vector.broadcast %146 : vector<1x32xf32> to vector<9x32xf32>
    %148 = arith.mulf %145, %147 : vector<9x32xf32>
    %c0_46 = arith.constant 0 : index
    %c0_47 = arith.constant 0 : index
    %149 = vector.load %arg9[%c0_46, %c0_47] : memref<1x32xf32, #tpu.memory_space<vmem>>, vector<1x32xf32>
    %150 = vector.broadcast %149 : vector<1x32xf32> to vector<9x32xf32>
    %151 = arith.addf %148, %150 : vector<9x32xf32>
    %152 = arith.truncf %151 : vector<9x32xf32> to vector<9x32xbf16>
    %c0_48 = arith.constant 0 : index
    %c0_49 = arith.constant 0 : index
    %153 = vector.load %arg10[%c0_48, %c0_49] : memref<32x64xbf16, #tpu.memory_space<vmem>>, vector<32x64xbf16>
    %cst_50 = arith.constant dense<0.000000e+00> : vector<9x64xf32>
    %154 = tpu.matmul %152, %153, %cst_50 {dimension_numbers = #tpu.dot_dimension_numbers<[1], [0], [0], [1], [0, 0, 1, 1], [], []>} : vector<9x32xbf16>, vector<32x64xbf16>, vector<9x64xf32> -> vector<9x64xf32>
    %c0_51 = arith.constant 0 : index
    %c0_52 = arith.constant 0 : index
    %155 = vector.load %arg11[%c0_51, %c0_52] : memref<1x64xf32, #tpu.memory_space<vmem>>, vector<1x64xf32>
    %156 = vector.broadcast %155 : vector<1x64xf32> to vector<9x64xf32>
    %157 = arith.addf %154, %156 : vector<9x64xf32>
    %cst_53 = arith.constant 0.000000e+00 : f32
    %158 = vector.broadcast %cst_53 : f32 to vector<9x64xf32>
    %159 = arith.maximumf %157, %158 : vector<9x64xf32>
    %160 = arith.truncf %159 : vector<9x64xf32> to vector<9x64xbf16>
    %c0_54 = arith.constant 0 : index
    %c0_55 = arith.constant 0 : index
    %161 = vector.load %arg12[%c0_54, %c0_55] : memref<64x32xbf16, #tpu.memory_space<vmem>>, vector<64x32xbf16>
    %cst_56 = arith.constant dense<0.000000e+00> : vector<9x32xf32>
    %162 = tpu.matmul %160, %161, %cst_56 {dimension_numbers = #tpu.dot_dimension_numbers<[1], [0], [0], [1], [0, 0, 1, 1], [], []>} : vector<9x64xbf16>, vector<64x32xbf16>, vector<9x32xf32> -> vector<9x32xf32>
    %c0_57 = arith.constant 0 : index
    %c0_58 = arith.constant 0 : index
    %163 = vector.load %arg13[%c0_57, %c0_58] : memref<1x32xf32, #tpu.memory_space<vmem>>, vector<1x32xf32>
    %164 = vector.broadcast %163 : vector<1x32xf32> to vector<9x32xf32>
    %165 = arith.addf %162, %164 : vector<9x32xf32>
    %166 = arith.addf %151, %165 : vector<9x32xf32>
    %cst_59 = arith.constant dense<0.000000e+00> : vector<9xf32>
    %167 = vector.multi_reduction <add>, %166, %cst_59 [1] : vector<9x32xf32> to vector<9xf32>
    %168 = vector.shape_cast %167 : vector<9xf32> to vector<9x1xf32>
    %cst_60 = arith.constant 3.200000e+01 : f32
    %169 = vector.broadcast %cst_60 : f32 to vector<9x1xf32>
    %170 = arith.divf %168, %169 : vector<9x1xf32>
    %171 = vector.broadcast %170 : vector<9x1xf32> to vector<9x32xf32>
    %172 = arith.subf %166, %171 : vector<9x32xf32>
    %173 = arith.mulf %172, %172 : vector<9x32xf32>
    %cst_61 = arith.constant dense<0.000000e+00> : vector<9xf32>
    %174 = vector.multi_reduction <add>, %173, %cst_61 [1] : vector<9x32xf32> to vector<9xf32>
    %175 = vector.shape_cast %174 : vector<9xf32> to vector<9x1xf32>
    %cst_62 = arith.constant 3.200000e+01 : f32
    %176 = vector.broadcast %cst_62 : f32 to vector<9x1xf32>
    %177 = arith.divf %175, %176 : vector<9x1xf32>
    %cst_63 = arith.constant 9.99999974E-6 : f32
    %178 = vector.broadcast %cst_63 : f32 to vector<9x1xf32>
    %179 = arith.addf %177, %178 : vector<9x1xf32>
    %180 = math.rsqrt %179 : vector<9x1xf32>
    %181 = vector.broadcast %180 : vector<9x1xf32> to vector<9x32xf32>
    %182 = arith.mulf %172, %181 : vector<9x32xf32>
    %c0_64 = arith.constant 0 : index
    %c0_65 = arith.constant 0 : index
    %183 = vector.load %arg14[%c0_64, %c0_65] : memref<1x32xf32, #tpu.memory_space<vmem>>, vector<1x32xf32>
    %184 = vector.broadcast %183 : vector<1x32xf32> to vector<9x32xf32>
    %185 = arith.mulf %182, %184 : vector<9x32xf32>
    %c0_66 = arith.constant 0 : index
    %c0_67 = arith.constant 0 : index
    %186 = vector.load %arg15[%c0_66, %c0_67] : memref<1x32xf32, #tpu.memory_space<vmem>>, vector<1x32xf32>
    %187 = vector.broadcast %186 : vector<1x32xf32> to vector<9x32xf32>
    %188 = arith.addf %185, %187 : vector<9x32xf32>
    %c0_68 = arith.constant 0 : index
    %c0_69 = arith.constant 0 : index
    %c0_70 = arith.constant 0 : index
    %189 = vector.load %arg16[%c0_68, %c0_69, %c0_70] : memref<1x9x32xf32, #tpu.memory_space<vmem>>, vector<1x9x32xf32>
    %190 = vector.shape_cast %189 : vector<1x9x32xf32> to vector<9x32xf32>
    %191 = vector.shape_cast %188 : vector<9x32xf32> to vector<1x9x32xf32>
    tpu.vector_store %arg16[%c0_68, %c0_69, %c0_70], %191 {strides = array<i32>} : memref<1x9x32xf32, #tpu.memory_space<vmem>>, vector<1x9x32xf32>,
    return
  }
  func.func @transform_0(%arg0: i32) -> i32 {
    %c0_i32 = arith.constant 0 : i32
    %c0_i32_0 = arith.constant 0 : i32
    return %c0_i32 : i32
  }
  func.func @transform_1(%arg0: i32) -> (i32, i32, i32) {
    %c0_i32 = arith.constant 0 : i32
    %c0_i32_0 = arith.constant 0 : i32
    %c0_i32_1 = arith.constant 0 : i32
    return %arg0, %c0_i32, %c0_i32_0 : i32, i32, i32
  }
  func.func @transform_2(%arg0: i32) -> (i32, i32, i32) {
    %c0_i32 = arith.constant 0 : i32
    %c0_i32_0 = arith.constant 0 : i32
    %c0_i32_1 = arith.constant 0 : i32
    return %arg0, %c0_i32, %c0_i32_0 : i32, i32, i32
  }
  func.func @transform_3(%arg0: i32) -> (i32, i32) {
    %c0_i32 = arith.constant 0 : i32
    %c0_i32_0 = arith.constant 0 : i32
    %c0_i32_1 = arith.constant 0 : i32
    return %c0_i32, %c0_i32_0 : i32, i32
  }
  func.func @transform_4(%arg0: i32) -> (i32, i32) {
    %c0_i32 = arith.constant 0 : i32
    %c0_i32_0 = arith.constant 0 : i32
    %c0_i32_1 = arith.constant 0 : i32
    return %c0_i32, %c0_i32_0 : i32, i32
  }
  func.func @transform_5(%arg0: i32) -> (i32, i32) {
    %c0_i32 = arith.constant 0 : i32
    %c0_i32_0 = arith.constant 0 : i32
    %c0_i32_1 = arith.constant 0 : i32
    return %c0_i32, %c0_i32_0 : i32, i32
  }
  func.func @transform_6(%arg0: i32) -> (i32, i32) {
    %c0_i32 = arith.constant 0 : i32
    %c0_i32_0 = arith.constant 0 : i32
    %c0_i32_1 = arith.constant 0 : i32
    return %c0_i32, %c0_i32_0 : i32, i32
  }
  func.func @transform_7(%arg0: i32) -> (i32, i32) {
    %c0_i32 = arith.constant 0 : i32
    %c0_i32_0 = arith.constant 0 : i32
    %c0_i32_1 = arith.constant 0 : i32
    return %c0_i32, %c0_i32_0 : i32, i32
  }
  func.func @transform_8(%arg0: i32) -> (i32, i32) {
    %c0_i32 = arith.constant 0 : i32
    %c0_i32_0 = arith.constant 0 : i32
    %c0_i32_1 = arith.constant 0 : i32
    return %c0_i32, %c0_i32_0 : i32, i32
  }
  func.func @transform_9(%arg0: i32) -> (i32, i32) {
    %c0_i32 = arith.constant 0 : i32
    %c0_i32_0 = arith.constant 0 : i32
    %c0_i32_1 = arith.constant 0 : i32
    return %c0_i32, %c0_i32_0 : i32, i32
  }
  func.func @transform_10(%arg0: i32) -> (i32, i32) {
    %c0_i32 = arith.constant 0 : i32
    %c0_i32_0 = arith.constant 0 : i32
    %c0_i32_1 = arith.constant 0 : i32
    return %c0_i32, %c0_i32_0 : i32, i32
  }
  func.func @transform_11(%arg0: i32) -> (i32, i32) {
    %c0_i32 = arith.constant 0 : i32
    %c0_i32_0 = arith.constant 0 : i32
    %c0_i32_1 = arith.constant 0 : i32
    return %c0_i32, %c0_i32_0 : i32, i32
  }
  func.func @transform_12(%arg0: i32) -> (i32, i32) {
    %c0_i32 = arith.constant 0 : i32
    %c0_i32_0 = arith.constant 0 : i32
    %c0_i32_1 = arith.constant 0 : i32
    return %c0_i32, %c0_i32_0 : i32, i32
  }
  func.func @transform_13(%arg0: i32) -> (i32, i32) {
    %c0_i32 = arith.constant 0 : i32
    %c0_i32_0 = arith.constant 0 : i32
    %c0_i32_1 = arith.constant 0 : i32
    return %c0_i32, %c0_i32_0 : i32, i32
  }
  func.func @transform_14(%arg0: i32) -> (i32, i32) {
    %c0_i32 = arith.constant 0 : i32
    %c0_i32_0 = arith.constant 0 : i32
    %c0_i32_1 = arith.constant 0 : i32
    return %c0_i32, %c0_i32_0 : i32, i32
  }
  func.func @transform_15(%arg0: i32) -> (i32, i32, i32) {
    %c0_i32 = arith.constant 0 : i32
    %c0_i32_0 = arith.constant 0 : i32
    %c0_i32_1 = arith.constant 0 : i32
    return %arg0, %c0_i32, %c0_i32_0 : i32, i32, i32
  }
}

</mosaic_0001>

<llo_original>
// kernel: abinet_iter_forward.18
$region0: #{abinet_iter_forward.18}
  #allocation0 [shape = 'u32[]', space=smem, size = 0x4, offset = 0x4, fixed_abs, tag = 'smem constant byte address 0x4 - core index']
  #allocation1 [shape = 'u32[144,128]{1,0:T(1,128)}', space=vmem, size = 0x12000, scoped, tag = 'internal scratch']
  %s0 = inlined_call_operand.vmem [shape: f32[128,27], index: 0, kind: input, shape index: {}]
  %s1 = inlined_call_operand.vmem [shape: bf16[27,16], index: 1, kind: input, shape index: {}]
  %s2 = inlined_call_operand.vmem [shape: f32[1,16], index: 2, kind: input, shape index: {}]
  %s3 = inlined_call_operand.vmem [shape: f32[128,16], index: 3, kind: output, shape index: {}]
  %s4 = sld [smem:[#allocation0]]
  $region22: #{abinet_iter_forward.18} parent=0
    _
  %s6 = ssub.s32 1, %s4
  %s7 = scalar_select 0, %s6, %s4
  // Predicated region
  $region2: #{abinet_iter_forward.18} parent=0 // pred_check
    _
  $region3: #{abinet_iter_forward.18} parent=0 // pred_check_branch
    %9 = sbr.rel (0) target = $region5
  $region4: #{abinet_iter_forward.18} parent=0 // pred_region
    _
  $region5: #{abinet_iter_forward.18} parent=0 // pred_fallthru
    _
  // Predicated region
  $region6: #{abinet_iter_forward.18} parent=0 // pred_check
    _
  $region7: #{abinet_iter_forward.18} parent=0 // pred_check_branch
    %11 = sbr.rel (0) target = $region9
  $region8: #{abinet_iter_forward.18} parent=0 // pred_region
    _
  $region9: #{abinet_iter_forward.18} parent=0 // pred_fallthru
    _
  // Predicated region
  $region10: #{abinet_iter_forward.18} parent=0 // pred_check
    _
  $region11: #{abinet_iter_forward.18} parent=0 // pred_check_branch
    %13 = sbr.rel (0) target = $region13
  $region12: #{abinet_iter_forward.18} parent=0 // pred_region
    _
  $region13: #{abinet_iter_forward.18} parent=0 // pred_fallthru
    _
  %v15 = vld [vmem:[%s0] sm:$0xff]
  %v16 = vld [vmem:[%s0 + $0x8] sm:$0xff]
  %v17 = vld [vmem:[%s0 + $0x10] sm:$0xff]
  %v18 = vld [vmem:[%s0 + $0x18] sm:$0xff]
  %v19 = vld [vmem:[%s0 + $0x20] sm:$0xff]
  %v20 = vld [vmem:[%s0 + $0x28] sm:$0xff]
  %v21 = vld [vmem:[%s0 + $0x30] sm:$0xff]
  %v22 = vld [vmem:[%s0 + $0x38] sm:$0xff]
  %v23 = vld [vmem:[%s0 + $0x40] sm:$0xff]
  %v24 = vld [vmem:[%s0 + $0x48] sm:$0xff]
  %v25 = vld [vmem:[%s0 + $0x50] sm:$0xff]
  %v26 = vld [vmem:[%s0 + $0x58] sm:$0xff]
  %v27 = vld [vmem:[%s0 + $0x60] sm:$0xff]
  %v28 = vld [vmem:[%s0 + $0x68] sm:$0xff]
  %v29 = vld [vmem:[%s0 + $0x70] sm:$0xff]
  %v30 = vld [vmem:[%s0 + $0x78] sm:$0xff]
  %v31 = vpack.c.bf16 %v16, %v15
  %v32 = vpack.c.bf16 %v18, %v17
  %v33 = vpack.c.bf16 %v20, %v19
  %v34 = vpack.c.bf16 %v22, %v21
  %v35 = vpack.c.bf16 %v24, %v23
  %v36 = vpack.c.bf16 %v26, %v25
  %v37 = vpack.c.bf16 %v28, %v27
  %v38 = vpack.c.bf16 %v30, %v29
  %v39 = vld [vmem:[%s1] sm:$0xf]
  %v40 = vld [vmem:[%s1 + $0x4] sm:$0xf]
  %v41 = vld [vmem:[%s1 + $0x8] sm:$0xf]
  %v42 = vld [vmem:[%s1 + $0xc] sm:$0x3]
  %v43 = vld [vmem:[%s2] sm:$0x1]
  %v45 = vlaneseq
  %v46 = vshrl.u32 %v45, 7
  %v47 = vsub.s32 0, %v46
  %v48 = vrot.slane %v43, %v47
  %v54 = vunpack.c.l.b16 %v39
  %v55 = vunpack.c.l.b16 %v40
  %v56 = vunpack.c.l.b16 %v41
  %v57 = vunpack.c.l.b16 %v42
  %v58 = vpack.c.b16 %v55, %v54
  %v59 = vpack.c.b16 %v57, %v56
  %vm61 = vcmask 220160
  %v63 = vsel %vm61, %v31, 0
  %v66 = vsel %vm61, %v32, 0
  %v69 = vsel %vm61, %v33, 0
  %v72 = vsel %vm61, %v34, 0
  %v75 = vsel %vm61, %v35, 0
  %v78 = vsel %vm61, %v36, 0
  %v81 = vsel %vm61, %v37, 0
  %v84 = vsel %vm61, %v38, 0
  %vm86 = vcmask 1044480
  %vm87 = vcmask 1045504
  %v88 = vsel %vm86, 4294967295, 65535
  %v89 = vsel %vm87, %v88, 0
  %v91 = vand.u32 %v59, %v89
  %93 = vmatprep.subr.bf16.mxu0 0
  %94 = vmatpush1.bf16.msra.mxu0 %v58
  %95 = vmatprep.subr.bf16.mxu0 0
  %96 = vmatpush1.bf16.msra.mxu0 %v91
  %97 = vmatprep.subr.bf16.mxu0 0
  %98 = vmatpush1.bf16.msra.mxu0 0
  %99 = vmatprep.subr.bf16.mxu0 0
  %100 = vmatpush1.bf16.msra.mxu0 0
  %101 = vmatprep.subr.bf16.mxu0 0
  %102 = vmatpush1.bf16.msra.mxu0 0
  %103 = vmatprep.subr.bf16.mxu0 0
  %104 = vmatpush1.bf16.msra.mxu0 0
  %105 = vmatprep.subr.bf16.mxu0 0
  %106 = vmatpush1.bf16.msra.mxu0 0
  %107 = vmatprep.subr.bf16.mxu0 0
  %108 = vmatpush1.bf16.msra.mxu0 0
  %109 = vmatprep.subr.bf16.mxu0 0
  %110 = vmatpush1.bf16.msra.mxu0 0
  %111 = vmatprep.subr.bf16.mxu0 0
  %112 = vmatpush1.bf16.msra.mxu0 0
  %113 = vmatprep.subr.bf16.mxu0 0
  %114 = vmatpush1.bf16.msra.mxu0 0
  %115 = vmatprep.subr.bf16.mxu0 0
  %116 = vmatpush1.bf16.msra.mxu0 0
  %117 = vmatprep.subr.bf16.mxu0 0
  %118 = vmatpush1.bf16.msra.mxu0 0
  %119 = vmatprep.subr.bf16.mxu0 0
  %120 = vmatpush1.bf16.msra.mxu0 0
  %121 = vmatprep.subr.bf16.mxu0 0
  %122 = vmatpush1.bf16.msra.mxu0 0
  %123 = vmatprep.subr.bf16.mxu0 0
  %124 = vmatpush1.bf16.msra.mxu0 0
  %125 = vmatprep.mubr.bf16.mxu0 0
  %126 = vmatmul.mubr.bf16.gmra.mrb[0].mxu0 %v63
  %v127 = vpop.f32.mrb[0].mxu0
  %v128 = vadd.f32 %v48, %v127
  %v129 = vpop.f32.mrb[0].mxu0
  %v130 = vpop.f32.mrb[0].mxu0
  %v131 = vadd.f32 %v48, %v130
  %v132 = vpop.f32.mrb[0].mxu0
  %133 = vmatprep.mubr.bf16.mxu0 0
  %134 = vmatmul.mubr.bf16.gmra.mrb[0].mxu0 %v66
  %v135 = vpop.f32.mrb[0].mxu0
  %v136 = vadd.f32 %v48, %v135
  %v137 = vpop.f32.mrb[0].mxu0
  %v138 = vpop.f32.mrb[0].mxu0
  %v139 = vadd.f32 %v48, %v138
  %v140 = vpop.f32.mrb[0].mxu0
  %141 = vmatprep.mubr.bf16.mxu0 0
  %142 = vmatmul.mubr.bf16.gmra.mrb[0].mxu0 %v69
  %v143 = vpop.f32.mrb[0].mxu0
  %v144 = vadd.f32 %v48, %v143
  %v145 = vpop.f32.mrb[0].mxu0
  %v146 = vpop.f32.mrb[0].mxu0
  %v147 = vadd.f32 %v48, %v146
  %v148 = vpop.f32.mrb[0].mxu0
  %149 = vmatprep.mubr.bf16.mxu0 0
  %150 = vmatmul.mubr.bf16.gmra.mrb[0].mxu0 %v72
  %v151 = vpop.f32.mrb[0].mxu0
  %v152 = vadd.f32 %v48, %v151
  %v153 = vpop.f32.mrb[0].mxu0
  %v154 = vpop.f32.mrb[0].mxu0
  %v155 = vadd.f32 %v48, %v154
  %v156 = vpop.f32.mrb[0].mxu0
  %157 = vmatprep.mubr.bf16.mxu0 0
  %158 = vmatmul.mubr.bf16.gmra.mrb[0].mxu0 %v75
  %v159 = vpop.f32.mrb[0].mxu0
  %v160 = vadd.f32 %v48, %v159
  %v161 = vpop.f32.mrb[0].mxu0
  %v162 = vpop.f32.mrb[0].mxu0
  %v163 = vadd.f32 %v48, %v162
  %v164 = vpop.f32.mrb[0].mxu0
  %165 = vmatprep.mubr.bf16.mxu0 0
  %166 = vmatmul.mubr.bf16.gmra.mrb[0].mxu0 %v78
  %v167 = vpop.f32.mrb[0].mxu0
  %v168 = vadd.f32 %v48, %v167
  %v169 = vpop.f32.mrb[0].mxu0
  %v170 = vpop.f32.mrb[0].mxu0
  %v171 = vadd.f32 %v48, %v170
  %v172 = vpop.f32.mrb[0].mxu0
  %173 = vmatprep.mubr.bf16.mxu0 0
  %174 = vmatmul.mubr.bf16.gmra.mrb[0].mxu0 %v81
  %v175 = vpop.f32.mrb[0].mxu0
  %v176 = vadd.f32 %v48, %v175
  %v177 = vpop.f32.mrb[0].mxu0
  %v178 = vpop.f32.mrb[0].mxu0
  %v179 = vadd.f32 %v48, %v178
  %v180 = vpop.f32.mrb[0].mxu0
  %181 = vmatprep.mubr.bf16.mxu0 0
  %182 = vmatmul.mubr.bf16.gmra.mrb[0].mxu0 %v84
  %v183 = vpop.f32.mrb[0].mxu0
  %v184 = vadd.f32 %v48, %v183
  %v185 = vpop.f32.mrb[0].mxu0
  %v186 = vpop.f32.mrb[0].mxu0
  %v187 = vadd.f32 %v48, %v186
  %v188 = vpop.f32.mrb[0].mxu0
  %189 = vdwg.mxu0
  %v190 = vmax.f32 %v128, 0.0
  %v191 = vmax.f32 %v131, 0.0
  %v192 = vmax.f32 %v136, 0.0
  %v193 = vmax.f32 %v139, 0.0
  %v194 = vmax.f32 %v144, 0.0
  %v195 = vmax.f32 %v147, 0.0
  %v196 = vmax.f32 %v152, 0.0
  %v197 = vmax.f32 %v155, 0.0
  %v198 = vmax.f32 %v160, 0.0
  %v199 = vmax.f32 %v163, 0.0
  %v200 = vmax.f32 %v168, 0.0
  %v201 = vmax.f32 %v171, 0.0
  %v202 = vmax.f32 %v176, 0.0
  %v203 = vmax.f32 %v179, 0.0
  %v204 = vmax.f32 %v184, 0.0
  %v205 = vmax.f32 %v187, 0.0
  %vm206 = vcmask 130048
  %207 = vst.msk [vmem:[%s3] sm:$0xff] %vm206, %v190
  %208 = vst.msk [vmem:[%s3 + $0x8] sm:$0xff] %vm206, %v191
  %209 = vst.msk [vmem:[%s3 + $0x10] sm:$0xff] %vm206, %v192
  %210 = vst.msk [vmem:[%s3 + $0x18] sm:$0xff] %vm206, %v193
  %211 = vst.msk [vmem:[%s3 + $0x20] sm:$0xff] %vm206, %v194
  %212 = vst.msk [vmem:[%s3 + $0x28] sm:$0xff] %vm206, %v195
  %213 = vst.msk [vmem:[%s3 + $0x30] sm:$0xff] %vm206, %v196
  %214 = vst.msk [vmem:[%s3 + $0x38] sm:$0xff] %vm206, %v197
  %215 = vst.msk [vmem:[%s3 + $0x40] sm:$0xff] %vm206, %v198
  %216 = vst.msk [vmem:[%s3 + $0x48] sm:$0xff] %vm206, %v199
  %217 = vst.msk [vmem:[%s3 + $0x50] sm:$0xff] %vm206, %v200
  %218 = vst.msk [vmem:[%s3 + $0x58] sm:$0xff] %vm206, %v201
  %219 = vst.msk [vmem:[%s3 + $0x60] sm:$0xff] %vm206, %v202
  %220 = vst.msk [vmem:[%s3 + $0x68] sm:$0xff] %vm206, %v203
  %221 = vst.msk [vmem:[%s3 + $0x70] sm:$0xff] %vm206, %v204
  %222 = vst.msk [vmem:[%s3 + $0x78] sm:$0xff] %vm206, %v205
  // Predicated region
  $region14: #{abinet_iter_forward.18} parent=0 // pred_check
    _
  $region15: #{abinet_iter_forward.18} parent=0 // pred_check_branch
    %224 = sbr.rel (0) target = $region17
  $region16: #{abinet_iter_forward.18} parent=0 // pred_region
    _
  $region17: #{abinet_iter_forward.18} parent=0 // pred_fallthru
    _
  // Predicated region
  $region18: #{abinet_iter_forward.18} parent=0 // pred_check
    _
  $region19: #{abinet_iter_forward.18} parent=0 // pred_check_branch
    %226 = sbr.rel (0) target = $region21
  $region20: #{abinet_iter_forward.18} parent=0 // pred_region
    _
  $region21: #{abinet_iter_forward.18} parent=0 // pred_fallthru
    _

// kernel: abinet_iter_forward.19
$region0: #{abinet_iter_forward.19}
  #allocation0 [shape = 'u32[]', space=smem, size = 0x4, offset = 0x4, fixed_abs, tag = 'smem constant byte address 0x4 - core index']
  #allocation1 [shape = 'u32[144,128]{1,0:T(1,128)}', space=vmem, size = 0x12000, scoped, tag = 'internal scratch']
  %s0 = inlined_call_operand.vmem [shape: f32[32,144], index: 0, kind: input, shape index: {}]
  %s1 = inlined_call_operand.vmem [shape: bf16[144,32], index: 1, kind: input, shape index: {}]
  %s2 = inlined_call_operand.vmem [shape: f32[1,32], index: 2, kind: input, shape index: {}]
  %s3 = inlined_call_operand.vmem [shape: f32[32,32], index: 3, kind: output, shape index: {}]
  %s4 = sld [smem:[#allocation0]]
  $region22: #{abinet_iter_forward.19} parent=0
    _
  %s6 = ssub.s32 1, %s4
  %s7 = scalar_select 0, %s6, %s4
  // Predicated region
  $region2: #{abinet_iter_forward.19} parent=0 // pred_check
    _
  $region3: #{abinet_iter_forward.19} parent=0 // pred_check_branch
    %9 = sbr.rel (0) target = $region5
  $region4: #{abinet_iter_forward.19} parent=0 // pred_region
    _
  $region5: #{abinet_iter_forward.19} parent=0 // pred_fallthru
    _
  // Predicated region
  $region6: #{abinet_iter_forward.19} parent=0 // pred_check
    _
  $region7: #{abinet_iter_forward.19} parent=0 // pred_check_branch
    %11 = sbr.rel (0) target = $region9
  $region8: #{abinet_iter_forward.19} parent=0 // pred_region
    _
  $region9: #{abinet_iter_forward.19} parent=0 // pred_fallthru
    _
  // Predicated region
  $region10: #{abinet_iter_forward.19} parent=0 // pred_check
    _
  $region11: #{abinet_iter_forward.19} parent=0 // pred_check_branch
    %13 = sbr.rel (0) target = $region13
  $region12: #{abinet_iter_forward.19} parent=0 // pred_region
    _
  $region13: #{abinet_iter_forward.19} parent=0 // pred_fallthru
    _
  %v15 = vld [vmem:[%s0] sm:$0xff]
  %v16 = vld [vmem:[%s0 + $0x8] sm:$0xff]
  %v17 = vld [vmem:[%s0 + $0x10] sm:$0xff]
  %v18 = vld [vmem:[%s0 + $0x18] sm:$0xff]
  %v19 = vld [vmem:[%s0 + $0x20] sm:$0xff]
  %v20 = vld [vmem:[%s0 + $0x28] sm:$0xff]
  %v21 = vld [vmem:[%s0 + $0x30] sm:$0xff]
  %v22 = vld [vmem:[%s0 + $0x38] sm:$0xff]
  %v23 = vpack.c.bf16 %v17, %v15
  %v24 = vpack.c.bf16 %v18, %v16
  %v25 = vpack.c.bf16 %v21, %v19
  %v26 = vpack.c.bf16 %v22, %v20
  %v27 = vld [vmem:[%s1] sm:$0xf]
  %v28 = vld [vmem:[%s1 + $0x4] sm:$0xf]
  %v29 = vld [vmem:[%s1 + $0x8] sm:$0xf]
  %v30 = vld [vmem:[%s1 + $0xc] sm:$0xf]
  %v31 = vld [vmem:[%s1 + $0x10] sm:$0xf]
  %v32 = vld [vmem:[%s1 + $0x14] sm:$0xf]
  %v33 = vld [vmem:[%s1 + $0x18] sm:$0xf]
  %v34 = vld [vmem:[%s1 + $0x1c] sm:$0xf]
  %v35 = vld [vmem:[%s1 + $0x20] sm:$0xf]
  %v36 = vld [vmem:[%s1 + $0x24] sm:$0xf]
  %v37 = vld [vmem:[%s1 + $0x28] sm:$0xf]
  %v38 = vld [vmem:[%s1 + $0x2c] sm:$0xf]
  %v39 = vld [vmem:[%s1 + $0x30] sm:$0xf]
  %v40 = vld [vmem:[%s1 + $0x34] sm:$0xf]
  %v41 = vld [vmem:[%s1 + $0x38] sm:$0xf]
  %v42 = vld [vmem:[%s1 + $0x3c] sm:$0xf]
  %v43 = vld [vmem:[%s1 + $0x40] sm:$0xf]
  %v44 = vld [vmem:[%s1 + $0x44] sm:$0xf]
  %v45 = vld [vmem:[%s2] sm:$0x1]
  %v47 = vlaneseq
  %v48 = vshrl.u32 %v47, 7
  %v49 = vsub.s32 0, %v48
  %v50 = vrot.slane %v45, %v49
  %v70 = vunpack.c.l.b16 %v27
  %v71 = vunpack.c.l.b16 %v28
  %v72 = vunpack.c.l.b16 %v29
  %v73 = vunpack.c.l.b16 %v30
  %v74 = vunpack.c.l.b16 %v31
  %v75 = vunpack.c.l.b16 %v32
  %v76 = vunpack.c.l.b16 %v33
  %v77 = vunpack.c.l.b16 %v34
  %v78 = vunpack.c.l.b16 %v35
  %v79 = vunpack.c.l.b16 %v36
  %v80 = vunpack.c.l.b16 %v37
  %v81 = vunpack.c.l.b16 %v38
  %v82 = vunpack.c.l.b16 %v39
  %v83 = vunpack.c.l.b16 %v40
  %v84 = vunpack.c.l.b16 %v41
  %v85 = vunpack.c.l.b16 %v42
  %v86 = vunpack.c.l.b16 %v43
  %v87 = vunpack.c.l.b16 %v44
  %v88 = vpack.c.b16 %v71, %v70
  %v89 = vpack.c.b16 %v73, %v72
  %v90 = vpack.c.b16 %v75, %v74
  %v91 = vpack.c.b16 %v77, %v76
  %v92 = vpack.c.b16 %v79, %v78
  %v93 = vpack.c.b16 %v81, %v80
  %v94 = vpack.c.b16 %v83, %v82
  %v95 = vpack.c.b16 %v85, %v84
  %v96 = vpack.c.b16 %v87, %v86
  %vm106 = vcmask 130048
  %v108 = vsel %vm106, %v24, 0
  %v111 = vsel %vm106, %v26, 0
  %113 = vmatprep.subr.bf16.mxu0 0
  %114 = vmatpush1.bf16.msra.mxu0 %v88
  %115 = vmatprep.subr.bf16.mxu0 0
  %116 = vmatpush1.bf16.msra.mxu0 %v89
  %117 = vmatprep.subr.bf16.mxu0 0
  %118 = vmatpush1.bf16.msra.mxu0 %v90
  %119 = vmatprep.subr.bf16.mxu0 0
  %120 = vmatpush1.bf16.msra.mxu0 %v91
  %121 = vmatprep.subr.bf16.mxu0 0
  %122 = vmatpush1.bf16.msra.mxu0 %v92
  %123 = vmatprep.subr.bf16.mxu0 0
  %124 = vmatpush1.bf16.msra.mxu0 %v93
  %125 = vmatprep.subr.bf16.mxu0 0
  %126 = vmatpush1.bf16.msra.mxu0 %v94
  %127 = vmatprep.subr.bf16.mxu0 0
  %128 = vmatpush1.bf16.msra.mxu0 %v95
  %129 = vmatprep.subr.bf16.mxu0 0
  %130 = vmatpush1.bf16.msra.mxu0 %v96
  %131 = vmatprep.subr.bf16.mxu0 0
  %132 = vmatpush1.bf16.msra.mxu0 0
  %133 = vmatprep.subr.bf16.mxu0 0
  %134 = vmatpush1.bf16.msra.mxu0 0
  %135 = vmatprep.subr.bf16.mxu0 0
  %136 = vmatpush1.bf16.msra.mxu0 0
  %137 = vmatprep.subr.bf16.mxu0 0
  %138 = vmatpush1.bf16.msra.mxu0 0
  %139 = vmatprep.subr.bf16.mxu0 0
  %140 = vmatpush1.bf16.msra.mxu0 0
  %141 = vmatprep.subr.bf16.mxu0 0
  %142 = vmatpush1.bf16.msra.mxu0 0
  %143 = vmatprep.subr.bf16.mxu0 0
  %144 = vmatpush1.bf16.msra.mxu0 0
  %145 = vmatprep.mubr.bf16.mxu0 %v108
  %146 = vmatmul.mubr.bf16.gmra.mrb[0].mxu0 %v23
  %v147 = vpop.f32.mrb[0].mxu0
  %v148 = vadd.f32 %v50, %v147
  %v149 = vpop.f32.mrb[0].mxu0
  %v150 = vpop.f32.mrb[0].mxu0
  %v151 = vadd.f32 %v50, %v150
  %v152 = vpop.f32.mrb[0].mxu0
  %153 = vmatprep.mubr.bf16.mxu0 %v111
  %154 = vmatmul.mubr.bf16.gmra.mrb[0].mxu0 %v25
  %v155 = vpop.f32.mrb[0].mxu0
  %v156 = vadd.f32 %v50, %v155
  %v157 = vpop.f32.mrb[0].mxu0
  %v158 = vpop.f32.mrb[0].mxu0
  %v159 = vadd.f32 %v50, %v158
  %v160 = vpop.f32.mrb[0].mxu0
  %161 = vdwg.mxu0
  %v162 = vmax.f32 %v148, 0.0
  %v163 = vmax.f32 %v151, 0.0
  %v164 = vmax.f32 %v156, 0.0
  %v165 = vmax.f32 %v159, 0.0
  %vm166 = vcmask 261120
  %167 = vst.msk [vmem:[%s3] sm:$0xff] %vm166, %v162
  %168 = vst.msk [vmem:[%s3 + $0x8] sm:$0xff] %vm166, %v163
  %169 = vst.msk [vmem:[%s3 + $0x10] sm:$0xff] %vm166, %v164
  %170 = vst.msk [vmem:[%s3 + $0x18] sm:$0xff] %vm166, %v165
  // Predicated region
  $region14: #{abinet_iter_forward.19} parent=0 // pred_check
    _
  $region15: #{abinet_iter_forward.19} parent=0 // pred_check_branch
    %172 = sbr.rel (0) target = $region17
  $region16: #{abinet_iter_forward.19} parent=0 // pred_region
    _
  $region17: #{abinet_iter_forward.19} parent=0 // pred_fallthru
    _
  // Predicated region
  $region18: #{abinet_iter_forward.19} parent=0 // pred_check
    _
  $region19: #{abinet_iter_forward.19} parent=0 // pred_check_branch
    %174 = sbr.rel (0) target = $region21
  $region20: #{abinet_iter_forward.19} parent=0 // pred_region
    _
  $region21: #{abinet_iter_forward.19} parent=0 // pred_fallthru
    _

// kernel: abinet_iter_forward.22
$region0: #{abinet_iter_forward.22}
  #allocation0 [shape = 'u32[]', space=smem, size = 0x4, offset = 0x4, fixed_abs, tag = 'smem constant byte address 0x4 - core index']
  #allocation1 [shape = 'u32[144,128]{1,0:T(1,128)}', space=vmem, size = 0x12000, scoped, tag = 'internal scratch']
  %s0 = inlined_call_operand.vmem [shape: f32[16,288], index: 0, kind: input, shape index: {}]
  %s1 = inlined_call_operand.vmem [shape: bf16[288,16], index: 1, kind: input, shape index: {}]
  %s2 = inlined_call_operand.vmem [shape: f32[1,16], index: 2, kind: input, shape index: {}]
  %s3 = inlined_call_operand.vmem [shape: f32[16,16], index: 3, kind: output, shape index: {}]
  %s4 = sld [smem:[#allocation0]]
  $region22: #{abinet_iter_forward.22} parent=0
    _
  %s6 = ssub.s32 1, %s4
  %s7 = scalar_select 0, %s6, %s4
  // Predicated region
  $region2: #{abinet_iter_forward.22} parent=0 // pred_check
    _
  $region3: #{abinet_iter_forward.22} parent=0 // pred_check_branch
    %9 = sbr.rel (0) target = $region5
  $region4: #{abinet_iter_forward.22} parent=0 // pred_region
    _
  $region5: #{abinet_iter_forward.22} parent=0 // pred_fallthru
    _
  // Predicated region
  $region6: #{abinet_iter_forward.22} parent=0 // pred_check
    _
  $region7: #{abinet_iter_forward.22} parent=0 // pred_check_branch
    %11 = sbr.rel (0) target = $region9
  $region8: #{abinet_iter_forward.22} parent=0 // pred_region
    _
  $region9: #{abinet_iter_forward.22} parent=0 // pred_fallthru
    _
  // Predicated region
  $region10: #{abinet_iter_forward.22} parent=0 // pred_check
    _
  $region11: #{abinet_iter_forward.22} parent=0 // pred_check_branch
    %13 = sbr.rel (0) target = $region13
  $region12: #{abinet_iter_forward.22} parent=0 // pred_region
    _
  $region13: #{abinet_iter_forward.22} parent=0 // pred_fallthru
    _
  %v15 = vld [vmem:[%s0] sm:$0xff]
  %v16 = vld [vmem:[%s0 + $0x8] sm:$0xff]
  %v17 = vld [vmem:[%s0 + $0x10] sm:$0xff]
  %v18 = vld [vmem:[%s0 + $0x18] sm:$0xff]
  %v19 = vld [vmem:[%s0 + $0x20] sm:$0xff]
  %v20 = vld [vmem:[%s0 + $0x28] sm:$0xff]
  %v21 = vpack.c.bf16 %v18, %v15
  %v22 = vpack.c.bf16 %v19, %v16
  %v23 = vpack.c.bf16 %v20, %v17
  %v24 = vld [vmem:[%s1] sm:$0xf]
  %v25 = vld [vmem:[%s1 + $0x4] sm:$0xf]
  %v26 = vld [vmem:[%s1 + $0x8] sm:$0xf]
  %v27 = vld [vmem:[%s1 + $0xc] sm:$0xf]
  %v28 = vld [vmem:[%s1 + $0x10] sm:$0xf]
  %v29 = vld [vmem:[%s1 + $0x14] sm:$0xf]
  %v30 = vld [vmem:[%s1 + $0x18] sm:$0xf]
  %v31 = vld [vmem:[%s1 + $0x1c] sm:$0xf]
  %v32 = vld [vmem:[%s1 + $0x20] sm:$0xf]
  %v33 = vld [vmem:[%s1 + $0x24] sm:$0xf]
  %v34 = vld [vmem:[%s1 + $0x28] sm:$0xf]
  %v35 = vld [vmem:[%s1 + $0x2c] sm:$0xf]
  %v36 = vld [vmem:[%s1 + $0x30] sm:$0xf]
  %v37 = vld [vmem:[%s1 + $0x34] sm:$0xf]
  %v38 = vld [vmem:[%s1 + $0x38] sm:$0xf]
  %v39 = vld [vmem:[%s1 + $0x3c] sm:$0xf]
  %v40 = vld [vmem:[%s1 + $0x40] sm:$0xf]
  %v41 = vld [vmem:[%s1 + $0x44] sm:$0xf]
  %v42 = vld [vmem:[%s1 + $0x48] sm:$0xf]
  %v43 = vld [vmem:[%s1 + $0x4c] sm:$0xf]
  %v44 = vld [vmem:[%s1 + $0x50] sm:$0xf]
  %v45 = vld [vmem:[%s1 + $0x54] sm:$0xf]
  %v46 = vld [vmem:[%s1 + $0x58] sm:$0xf]
  %v47 = vld [vmem:[%s1 + $0x5c] sm:$0xf]
  %v48 = vld [vmem:[%s1 + $0x60] sm:$0xf]
  %v49 = vld [vmem:[%s1 + $0x64] sm:$0xf]
  %v50 = vld [vmem:[%s1 + $0x68] sm:$0xf]
  %v51 = vld [vmem:[%s1 + $0x6c] sm:$0xf]
  %v52 = vld [vmem:[%s1 + $0x70] sm:$0xf]
  %v53 = vld [vmem:[%s1 + $0x74] sm:$0xf]
  %v54 = vld [vmem:[%s1 + $0x78] sm:$0xf]
  %v55 = vld [vmem:[%s1 + $0x7c] sm:$0xf]
  %v56 = vld [vmem:[%s1 + $0x80] sm:$0xf]
  %v57 = vld [vmem:[%s1 + $0x84] sm:$0xf]
  %v58 = vld [vmem:[%s1 + $0x88] sm:$0xf]
  %v59 = vld [vmem:[%s1 + $0x8c] sm:$0xf]
  %v60 = vld [vmem:[%s2] sm:$0x1]
  %v62 = vlaneseq
  %v63 = vshrl.u32 %v62, 7
  %v64 = vsub.s32 0, %v63
  %v65 = vrot.slane %v60, %v64
  %v103 = vunpack.c.l.b16 %v24
  %v104 = vunpack.c.l.b16 %v25
  %v105 = vunpack.c.l.b16 %v26
  %v106 = vunpack.c.l.b16 %v27
  %v107 = vunpack.c.l.b16 %v28
  %v108 = vunpack.c.l.b16 %v29
  %v109 = vunpack.c.l.b16 %v30
  %v110 = vunpack.c.l.b16 %v31
  %v111 = vunpack.c.l.b16 %v32
  %v112 = vunpack.c.l.b16 %v33
  %v113 = vunpack.c.l.b16 %v34
  %v114 = vunpack.c.l.b16 %v35
  %v115 = vunpack.c.l.b16 %v36
  %v116 = vunpack.c.l.b16 %v37
  %v117 = vunpack.c.l.b16 %v38
  %v118 = vunpack.c.l.b16 %v39
  %v119 = vunpack.c.l.b16 %v40
  %v120 = vunpack.c.l.b16 %v41
  %v121 = vunpack.c.l.b16 %v42
  %v122 = vunpack.c.l.b16 %v43
  %v123 = vunpack.c.l.b16 %v44
  %v124 = vunpack.c.l.b16 %v45
  %v125 = vunpack.c.l.b16 %v46
  %v126 = vunpack.c.l.b16 %v47
  %v127 = vunpack.c.l.b16 %v48
  %v128 = vunpack.c.l.b16 %v49
  %v129 = vunpack.c.l.b16 %v50
  %v130 = vunpack.c.l.b16 %v51
  %v131 = vunpack.c.l.b16 %v52
  %v132 = vunpack.c.l.b16 %v53
  %v133 = vunpack.c.l.b16 %v54
  %v134 = vunpack.c.l.b16 %v55
  %v135 = vunpack.c.l.b16 %v56
  %v136 = vunpack.c.l.b16 %v57
  %v137 = vunpack.c.l.b16 %v58
  %v138 = vunpack.c.l.b16 %v59
  %v139 = vpack.c.b16 %v104, %v103
  %v140 = vpack.c.b16 %v106, %v105
  %v141 = vpack.c.b16 %v108, %v107
  %v142 = vpack.c.b16 %v110, %v109
  %v143 = vpack.c.b16 %v112, %v111
  %v144 = vpack.c.b16 %v114, %v113
  %v145 = vpack.c.b16 %v116, %v115
  %v146 = vpack.c.b16 %v118, %v117
  %v147 = vpack.c.b16 %v120, %v119
  %v148 = vpack.c.b16 %v122, %v121
  %v149 = vpack.c.b16 %v124, %v123
  %v150 = vpack.c.b16 %v126, %v125
  %v151 = vpack.c.b16 %v128, %v127
  %v152 = vpack.c.b16 %v130, %v129
  %v153 = vpack.c.b16 %v132, %v131
  %v154 = vpack.c.b16 %v134, %v133
  %v155 = vpack.c.b16 %v136, %v135
  %v156 = vpack.c.b16 %v138, %v137
  %vm175 = vcmask 261120
  %v177 = vsel %vm175, %v23, 0
  %179 = vmatprep.subr.bf16.mxu0 0
  %180 = vmatpush1.bf16.msra.mxu0 %v139
  %181 = vmatprep.subr.bf16.mxu0 0
  %182 = vmatpush1.bf16.msra.mxu0 %v140
  %183 = vmatprep.subr.bf16.mxu0 0
  %184 = vmatpush1.bf16.msra.mxu0 %v141
  %185 = vmatprep.subr.bf16.mxu0 0
  %186 = vmatpush1.bf16.msra.mxu0 %v142
  %187 = vmatprep.subr.bf16.mxu0 0
  %188 = vmatpush1.bf16.msra.mxu0 %v143
  %189 = vmatprep.subr.bf16.mxu0 0
  %190 = vmatpush1.bf16.msra.mxu0 %v144
  %191 = vmatprep.subr.bf16.mxu0 0
  %192 = vmatpush1.bf16.msra.mxu0 %v145
  %193 = vmatprep.subr.bf16.mxu0 0
  %194 = vmatpush1.bf16.msra.mxu0 %v146
  %195 = vmatprep.subr.bf16.mxu0 0
  %196 = vmatpush1.bf16.msra.mxu0 %v147
  %197 = vmatprep.subr.bf16.mxu0 0
  %198 = vmatpush1.bf16.msra.mxu0 %v148
  %199 = vmatprep.subr.bf16.mxu0 0
  %200 = vmatpush1.bf16.msra.mxu0 %v149
  %201 = vmatprep.subr.bf16.mxu0 0
  %202 = vmatpush1.bf16.msra.mxu0 %v150
  %203 = vmatprep.subr.bf16.mxu0 0
  %204 = vmatpush1.bf16.msra.mxu0 %v151
  %205 = vmatprep.subr.bf16.mxu0 0
  %206 = vmatpush1.bf16.msra.mxu0 %v152
  %207 = vmatprep.subr.bf16.mxu0 0
  %208 = vmatpush1.bf16.msra.mxu0 %v153
  %209 = vmatprep.subr.bf16.mxu0 0
  %210 = vmatpush1.bf16.msra.mxu0 %v154
  %211 = vmatprep.mubr.bf16.mxu0 %v22
  %212 = vmatmul.mubr.bf16.gmra.mrb[0].mxu0 %v21
  %v213 = vpop.f32.mrb[0].mxu0
  %v214 = vadd.f32 %v65, %v213
  %v215 = vpop.f32.mrb[0].mxu0
  %v216 = vpop.f32.mrb[0].mxu0
  %v217 = vadd.f32 %v65, %v216
  %v218 = vpop.f32.mrb[0].mxu0
  %219 = vdwg.mxu0
  %220 = vmatprep.subr.bf16.mxu0 0
  %221 = vmatpush1.bf16.msra.mxu0 %v155
  %222 = vmatprep.subr.bf16.mxu0 0
  %223 = vmatpush1.bf16.msra.mxu0 %v156
  %224 = vmatprep.subr.bf16.mxu0 0
  %225 = vmatpush1.bf16.msra.mxu0 0
  %226 = vmatprep.subr.bf16.mxu0 0
  %227 = vmatpush1.bf16.msra.mxu0 0
  %228 = vmatprep.subr.bf16.mxu0 0
  %229 = vmatpush1.bf16.msra.mxu0 0
  %230 = vmatprep.subr.bf16.mxu0 0
  %231 = vmatpush1.bf16.msra.mxu0 0
  %232 = vmatprep.subr.bf16.mxu0 0
  %233 = vmatpush1.bf16.msra.mxu0 0
  %234 = vmatprep.subr.bf16.mxu0 0
  %235 = vmatpush1.bf16.msra.mxu0 0
  %236 = vmatprep.subr.bf16.mxu0 0
  %237 = vmatpush1.bf16.msra.mxu0 0
  %238 = vmatprep.subr.bf16.mxu0 0
  %239 = vmatpush1.bf16.msra.mxu0 0
  %240 = vmatprep.subr.bf16.mxu0 0
  %241 = vmatpush1.bf16.msra.mxu0 0
  %242 = vmatprep.subr.bf16.mxu0 0
  %243 = vmatpush1.bf16.msra.mxu0 0
  %244 = vmatprep.subr.bf16.mxu0 0
  %245 = vmatpush1.bf16.msra.mxu0 0
  %246 = vmatprep.subr.bf16.mxu0 0
  %247 = vmatpush1.bf16.msra.mxu0 0
  %248 = vmatprep.subr.bf16.mxu0 0
  %249 = vmatpush1.bf16.msra.mxu0 0
  %250 = vmatprep.subr.bf16.mxu0 0
  %251 = vmatpush1.bf16.msra.mxu0 0
  %252 = vmatprep.mubr.bf16.mxu0 0
  %253 = vmatmul.mubr.bf16.gmra.mrb[0].mxu0 %v177
  %v254 = vpop.f32.mrb[0].mxu0
  %v255 = vadd.f32 %v214, %v254
  %v256 = vpop.f32.mrb[0].mxu0
  %v257 = vpop.f32.mrb[0].mxu0
  %v258 = vadd.f32 %v217, %v257
  %v259 = vpop.f32.mrb[0].mxu0
  %260 = vdwg.mxu0
  %v261 = vmax.f32 %v255, 0.0
  %v262 = vmax.f32 %v258, 0.0
  %vm263 = vcmask 130048
  %264 = vst.msk [vmem:[%s3] sm:$0xff] %vm263, %v261
  %265 = vst.msk [vmem:[%s3 + $0x8] sm:$0xff] %vm263, %v262
  // Predicated region
  $region14: #{abinet_iter_forward.22} parent=0 // pred_check
    _
  $region15: #{abinet_iter_forward.22} parent=0 // pred_check_branch
    %267 = sbr.rel (0) target = $region17
  $region16: #{abinet_iter_forward.22} parent=0 // pred_region
    _
  $region17: #{abinet_iter_forward.22} parent=0 // pred_fallthru
    _
  // Predicated region
  $region18: #{abinet_iter_forward.22} parent=0 // pred_check
    _
  $region19: #{abinet_iter_forward.22} parent=0 // pred_check_branch
    %269 = sbr.rel (0) target = $region21
  $region20: #{abinet_iter_forward.22} parent=0 // pred_region
    _
  $region21: #{abinet_iter_forward.22} parent=0 // pred_fallthru
    _

// kernel: abinet_iter_forward.20
$region0: #{abinet_iter_forward.20}
  #allocation0 [shape = 'u32[]', space=smem, size = 0x4, offset = 0x4, fixed_abs, tag = 'smem constant byte address 0x4 - core index']
  #allocation1 [shape = 'u32[144,128]{1,0:T(1,128)}', space=vmem, size = 0x12000, scoped, tag = 'internal scratch']
  %s0 = inlined_call_operand.vmem [shape: f32[2,16,32], index: 0, kind: input, shape index: {}]
  %s1 = inlined_call_operand.vmem [shape: bf16[32,96], index: 1, kind: input, shape index: {}]
  %s2 = inlined_call_operand.vmem [shape: f32[1,96], index: 2, kind: input, shape index: {}]
  %s3 = inlined_call_operand.vmem [shape: bf16[32,32], index: 3, kind: input, shape index: {}]
  %s4 = inlined_call_operand.vmem [shape: f32[1,32], index: 4, kind: input, shape index: {}]
  %s5 = inlined_call_operand.vmem [shape: f32[1,32], index: 5, kind: input, shape index: {}]
  %s6 = inlined_call_operand.vmem [shape: f32[1,32], index: 6, kind: input, shape index: {}]
  %s7 = inlined_call_operand.vmem [shape: bf16[32,64], index: 7, kind: input, shape index: {}]
  %s8 = inlined_call_operand.vmem [shape: f32[1,64], index: 8, kind: input, shape index: {}]
  %s9 = inlined_call_operand.vmem [shape: bf16[64,32], index: 9, kind: input, shape index: {}]
  %s10 = inlined_call_operand.vmem [shape: f32[1,32], index: 10, kind: input, shape index: {}]
  %s11 = inlined_call_operand.vmem [shape: f32[1,32], index: 11, kind: input, shape index: {}]
  %s12 = inlined_call_operand.vmem [shape: f32[1,32], index: 12, kind: input, shape index: {}]
  %s13 = inlined_call_operand.vmem [shape: f32[2,16,32], index: 13, kind: output, shape index: {}]
  %s14 = sld [smem:[#allocation0]]
  $region85: #{abinet_iter_forward.20} parent=0
    _
  %s16 = ssub.s32 1, %s14
  %s17 = scalar_select 0, %s16, %s14
  loop: start=0, step=1, limit=4
  $region2: #{abinet_iter_forward.20} parent=0 // loop_pre_header
    _
  $region3: #{abinet_iter_forward.20} parent=0 // loop_header
    %s19 = sphi 0, %s23
    %p20 = scmp.ge.s32.totalorder %s19, 4
    %s29 = sphi 0, %s31
    %s32 = sphi 0, %s29
    %s33 = sphi 0, %s32
    %s49 = sphi 0, %s33
    %s53 = sphi 0, %s53
    %s55 = sphi 0, %s53
    %s56 = sphi 0, %s55
    %s70 = sphi 0, %s56
    %s74 = sphi 0, %s74
    %s76 = sphi 0, %s74
    %s77 = sphi 0, %s76
    %s91 = sphi 0, %s77
    %s95 = sphi 0, %s95
    %s97 = sphi 0, %s95
    %s98 = sphi 0, %s97
    %s112 = sphi 0, %s98
    %s116 = sphi 0, %s116
    %s118 = sphi 0, %s116
    %s119 = sphi 0, %s118
    %s133 = sphi 0, %s119
    %s137 = sphi 0, %s137
    %s139 = sphi 0, %s137
    %s140 = sphi 0, %s139
    %s154 = sphi 0, %s140
    %s158 = sphi 0, %s158
    %s160 = sphi 0, %s158
    %s161 = sphi 0, %s160
    %s175 = sphi 0, %s161
    %s179 = sphi 0, %s179
    %s181 = sphi 0, %s179
    %s182 = sphi 0, %s181
    %s196 = sphi 0, %s182
    %s200 = sphi 0, %s200
    %s202 = sphi 0, %s200
    %s203 = sphi 0, %s202
    %s217 = sphi 0, %s203
    %s221 = sphi 0, %s221
    %s223 = sphi 0, %s221
    %s224 = sphi 0, %s223
    %s238 = sphi 0, %s224
    %s242 = sphi 0, %s242
    %s244 = sphi 0, %s242
    %s245 = sphi 0, %s244
    %s259 = sphi 0, %s245
    %s263 = sphi 0, %s263
    %s265 = sphi 0, %s263
    %s266 = sphi 0, %s265
    %s280 = sphi 0, %s266
    %s284 = sphi 0, %s284
    %s286 = sphi 0, %s284
    %s287 = sphi 0, %s286
    %s301 = sphi 0, %s287
    %s307 = sphi 0, %s309
    %s310 = sphi 0, %s307
    %s311 = sphi 0, %s310
    %s327 = sphi 0, %s311
  $region4: #{abinet_iter_forward.20} parent=0 // loop_header_branch
    %22 = sbr.rel (%p20) target = $region8
  $region5: #{abinet_iter_forward.20} parent=0 // loop_body
    %s24 = ssub.s32 %s19, 1
    %s25 = ssub.s32 %s19, 2
    %s26 = sadd.s32 %s19, 1
    %s27 = ssub.s32 %s19, %s26
    %p28 = scmp.eq.s32.totalorder %s27, 0
    %s30 = sadd.s32 %s29, 1
    %s31 = scalar_select %p28, %s29, %s30
    %p34 = pneg %p28
    %p35 = scmp.eq.s32.totalorder %s19, 1
    %p36 = por %p34, %p35
    %p37 = scmp.ne.s32.totalorder %s29, %s32
    %p38 = scmp.eq.s32.totalorder %s19, 0
    %p39 = por %p37, %p38
    %p40 = scmp.ne.s32.totalorder %s29, %s32
    %p41 = scmp.eq.s32.totalorder %s24, 1
    %p42 = por %p40, %p41
    %p43 = scmp.ne.s32.totalorder %s32, %s33
    %p44 = scmp.eq.s32.totalorder %s24, 0
    %p45 = por %p43, %p44
    %p46 = scmp.ne.s32.totalorder %s32, %s33
    %p47 = scmp.eq.s32.totalorder %s25, 1
    %p48 = por %p46, %p47
    %p50 = scmp.ne.s32.totalorder %s33, %s49
    %p51 = scmp.eq.s32.totalorder %s25, 0
    %p52 = por %p50, %p51
    %s54 = sadd.s32 %s53, 1
    %p57 = scmp.eq.s32.totalorder %s19, 1
    %p58 = scmp.ne.s32.totalorder %s53, %s55
    %p59 = scmp.eq.s32.totalorder %s19, 0
    %p60 = por %p58, %p59
    %p61 = scmp.ne.s32.totalorder %s53, %s55
    %p62 = scmp.eq.s32.totalorder %s24, 1
    %p63 = por %p61, %p62
    %p64 = scmp.ne.s32.totalorder %s55, %s56
    %p65 = scmp.eq.s32.totalorder %s24, 0
    %p66 = por %p64, %p65
    %p67 = scmp.ne.s32.totalorder %s55, %s56
    %p68 = scmp.eq.s32.totalorder %s25, 1
    %p69 = por %p67, %p68
    %p71 = scmp.ne.s32.totalorder %s56, %s70
    %p72 = scmp.eq.s32.totalorder %s25, 0
    %p73 = por %p71, %p72
    %s75 = sadd.s32 %s74, 1
    %p78 = scmp.eq.s32.totalorder %s19, 1
    %p79 = scmp.ne.s32.totalorder %s74, %s76
    %p80 = scmp.eq.s32.totalorder %s19, 0
    %p81 = por %p79, %p80
    %p82 = scmp.ne.s32.totalorder %s74, %s76
    %p83 = scmp.eq.s32.totalorder %s24, 1
    %p84 = por %p82, %p83
    %p85 = scmp.ne.s32.totalorder %s76, %s77
    %p86 = scmp.eq.s32.totalorder %s24, 0
    %p87 = por %p85, %p86
    %p88 = scmp.ne.s32.totalorder %s76, %s77
    %p89 = scmp.eq.s32.totalorder %s25, 1
    %p90 = por %p88, %p89
    %p92 = scmp.ne.s32.totalorder %s77, %s91
    %p93 = scmp.eq.s32.totalorder %s25, 0
    %p94 = por %p92, %p93
    %s96 = sadd.s32 %s95, 1
    %p99 = scmp.eq.s32.totalorder %s19, 1
    %p100 = scmp.ne.s32.totalorder %s95, %s97
    %p101 = scmp.eq.s32.totalorder %s19, 0
    %p102 = por %p100, %p101
    %p103 = scmp.ne.s32.totalorder %s95, %s97
    %p104 = scmp.eq.s32.totalorder %s24, 1
    %p105 = por %p103, %p104
    %p106 = scmp.ne.s32.totalorder %s97, %s98
    %p107 = scmp.eq.s32.totalorder %s24, 0
    %p108 = por %p106, %p107
    %p109 = scmp.ne.s32.totalorder %s97, %s98
    %p110 = scmp.eq.s32.totalorder %s25, 1
    %p111 = por %p109, %p110
    %p113 = scmp.ne.s32.totalorder %s98, %s112
    %p114 = scmp.eq.s32.totalorder %s25, 0
    %p115 = por %p113, %p114
    %s117 = sadd.s32 %s116, 1
    %p120 = scmp.eq.s32.totalorder %s19, 1
    %p121 = scmp.ne.s32.totalorder %s116, %s118
    %p122 = scmp.eq.s32.totalorder %s19, 0
    %p123 = por %p121, %p122
    %p124 = scmp.ne.s32.totalorder %s116, %s118
    %p125 = scmp.eq.s32.totalorder %s24, 1
    %p126 = por %p124, %p125
    %p127 = scmp.ne.s32.totalorder %s118, %s119
    %p128 = scmp.eq.s32.totalorder %s24, 0
    %p129 = por %p127, %p128
    %p130 = scmp.ne.s32.totalorder %s118, %s119
    %p131 = scmp.eq.s32.totalorder %s25, 1
    %p132 = por %p130, %p131
    %p134 = scmp.ne.s32.totalorder %s119, %s133
    %p135 = scmp.eq.s32.totalorder %s25, 0
    %p136 = por %p134, %p135
    %s138 = sadd.s32 %s137, 1
    %p141 = scmp.eq.s32.totalorder %s19, 1
    %p142 = scmp.ne.s32.totalorder %s137, %s139
    %p143 = scmp.eq.s32.totalorder %s19, 0
    %p144 = por %p142, %p143
    %p145 = scmp.ne.s32.totalorder %s137, %s139
    %p146 = scmp.eq.s32.totalorder %s24, 1
    %p147 = por %p145, %p146
    %p148 = scmp.ne.s32.totalorder %s139, %s140
    %p149 = scmp.eq.s32.totalorder %s24, 0
    %p150 = por %p148, %p149
    %p151 = scmp.ne.s32.totalorder %s139, %s140
    %p152 = scmp.eq.s32.totalorder %s25, 1
    %p153 = por %p151, %p152
    %p155 = scmp.ne.s32.totalorder %s140, %s154
    %p156 = scmp.eq.s32.totalorder %s25, 0
    %p157 = por %p155, %p156
    %s159 = sadd.s32 %s158, 1
    %p162 = scmp.eq.s32.totalorder %s19, 1
    %p163 = scmp.ne.s32.totalorder %s158, %s160
    %p164 = scmp.eq.s32.totalorder %s19, 0
    %p165 = por %p163, %p164
    %p166 = scmp.ne.s32.totalorder %s158, %s160
    %p167 = scmp.eq.s32.totalorder %s24, 1
    %p168 = por %p166, %p167
    %p169 = scmp.ne.s32.totalorder %s160, %s161
    %p170 = scmp.eq.s32.totalorder %s24, 0
    %p171 = por %p169, %p170
    %p172 = scmp.ne.s32.totalorder %s160, %s161
    %p173 = scmp.eq.s32.totalorder %s25, 1
    %p174 = por %p172, %p173
    %p176 = scmp.ne.s32.totalorder %s161, %s175
    %p177 = scmp.eq.s32.totalorder %s25, 0
    %p178 = por %p176, %p177
    %s180 = sadd.s32 %s179, 1
    %p183 = scmp.eq.s32.totalorder %s19, 1
    %p184 = scmp.ne.s32.totalorder %s179, %s181
    %p185 = scmp.eq.s32.totalorder %s19, 0
    %p186 = por %p184, %p185
    %p187 = scmp.ne.s32.totalorder %s179, %s181
    %p188 = scmp.eq.s32.totalorder %s24, 1
    %p189 = por %p187, %p188
    %p190 = scmp.ne.s32.totalorder %s181, %s182
    %p191 = scmp.eq.s32.totalorder %s24, 0
    %p192 = por %p190, %p191
    %p193 = scmp.ne.s32.totalorder %s181, %s182
    %p194 = scmp.eq.s32.totalorder %s25, 1
    %p195 = por %p193, %p194
    %p197 = scmp.ne.s32.totalorder %s182, %s196
    %p198 = scmp.eq.s32.totalorder %s25, 0
    %p199 = por %p197, %p198
    %s201 = sadd.s32 %s200, 1
    %p204 = scmp.eq.s32.totalorder %s19, 1
    %p205 = scmp.ne.s32.totalorder %s200, %s202
    %p206 = scmp.eq.s32.totalorder %s19, 0
    %p207 = por %p205, %p206
    %p208 = scmp.ne.s32.totalorder %s200, %s202
    %p209 = scmp.eq.s32.totalorder %s24, 1
    %p210 = por %p208, %p209
    %p211 = scmp.ne.s32.totalorder %s202, %s203
    %p212 = scmp.eq.s32.totalorder %s24, 0
    %p213 = por %p211, %p212
    %p214 = scmp.ne.s32.totalorder %s202, %s203
    %p215 = scmp.eq.s32.totalorder %s25, 1
    %p216 = por %p214, %p215
    %p218 = scmp.ne.s32.totalorder %s203, %s217
    %p219 = scmp.eq.s32.totalorder %s25, 0
    %p220 = por %p218, %p219
    %s222 = sadd.s32 %s221, 1
    %p225 = scmp.eq.s32.totalorder %s19, 1
    %p226 = scmp.ne.s32.totalorder %s221, %s223
    %p227 = scmp.eq.s32.totalorder %s19, 0
    %p228 = por %p226, %p227
    %p229 = scmp.ne.s32.totalorder %s221, %s223
    %p230 = scmp.eq.s32.totalorder %s24, 1
    %p231 = por %p229, %p230
    %p232 = scmp.ne.s32.totalorder %s223, %s224
    %p233 = scmp.eq.s32.totalorder %s24, 0
    %p234 = por %p232, %p233
    %p235 = scmp.ne.s32.totalorder %s223, %s224
    %p236 = scmp.eq.s32.totalorder %s25, 1
    %p237 = por %p235, %p236
    %p239 = scmp.ne.s32.totalorder %s224, %s238
    %p240 = scmp.eq.s32.totalorder %s25, 0
    %p241 = por %p239, %p240
    %s243 = sadd.s32 %s242, 1
    %p246 = scmp.eq.s32.totalorder %s19, 1
    %p247 = scmp.ne.s32.totalorder %s242, %s244
    %p248 = scmp.eq.s32.totalorder %s19, 0
    %p249 = por %p247, %p248
    %p250 = scmp.ne.s32.totalorder %s242, %s244
    %p251 = scmp.eq.s32.totalorder %s24, 1
    %p252 = por %p250, %p251
    %p253 = scmp.ne.s32.totalorder %s244, %s245
    %p254 = scmp.eq.s32.totalorder %s24, 0
    %p255 = por %p253, %p254
    %p256 = scmp.ne.s32.totalorder %s244, %s245
    %p257 = scmp.eq.s32.totalorder %s25, 1
    %p258 = por %p256, %p257
    %p260 = scmp.ne.s32.totalorder %s245, %s259
    %p261 = scmp.eq.s32.totalorder %s25, 0
    %p262 = por %p260, %p261
    %s264 = sadd.s32 %s263, 1
    %p267 = scmp.eq.s32.totalorder %s19, 1
    %p268 = scmp.ne.s32.totalorder %s263, %s265
    %p269 = scmp.eq.s32.totalorder %s19, 0
    %p270 = por %p268, %p269
    %p271 = scmp.ne.s32.totalorder %s263, %s265
    %p272 = scmp.eq.s32.totalorder %s24, 1
    %p273 = por %p271, %p272
    %p274 = scmp.ne.s32.totalorder %s265, %s266
    %p275 = scmp.eq.s32.totalorder %s24, 0
    %p276 = por %p274, %p275
    %p277 = scmp.ne.s32.totalorder %s265, %s266
    %p278 = scmp.eq.s32.totalorder %s25, 1
    %p279 = por %p277, %p278
    %p281 = scmp.ne.s32.totalorder %s266, %s280
    %p282 = scmp.eq.s32.totalorder %s25, 0
    %p283 = por %p281, %p282
    %s285 = sadd.s32 %s284, 1
    %p288 = scmp.eq.s32.totalorder %s19, 1
    %p289 = scmp.ne.s32.totalorder %s284, %s286
    %p290 = scmp.eq.s32.totalorder %s19, 0
    %p291 = por %p289, %p290
    %p292 = scmp.ne.s32.totalorder %s284, %s286
    %p293 = scmp.eq.s32.totalorder %s24, 1
    %p294 = por %p292, %p293
    %p295 = scmp.ne.s32.totalorder %s286, %s287
    %p296 = scmp.eq.s32.totalorder %s24, 0
    %p297 = por %p295, %p296
    %p298 = scmp.ne.s32.totalorder %s286, %s287
    %p299 = scmp.eq.s32.totalorder %s25, 1
    %p300 = por %p298, %p299
    %p302 = scmp.ne.s32.totalorder %s287, %s301
    %p303 = scmp.eq.s32.totalorder %s25, 0
    %p304 = por %p302, %p303
    %s305 = ssub.s32 %s19, %s26
    %p306 = scmp.eq.s32.totalorder %s305, 0
    %s308 = sadd.s32 %s307, 1
    %s309 = scalar_select %p306, %s307, %s308
    %p312 = pneg %p306
    %p313 = scmp.eq.s32.totalorder %s19, 1
    %p314 = por %p312, %p313
    %p315 = scmp.ne.s32.totalorder %s307, %s310
    %p316 = scmp.eq.s32.totalorder %s19, 0
    %p317 = por %p315, %p316
    %p318 = scmp.ne.s32.totalorder %s307, %s310
    %p319 = scmp.eq.s32.totalorder %s24, 1
    %p320 = por %p318, %p319
    %p321 = scmp.ne.s32.totalorder %s310, %s311
    %p322 = scmp.eq.s32.totalorder %s24, 0
    %p323 = por %p321, %p322
    %p324 = scmp.ne.s32.totalorder %s310, %s311
    %p325 = scmp.eq.s32.totalorder %s25, 1
    %p326 = por %p324, %p325
    %p328 = scmp.ne.s32.totalorder %s311, %s327
    %p329 = scmp.eq.s32.totalorder %s25, 0
    %p330 = por %p328, %p329
    %p331 = scmp.le.s32.totalorder 1, %s19
    %p332 = scmp.lt.s32.totalorder %s19, 3
    %p333 = pnand %p331, %p332
    %p334 = pneg %p333
    // Predicated region
    $region9: #{abinet_iter_forward.20} parent=5 // pred_check
      _
    $region10: #{abinet_iter_forward.20} parent=5 // pred_check_branch
      %336 = sbr.rel (%p333) target = $region12
    $region11: #{abinet_iter_forward.20} parent=5 // pred_region
      %s337 = ssub.s32 %s19, 1
      // Predicated region
      $region13: #{abinet_iter_forward.20} parent=11 // pred_check
        %p338 = pneg %p66
      $region14: #{abinet_iter_forward.20} parent=11 // pred_check_branch
        %340 = sbr.rel (%p338) target = $region16
      $region15: #{abinet_iter_forward.20} parent=11 // pred_region
        _
      $region16: #{abinet_iter_forward.20} parent=11 // pred_fallthru
        _
      // Predicated region
      $region17: #{abinet_iter_forward.20} parent=11 // pred_check
        %p341 = pneg %p87
      $region18: #{abinet_iter_forward.20} parent=11 // pred_check_branch
        %343 = sbr.rel (%p341) target = $region20
      $region19: #{abinet_iter_forward.20} parent=11 // pred_region
        _
      $region20: #{abinet_iter_forward.20} parent=11 // pred_fallthru
        _
      // Predicated region
      $region21: #{abinet_iter_forward.20} parent=11 // pred_check
        %p344 = pneg %p108
      $region22: #{abinet_iter_forward.20} parent=11 // pred_check_branch
        %346 = sbr.rel (%p344) target = $region24
      $region23: #{abinet_iter_forward.20} parent=11 // pred_region
        _
      $region24: #{abinet_iter_forward.20} parent=11 // pred_fallthru
        _
      // Predicated region
      $region25: #{abinet_iter_forward.20} parent=11 // pred_check
        %p347 = pneg %p129
      $region26: #{abinet_iter_forward.20} parent=11 // pred_check_branch
        %349 = sbr.rel (%p347) target = $region28
      $region27: #{abinet_iter_forward.20} parent=11 // pred_region
        _
      $region28: #{abinet_iter_forward.20} parent=11 // pred_fallthru
        _
      // Predicated region
      $region29: #{abinet_iter_forward.20} parent=11 // pred_check
        %p350 = pneg %p150
      $region30: #{abinet_iter_forward.20} parent=11 // pred_check_branch
        %352 = sbr.rel (%p350) target = $region32
      $region31: #{abinet_iter_forward.20} parent=11 // pred_region
        _
      $region32: #{abinet_iter_forward.20} parent=11 // pred_fallthru
        _
      // Predicated region
      $region33: #{abinet_iter_forward.20} parent=11 // pred_check
        %p353 = pneg %p171
      $region34: #{abinet_iter_forward.20} parent=11 // pred_check_branch
        %355 = sbr.rel (%p353) target = $region36
      $region35: #{abinet_iter_forward.20} parent=11 // pred_region
        _
      $region36: #{abinet_iter_forward.20} parent=11 // pred_fallthru
        _
      // Predicated region
      $region37: #{abinet_iter_forward.20} parent=11 // pred_check
        %p356 = pneg %p192
      $region38: #{abinet_iter_forward.20} parent=11 // pred_check_branch
        %358 = sbr.rel (%p356) target = $region40
      $region39: #{abinet_iter_forward.20} parent=11 // pred_region
        _
      $region40: #{abinet_iter_forward.20} parent=11 // pred_fallthru
        _
      // Predicated region
      $region41: #{abinet_iter_forward.20} parent=11 // pred_check
        %p359 = pneg %p213
      $region42: #{abinet_iter_forward.20} parent=11 // pred_check_branch
        %361 = sbr.rel (%p359) target = $region44
      $region43: #{abinet_iter_forward.20} parent=11 // pred_region
        _
      $region44: #{abinet_iter_forward.20} parent=11 // pred_fallthru
        _
      // Predicated region
      $region45: #{abinet_iter_forward.20} parent=11 // pred_check
        %p362 = pneg %p234
      $region46: #{abinet_iter_forward.20} parent=11 // pred_check_branch
        %364 = sbr.rel (%p362) target = $region48
      $region47: #{abinet_iter_forward.20} parent=11 // pred_region
        _
      $region48: #{abinet_iter_forward.20} parent=11 // pred_fallthru
        _
      // Predicated region
      $region49: #{abinet_iter_forward.20} parent=11 // pred_check
        %p365 = pneg %p255
      $region50: #{abinet_iter_forward.20} parent=11 // pred_check_branch
        %367 = sbr.rel (%p365) target = $region52
      $region51: #{abinet_iter_forward.20} parent=11 // pred_region
        _
      $region52: #{abinet_iter_forward.20} parent=11 // pred_fallthru
        _
      // Predicated region
      $region53: #{abinet_iter_forward.20} parent=11 // pred_check
        %p368 = pneg %p276
      $region54: #{abinet_iter_forward.20} parent=11 // pred_check_branch
        %370 = sbr.rel (%p368) target = $region56
      $region55: #{abinet_iter_forward.20} parent=11 // pred_region
        _
      $region56: #{abinet_iter_forward.20} parent=11 // pred_fallthru
        _
      // Predicated region
      $region57: #{abinet_iter_forward.20} parent=11 // pred_check
        %p371 = pneg %p297
      $region58: #{abinet_iter_forward.20} parent=11 // pred_check_branch
        %373 = sbr.rel (%p371) target = $region60
      $region59: #{abinet_iter_forward.20} parent=11 // pred_region
        _
      $region60: #{abinet_iter_forward.20} parent=11 // pred_fallthru
        _
    $region12: #{abinet_iter_forward.20} parent=5 // pred_fallthru
      _
    %p374 = scmp.lt.s32.totalorder %s19, 2
    // Predicated region
    $region61: #{abinet_iter_forward.20} parent=5 // pred_check
      %p375 = pneg %p374
    $region62: #{abinet_iter_forward.20} parent=5 // pred_check_branch
      %377 = sbr.rel (%p375) target = $region64
    $region63: #{abinet_iter_forward.20} parent=5 // pred_region
      // Predicated region
      $region65: #{abinet_iter_forward.20} parent=63 // pred_check
        %p378 = pneg %p39
      $region66: #{abinet_iter_forward.20} parent=63 // pred_check_branch
        %380 = sbr.rel (%p378) target = $region68
      $region67: #{abinet_iter_forward.20} parent=63 // pred_region
        %p381 = scmp.lt.s32.totalorder %s19, 1
        %s382 = scalar_select %p381, %s19, 1
        %s383 = smul.addr %s382, 2
        %s384 = smul.addr %s383, 8
        %s385 = scalar_lea.vmem %s0, %s384
      $region68: #{abinet_iter_forward.20} parent=63 // pred_fallthru
        _
    $region64: #{abinet_iter_forward.20} parent=5 // pred_fallthru
      _
    %p386 = scmp.le.s32.totalorder 1, %s19
    %p387 = scmp.lt.s32.totalorder %s19, 3
    %p388 = pnand %p386, %p387
    %p389 = pneg %p388
    // Predicated region
    $region69: #{abinet_iter_forward.20} parent=5 // pred_check
      _
    $region70: #{abinet_iter_forward.20} parent=5 // pred_check_branch
      %391 = sbr.rel (%p388) target = $region72
    $region71: #{abinet_iter_forward.20} parent=5 // pred_region
      %s392 = ssub.s32 %s19, 1
      %p393 = scmp.lt.s32.totalorder %s24, 1
      %s394 = scalar_select %p393, %s24, 1
      %s395 = smul.addr %s394, 2
      %s396 = smul.addr %s395, 8
      %s397 = scalar_lea.vmem %s0, %s396
      %p398 = pneg %p45
      %p399 = pneg %p42
      %p400 = pneg %p66
      %p401 = pneg %p63
      %p402 = pneg %p87
      %p403 = pneg %p84
      %p404 = pneg %p108
      %p405 = pneg %p105
      %p406 = pneg %p129
      %p407 = pneg %p126
      %p408 = pneg %p150
      %p409 = pneg %p147
      %p410 = pneg %p171
      %p411 = pneg %p168
      %p412 = pneg %p192
      %p413 = pneg %p189
      %p414 = pneg %p213
      %p415 = pneg %p210
      %p416 = pneg %p234
      %p417 = pneg %p231
      %p418 = pneg %p255
      %p419 = pneg %p252
      %p420 = pneg %p276
      %p421 = pneg %p273
      %p422 = pneg %p297
      %p423 = pneg %p294
      %p424 = pneg %p323
      %p425 = pneg %p320
      %p426 = scmp.lt.s32.totalorder %s24, 1
      %s427 = scalar_select %p426, %s24, 1
      %s428 = smul.addr %s427, 2
      %s429 = smul.addr %s428, 8
      %s430 = scalar_lea.vmem %s13, %s429
      %p431 = scmp.lt.s32.totalorder %s24, 1
      %s432 = scalar_select %p431, %s24, 1
      %s433 = smul.addr %s432, 2
      %s434 = smul.addr %s433, 8
      %s435 = scalar_lea.vmem %s0, %s434
      %p436 = scmp.lt.s32.totalorder %s24, 1
      %s437 = scalar_select %p436, %s24, 1
      %s438 = smul.addr %s437, 2
      %s439 = smul.addr %s438, 8
      %s440 = scalar_lea.vmem %s13, %s439
      %v442 = vld [vmem:[%s435] sm:$0xff]
      %v443 = vld [vmem:[%s435 + $0x8] sm:$0xff]
      %v444 = vld [vmem:[%s1] sm:$0xf]
      %v445 = vld [vmem:[%s1 + $0x4] sm:$0xf]
      %v446 = vld [vmem:[%s1 + $0x8] sm:$0xf]
      %v447 = vld [vmem:[%s1 + $0xc] sm:$0xf]
      %v448 = vld [vmem:[%s2] sm:$0x1]
      %v449 = vpack.c.bf16 %v443, %v442
      %v451 = vlaneseq
      %v452 = vshrl.u32 %v451, 7
      %v453 = vsub.s32 0, %v452
      %v454 = vrot.slane %v448, %v453
      %v460 = vunpack.c.l.b16 %v444
      %v461 = vunpack.c.l.b16 %v445
      %v462 = vunpack.c.l.b16 %v446
      %v463 = vunpack.c.l.b16 %v447
      %v464 = vpack.c.b16 %v461, %v460
      %v465 = vpack.c.b16 %v463, %v462
      %vm468 = vcmask 261120
      %v470 = vsel %vm468, %v449, 0
      %472 = vmatprep.subr.bf16.mxu0 0
      %473 = vmatpush1.bf16.msra.mxu0 %v464
      %474 = vmatprep.subr.bf16.mxu0 0
      %475 = vmatpush1.bf16.msra.mxu0 %v465
      %476 = vmatprep.subr.bf16.mxu0 0
      %477 = vmatpush1.bf16.msra.mxu0 0
      %478 = vmatprep.subr.bf16.mxu0 0
      %479 = vmatpush1.bf16.msra.mxu0 0
      %480 = vmatprep.subr.bf16.mxu0 0
      %481 = vmatpush1.bf16.msra.mxu0 0
      %482 = vmatprep.subr.bf16.mxu0 0
      %483 = vmatpush1.bf16.msra.mxu0 0
      %484 = vmatprep.subr.bf16.mxu0 0
      %485 = vmatpush1.bf16.msra.mxu0 0
      %486 = vmatprep.subr.bf16.mxu0 0
      %487 = vmatpush1.bf16.msra.mxu0 0
      %488 = vmatprep.subr.bf16.mxu0 0
      %489 = vmatpush1.bf16.msra.mxu0 0
      %490 = vmatprep.subr.bf16.mxu0 0
      %491 = vmatpush1.bf16.msra.mxu0 0
      %492 = vmatprep.subr.bf16.mxu0 0
      %493 = vmatpush1.bf16.msra.mxu0 0
      %494 = vmatprep.subr.bf16.mxu0 0
      %495 = vmatpush1.bf16.msra.mxu0 0
      %496 = vmatprep.subr.bf16.mxu0 0
      %497 = vmatpush1.bf16.msra.mxu0 0
      %498 = vmatprep.subr.bf16.mxu0 0
      %499 = vmatpush1.bf16.msra.mxu0 0
      %500 = vmatprep.subr.bf16.mxu0 0
      %501 = vmatpush1.bf16.msra.mxu0 0
      %502 = vmatprep.subr.bf16.mxu0 0
      %503 = vmatpush1.bf16.msra.mxu0 0
      %504 = vmatprep.mubr.bf16.mxu0 0
      %505 = vmatmul.mubr.bf16.gmra.mrb[0].mxu0 %v470
      %v506 = vpop.f32.mrb[0].mxu0
      %v507 = vadd.f32 %v454, %v506
      %v508 = vpop.f32.mrb[0].mxu0
      %v509 = vpop.f32.mrb[0].mxu0
      %v510 = vadd.f32 %v454, %v509
      %v511 = vpop.f32.mrb[0].mxu0
      %512 = vdwg.mxu0
      %v513 = vpack.c.bf16 %v510, %v507
      %515 = vrot.lane.b32.xlu0 %v513, 96
      %v516 = vpop.permute.xlu0 %515
      %vm517 = vcmask 64512
      %v519 = vsel %vm517, %v513, 0
      %v522 = vsel %vm517, %v516, 0
      %524 = vmatprep.subr.bf16.mxu0 0
      %525 = vmatpush1.bf16.xpose.msra.mxu0 %v522
      %526 = vmatprep.subr.bf16.mxu0 0
      %527 = vmatpush1.bf16.xpose.msra.mxu0 0
      %528 = vmatprep.subr.bf16.mxu0 0
      %529 = vmatpush1.bf16.xpose.msra.mxu0 0
      %530 = vmatprep.subr.bf16.mxu0 0
      %531 = vmatpush1.bf16.xpose.msra.mxu0 0
      %532 = vmatprep.subr.bf16.mxu0 0
      %533 = vmatpush1.bf16.xpose.msra.mxu0 0
      %534 = vmatprep.subr.bf16.mxu0 0
      %535 = vmatpush1.bf16.xpose.msra.mxu0 0
      %536 = vmatprep.subr.bf16.mxu0 0
      %537 = vmatpush1.bf16.xpose.msra.mxu0 0
      %538 = vmatprep.subr.bf16.mxu0 0
      %539 = vmatpush1.bf16.xpose.msra.mxu0 0
      %540 = vmatprep.subr.bf16.mxu0 0
      %541 = vmatpush1.bf16.xpose.msra.mxu0 0
      %542 = vmatprep.subr.bf16.mxu0 0
      %543 = vmatpush1.bf16.xpose.msra.mxu0 0
      %544 = vmatprep.subr.bf16.mxu0 0
      %545 = vmatpush1.bf16.xpose.msra.mxu0 0
      %546 = vmatprep.subr.bf16.mxu0 0
      %547 = vmatpush1.bf16.xpose.msra.mxu0 0
      %548 = vmatprep.subr.bf16.mxu0 0
      %549 = vmatpush1.bf16.xpose.msra.mxu0 0
      %550 = vmatprep.subr.bf16.mxu0 0
      %551 = vmatpush1.bf16.xpose.msra.mxu0 0
      %552 = vmatprep.subr.bf16.mxu0 0
      %553 = vmatpush1.bf16.xpose.msra.mxu0 0
      %554 = vmatprep.subr.bf16.mxu0 0
      %555 = vmatpush1.bf16.xpose.msra.mxu0 0
      %556 = vmatprep.mubr.bf16.mxu0 0
      %557 = vmatmul.mubr.bf16.gmra.mrb[0].mxu0 %v519
      %v558 = vpop.f32.mrb[0].mxu0
      %v559 = vadd.f32 0.0, %v558
      %v560 = vpop.f32.mrb[0].mxu0
      %v561 = vpop.f32.mrb[0].mxu0
      %v562 = vadd.f32 0.0, %v561
      %v563 = vpop.f32.mrb[0].mxu0
      %564 = vdwg.mxu0
      %v565 = vmul.f32 %v559, 0.35355338
      %v566 = vmul.f32 %v562, 0.35355338
      %vm567 = vcmask 130048
      %v568 = vsel %vm567, %v565, -inf
      %569 = vmax.xlane.f32.xlu0 %v568
      %v570 = vpop.xlane.xlu0 %569
      %v571 = vsel %vm567, %v566, -inf
      %572 = vmax.xlane.f32.xlu0 %v571
      %v573 = vpop.xlane.xlu0 %572
      %v574 = vsub.f32 %v565, %v570
      %v575 = vsub.f32 %v566, %v573
      %v576 = vmul.f32 %v574, 1.442695
      %v577 = vpow.pop %v576
      %v578 = vmul.f32 %v575, 1.442695
      %v579 = vpow.pop %v578
      %v580 = vsel %vm567, %v577, 0.0
      %581 = vadd.xlane.f32.xlu0 %v580
      %v582 = vpop.xlane.xlu0 %581
      %v583 = vsel %vm567, %v579, 0.0
      %584 = vadd.xlane.f32.xlu0 %v583
      %v585 = vpop.xlane.xlu0 %584
      %v586 = vrcp.pop %v582
      %v587 = vrcp.pop %v585
      %v588 = vmul.f32 %v577, %v586
      %v589 = vmul.f32 %v579, %v587
      %v590 = vpack.c.bf16 %v589, %v588
      %591 = vrot.lane.b32.xlu0 %v513, 64
      %v592 = vpop.permute.xlu0 %591
      %v595 = vsel %vm567, %v590, 0
      %597 = vmatprep.subr.bf16.mxu0 0
      %598 = vmatpush1.bf16.msra.mxu0 %v592
      %599 = vmatprep.subr.bf16.mxu0 0
      %600 = vmatpush1.bf16.msra.mxu0 0
      %601 = vmatprep.subr.bf16.mxu0 0
      %602 = vmatpush1.bf16.msra.mxu0 0
      %603 = vmatprep.subr.bf16.mxu0 0
      %604 = vmatpush1.bf16.msra.mxu0 0
      %605 = vmatprep.subr.bf16.mxu0 0
      %606 = vmatpush1.bf16.msra.mxu0 0
      %607 = vmatprep.subr.bf16.mxu0 0
      %608 = vmatpush1.bf16.msra.mxu0 0
      %609 = vmatprep.subr.bf16.mxu0 0
      %610 = vmatpush1.bf16.msra.mxu0 0
      %611 = vmatprep.subr.bf16.mxu0 0
      %612 = vmatpush1.bf16.msra.mxu0 0
      %613 = vmatprep.subr.bf16.mxu0 0
      %614 = vmatpush1.bf16.msra.mxu0 0
      %615 = vmatprep.subr.bf16.mxu0 0
      %616 = vmatpush1.bf16.msra.mxu0 0
      %617 = vmatprep.subr.bf16.mxu0 0
      %618 = vmatpush1.bf16.msra.mxu0 0
      %619 = vmatprep.subr.bf16.mxu0 0
      %620 = vmatpush1.bf16.msra.mxu0 0
      %621 = vmatprep.subr.bf16.mxu0 0
      %622 = vmatpush1.bf16.msra.mxu0 0
      %623 = vmatprep.subr.bf16.mxu0 0
      %624 = vmatpush1.bf16.msra.mxu0 0
      %625 = vmatprep.subr.bf16.mxu0 0
      %626 = vmatpush1.bf16.msra.mxu0 0
      %627 = vmatprep.subr.bf16.mxu0 0
      %628 = vmatpush1.bf16.msra.mxu0 0
      %629 = vmatprep.mubr.bf16.mxu0 0
      %630 = vmatmul.mubr.bf16.gmra.mrb[0].mxu0 %v595
      %v631 = vpop.f32.mrb[0].mxu0
      %v632 = vadd.f32 0.0, %v631
      %v633 = vpop.f32.mrb[0].mxu0
      %v634 = vpop.f32.mrb[0].mxu0
      %v635 = vadd.f32 0.0, %v634
      %v636 = vpop.f32.mrb[0].mxu0
      %637 = vdwg.mxu0
      %638 = vrot.lane.b32.xlu0 %v513, 120
      %v639 = vpop.permute.xlu0 %638
      %640 = vrot.lane.b32.xlu0 %v513, 88
      %v641 = vpop.permute.xlu0 %640
      %v643 = vsel %vm517, %v639, 0
      %v646 = vsel %vm517, %v641, 0
      %648 = vmatprep.subr.bf16.mxu0 0
      %649 = vmatpush1.bf16.xpose.msra.mxu0 %v646
      %650 = vmatprep.subr.bf16.mxu0 0
      %651 = vmatpush1.bf16.xpose.msra.mxu0 0
      %652 = vmatprep.subr.bf16.mxu0 0
      %653 = vmatpush1.bf16.xpose.msra.mxu0 0
      %654 = vmatprep.subr.bf16.mxu0 0
      %655 = vmatpush1.bf16.xpose.msra.mxu0 0
      %656 = vmatprep.subr.bf16.mxu0 0
      %657 = vmatpush1.bf16.xpose.msra.mxu0 0
      %658 = vmatprep.subr.bf16.mxu0 0
      %659 = vmatpush1.bf16.xpose.msra.mxu0 0
      %660 = vmatprep.subr.bf16.mxu0 0
      %661 = vmatpush1.bf16.xpose.msra.mxu0 0
      %662 = vmatprep.subr.bf16.mxu0 0
      %663 = vmatpush1.bf16.xpose.msra.mxu0 0
      %664 = vmatprep.subr.bf16.mxu0 0
      %665 = vmatpush1.bf16.xpose.msra.mxu0 0
      %666 = vmatprep.subr.bf16.mxu0 0
      %667 = vmatpush1.bf16.xpose.msra.mxu0 0
      %668 = vmatprep.subr.bf16.mxu0 0
      %669 = vmatpush1.bf16.xpose.msra.mxu0 0
      %670 = vmatprep.subr.bf16.mxu0 0
      %671 = vmatpush1.bf16.xpose.msra.mxu0 0
      %672 = vmatprep.subr.bf16.mxu0 0
      %673 = vmatpush1.bf16.xpose.msra.mxu0 0
      %674 = vmatprep.subr.bf16.mxu0 0
      %675 = vmatpush1.bf16.xpose.msra.mxu0 0
      %676 = vmatprep.subr.bf16.mxu0 0
      %677 = vmatpush1.bf16.xpose.msra.mxu0 0
      %678 = vmatprep.subr.bf16.mxu0 0
      %679 = vmatpush1.bf16.xpose.msra.mxu0 0
      %680 = vmatprep.mubr.bf16.mxu0 0
      %681 = vmatmul.mubr.bf16.gmra.mrb[0].mxu0 %v643
      %v682 = vpop.f32.mrb[0].mxu0
      %v683 = vadd.f32 0.0, %v682
      %v684 = vpop.f32.mrb[0].mxu0
      %v685 = vpop.f32.mrb[0].mxu0
      %v686 = vadd.f32 0.0, %v685
      %v687 = vpop.f32.mrb[0].mxu0
      %688 = vdwg.mxu0
      %v689 = vmul.f32 %v683, 0.35355338
      %v690 = vmul.f32 %v686, 0.35355338
      %v691 = vsel %vm567, %v689, -inf
      %692 = vmax.xlane.f32.xlu0 %v691
      %v693 = vpop.xlane.xlu0 %692
      %v694 = vsel %vm567, %v690, -inf
      %695 = vmax.xlane.f32.xlu0 %v694
      %v696 = vpop.xlane.xlu0 %695
      %v697 = vsub.f32 %v689, %v693
      %v698 = vsub.f32 %v690, %v696
      %v699 = vmul.f32 %v697, 1.442695
      %v700 = vpow.pop %v699
      %v701 = vmul.f32 %v698, 1.442695
      %v702 = vpow.pop %v701
      %v703 = vsel %vm567, %v700, 0.0
      %704 = vadd.xlane.f32.xlu0 %v703
      %v705 = vpop.xlane.xlu0 %704
      %v706 = vsel %vm567, %v702, 0.0
      %707 = vadd.xlane.f32.xlu0 %v706
      %v708 = vpop.xlane.xlu0 %707
      %v709 = vrcp.pop %v705
      %v710 = vrcp.pop %v708
      %v711 = vmul.f32 %v700, %v709
      %v712 = vmul.f32 %v702, %v710
      %v713 = vpack.c.bf16 %v712, %v711
      %714 = vrot.lane.b32.xlu0 %v513, 56
      %v715 = vpop.permute.xlu0 %714
      %v718 = vsel %vm567, %v713, 0
      %720 = vmatprep.subr.bf16.mxu0 0
      %721 = vmatpush1.bf16.msra.mxu0 %v715
      %722 = vmatprep.subr.bf16.mxu0 0
      %723 = vmatpush1.bf16.msra.mxu0 0
      %724 = vmatprep.subr.bf16.mxu0 0
      %725 = vmatpush1.bf16.msra.mxu0 0
      %726 = vmatprep.subr.bf16.mxu0 0
      %727 = vmatpush1.bf16.msra.mxu0 0
      %728 = vmatprep.subr.bf16.mxu0 0
      %729 = vmatpush1.bf16.msra.mxu0 0
      %730 = vmatprep.subr.bf16.mxu0 0
      %731 = vmatpush1.bf16.msra.mxu0 0
      %732 = vmatprep.subr.bf16.mxu0 0
      %733 = vmatpush1.bf16.msra.mxu0 0
      %734 = vmatprep.subr.bf16.mxu0 0
      %735 = vmatpush1.bf16.msra.mxu0 0
      %736 = vmatprep.subr.bf16.mxu0 0
      %737 = vmatpush1.bf16.msra.mxu0 0
      %738 = vmatprep.subr.bf16.mxu0 0
      %739 = vmatpush1.bf16.msra.mxu0 0
      %740 = vmatprep.subr.bf16.mxu0 0
      %741 = vmatpush1.bf16.msra.mxu0 0
      %742 = vmatprep.subr.bf16.mxu0 0
      %743 = vmatpush1.bf16.msra.mxu0 0
      %744 = vmatprep.subr.bf16.mxu0 0
      %745 = vmatpush1.bf16.msra.mxu0 0
      %746 = vmatprep.subr.bf16.mxu0 0
      %747 = vmatpush1.bf16.msra.mxu0 0
      %748 = vmatprep.subr.bf16.mxu0 0
      %749 = vmatpush1.bf16.msra.mxu0 0
      %750 = vmatprep.subr.bf16.mxu0 0
      %751 = vmatpush1.bf16.msra.mxu0 0
      %752 = vmatprep.mubr.bf16.mxu0 0
      %753 = vmatmul.mubr.bf16.gmra.mrb[0].mxu0 %v718
      %v754 = vpop.f32.mrb[0].mxu0
      %v755 = vadd.f32 0.0, %v754
      %v756 = vpop.f32.mrb[0].mxu0
      %v757 = vpop.f32.mrb[0].mxu0
      %v758 = vadd.f32 0.0, %v757
      %v759 = vpop.f32.mrb[0].mxu0
      %760 = vdwg.mxu0
      %761 = vrot.lane.b32.xlu0 %v513, 112
      %v762 = vpop.permute.xlu0 %761
      %763 = vrot.lane.b32.xlu0 %v513, 80
      %v764 = vpop.permute.xlu0 %763
      %v766 = vsel %vm517, %v762, 0
      %v769 = vsel %vm517, %v764, 0
      %771 = vmatprep.subr.bf16.mxu0 0
      %772 = vmatpush1.bf16.xpose.msra.mxu0 %v769
      %773 = vmatprep.subr.bf16.mxu0 0
      %774 = vmatpush1.bf16.xpose.msra.mxu0 0
      %775 = vmatprep.subr.bf16.mxu0 0
      %776 = vmatpush1.bf16.xpose.msra.mxu0 0
      %777 = vmatprep.subr.bf16.mxu0 0
      %778 = vmatpush1.bf16.xpose.msra.mxu0 0
      %779 = vmatprep.subr.bf16.mxu0 0
      %780 = vmatpush1.bf16.xpose.msra.mxu0 0
      %781 = vmatprep.subr.bf16.mxu0 0
      %782 = vmatpush1.bf16.xpose.msra.mxu0 0
      %783 = vmatprep.subr.bf16.mxu0 0
      %784 = vmatpush1.bf16.xpose.msra.mxu0 0
      %785 = vmatprep.subr.bf16.mxu0 0
      %786 = vmatpush1.bf16.xpose.msra.mxu0 0
      %787 = vmatprep.subr.bf16.mxu0 0
      %788 = vmatpush1.bf16.xpose.msra.mxu0 0
      %789 = vmatprep.subr.bf16.mxu0 0
      %790 = vmatpush1.bf16.xpose.msra.mxu0 0
      %791 = vmatprep.subr.bf16.mxu0 0
      %792 = vmatpush1.bf16.xpose.msra.mxu0 0
      %793 = vmatprep.subr.bf16.mxu0 0
      %794 = vmatpush1.bf16.xpose.msra.mxu0 0
      %795 = vmatprep.subr.bf16.mxu0 0
      %796 = vmatpush1.bf16.xpose.msra.mxu0 0
      %797 = vmatprep.subr.bf16.mxu0 0
      %798 = vmatpush1.bf16.xpose.msra.mxu0 0
      %799 = vmatprep.subr.bf16.mxu0 0
      %800 = vmatpush1.bf16.xpose.msra.mxu0 0
      %801 = vmatprep.subr.bf16.mxu0 0
      %802 = vmatpush1.bf16.xpose.msra.mxu0 0
      %803 = vmatprep.mubr.bf16.mxu0 0
      %804 = vmatmul.mubr.bf16.gmra.mrb[0].mxu0 %v766
      %v805 = vpop.f32.mrb[0].mxu0
      %v806 = vadd.f32 0.0, %v805
      %v807 = vpop.f32.mrb[0].mxu0
      %v808 = vpop.f32.mrb[0].mxu0
      %v809 = vadd.f32 0.0, %v808
      %v810 = vpop.f32.mrb[0].mxu0
      %811 = vdwg.mxu0
      %v812 = vmul.f32 %v806, 0.35355338
      %v813 = vmul.f32 %v809, 0.35355338
      %v814 = vsel %vm567, %v812, -inf
      %815 = vmax.xlane.f32.xlu0 %v814
      %v816 = vpop.xlane.xlu0 %815
      %v817 = vsel %vm567, %v813, -inf
      %818 = vmax.xlane.f32.xlu0 %v817
      %v819 = vpop.xlane.xlu0 %818
      %v820 = vsub.f32 %v812, %v816
      %v821 = vsub.f32 %v813, %v819
      %v822 = vmul.f32 %v820, 1.442695
      %v823 = vpow.pop %v822
      %v824 = vmul.f32 %v821, 1.442695
      %v825 = vpow.pop %v824
      %v826 = vsel %vm567, %v823, 0.0
      %827 = vadd.xlane.f32.xlu0 %v826
      %v828 = vpop.xlane.xlu0 %827
      %v829 = vsel %vm567, %v825, 0.0
      %830 = vadd.xlane.f32.xlu0 %v829
      %v831 = vpop.xlane.xlu0 %830
      %v832 = vrcp.pop %v828
      %v833 = vrcp.pop %v831
      %v834 = vmul.f32 %v823, %v832
      %v835 = vmul.f32 %v825, %v833
      %v836 = vpack.c.bf16 %v835, %v834
      %837 = vrot.lane.b32.xlu0 %v513, 48
      %v838 = vpop.permute.xlu0 %837
      %v841 = vsel %vm567, %v836, 0
      %843 = vmatprep.subr.bf16.mxu0 0
      %844 = vmatpush1.bf16.msra.mxu0 %v838
      %845 = vmatprep.subr.bf16.mxu0 0
      %846 = vmatpush1.bf16.msra.mxu0 0
      %847 = vmatprep.subr.bf16.mxu0 0
      %848 = vmatpush1.bf16.msra.mxu0 0
      %849 = vmatprep.subr.bf16.mxu0 0
      %850 = vmatpush1.bf16.msra.mxu0 0
      %851 = vmatprep.subr.bf16.mxu0 0
      %852 = vmatpush1.bf16.msra.mxu0 0
      %853 = vmatprep.subr.bf16.mxu0 0
      %854 = vmatpush1.bf16.msra.mxu0 0
      %855 = vmatprep.subr.bf16.mxu0 0
      %856 = vmatpush1.bf16.msra.mxu0 0
      %857 = vmatprep.subr.bf16.mxu0 0
      %858 = vmatpush1.bf16.msra.mxu0 0
      %859 = vmatprep.subr.bf16.mxu0 0
      %860 = vmatpush1.bf16.msra.mxu0 0
      %861 = vmatprep.subr.bf16.mxu0 0
      %862 = vmatpush1.bf16.msra.mxu0 0
      %863 = vmatprep.subr.bf16.mxu0 0
      %864 = vmatpush1.bf16.msra.mxu0 0
      %865 = vmatprep.subr.bf16.mxu0 0
      %866 = vmatpush1.bf16.msra.mxu0 0
      %867 = vmatprep.subr.bf16.mxu0 0
      %868 = vmatpush1.bf16.msra.mxu0 0
      %869 = vmatprep.subr.bf16.mxu0 0
      %870 = vmatpush1.bf16.msra.mxu0 0
      %871 = vmatprep.subr.bf16.mxu0 0
      %872 = vmatpush1.bf16.msra.mxu0 0
      %873 = vmatprep.subr.bf16.mxu0 0
      %874 = vmatpush1.bf16.msra.mxu0 0
      %875 = vmatprep.mubr.bf16.mxu0 0
      %876 = vmatmul.mubr.bf16.gmra.mrb[0].mxu0 %v841
      %v877 = vpop.f32.mrb[0].mxu0
      %v878 = vadd.f32 0.0, %v877
      %v879 = vpop.f32.mrb[0].mxu0
      %v880 = vpop.f32.mrb[0].mxu0
      %v881 = vadd.f32 0.0, %v880
      %v882 = vpop.f32.mrb[0].mxu0
      %883 = vdwg.mxu0
      %884 = vrot.lane.b32.xlu0 %v513, 104
      %v885 = vpop.permute.xlu0 %884
      %886 = vrot.lane.b32.xlu0 %v513, 72
      %v887 = vpop.permute.xlu0 %886
      %v889 = vsel %vm517, %v885, 0
      %v892 = vsel %vm517, %v887, 0
      %894 = vmatprep.subr.bf16.mxu0 0
      %895 = vmatpush1.bf16.xpose.msra.mxu0 %v892
      %896 = vmatprep.subr.bf16.mxu0 0
      %897 = vmatpush1.bf16.xpose.msra.mxu0 0
      %898 = vmatprep.subr.bf16.mxu0 0
      %899 = vmatpush1.bf16.xpose.msra.mxu0 0
      %900 = vmatprep.subr.bf16.mxu0 0
      %901 = vmatpush1.bf16.xpose.msra.mxu0 0
      %902 = vmatprep.subr.bf16.mxu0 0
      %903 = vmatpush1.bf16.xpose.msra.mxu0 0
      %904 = vmatprep.subr.bf16.mxu0 0
      %905 = vmatpush1.bf16.xpose.msra.mxu0 0
      %906 = vmatprep.subr.bf16.mxu0 0
      %907 = vmatpush1.bf16.xpose.msra.mxu0 0
      %908 = vmatprep.subr.bf16.mxu0 0
      %909 = vmatpush1.bf16.xpose.msra.mxu0 0
      %910 = vmatprep.subr.bf16.mxu0 0
      %911 = vmatpush1.bf16.xpose.msra.mxu0 0
      %912 = vmatprep.subr.bf16.mxu0 0
      %913 = vmatpush1.bf16.xpose.msra.mxu0 0
      %914 = vmatprep.subr.bf16.mxu0 0
      %915 = vmatpush1.bf16.xpose.msra.mxu0 0
      %916 = vmatprep.subr.bf16.mxu0 0
      %917 = vmatpush1.bf16.xpose.msra.mxu0 0
      %918 = vmatprep.subr.bf16.mxu0 0
      %919 = vmatpush1.bf16.xpose.msra.mxu0 0
      %920 = vmatprep.subr.bf16.mxu0 0
      %921 = vmatpush1.bf16.xpose.msra.mxu0 0
      %922 = vmatprep.subr.bf16.mxu0 0
      %923 = vmatpush1.bf16.xpose.msra.mxu0 0
      %924 = vmatprep.subr.bf16.mxu0 0
      %925 = vmatpush1.bf16.xpose.msra.mxu0 0
      %926 = vmatprep.mubr.bf16.mxu0 0
      %927 = vmatmul.mubr.bf16.gmra.mrb[0].mxu0 %v889
      %v928 = vpop.f32.mrb[0].mxu0
      %v929 = vadd.f32 0.0, %v928
      %v930 = vpop.f32.mrb[0].mxu0
      %v931 = vpop.f32.mrb[0].mxu0
      %v932 = vadd.f32 0.0, %v931
      %v933 = vpop.f32.mrb[0].mxu0
      %934 = vdwg.mxu0
      %v935 = vmul.f32 %v929, 0.35355338
      %v936 = vmul.f32 %v932, 0.35355338
      %v937 = vsel %vm567, %v935, -inf
      %938 = vmax.xlane.f32.xlu0 %v937
      %v939 = vpop.xlane.xlu0 %938
      %v940 = vsel %vm567, %v936, -inf
      %941 = vmax.xlane.f32.xlu0 %v940
      %v942 = vpop.xlane.xlu0 %941
      %v943 = vsub.f32 %v935, %v939
      %v944 = vsub.f32 %v936, %v942
      %v945 = vmul.f32 %v943, 1.442695
      %v946 = vpow.pop %v945
      %v947 = vmul.f32 %v944, 1.442695
      %v948 = vpow.pop %v947
      %v949 = vsel %vm567, %v946, 0.0
      %950 = vadd.xlane.f32.xlu0 %v949
      %v951 = vpop.xlane.xlu0 %950
      %v952 = vsel %vm567, %v948, 0.0
      %953 = vadd.xlane.f32.xlu0 %v952
      %v954 = vpop.xlane.xlu0 %953
      %v955 = vrcp.pop %v951
      %v956 = vrcp.pop %v954
      %v957 = vmul.f32 %v946, %v955
      %v958 = vmul.f32 %v948, %v956
      %v959 = vpack.c.bf16 %v958, %v957
      %960 = vrot.lane.b32.xlu0 %v513, 40
      %v961 = vpop.permute.xlu0 %960
      %v964 = vsel %vm567, %v959, 0
      %966 = vmatprep.subr.bf16.mxu0 0
      %967 = vmatpush1.bf16.msra.mxu0 %v961
      %968 = vmatprep.subr.bf16.mxu0 0
      %969 = vmatpush1.bf16.msra.mxu0 0
      %970 = vmatprep.subr.bf16.mxu0 0
      %971 = vmatpush1.bf16.msra.mxu0 0
      %972 = vmatprep.subr.bf16.mxu0 0
      %973 = vmatpush1.bf16.msra.mxu0 0
      %974 = vmatprep.subr.bf16.mxu0 0
      %975 = vmatpush1.bf16.msra.mxu0 0
      %976 = vmatprep.subr.bf16.mxu0 0
      %977 = vmatpush1.bf16.msra.mxu0 0
      %978 = vmatprep.subr.bf16.mxu0 0
      %979 = vmatpush1.bf16.msra.mxu0 0
      %980 = vmatprep.subr.bf16.mxu0 0
      %981 = vmatpush1.bf16.msra.mxu0 0
      %982 = vmatprep.subr.bf16.mxu0 0
      %983 = vmatpush1.bf16.msra.mxu0 0
      %984 = vmatprep.subr.bf16.mxu0 0
      %985 = vmatpush1.bf16.msra.mxu0 0
      %986 = vmatprep.subr.bf16.mxu0 0
      %987 = vmatpush1.bf16.msra.mxu0 0
      %988 = vmatprep.subr.bf16.mxu0 0
      %989 = vmatpush1.bf16.msra.mxu0 0
      %990 = vmatprep.subr.bf16.mxu0 0
      %991 = vmatpush1.bf16.msra.mxu0 0
      %992 = vmatprep.subr.bf16.mxu0 0
      %993 = vmatpush1.bf16.msra.mxu0 0
      %994 = vmatprep.subr.bf16.mxu0 0
      %995 = vmatpush1.bf16.msra.mxu0 0
      %996 = vmatprep.subr.bf16.mxu0 0
      %997 = vmatpush1.bf16.msra.mxu0 0
      %998 = vmatprep.mubr.bf16.mxu0 0
      %999 = vmatmul.mubr.bf16.gmra.mrb[0].mxu0 %v964
      %v1000 = vpop.f32.mrb[0].mxu0
      %v1001 = vadd.f32 0.0, %v1000
      %v1002 = vpop.f32.mrb[0].mxu0
      %v1003 = vpop.f32.mrb[0].mxu0
      %v1004 = vadd.f32 0.0, %v1003
      %v1005 = vpop.f32.mrb[0].mxu0
      %1006 = vdwg.mxu0
      %1009 = vrot.lane.b32.xlu0 %v755, 8
      %v1010 = vpop.permute.xlu0 %1009
      %1011 = vrot.lane.b32.xlu0 %v758, 8
      %v1012 = vpop.permute.xlu0 %1011
      %1017 = vrot.lane.b32.xlu0 %v878, 16
      %v1018 = vpop.permute.xlu0 %1017
      %1019 = vrot.lane.b32.xlu0 %v881, 16
      %v1020 = vpop.permute.xlu0 %1019
      %1025 = vrot.lane.b32.xlu0 %v1001, 24
      %v1026 = vpop.permute.xlu0 %1025
      %1027 = vrot.lane.b32.xlu0 %v1004, 24
      %v1028 = vpop.permute.xlu0 %1027
      %v1031 = vsel %vm517, %v632, %v1010
      %v1032 = vsel %vm517, %v635, %v1012
      %v1033 = vsel %vm567, %v1031, %v1018
      %v1034 = vsel %vm567, %v1032, %v1020
      %vm1035 = vcmask 195584
      %v1036 = vsel %vm1035, %v1033, %v1026
      %v1037 = vsel %vm1035, %v1034, %v1028
      %v1038 = vpack.c.bf16 %v1037, %v1036
      %v1039 = vld [vmem:[%s3] sm:$0xf]
      %v1040 = vld [vmem:[%s3 + $0x4] sm:$0xf]
      %v1041 = vld [vmem:[%s3 + $0x8] sm:$0xf]
      %v1042 = vld [vmem:[%s3 + $0xc] sm:$0xf]
      %v1043 = vld [vmem:[%s4] sm:$0x1]
      %v1045 = vlaneseq
      %v1046 = vshrl.u32 %v1045, 7
      %v1047 = vsub.s32 0, %v1046
      %v1048 = vrot.slane %v1043, %v1047
      %v1054 = vunpack.c.l.b16 %v1039
      %v1055 = vunpack.c.l.b16 %v1040
      %v1056 = vunpack.c.l.b16 %v1041
      %v1057 = vunpack.c.l.b16 %v1042
      %v1058 = vpack.c.b16 %v1055, %v1054
      %v1059 = vpack.c.b16 %v1057, %v1056
      %v1063 = vsel %vm468, %v1038, 0
      %1065 = vmatprep.subr.bf16.mxu0 0
      %1066 = vmatpush1.bf16.msra.mxu0 %v1058
      %1067 = vmatprep.subr.bf16.mxu0 0
      %1068 = vmatpush1.bf16.msra.mxu0 %v1059
      %1069 = vmatprep.subr.bf16.mxu0 0
      %1070 = vmatpush1.bf16.msra.mxu0 0
      %1071 = vmatprep.subr.bf16.mxu0 0
      %1072 = vmatpush1.bf16.msra.mxu0 0
      %1073 = vmatprep.subr.bf16.mxu0 0
      %1074 = vmatpush1.bf16.msra.mxu0 0
      %1075 = vmatprep.subr.bf16.mxu0 0
      %1076 = vmatpush1.bf16.msra.mxu0 0
      %1077 = vmatprep.subr.bf16.mxu0 0
      %1078 = vmatpush1.bf16.msra.mxu0 0
      %1079 = vmatprep.subr.bf16.mxu0 0
      %1080 = vmatpush1.bf16.msra.mxu0 0
      %1081 = vmatprep.subr.bf16.mxu0 0
      %1082 = vmatpush1.bf16.msra.mxu0 0
      %1083 = vmatprep.subr.bf16.mxu0 0
      %1084 = vmatpush1.bf16.msra.mxu0 0
      %1085 = vmatprep.subr.bf16.mxu0 0
      %1086 = vmatpush1.bf16.msra.mxu0 0
      %1087 = vmatprep.subr.bf16.mxu0 0
      %1088 = vmatpush1.bf16.msra.mxu0 0
      %1089 = vmatprep.subr.bf16.mxu0 0
      %1090 = vmatpush1.bf16.msra.mxu0 0
      %1091 = vmatprep.subr.bf16.mxu0 0
      %1092 = vmatpush1.bf16.msra.mxu0 0
      %1093 = vmatprep.subr.bf16.mxu0 0
      %1094 = vmatpush1.bf16.msra.mxu0 0
      %1095 = vmatprep.subr.bf16.mxu0 0
      %1096 = vmatpush1.bf16.msra.mxu0 0
      %1097 = vmatprep.mubr.bf16.mxu0 0
      %1098 = vmatmul.mubr.bf16.gmra.mrb[0].mxu0 %v1063
      %v1099 = vpop.f32.mrb[0].mxu0
      %v1100 = vadd.f32 %v1048, %v1099
      %v1101 = vpop.f32.mrb[0].mxu0
      %v1102 = vpop.f32.mrb[0].mxu0
      %v1103 = vadd.f32 %v1048, %v1102
      %v1104 = vpop.f32.mrb[0].mxu0
      %1105 = vdwg.mxu0
      %v1106 = vadd.f32 %v442, %v1100
      %v1107 = vadd.f32 %v443, %v1103
      %v1108 = vsel %vm468, %v1106, 0.0
      %1109 = vadd.xlane.f32.xlu0 %v1108
      %v1110 = vpop.xlane.xlu0 %1109
      %v1111 = vsel %vm468, %v1107, 0.0
      %1112 = vadd.xlane.f32.xlu0 %v1111
      %v1113 = vpop.xlane.xlu0 %1112
      %v1114 = vrcp.pop 32.0
      %v1115 = vmul.f32 %v1110, %v1114
      %v1116 = vmul.f32 %v1113, %v1114
      %v1117 = vsub.f32 %v1106, %v1115
      %v1118 = vsub.f32 %v1107, %v1116
      %v1119 = vmul.f32 %v1117, %v1117
      %v1120 = vmul.f32 %v1118, %v1118
      %v1121 = vsel %vm468, %v1119, 0.0
      %1122 = vadd.xlane.f32.xlu0 %v1121
      %v1123 = vpop.xlane.xlu0 %1122
      %v1124 = vsel %vm468, %v1120, 0.0
      %1125 = vadd.xlane.f32.xlu0 %v1124
      %v1126 = vpop.xlane.xlu0 %1125
      %v1127 = vmul.f32 %v1123, %v1114
      %v1128 = vmul.f32 %v1126, %v1114
      %v1129 = vadd.f32 %v1127, 1e-05
      %v1130 = vadd.f32 %v1128, 1e-05
      %v1131 = vrsqrt.pop %v1129
      %v1132 = vrsqrt.pop %v1130
      %v1133 = vmul.f32 %v1117, %v1131
      %v1134 = vmul.f32 %v1118, %v1132
      %v1135 = vld [vmem:[%s5] sm:$0x1]
      %v1137 = vlaneseq
      %v1138 = vshrl.u32 %v1137, 7
      %v1139 = vsub.s32 0, %v1138
      %v1140 = vrot.slane %v1135, %v1139
      %v1142 = vmul.f32 %v1133, %v1140
      %v1143 = vmul.f32 %v1134, %v1140
      %v1144 = vld [vmem:[%s6] sm:$0x1]
      %v1146 = vlaneseq
      %v1147 = vshrl.u32 %v1146, 7
      %v1148 = vsub.s32 0, %v1147
      %v1149 = vrot.slane %v1144, %v1148
      %v1151 = vadd.f32 %v1142, %v1149
      %v1152 = vadd.f32 %v1143, %v1149
      %v1153 = vpack.c.bf16 %v1152, %v1151
      %v1154 = vld [vmem:[%s7] sm:$0xf]
      %v1155 = vld [vmem:[%s7 + $0x4] sm:$0xf]
      %v1156 = vld [vmem:[%s7 + $0x8] sm:$0xf]
      %v1157 = vld [vmem:[%s7 + $0xc] sm:$0xf]
      %v1158 = vld [vmem:[%s8] sm:$0x1]
      %v1160 = vlaneseq
      %v1161 = vshrl.u32 %v1160, 7
      %v1162 = vsub.s32 0, %v1161
      %v1163 = vrot.slane %v1158, %v1162
      %v1169 = vunpack.c.l.b16 %v1154
      %v1170 = vunpack.c.l.b16 %v1155
      %v1171 = vunpack.c.l.b16 %v1156
      %v1172 = vunpack.c.l.b16 %v1157
      %v1173 = vpack.c.b16 %v1170, %v1169
      %v1174 = vpack.c.b16 %v1172, %v1171
      %v1178 = vsel %vm468, %v1153, 0
      %1180 = vmatprep.subr.bf16.mxu0 0
      %1181 = vmatpush1.bf16.msra.mxu0 %v1173
      %1182 = vmatprep.subr.bf16.mxu0 0
      %1183 = vmatpush1.bf16.msra.mxu0 %v1174
      %1184 = vmatprep.subr.bf16.mxu0 0
      %1185 = vmatpush1.bf16.msra.mxu0 0
      %1186 = vmatprep.subr.bf16.mxu0 0
      %1187 = vmatpush1.bf16.msra.mxu0 0
      %1188 = vmatprep.subr.bf16.mxu0 0
      %1189 = vmatpush1.bf16.msra.mxu0 0
      %1190 = vmatprep.subr.bf16.mxu0 0
      %1191 = vmatpush1.bf16.msra.mxu0 0
      %1192 = vmatprep.subr.bf16.mxu0 0
      %1193 = vmatpush1.bf16.msra.mxu0 0
      %1194 = vmatprep.subr.bf16.mxu0 0
      %1195 = vmatpush1.bf16.msra.mxu0 0
      %1196 = vmatprep.subr.bf16.mxu0 0
      %1197 = vmatpush1.bf16.msra.mxu0 0
      %1198 = vmatprep.subr.bf16.mxu0 0
      %1199 = vmatpush1.bf16.msra.mxu0 0
      %1200 = vmatprep.subr.bf16.mxu0 0
      %1201 = vmatpush1.bf16.msra.mxu0 0
      %1202 = vmatprep.subr.bf16.mxu0 0
      %1203 = vmatpush1.bf16.msra.mxu0 0
      %1204 = vmatprep.subr.bf16.mxu0 0
      %1205 = vmatpush1.bf16.msra.mxu0 0
      %1206 = vmatprep.subr.bf16.mxu0 0
      %1207 = vmatpush1.bf16.msra.mxu0 0
      %1208 = vmatprep.subr.bf16.mxu0 0
      %1209 = vmatpush1.bf16.msra.mxu0 0
      %1210 = vmatprep.subr.bf16.mxu0 0
      %1211 = vmatpush1.bf16.msra.mxu0 0
      %1212 = vmatprep.mubr.bf16.mxu0 0
      %1213 = vmatmul.mubr.bf16.gmra.mrb[0].mxu0 %v1178
      %v1214 = vpop.f32.mrb[0].mxu0
      %v1215 = vadd.f32 %v1163, %v1214
      %v1216 = vpop.f32.mrb[0].mxu0
      %v1217 = vpop.f32.mrb[0].mxu0
      %v1218 = vadd.f32 %v1163, %v1217
      %v1219 = vpop.f32.mrb[0].mxu0
      %1220 = vdwg.mxu0
      %v1221 = vmax.f32 %v1215, 0.0
      %v1222 = vmax.f32 %v1218, 0.0
      %v1223 = vpack.c.bf16 %v1222, %v1221
      %v1224 = vld [vmem:[%s9] sm:$0xf]
      %v1225 = vld [vmem:[%s9 + $0x4] sm:$0xf]
      %v1226 = vld [vmem:[%s9 + $0x8] sm:$0xf]
      %v1227 = vld [vmem:[%s9 + $0xc] sm:$0xf]
      %v1228 = vld [vmem:[%s9 + $0x10] sm:$0xf]
      %v1229 = vld [vmem:[%s9 + $0x14] sm:$0xf]
      %v1230 = vld [vmem:[%s9 + $0x18] sm:$0xf]
      %v1231 = vld [vmem:[%s9 + $0x1c] sm:$0xf]
      %v1232 = vld [vmem:[%s10] sm:$0x1]
      %v1234 = vlaneseq
      %v1235 = vshrl.u32 %v1234, 7
      %v1236 = vsub.s32 0, %v1235
      %v1237 = vrot.slane %v1232, %v1236
      %v1247 = vunpack.c.l.b16 %v1224
      %v1248 = vunpack.c.l.b16 %v1225
      %v1249 = vunpack.c.l.b16 %v1226
      %v1250 = vunpack.c.l.b16 %v1227
      %v1251 = vunpack.c.l.b16 %v1228
      %v1252 = vunpack.c.l.b16 %v1229
      %v1253 = vunpack.c.l.b16 %v1230
      %v1254 = vunpack.c.l.b16 %v1231
      %v1255 = vpack.c.b16 %v1248, %v1247
      %v1256 = vpack.c.b16 %v1250, %v1249
      %v1257 = vpack.c.b16 %v1252, %v1251
      %v1258 = vpack.c.b16 %v1254, %v1253
      %vm1263 = vcmask 523264
      %v1265 = vsel %vm1263, %v1223, 0
      %1267 = vmatprep.subr.bf16.mxu0 0
      %1268 = vmatpush1.bf16.msra.mxu0 %v1255
      %1269 = vmatprep.subr.bf16.mxu0 0
      %1270 = vmatpush1.bf16.msra.mxu0 %v1256
      %1271 = vmatprep.subr.bf16.mxu0 0
      %1272 = vmatpush1.bf16.msra.mxu0 %v1257
      %1273 = vmatprep.subr.bf16.mxu0 0
      %1274 = vmatpush1.bf16.msra.mxu0 %v1258
      %1275 = vmatprep.subr.bf16.mxu0 0
      %1276 = vmatpush1.bf16.msra.mxu0 0
      %1277 = vmatprep.subr.bf16.mxu0 0
      %1278 = vmatpush1.bf16.msra.mxu0 0
      %1279 = vmatprep.subr.bf16.mxu0 0
      %1280 = vmatpush1.bf16.msra.mxu0 0
      %1281 = vmatprep.subr.bf16.mxu0 0
      %1282 = vmatpush1.bf16.msra.mxu0 0
      %1283 = vmatprep.subr.bf16.mxu0 0
      %1284 = vmatpush1.bf16.msra.mxu0 0
      %1285 = vmatprep.subr.bf16.mxu0 0
      %1286 = vmatpush1.bf16.msra.mxu0 0
      %1287 = vmatprep.subr.bf16.mxu0 0
      %1288 = vmatpush1.bf16.msra.mxu0 0
      %1289 = vmatprep.subr.bf16.mxu0 0
      %1290 = vmatpush1.bf16.msra.mxu0 0
      %1291 = vmatprep.subr.bf16.mxu0 0
      %1292 = vmatpush1.bf16.msra.mxu0 0
      %1293 = vmatprep.subr.bf16.mxu0 0
      %1294 = vmatpush1.bf16.msra.mxu0 0
      %1295 = vmatprep.subr.bf16.mxu0 0
      %1296 = vmatpush1.bf16.msra.mxu0 0
      %1297 = vmatprep.subr.bf16.mxu0 0
      %1298 = vmatpush1.bf16.msra.mxu0 0
      %1299 = vmatprep.mubr.bf16.mxu0 0
      %1300 = vmatmul.mubr.bf16.gmra.mrb[0].mxu0 %v1265
      %v1301 = vpop.f32.mrb[0].mxu0
      %v1302 = vadd.f32 %v1237, %v1301
      %v1303 = vpop.f32.mrb[0].mxu0
      %v1304 = vpop.f32.mrb[0].mxu0
      %v1305 = vadd.f32 %v1237, %v1304
      %v1306 = vpop.f32.mrb[0].mxu0
      %1307 = vdwg.mxu0
      %v1308 = vadd.f32 %v1151, %v1302
      %v1309 = vadd.f32 %v1152, %v1305
      %v1310 = vsel %vm468, %v1308, 0.0
      %1311 = vadd.xlane.f32.xlu0 %v1310
      %v1312 = vpop.xlane.xlu0 %1311
      %v1313 = vsel %vm468, %v1309, 0.0
      %1314 = vadd.xlane.f32.xlu0 %v1313
      %v1315 = vpop.xlane.xlu0 %1314
      %v1316 = vmul.f32 %v1312, %v1114
      %v1317 = vmul.f32 %v1315, %v1114
      %v1318 = vsub.f32 %v1308, %v1316
      %v1319 = vsub.f32 %v1309, %v1317
      %v1320 = vmul.f32 %v1318, %v1318
      %v1321 = vmul.f32 %v1319, %v1319
      %v1322 = vsel %vm468, %v1320, 0.0
      %1323 = vadd.xlane.f32.xlu0 %v1322
      %v1324 = vpop.xlane.xlu0 %1323
      %v1325 = vsel %vm468, %v1321, 0.0
      %1326 = vadd.xlane.f32.xlu0 %v1325
      %v1327 = vpop.xlane.xlu0 %1326
      %v1328 = vmul.f32 %v1324, %v1114
      %v1329 = vmul.f32 %v1327, %v1114
      %v1330 = vadd.f32 %v1328, 1e-05
      %v1331 = vadd.f32 %v1329, 1e-05
      %v1332 = vrsqrt.pop %v1330
      %v1333 = vrsqrt.pop %v1331
      %v1334 = vmul.f32 %v1318, %v1332
      %v1335 = vmul.f32 %v1319, %v1333
      %v1336 = vld [vmem:[%s11] sm:$0x1]
      %v1338 = vlaneseq
      %v1339 = vshrl.u32 %v1338, 7
      %v1340 = vsub.s32 0, %v1339
      %v1341 = vrot.slane %v1336, %v1340
      %v1343 = vmul.f32 %v1334, %v1341
      %v1344 = vmul.f32 %v1335, %v1341
      %v1345 = vld [vmem:[%s12] sm:$0x1]
      %v1347 = vlaneseq
      %v1348 = vshrl.u32 %v1347, 7
      %v1349 = vsub.s32 0, %v1348
      %v1350 = vrot.slane %v1345, %v1349
      %v1352 = vadd.f32 %v1343, %v1350
      %v1353 = vadd.f32 %v1344, %v1350
      %1354 = vst.msk [vmem:[%s440] sm:$0xff] %vm468, %v1352
      %1355 = vst.msk [vmem:[%s440 + $0x8] sm:$0xff] %vm468, %v1353
      %p1356 = scmp.lt.s32.totalorder %s24, 1
      %s1357 = scalar_select %p1356, %s24, 1
      %s1358 = smul.addr %s1357, 2
      %s1359 = smul.addr %s1358, 8
      %s1360 = scalar_lea.vmem %s13, %s1359
      // Predicated region
      $region73: #{abinet_iter_forward.20} parent=71 // pred_check
        %p1361 = pneg %p320
      $region74: #{abinet_iter_forward.20} parent=71 // pred_check_branch
        %1363 = sbr.rel (%p1361) target = $region76
      $region75: #{abinet_iter_forward.20} parent=71 // pred_region
        _
      $region76: #{abinet_iter_forward.20} parent=71 // pred_fallthru
        _
    $region72: #{abinet_iter_forward.20} parent=5 // pred_fallthru
      _
    %p1364 = scmp.le.s32.totalorder 2, %s19
    // Predicated region
    $region77: #{abinet_iter_forward.20} parent=5 // pred_check
      %p1365 = pneg %p1364
    $region78: #{abinet_iter_forward.20} parent=5 // pred_check_branch
      %1367 = sbr.rel (%p1365) target = $region80
    $region79: #{abinet_iter_forward.20} parent=5 // pred_region
      %s1368 = ssub.s32 %s19, 2
      // Predicated region
      $region81: #{abinet_iter_forward.20} parent=79 // pred_check
        %p1369 = pneg %p326
      $region82: #{abinet_iter_forward.20} parent=79 // pred_check_branch
        %1371 = sbr.rel (%p1369) target = $region84
      $region83: #{abinet_iter_forward.20} parent=79 // pred_region
        %p1372 = scmp.lt.s32.totalorder %s25, 1
        %s1373 = scalar_select %p1372, %s25, 1
        %s1374 = smul.addr %s1373, 2
        %s1375 = smul.addr %s1374, 8
        %s1376 = scalar_lea.vmem %s13, %s1375
      $region84: #{abinet_iter_forward.20} parent=79 // pred_fallthru
        _
    $region80: #{abinet_iter_forward.20} parent=5 // pred_fallthru
      _
  $region6: #{abinet_iter_forward.20} parent=0 // loop_footer
    %s23 = sadd.s32 1, %s19
  $region7: #{abinet_iter_forward.20} parent=0 // loop_footer_branch
    %18 = sbr.rel target = $region3
  $region8: #{abinet_iter_forward.20} parent=0 // loop_exit
    _

// kernel: tile.11
$region0: #{tile.11}
  %s0 = inlined_call_operand.vmem [shape: f32[2,9,32], index: 0, kind: input, shape index: {}]
  %s1 = inlined_call_operand.vmem [shape: f32[18,32], index: 1, kind: output, shape index: {}]
  %v2 = vld [vmem:[%s0] sm:$0xff]
  %vm3 = vcmask 261120
  %4 = vst.msk [vmem:[%s1] sm:$0xff] %vm3, %v2
  %s5 = scalar_lea.vmem %s0, 8
  %s6 = smov 3
  %v7 = vld [vmem:[%s5] ss:$8 sm:%s6]
  %vm8 = vcmask 261120
  %s9 = scalar_lea.vmem %s1, 8
  %10 = vst.msk [vmem:[%s9] sm:$0x3] %vm8, %v7
  %s11 = scalar_lea.vmem %s0, 17
  %v12 = vld [vmem:[%s11] sm:$0xff]
  %vm13 = vcmask 261120
  %s14 = scalar_lea.vmem %s1, 10
  %15 = vst.msk [vmem:[%s14] sm:$0xff] %vm13, %v12

// kernel: abinet_iter_forward.24
$region0: #{abinet_iter_forward.24}
  #allocation0 [shape = 'u32[]', space=smem, size = 0x4, offset = 0x4, fixed_abs, tag = 'smem constant byte address 0x4 - core index']
  #allocation1 [shape = 'u32[144,128]{1,0:T(1,128)}', space=vmem, size = 0x12000, scoped, tag = 'internal scratch']
  %s0 = inlined_call_operand.vmem [shape: f32[16,144], index: 0, kind: input, shape index: {}]
  %s1 = inlined_call_operand.vmem [shape: bf16[144,16], index: 1, kind: input, shape index: {}]
  %s2 = inlined_call_operand.vmem [shape: f32[1,16], index: 2, kind: input, shape index: {}]
  %s3 = inlined_call_operand.vmem [shape: f32[16,16], index: 3, kind: output, shape index: {}]
  %s4 = sld [smem:[#allocation0]]
  $region22: #{abinet_iter_forward.24} parent=0
    _
  %s6 = ssub.s32 1, %s4
  %s7 = scalar_select 0, %s6, %s4
  // Predicated region
  $region2: #{abinet_iter_forward.24} parent=0 // pred_check
    _
  $region3: #{abinet_iter_forward.24} parent=0 // pred_check_branch
    %9 = sbr.rel (0) target = $region5
  $region4: #{abinet_iter_forward.24} parent=0 // pred_region
    _
  $region5: #{abinet_iter_forward.24} parent=0 // pred_fallthru
    _
  // Predicated region
  $region6: #{abinet_iter_forward.24} parent=0 // pred_check
    _
  $region7: #{abinet_iter_forward.24} parent=0 // pred_check_branch
    %11 = sbr.rel (0) target = $region9
  $region8: #{abinet_iter_forward.24} parent=0 // pred_region
    _
  $region9: #{abinet_iter_forward.24} parent=0 // pred_fallthru
    _
  // Predicated region
  $region10: #{abinet_iter_forward.24} parent=0 // pred_check
    _
  $region11: #{abinet_iter_forward.24} parent=0 // pred_check_branch
    %13 = sbr.rel (0) target = $region13
  $region12: #{abinet_iter_forward.24} parent=0 // pred_region
    _
  $region13: #{abinet_iter_forward.24} parent=0 // pred_fallthru
    _
  %v15 = vld [vmem:[%s0] sm:$0xff]
  %v16 = vld [vmem:[%s0 + $0x8] sm:$0xff]
  %v17 = vld [vmem:[%s0 + $0x10] sm:$0xff]
  %v18 = vld [vmem:[%s0 + $0x18] sm:$0xff]
  %v19 = vpack.c.bf16 %v17, %v15
  %v20 = vpack.c.bf16 %v18, %v16
  %v21 = vld [vmem:[%s1] sm:$0xf]
  %v22 = vld [vmem:[%s1 + $0x4] sm:$0xf]
  %v23 = vld [vmem:[%s1 + $0x8] sm:$0xf]
  %v24 = vld [vmem:[%s1 + $0xc] sm:$0xf]
  %v25 = vld [vmem:[%s1 + $0x10] sm:$0xf]
  %v26 = vld [vmem:[%s1 + $0x14] sm:$0xf]
  %v27 = vld [vmem:[%s1 + $0x18] sm:$0xf]
  %v28 = vld [vmem:[%s1 + $0x1c] sm:$0xf]
  %v29 = vld [vmem:[%s1 + $0x20] sm:$0xf]
  %v30 = vld [vmem:[%s1 + $0x24] sm:$0xf]
  %v31 = vld [vmem:[%s1 + $0x28] sm:$0xf]
  %v32 = vld [vmem:[%s1 + $0x2c] sm:$0xf]
  %v33 = vld [vmem:[%s1 + $0x30] sm:$0xf]
  %v34 = vld [vmem:[%s1 + $0x34] sm:$0xf]
  %v35 = vld [vmem:[%s1 + $0x38] sm:$0xf]
  %v36 = vld [vmem:[%s1 + $0x3c] sm:$0xf]
  %v37 = vld [vmem:[%s1 + $0x40] sm:$0xf]
  %v38 = vld [vmem:[%s1 + $0x44] sm:$0xf]
  %v39 = vld [vmem:[%s2] sm:$0x1]
  %v41 = vlaneseq
  %v42 = vshrl.u32 %v41, 7
  %v43 = vsub.s32 0, %v42
  %v44 = vrot.slane %v39, %v43
  %v64 = vunpack.c.l.b16 %v21
  %v65 = vunpack.c.l.b16 %v22
  %v66 = vunpack.c.l.b16 %v23
  %v67 = vunpack.c.l.b16 %v24
  %v68 = vunpack.c.l.b16 %v25
  %v69 = vunpack.c.l.b16 %v26
  %v70 = vunpack.c.l.b16 %v27
  %v71 = vunpack.c.l.b16 %v28
  %v72 = vunpack.c.l.b16 %v29
  %v73 = vunpack.c.l.b16 %v30
  %v74 = vunpack.c.l.b16 %v31
  %v75 = vunpack.c.l.b16 %v32
  %v76 = vunpack.c.l.b16 %v33
  %v77 = vunpack.c.l.b16 %v34
  %v78 = vunpack.c.l.b16 %v35
  %v79 = vunpack.c.l.b16 %v36
  %v80 = vunpack.c.l.b16 %v37
  %v81 = vunpack.c.l.b16 %v38
  %v82 = vpack.c.b16 %v65, %v64
  %v83 = vpack.c.b16 %v67, %v66
  %v84 = vpack.c.b16 %v69, %v68
  %v85 = vpack.c.b16 %v71, %v70
  %v86 = vpack.c.b16 %v73, %v72
  %v87 = vpack.c.b16 %v75, %v74
  %v88 = vpack.c.b16 %v77, %v76
  %v89 = vpack.c.b16 %v79, %v78
  %v90 = vpack.c.b16 %v81, %v80
  %vm100 = vcmask 130048
  %v102 = vsel %vm100, %v20, 0
  %104 = vmatprep.subr.bf16.mxu0 0
  %105 = vmatpush1.bf16.msra.mxu0 %v82
  %106 = vmatprep.subr.bf16.mxu0 0
  %107 = vmatpush1.bf16.msra.mxu0 %v83
  %108 = vmatprep.subr.bf16.mxu0 0
  %109 = vmatpush1.bf16.msra.mxu0 %v84
  %110 = vmatprep.subr.bf16.mxu0 0
  %111 = vmatpush1.bf16.msra.mxu0 %v85
  %112 = vmatprep.subr.bf16.mxu0 0
  %113 = vmatpush1.bf16.msra.mxu0 %v86
  %114 = vmatprep.subr.bf16.mxu0 0
  %115 = vmatpush1.bf16.msra.mxu0 %v87
  %116 = vmatprep.subr.bf16.mxu0 0
  %117 = vmatpush1.bf16.msra.mxu0 %v88
  %118 = vmatprep.subr.bf16.mxu0 0
  %119 = vmatpush1.bf16.msra.mxu0 %v89
  %120 = vmatprep.subr.bf16.mxu0 0
  %121 = vmatpush1.bf16.msra.mxu0 %v90
  %122 = vmatprep.subr.bf16.mxu0 0
  %123 = vmatpush1.bf16.msra.mxu0 0
  %124 = vmatprep.subr.bf16.mxu0 0
  %125 = vmatpush1.bf16.msra.mxu0 0
  %126 = vmatprep.subr.bf16.mxu0 0
  %127 = vmatpush1.bf16.msra.mxu0 0
  %128 = vmatprep.subr.bf16.mxu0 0
  %129 = vmatpush1.bf16.msra.mxu0 0
  %130 = vmatprep.subr.bf16.mxu0 0
  %131 = vmatpush1.bf16.msra.mxu0 0
  %132 = vmatprep.subr.bf16.mxu0 0
  %133 = vmatpush1.bf16.msra.mxu0 0
  %134 = vmatprep.subr.bf16.mxu0 0
  %135 = vmatpush1.bf16.msra.mxu0 0
  %136 = vmatprep.mubr.bf16.mxu0 %v102
  %137 = vmatmul.mubr.bf16.gmra.mrb[0].mxu0 %v19
  %v138 = vpop.f32.mrb[0].mxu0
  %v139 = vadd.f32 %v44, %v138
  %v140 = vpop.f32.mrb[0].mxu0
  %v141 = vpop.f32.mrb[0].mxu0
  %v142 = vadd.f32 %v44, %v141
  %v143 = vpop.f32.mrb[0].mxu0
  %144 = vdwg.mxu0
  %v145 = vmax.f32 %v139, 0.0
  %v146 = vmax.f32 %v142, 0.0
  %147 = vst.msk [vmem:[%s3] sm:$0xff] %vm100, %v145
  %148 = vst.msk [vmem:[%s3 + $0x8] sm:$0xff] %vm100, %v146
  // Predicated region
  $region14: #{abinet_iter_forward.24} parent=0 // pred_check
    _
  $region15: #{abinet_iter_forward.24} parent=0 // pred_check_branch
    %150 = sbr.rel (0) target = $region17
  $region16: #{abinet_iter_forward.24} parent=0 // pred_region
    _
  $region17: #{abinet_iter_forward.24} parent=0 // pred_fallthru
    _
  // Predicated region
  $region18: #{abinet_iter_forward.24} parent=0 // pred_check
    _
  $region19: #{abinet_iter_forward.24} parent=0 // pred_check_branch
    %152 = sbr.rel (0) target = $region21
  $region20: #{abinet_iter_forward.24} parent=0 // pred_region
    _
  $region21: #{abinet_iter_forward.24} parent=0 // pred_fallthru
    _

// kernel: abinet_iter_forward.23
$region0: #{abinet_iter_forward.23}
  #allocation0 [shape = 'u32[]', space=smem, size = 0x4, offset = 0x4, fixed_abs, tag = 'smem constant byte address 0x4 - core index']
  #allocation1 [shape = 'u32[144,128]{1,0:T(1,128)}', space=vmem, size = 0x12000, scoped, tag = 'internal scratch']
  %s0 = inlined_call_operand.vmem [shape: f32[4,144], index: 0, kind: input, shape index: {}]
  %s1 = inlined_call_operand.vmem [shape: bf16[144,16], index: 1, kind: input, shape index: {}]
  %s2 = inlined_call_operand.vmem [shape: f32[1,16], index: 2, kind: input, shape index: {}]
  %s3 = inlined_call_operand.vmem [shape: f32[4,16], index: 3, kind: output, shape index: {}]
  %s4 = sld [smem:[#allocation0]]
  $region22: #{abinet_iter_forward.23} parent=0
    _
  %s6 = ssub.s32 1, %s4
  %s7 = scalar_select 0, %s6, %s4
  // Predicated region
  $region2: #{abinet_iter_forward.23} parent=0 // pred_check
    _
  $region3: #{abinet_iter_forward.23} parent=0 // pred_check_branch
    %9 = sbr.rel (0) target = $region5
  $region4: #{abinet_iter_forward.23} parent=0 // pred_region
    _
  $region5: #{abinet_iter_forward.23} parent=0 // pred_fallthru
    _
  // Predicated region
  $region6: #{abinet_iter_forward.23} parent=0 // pred_check
    _
  $region7: #{abinet_iter_forward.23} parent=0 // pred_check_branch
    %11 = sbr.rel (0) target = $region9
  $region8: #{abinet_iter_forward.23} parent=0 // pred_region
    _
  $region9: #{abinet_iter_forward.23} parent=0 // pred_fallthru
    _
  // Predicated region
  $region10: #{abinet_iter_forward.23} parent=0 // pred_check
    _
  $region11: #{abinet_iter_forward.23} parent=0 // pred_check_branch
    %13 = sbr.rel (0) target = $region13
  $region12: #{abinet_iter_forward.23} parent=0 // pred_region
    _
  $region13: #{abinet_iter_forward.23} parent=0 // pred_fallthru
    _
  %v15 = vld [vmem:[%s0] sm:$0xff]
  %v17 = vcombine.high %v15, %v15
  %v19 = vpack.c.bf16 %v15, %v15
  %v20 = vpack.c.bf16 %v17, %v17
  %v21 = vld [vmem:[%s1] sm:$0xf]
  %v22 = vld [vmem:[%s1 + $0x4] sm:$0xf]
  %v23 = vld [vmem:[%s1 + $0x8] sm:$0xf]
  %v24 = vld [vmem:[%s1 + $0xc] sm:$0xf]
  %v25 = vld [vmem:[%s1 + $0x10] sm:$0xf]
  %v26 = vld [vmem:[%s1 + $0x14] sm:$0xf]
  %v27 = vld [vmem:[%s1 + $0x18] sm:$0xf]
  %v28 = vld [vmem:[%s1 + $0x1c] sm:$0xf]
  %v29 = vld [vmem:[%s1 + $0x20] sm:$0xf]
  %v30 = vld [vmem:[%s1 + $0x24] sm:$0xf]
  %v31 = vld [vmem:[%s1 + $0x28] sm:$0xf]
  %v32 = vld [vmem:[%s1 + $0x2c] sm:$0xf]
  %v33 = vld [vmem:[%s1 + $0x30] sm:$0xf]
  %v34 = vld [vmem:[%s1 + $0x34] sm:$0xf]
  %v35 = vld [vmem:[%s1 + $0x38] sm:$0xf]
  %v36 = vld [vmem:[%s1 + $0x3c] sm:$0xf]
  %v37 = vld [vmem:[%s1 + $0x40] sm:$0xf]
  %v38 = vld [vmem:[%s1 + $0x44] sm:$0xf]
  %v39 = vld [vmem:[%s2] sm:$0x1]
  %v41 = vlaneseq
  %v42 = vshrl.u32 %v41, 7
  %v43 = vsub.s32 0, %v42
  %v44 = vrot.slane %v39, %v43
  %v64 = vunpack.c.l.b16 %v21
  %v65 = vunpack.c.l.b16 %v22
  %v66 = vunpack.c.l.b16 %v23
  %v67 = vunpack.c.l.b16 %v24
  %v68 = vunpack.c.l.b16 %v25
  %v69 = vunpack.c.l.b16 %v26
  %v70 = vunpack.c.l.b16 %v27
  %v71 = vunpack.c.l.b16 %v28
  %v72 = vunpack.c.l.b16 %v29
  %v73 = vunpack.c.l.b16 %v30
  %v74 = vunpack.c.l.b16 %v31
  %v75 = vunpack.c.l.b16 %v32
  %v76 = vunpack.c.l.b16 %v33
  %v77 = vunpack.c.l.b16 %v34
  %v78 = vunpack.c.l.b16 %v35
  %v79 = vunpack.c.l.b16 %v36
  %v80 = vunpack.c.l.b16 %v37
  %v81 = vunpack.c.l.b16 %v38
  %v82 = vpack.c.b16 %v65, %v64
  %v83 = vpack.c.b16 %v67, %v66
  %v84 = vpack.c.b16 %v69, %v68
  %v85 = vpack.c.b16 %v71, %v70
  %v86 = vpack.c.b16 %v73, %v72
  %v87 = vpack.c.b16 %v75, %v74
  %v88 = vpack.c.b16 %v77, %v76
  %v89 = vpack.c.b16 %v79, %v78
  %v90 = vpack.c.b16 %v81, %v80
  %vm100 = vcmask 130048
  %v102 = vsel %vm100, %v20, 0
  %104 = vmatprep.subr.bf16.mxu0 0
  %105 = vmatpush1.bf16.msra.mxu0 %v82
  %106 = vmatprep.subr.bf16.mxu0 0
  %107 = vmatpush1.bf16.msra.mxu0 %v83
  %108 = vmatprep.subr.bf16.mxu0 0
  %109 = vmatpush1.bf16.msra.mxu0 %v84
  %110 = vmatprep.subr.bf16.mxu0 0
  %111 = vmatpush1.bf16.msra.mxu0 %v85
  %112 = vmatprep.subr.bf16.mxu0 0
  %113 = vmatpush1.bf16.msra.mxu0 %v86
  %114 = vmatprep.subr.bf16.mxu0 0
  %115 = vmatpush1.bf16.msra.mxu0 %v87
  %116 = vmatprep.subr.bf16.mxu0 0
  %117 = vmatpush1.bf16.msra.mxu0 %v88
  %118 = vmatprep.subr.bf16.mxu0 0
  %119 = vmatpush1.bf16.msra.mxu0 %v89
  %120 = vmatprep.subr.bf16.mxu0 0
  %121 = vmatpush1.bf16.msra.mxu0 %v90
  %122 = vmatprep.subr.bf16.mxu0 0
  %123 = vmatpush1.bf16.msra.mxu0 0
  %124 = vmatprep.subr.bf16.mxu0 0
  %125 = vmatpush1.bf16.msra.mxu0 0
  %126 = vmatprep.subr.bf16.mxu0 0
  %127 = vmatpush1.bf16.msra.mxu0 0
  %128 = vmatprep.subr.bf16.mxu0 0
  %129 = vmatpush1.bf16.msra.mxu0 0
  %130 = vmatprep.subr.bf16.mxu0 0
  %131 = vmatpush1.bf16.msra.mxu0 0
  %132 = vmatprep.subr.bf16.mxu0 0
  %133 = vmatpush1.bf16.msra.mxu0 0
  %134 = vmatprep.subr.bf16.mxu0 0
  %135 = vmatpush1.bf16.msra.mxu0 0
  %136 = vmatprep.mubr.bf16.mxu0 %v102
  %137 = vmatmul.mubr.bf16.gmra.mrb[0].mxu0 %v19
  %v138 = vpop.f32.mrb[0].mxu0
  %v139 = vadd.f32 %v44, %v138
  %v140 = vpop.f32.mrb[0].mxu0
  %v141 = vpop.f32.mrb[0].mxu0
  %v142 = vpop.f32.mrb[0].mxu0
  %143 = vdwg.mxu0
  %v144 = vmax.f32 %v139, 0.0
  %vm145 = vcmask 125952
  %146 = vst.msk [vmem:[%s3] sm:$0xf] %vm145, %v144
  // Predicated region
  $region14: #{abinet_iter_forward.23} parent=0 // pred_check
    _
  $region15: #{abinet_iter_forward.23} parent=0 // pred_check_branch
    %148 = sbr.rel (0) target = $region17
  $region16: #{abinet_iter_forward.23} parent=0 // pred_region
    _
  $region17: #{abinet_iter_forward.23} parent=0 // pred_fallthru
    _
  // Predicated region
  $region18: #{abinet_iter_forward.23} parent=0 // pred_check
    _
  $region19: #{abinet_iter_forward.23} parent=0 // pred_check_branch
    %150 = sbr.rel (0) target = $region21
  $region20: #{abinet_iter_forward.23} parent=0 // pred_region
    _
  $region21: #{abinet_iter_forward.23} parent=0 // pred_fallthru
    _

// kernel: abinet_iter_forward.26
$region0: #{abinet_iter_forward.26}
  #allocation0 [shape = 'u32[]', space=smem, size = 0x4, offset = 0x4, fixed_abs, tag = 'smem constant byte address 0x4 - core index']
  #allocation1 [shape = 'u32[144,128]{1,0:T(1,128)}', space=vmem, size = 0x12000, scoped, tag = 'internal scratch']
  %s0 = inlined_call_operand.vmem [shape: f32[9,32], index: 0, kind: input, shape index: {}]
  %s1 = inlined_call_operand.vmem [shape: f32[2,16,32], index: 1, kind: input, shape index: {}]
  %s2 = inlined_call_operand.vmem [shape: f32[2,16,32], index: 2, kind: input, shape index: {}]
  %s3 = inlined_call_operand.vmem [shape: bf16[32,32], index: 3, kind: input, shape index: {}]
  %s4 = inlined_call_operand.vmem [shape: f32[1,32], index: 4, kind: input, shape index: {}]
  %s5 = inlined_call_operand.vmem [shape: bf16[32,16], index: 5, kind: input, shape index: {}]
  %s6 = inlined_call_operand.vmem [shape: f32[1,16], index: 6, kind: input, shape index: {}]
  %s7 = inlined_call_operand.vmem [shape: f32[2,9,32], index: 7, kind: output, shape index: {0}]
  %s8 = inlined_call_operand.vmem [shape: f32[2,9,16], index: 8, kind: output, shape index: {1}]
  %s9 = inlined_call_operand.vmem [shape: f32[2,9,16], index: 9, kind: output, shape index: {2}]
  %10 = xla_tuple %s7, %s8, %s9
  %s11 = sld [smem:[#allocation0]]
  $region77: #{abinet_iter_forward.26} parent=0
    _
  %s13 = ssub.s32 1, %s11
  %s14 = scalar_select 0, %s13, %s11
  loop: start=0, step=1, limit=4
  $region2: #{abinet_iter_forward.26} parent=0 // loop_pre_header
    _
  $region3: #{abinet_iter_forward.26} parent=0 // loop_header
    %s16 = sphi 0, %s20
    %p17 = scmp.ge.s32.totalorder %s16, 4
    %s24 = sphi 0, %s24
    %s26 = sphi 0, %s24
    %s27 = sphi 0, %s26
    %s41 = sphi 0, %s27
    %s47 = sphi 0, %s49
    %s50 = sphi 0, %s47
    %s51 = sphi 0, %s50
    %s67 = sphi 0, %s51
    %s73 = sphi 0, %s75
    %s76 = sphi 0, %s73
    %s77 = sphi 0, %s76
    %s93 = sphi 0, %s77
    %s97 = sphi 0, %s97
    %s99 = sphi 0, %s97
    %s100 = sphi 0, %s99
    %s114 = sphi 0, %s100
    %s118 = sphi 0, %s118
    %s120 = sphi 0, %s118
    %s121 = sphi 0, %s120
    %s135 = sphi 0, %s121
    %s139 = sphi 0, %s139
    %s141 = sphi 0, %s139
    %s142 = sphi 0, %s141
    %s156 = sphi 0, %s142
    %s160 = sphi 0, %s160
    %s162 = sphi 0, %s160
    %s163 = sphi 0, %s162
    %s177 = sphi 0, %s163
    %s183 = sphi 0, %s185
    %s186 = sphi 0, %s183
    %s187 = sphi 0, %s186
    %s203 = sphi 0, %s187
    %s209 = sphi 0, %s211
    %s212 = sphi 0, %s209
    %s213 = sphi 0, %s212
    %s229 = sphi 0, %s213
    %s235 = sphi 0, %s237
    %s238 = sphi 0, %s235
    %s239 = sphi 0, %s238
    %s255 = sphi 0, %s239
  $region4: #{abinet_iter_forward.26} parent=0 // loop_header_branch
    %19 = sbr.rel (%p17) target = $region8
  $region5: #{abinet_iter_forward.26} parent=0 // loop_body
    %s21 = ssub.s32 %s16, 1
    %s22 = ssub.s32 %s16, 2
    %s23 = sadd.s32 %s16, 1
    %s25 = sadd.s32 %s24, 1
    %p28 = scmp.eq.s32.totalorder %s16, 1
    %p29 = scmp.ne.s32.totalorder %s24, %s26
    %p30 = scmp.eq.s32.totalorder %s16, 0
    %p31 = por %p29, %p30
    %p32 = scmp.ne.s32.totalorder %s24, %s26
    %p33 = scmp.eq.s32.totalorder %s21, 1
    %p34 = por %p32, %p33
    %p35 = scmp.ne.s32.totalorder %s26, %s27
    %p36 = scmp.eq.s32.totalorder %s21, 0
    %p37 = por %p35, %p36
    %p38 = scmp.ne.s32.totalorder %s26, %s27
    %p39 = scmp.eq.s32.totalorder %s22, 1
    %p40 = por %p38, %p39
    %p42 = scmp.ne.s32.totalorder %s27, %s41
    %p43 = scmp.eq.s32.totalorder %s22, 0
    %p44 = por %p42, %p43
    %s45 = ssub.s32 %s16, %s23
    %p46 = scmp.eq.s32.totalorder %s45, 0
    %s48 = sadd.s32 %s47, 1
    %s49 = scalar_select %p46, %s47, %s48
    %p52 = pneg %p46
    %p53 = scmp.eq.s32.totalorder %s16, 1
    %p54 = por %p52, %p53
    %p55 = scmp.ne.s32.totalorder %s47, %s50
    %p56 = scmp.eq.s32.totalorder %s16, 0
    %p57 = por %p55, %p56
    %p58 = scmp.ne.s32.totalorder %s47, %s50
    %p59 = scmp.eq.s32.totalorder %s21, 1
    %p60 = por %p58, %p59
    %p61 = scmp.ne.s32.totalorder %s50, %s51
    %p62 = scmp.eq.s32.totalorder %s21, 0
    %p63 = por %p61, %p62
    %p64 = scmp.ne.s32.totalorder %s50, %s51
    %p65 = scmp.eq.s32.totalorder %s22, 1
    %p66 = por %p64, %p65
    %p68 = scmp.ne.s32.totalorder %s51, %s67
    %p69 = scmp.eq.s32.totalorder %s22, 0
    %p70 = por %p68, %p69
    %s71 = ssub.s32 %s16, %s23
    %p72 = scmp.eq.s32.totalorder %s71, 0
    %s74 = sadd.s32 %s73, 1
    %s75 = scalar_select %p72, %s73, %s74
    %p78 = pneg %p72
    %p79 = scmp.eq.s32.totalorder %s16, 1
    %p80 = por %p78, %p79
    %p81 = scmp.ne.s32.totalorder %s73, %s76
    %p82 = scmp.eq.s32.totalorder %s16, 0
    %p83 = por %p81, %p82
    %p84 = scmp.ne.s32.totalorder %s73, %s76
    %p85 = scmp.eq.s32.totalorder %s21, 1
    %p86 = por %p84, %p85
    %p87 = scmp.ne.s32.totalorder %s76, %s77
    %p88 = scmp.eq.s32.totalorder %s21, 0
    %p89 = por %p87, %p88
    %p90 = scmp.ne.s32.totalorder %s76, %s77
    %p91 = scmp.eq.s32.totalorder %s22, 1
    %p92 = por %p90, %p91
    %p94 = scmp.ne.s32.totalorder %s77, %s93
    %p95 = scmp.eq.s32.totalorder %s22, 0
    %p96 = por %p94, %p95
    %s98 = sadd.s32 %s97, 1
    %p101 = scmp.eq.s32.totalorder %s16, 1
    %p102 = scmp.ne.s32.totalorder %s97, %s99
    %p103 = scmp.eq.s32.totalorder %s16, 0
    %p104 = por %p102, %p103
    %p105 = scmp.ne.s32.totalorder %s97, %s99
    %p106 = scmp.eq.s32.totalorder %s21, 1
    %p107 = por %p105, %p106
    %p108 = scmp.ne.s32.totalorder %s99, %s100
    %p109 = scmp.eq.s32.totalorder %s21, 0
    %p110 = por %p108, %p109
    %p111 = scmp.ne.s32.totalorder %s99, %s100
    %p112 = scmp.eq.s32.totalorder %s22, 1
    %p113 = por %p111, %p112
    %p115 = scmp.ne.s32.totalorder %s100, %s114
    %p116 = scmp.eq.s32.totalorder %s22, 0
    %p117 = por %p115, %p116
    %s119 = sadd.s32 %s118, 1
    %p122 = scmp.eq.s32.totalorder %s16, 1
    %p123 = scmp.ne.s32.totalorder %s118, %s120
    %p124 = scmp.eq.s32.totalorder %s16, 0
    %p125 = por %p123, %p124
    %p126 = scmp.ne.s32.totalorder %s118, %s120
    %p127 = scmp.eq.s32.totalorder %s21, 1
    %p128 = por %p126, %p127
    %p129 = scmp.ne.s32.totalorder %s120, %s121
    %p130 = scmp.eq.s32.totalorder %s21, 0
    %p131 = por %p129, %p130
    %p132 = scmp.ne.s32.totalorder %s120, %s121
    %p133 = scmp.eq.s32.totalorder %s22, 1
    %p134 = por %p132, %p133
    %p136 = scmp.ne.s32.totalorder %s121, %s135
    %p137 = scmp.eq.s32.totalorder %s22, 0
    %p138 = por %p136, %p137
    %s140 = sadd.s32 %s139, 1
    %p143 = scmp.eq.s32.totalorder %s16, 1
    %p144 = scmp.ne.s32.totalorder %s139, %s141
    %p145 = scmp.eq.s32.totalorder %s16, 0
    %p146 = por %p144, %p145
    %p147 = scmp.ne.s32.totalorder %s139, %s141
    %p148 = scmp.eq.s32.totalorder %s21, 1
    %p149 = por %p147, %p148
    %p150 = scmp.ne.s32.totalorder %s141, %s142
    %p151 = scmp.eq.s32.totalorder %s21, 0
    %p152 = por %p150, %p151
    %p153 = scmp.ne.s32.totalorder %s141, %s142
    %p154 = scmp.eq.s32.totalorder %s22, 1
    %p155 = por %p153, %p154
    %p157 = scmp.ne.s32.totalorder %s142, %s156
    %p158 = scmp.eq.s32.totalorder %s22, 0
    %p159 = por %p157, %p158
    %s161 = sadd.s32 %s160, 1
    %p164 = scmp.eq.s32.totalorder %s16, 1
    %p165 = scmp.ne.s32.totalorder %s160, %s162
    %p166 = scmp.eq.s32.totalorder %s16, 0
    %p167 = por %p165, %p166
    %p168 = scmp.ne.s32.totalorder %s160, %s162
    %p169 = scmp.eq.s32.totalorder %s21, 1
    %p170 = por %p168, %p169
    %p171 = scmp.ne.s32.totalorder %s162, %s163
    %p172 = scmp.eq.s32.totalorder %s21, 0
    %p173 = por %p171, %p172
    %p174 = scmp.ne.s32.totalorder %s162, %s163
    %p175 = scmp.eq.s32.totalorder %s22, 1
    %p176 = por %p174, %p175
    %p178 = scmp.ne.s32.totalorder %s163, %s177
    %p179 = scmp.eq.s32.totalorder %s22, 0
    %p180 = por %p178, %p179
    %s181 = ssub.s32 %s16, %s23
    %p182 = scmp.eq.s32.totalorder %s181, 0
    %s184 = sadd.s32 %s183, 1
    %s185 = scalar_select %p182, %s183, %s184
    %p188 = pneg %p182
    %p189 = scmp.eq.s32.totalorder %s16, 1
    %p190 = por %p188, %p189
    %p191 = scmp.ne.s32.totalorder %s183, %s186
    %p192 = scmp.eq.s32.totalorder %s16, 0
    %p193 = por %p191, %p192
    %p194 = scmp.ne.s32.totalorder %s183, %s186
    %p195 = scmp.eq.s32.totalorder %s21, 1
    %p196 = por %p194, %p195
    %p197 = scmp.ne.s32.totalorder %s186, %s187
    %p198 = scmp.eq.s32.totalorder %s21, 0
    %p199 = por %p197, %p198
    %p200 = scmp.ne.s32.totalorder %s186, %s187
    %p201 = scmp.eq.s32.totalorder %s22, 1
    %p202 = por %p200, %p201
    %p204 = scmp.ne.s32.totalorder %s187, %s203
    %p205 = scmp.eq.s32.totalorder %s22, 0
    %p206 = por %p204, %p205
    %s207 = ssub.s32 %s16, %s23
    %p208 = scmp.eq.s32.totalorder %s207, 0
    %s210 = sadd.s32 %s209, 1
    %s211 = scalar_select %p208, %s209, %s210
    %p214 = pneg %p208
    %p215 = scmp.eq.s32.totalorder %s16, 1
    %p216 = por %p214, %p215
    %p217 = scmp.ne.s32.totalorder %s209, %s212
    %p218 = scmp.eq.s32.totalorder %s16, 0
    %p219 = por %p217, %p218
    %p220 = scmp.ne.s32.totalorder %s209, %s212
    %p221 = scmp.eq.s32.totalorder %s21, 1
    %p222 = por %p220, %p221
    %p223 = scmp.ne.s32.totalorder %s212, %s213
    %p224 = scmp.eq.s32.totalorder %s21, 0
    %p225 = por %p223, %p224
    %p226 = scmp.ne.s32.totalorder %s212, %s213
    %p227 = scmp.eq.s32.totalorder %s22, 1
    %p228 = por %p226, %p227
    %p230 = scmp.ne.s32.totalorder %s213, %s229
    %p231 = scmp.eq.s32.totalorder %s22, 0
    %p232 = por %p230, %p231
    %s233 = ssub.s32 %s16, %s23
    %p234 = scmp.eq.s32.totalorder %s233, 0
    %s236 = sadd.s32 %s235, 1
    %s237 = scalar_select %p234, %s235, %s236
    %p240 = pneg %p234
    %p241 = scmp.eq.s32.totalorder %s16, 1
    %p242 = por %p240, %p241
    %p243 = scmp.ne.s32.totalorder %s235, %s238
    %p244 = scmp.eq.s32.totalorder %s16, 0
    %p245 = por %p243, %p244
    %p246 = scmp.ne.s32.totalorder %s235, %s238
    %p247 = scmp.eq.s32.totalorder %s21, 1
    %p248 = por %p246, %p247
    %p249 = scmp.ne.s32.totalorder %s238, %s239
    %p250 = scmp.eq.s32.totalorder %s21, 0
    %p251 = por %p249, %p250
    %p252 = scmp.ne.s32.totalorder %s238, %s239
    %p253 = scmp.eq.s32.totalorder %s22, 1
    %p254 = por %p252, %p253
    %p256 = scmp.ne.s32.totalorder %s239, %s255
    %p257 = scmp.eq.s32.totalorder %s22, 0
    %p258 = por %p256, %p257
    %p259 = scmp.le.s32.totalorder 1, %s16
    %p260 = scmp.lt.s32.totalorder %s16, 3
    %p261 = pnand %p259, %p260
    %p262 = pneg %p261
    // Predicated region
    $region9: #{abinet_iter_forward.26} parent=5 // pred_check
      _
    $region10: #{abinet_iter_forward.26} parent=5 // pred_check_branch
      %264 = sbr.rel (%p261) target = $region12
    $region11: #{abinet_iter_forward.26} parent=5 // pred_region
      %s265 = ssub.s32 %s16, 1
      // Predicated region
      $region13: #{abinet_iter_forward.26} parent=11 // pred_check
        %p266 = pneg %p37
      $region14: #{abinet_iter_forward.26} parent=11 // pred_check_branch
        %268 = sbr.rel (%p266) target = $region16
      $region15: #{abinet_iter_forward.26} parent=11 // pred_region
        _
      $region16: #{abinet_iter_forward.26} parent=11 // pred_fallthru
        _
      // Predicated region
      $region17: #{abinet_iter_forward.26} parent=11 // pred_check
        %p269 = pneg %p110
      $region18: #{abinet_iter_forward.26} parent=11 // pred_check_branch
        %271 = sbr.rel (%p269) target = $region20
      $region19: #{abinet_iter_forward.26} parent=11 // pred_region
        _
      $region20: #{abinet_iter_forward.26} parent=11 // pred_fallthru
        _
      // Predicated region
      $region21: #{abinet_iter_forward.26} parent=11 // pred_check
        %p272 = pneg %p131
      $region22: #{abinet_iter_forward.26} parent=11 // pred_check_branch
        %274 = sbr.rel (%p272) target = $region24
      $region23: #{abinet_iter_forward.26} parent=11 // pred_region
        _
      $region24: #{abinet_iter_forward.26} parent=11 // pred_fallthru
        _
      // Predicated region
      $region25: #{abinet_iter_forward.26} parent=11 // pred_check
        %p275 = pneg %p152
      $region26: #{abinet_iter_forward.26} parent=11 // pred_check_branch
        %277 = sbr.rel (%p275) target = $region28
      $region27: #{abinet_iter_forward.26} parent=11 // pred_region
        _
      $region28: #{abinet_iter_forward.26} parent=11 // pred_fallthru
        _
      // Predicated region
      $region29: #{abinet_iter_forward.26} parent=11 // pred_check
        %p278 = pneg %p173
      $region30: #{abinet_iter_forward.26} parent=11 // pred_check_branch
        %280 = sbr.rel (%p278) target = $region32
      $region31: #{abinet_iter_forward.26} parent=11 // pred_region
        _
      $region32: #{abinet_iter_forward.26} parent=11 // pred_fallthru
        _
    $region12: #{abinet_iter_forward.26} parent=5 // pred_fallthru
      _
    %p281 = scmp.lt.s32.totalorder %s16, 2
    // Predicated region
    $region33: #{abinet_iter_forward.26} parent=5 // pred_check
      %p282 = pneg %p281
    $region34: #{abinet_iter_forward.26} parent=5 // pred_check_branch
      %284 = sbr.rel (%p282) target = $region36
    $region35: #{abinet_iter_forward.26} parent=5 // pred_region
      // Predicated region
      $region37: #{abinet_iter_forward.26} parent=35 // pred_check
        %p285 = pneg %p57
      $region38: #{abinet_iter_forward.26} parent=35 // pred_check_branch
        %287 = sbr.rel (%p285) target = $region40
      $region39: #{abinet_iter_forward.26} parent=35 // pred_region
        %p288 = scmp.lt.s32.totalorder %s16, 1
        %s289 = scalar_select %p288, %s16, 1
        %s290 = smul.addr %s289, 2
        %s291 = smul.addr %s290, 8
        %s292 = scalar_lea.vmem %s1, %s291
      $region40: #{abinet_iter_forward.26} parent=35 // pred_fallthru
        _
      // Predicated region
      $region41: #{abinet_iter_forward.26} parent=35 // pred_check
        %p293 = pneg %p83
      $region42: #{abinet_iter_forward.26} parent=35 // pred_check_branch
        %295 = sbr.rel (%p293) target = $region44
      $region43: #{abinet_iter_forward.26} parent=35 // pred_region
        %p296 = scmp.lt.s32.totalorder %s16, 1
        %s297 = scalar_select %p296, %s16, 1
        %s298 = smul.addr %s297, 2
        %s299 = smul.addr %s298, 8
        %s300 = scalar_lea.vmem %s2, %s299
      $region44: #{abinet_iter_forward.26} parent=35 // pred_fallthru
        _
    $region36: #{abinet_iter_forward.26} parent=5 // pred_fallthru
      _
    %p301 = scmp.le.s32.totalorder 1, %s16
    %p302 = scmp.lt.s32.totalorder %s16, 3
    %p303 = pnand %p301, %p302
    %p304 = pneg %p303
    // Predicated region
    $region45: #{abinet_iter_forward.26} parent=5 // pred_check
      _
    $region46: #{abinet_iter_forward.26} parent=5 // pred_check_branch
      %306 = sbr.rel (%p303) target = $region48
    $region47: #{abinet_iter_forward.26} parent=5 // pred_region
      %s307 = ssub.s32 %s16, 1
      %p308 = pneg %p37
      %p309 = pneg %p34
      %p310 = scmp.lt.s32.totalorder %s21, 1
      %s311 = scalar_select %p310, %s21, 1
      %s312 = smul.addr %s311, 2
      %s313 = smul.addr %s312, 8
      %s314 = scalar_lea.vmem %s1, %s313
      %p315 = pneg %p63
      %p316 = pneg %p60
      %p317 = scmp.lt.s32.totalorder %s21, 1
      %s318 = scalar_select %p317, %s21, 1
      %s319 = smul.addr %s318, 2
      %s320 = smul.addr %s319, 8
      %s321 = scalar_lea.vmem %s2, %s320
      %p322 = pneg %p89
      %p323 = pneg %p86
      %p324 = pneg %p110
      %p325 = pneg %p107
      %p326 = pneg %p131
      %p327 = pneg %p128
      %p328 = pneg %p152
      %p329 = pneg %p149
      %p330 = pneg %p173
      %p331 = pneg %p170
      %p332 = pneg %p199
      %p333 = pneg %p196
      %p334 = scmp.lt.s32.totalorder %s21, 1
      %s335 = scalar_select %p334, %s21, 1
      %s336 = smul.addr %s335, 2
      %s337 = smul.addr %s336, 8
      %s338 = scalar_lea.vmem %s7, %s337
      %p339 = pneg %p225
      %p340 = pneg %p222
      %p341 = scmp.lt.s32.totalorder %s21, 1
      %s342 = scalar_select %p341, %s21, 1
      %s343 = smul.addr %s342, 2
      %s344 = smul.addr %s343, 8
      %s345 = scalar_lea.vmem %s8, %s344
      %p346 = pneg %p251
      %p347 = pneg %p248
      %p348 = scmp.lt.s32.totalorder %s21, 1
      %s349 = scalar_select %p348, %s21, 1
      %s350 = smul.addr %s349, 2
      %s351 = smul.addr %s350, 8
      %s352 = scalar_lea.vmem %s9, %s351
      %p353 = scmp.lt.s32.totalorder %s21, 1
      %s354 = scalar_select %p353, %s21, 1
      %s355 = smul.addr %s354, 2
      %s356 = smul.addr %s355, 8
      %s357 = scalar_lea.vmem %s1, %s356
      %p358 = scmp.lt.s32.totalorder %s21, 1
      %s359 = scalar_select %p358, %s21, 1
      %s360 = smul.addr %s359, 2
      %s361 = smul.addr %s360, 8
      %s362 = scalar_lea.vmem %s2, %s361
      %p363 = scmp.lt.s32.totalorder %s21, 1
      %s364 = scalar_select %p363, %s21, 1
      %s365 = smul.addr %s364, 2
      %s366 = smul.addr %s365, 8
      %s367 = scalar_lea.vmem %s7, %s366
      %p368 = scmp.lt.s32.totalorder %s21, 1
      %s369 = scalar_select %p368, %s21, 1
      %s370 = smul.addr %s369, 2
      %s371 = smul.addr %s370, 8
      %s372 = scalar_lea.vmem %s8, %s371
      %p373 = scmp.lt.s32.totalorder %s21, 1
      %s374 = scalar_select %p373, %s21, 1
      %s375 = smul.addr %s374, 2
      %s376 = smul.addr %s375, 8
      %s377 = scalar_lea.vmem %s9, %s376
      %v379 = vld [vmem:[%s0] sm:$0xff]
      %v380 = vld [vmem:[%s0 + $0x8] sm:$0x1]
      %v381 = vpack.c.bf16 %v380, %v379
      %v382 = vld [vmem:[%s3] sm:$0xf]
      %v383 = vld [vmem:[%s3 + $0x4] sm:$0xf]
      %v384 = vld [vmem:[%s3 + $0x8] sm:$0xf]
      %v385 = vld [vmem:[%s3 + $0xc] sm:$0xf]
      %v386 = vld [vmem:[%s4] sm:$0x1]
      %v388 = vlaneseq
      %v389 = vshrl.u32 %v388, 7
      %v390 = vsub.s32 0, %v389
      %v391 = vrot.slane %v386, %v390
      %v397 = vunpack.c.l.b16 %v382
      %v398 = vunpack.c.l.b16 %v383
      %v399 = vunpack.c.l.b16 %v384
      %v400 = vunpack.c.l.b16 %v385
      %v401 = vpack.c.b16 %v398, %v397
      %v402 = vpack.c.b16 %v400, %v399
      %vm405 = vcmask 261120
      %v407 = vsel %vm405, %v381, 0
      %409 = vmatprep.subr.bf16.mxu0 0
      %410 = vmatpush1.bf16.msra.mxu0 %v401
      %411 = vmatprep.subr.bf16.mxu0 0
      %412 = vmatpush1.bf16.msra.mxu0 %v402
      %413 = vmatprep.subr.bf16.mxu0 0
      %414 = vmatpush1.bf16.msra.mxu0 0
      %415 = vmatprep.subr.bf16.mxu0 0
      %416 = vmatpush1.bf16.msra.mxu0 0
      %417 = vmatprep.subr.bf16.mxu0 0
      %418 = vmatpush1.bf16.msra.mxu0 0
      %419 = vmatprep.subr.bf16.mxu0 0
      %420 = vmatpush1.bf16.msra.mxu0 0
      %421 = vmatprep.subr.bf16.mxu0 0
      %422 = vmatpush1.bf16.msra.mxu0 0
      %423 = vmatprep.subr.bf16.mxu0 0
      %424 = vmatpush1.bf16.msra.mxu0 0
      %425 = vmatprep.subr.bf16.mxu0 0
      %426 = vmatpush1.bf16.msra.mxu0 0
      %427 = vmatprep.subr.bf16.mxu0 0
      %428 = vmatpush1.bf16.msra.mxu0 0
      %429 = vmatprep.subr.bf16.mxu0 0
      %430 = vmatpush1.bf16.msra.mxu0 0
      %431 = vmatprep.subr.bf16.mxu0 0
      %432 = vmatpush1.bf16.msra.mxu0 0
      %433 = vmatprep.subr.bf16.mxu0 0
      %434 = vmatpush1.bf16.msra.mxu0 0
      %435 = vmatprep.subr.bf16.mxu0 0
      %436 = vmatpush1.bf16.msra.mxu0 0
      %437 = vmatprep.subr.bf16.mxu0 0
      %438 = vmatpush1.bf16.msra.mxu0 0
      %439 = vmatprep.subr.bf16.mxu0 0
      %440 = vmatpush1.bf16.msra.mxu0 0
      %441 = vmatprep.mubr.bf16.mxu0 0
      %442 = vmatmul.mubr.bf16.gmra.mrb[0].mxu0 %v407
      %v443 = vpop.f32.mrb[0].mxu0
      %v444 = vadd.f32 %v391, %v443
      %v445 = vpop.f32.mrb[0].mxu0
      %v446 = vpop.f32.mrb[0].mxu0
      %v447 = vadd.f32 %v391, %v446
      %v448 = vpop.f32.mrb[0].mxu0
      %449 = vdwg.mxu0
      %v450 = vld [vmem:[%s357] sm:$0xff]
      %v451 = vld [vmem:[%s357 + $0x8] sm:$0xff]
      %v452 = vld [vmem:[%s362] sm:$0xff]
      %v453 = vld [vmem:[%s362 + $0x8] sm:$0xff]
      %v454 = vpack.c.bf16 %v447, %v444
      %v455 = vpack.c.bf16 %v451, %v450
      %v457 = vsel %vm405, %v454, 0
      %v460 = vsel %vm405, %v455, 0
      %462 = vmatprep.subr.bf16.mxu0 0
      %463 = vmatpush1.bf16.xpose.msra.mxu0 %v460
      %464 = vmatprep.subr.bf16.mxu0 0
      %465 = vmatpush1.bf16.xpose.msra.mxu0 0
      %466 = vmatprep.subr.bf16.mxu0 0
      %467 = vmatpush1.bf16.xpose.msra.mxu0 0
      %468 = vmatprep.subr.bf16.mxu0 0
      %469 = vmatpush1.bf16.xpose.msra.mxu0 0
      %470 = vmatprep.subr.bf16.mxu0 0
      %471 = vmatpush1.bf16.xpose.msra.mxu0 0
      %472 = vmatprep.subr.bf16.mxu0 0
      %473 = vmatpush1.bf16.xpose.msra.mxu0 0
      %474 = vmatprep.subr.bf16.mxu0 0
      %475 = vmatpush1.bf16.xpose.msra.mxu0 0
      %476 = vmatprep.subr.bf16.mxu0 0
      %477 = vmatpush1.bf16.xpose.msra.mxu0 0
      %478 = vmatprep.subr.bf16.mxu0 0
      %479 = vmatpush1.bf16.xpose.msra.mxu0 0
      %480 = vmatprep.subr.bf16.mxu0 0
      %481 = vmatpush1.bf16.xpose.msra.mxu0 0
      %482 = vmatprep.subr.bf16.mxu0 0
      %483 = vmatpush1.bf16.xpose.msra.mxu0 0
      %484 = vmatprep.subr.bf16.mxu0 0
      %485 = vmatpush1.bf16.xpose.msra.mxu0 0
      %486 = vmatprep.subr.bf16.mxu0 0
      %487 = vmatpush1.bf16.xpose.msra.mxu0 0
      %488 = vmatprep.subr.bf16.mxu0 0
      %489 = vmatpush1.bf16.xpose.msra.mxu0 0
      %490 = vmatprep.subr.bf16.mxu0 0
      %491 = vmatpush1.bf16.xpose.msra.mxu0 0
      %492 = vmatprep.subr.bf16.mxu0 0
      %493 = vmatpush1.bf16.xpose.msra.mxu0 0
      %494 = vmatprep.mubr.bf16.mxu0 0
      %495 = vmatmul.mubr.bf16.gmra.mrb[0].mxu0 %v457
      %v496 = vpop.f32.mrb[0].mxu0
      %v497 = vadd.f32 0.0, %v496
      %v498 = vpop.f32.mrb[0].mxu0
      %v499 = vpop.f32.mrb[0].mxu0
      %v500 = vadd.f32 0.0, %v499
      %v501 = vpop.f32.mrb[0].mxu0
      %502 = vdwg.mxu0
      %v503 = vmul.f32 %v497, 0.17677669
      %v504 = vmul.f32 %v500, 0.17677669
      %vm505 = vcmask 130048
      %v506 = vsel %vm505, %v503, -inf
      %507 = vmax.xlane.f32.xlu0 %v506
      %v508 = vpop.xlane.xlu0 %507
      %vm509 = vcmask 122880
      %v510 = vsel %vm509, %v504, -inf
      %511 = vmax.xlane.f32.xlu0 %v510
      %v512 = vpop.xlane.xlu0 %511
      %v513 = vsub.f32 %v503, %v508
      %v514 = vsub.f32 %v504, %v512
      %v515 = vmul.f32 %v513, 1.442695
      %v516 = vpow.pop %v515
      %v517 = vmul.f32 %v514, 1.442695
      %v518 = vpow.pop %v517
      %v519 = vsel %vm505, %v516, 0.0
      %520 = vadd.xlane.f32.xlu0 %v519
      %v521 = vpop.xlane.xlu0 %520
      %v522 = vsel %vm509, %v518, 0.0
      %523 = vadd.xlane.f32.xlu0 %v522
      %v524 = vpop.xlane.xlu0 %523
      %v525 = vrcp.pop %v521
      %v526 = vrcp.pop %v524
      %v527 = vmul.f32 %v516, %v525
      %v528 = vmul.f32 %v518, %v526
      %v529 = vpack.c.bf16 %v528, %v527
      %v530 = vpack.c.bf16 %v453, %v452
      %v532 = vsel %vm505, %v529, 0
      %534 = vmatprep.subr.bf16.mxu0 0
      %535 = vmatpush1.bf16.msra.mxu0 %v530
      %536 = vmatprep.subr.bf16.mxu0 0
      %537 = vmatpush1.bf16.msra.mxu0 0
      %538 = vmatprep.subr.bf16.mxu0 0
      %539 = vmatpush1.bf16.msra.mxu0 0
      %540 = vmatprep.subr.bf16.mxu0 0
      %541 = vmatpush1.bf16.msra.mxu0 0
      %542 = vmatprep.subr.bf16.mxu0 0
      %543 = vmatpush1.bf16.msra.mxu0 0
      %544 = vmatprep.subr.bf16.mxu0 0
      %545 = vmatpush1.bf16.msra.mxu0 0
      %546 = vmatprep.subr.bf16.mxu0 0
      %547 = vmatpush1.bf16.msra.mxu0 0
      %548 = vmatprep.subr.bf16.mxu0 0
      %549 = vmatpush1.bf16.msra.mxu0 0
      %550 = vmatprep.subr.bf16.mxu0 0
      %551 = vmatpush1.bf16.msra.mxu0 0
      %552 = vmatprep.subr.bf16.mxu0 0
      %553 = vmatpush1.bf16.msra.mxu0 0
      %554 = vmatprep.subr.bf16.mxu0 0
      %555 = vmatpush1.bf16.msra.mxu0 0
      %556 = vmatprep.subr.bf16.mxu0 0
      %557 = vmatpush1.bf16.msra.mxu0 0
      %558 = vmatprep.subr.bf16.mxu0 0
      %559 = vmatpush1.bf16.msra.mxu0 0
      %560 = vmatprep.subr.bf16.mxu0 0
      %561 = vmatpush1.bf16.msra.mxu0 0
      %562 = vmatprep.subr.bf16.mxu0 0
      %563 = vmatpush1.bf16.msra.mxu0 0
      %564 = vmatprep.subr.bf16.mxu0 0
      %565 = vmatpush1.bf16.msra.mxu0 0
      %566 = vmatprep.mubr.bf16.mxu0 0
      %567 = vmatmul.mubr.bf16.gmra.mrb[0].mxu0 %v532
      %v568 = vpop.f32.mrb[0].mxu0
      %v569 = vadd.f32 0.0, %v568
      %v570 = vpop.f32.mrb[0].mxu0
      %v571 = vpop.f32.mrb[0].mxu0
      %v572 = vadd.f32 0.0, %v571
      %v573 = vpop.f32.mrb[0].mxu0
      %574 = vdwg.mxu0
      %575 = vst.msk [vmem:[%s367] sm:$0xff] %vm405, %v569
      %vm576 = vcmask 253952
      %577 = vst.msk [vmem:[%s367 + $0x8] sm:$0x1] %vm576, %v572
      %578 = vst.msk [vmem:[%s372] sm:$0xff] %vm505, %v527
      %579 = vst.msk [vmem:[%s372 + $0x8] sm:$0x1] %vm509, %v528
      %v580 = vpack.c.bf16 %v572, %v569
      %v581 = vld [vmem:[%s5] sm:$0xf]
      %v582 = vld [vmem:[%s5 + $0x4] sm:$0xf]
      %v583 = vld [vmem:[%s5 + $0x8] sm:$0xf]
      %v584 = vld [vmem:[%s5 + $0xc] sm:$0xf]
      %v585 = vld [vmem:[%s6] sm:$0x1]
      %v587 = vlaneseq
      %v588 = vshrl.u32 %v587, 7
      %v589 = vsub.s32 0, %v588
      %v590 = vrot.slane %v585, %v589
      %v596 = vunpack.c.l.b16 %v581
      %v597 = vunpack.c.l.b16 %v582
      %v598 = vunpack.c.l.b16 %v583
      %v599 = vunpack.c.l.b16 %v584
      %v600 = vpack.c.b16 %v597, %v596
      %v601 = vpack.c.b16 %v599, %v598
      %v605 = vsel %vm405, %v580, 0
      %607 = vmatprep.subr.bf16.mxu0 0
      %608 = vmatpush1.bf16.msra.mxu0 %v600
      %609 = vmatprep.subr.bf16.mxu0 0
      %610 = vmatpush1.bf16.msra.mxu0 %v601
      %611 = vmatprep.subr.bf16.mxu0 0
      %612 = vmatpush1.bf16.msra.mxu0 0
      %613 = vmatprep.subr.bf16.mxu0 0
      %614 = vmatpush1.bf16.msra.mxu0 0
      %615 = vmatprep.subr.bf16.mxu0 0
      %616 = vmatpush1.bf16.msra.mxu0 0
      %617 = vmatprep.subr.bf16.mxu0 0
      %618 = vmatpush1.bf16.msra.mxu0 0
      %619 = vmatprep.subr.bf16.mxu0 0
      %620 = vmatpush1.bf16.msra.mxu0 0
      %621 = vmatprep.subr.bf16.mxu0 0
      %622 = vmatpush1.bf16.msra.mxu0 0
      %623 = vmatprep.subr.bf16.mxu0 0
      %624 = vmatpush1.bf16.msra.mxu0 0
      %625 = vmatprep.subr.bf16.mxu0 0
      %626 = vmatpush1.bf16.msra.mxu0 0
      %627 = vmatprep.subr.bf16.mxu0 0
      %628 = vmatpush1.bf16.msra.mxu0 0
      %629 = vmatprep.subr.bf16.mxu0 0
      %630 = vmatpush1.bf16.msra.mxu0 0
      %631 = vmatprep.subr.bf16.mxu0 0
      %632 = vmatpush1.bf16.msra.mxu0 0
      %633 = vmatprep.subr.bf16.mxu0 0
      %634 = vmatpush1.bf16.msra.mxu0 0
      %635 = vmatprep.subr.bf16.mxu0 0
      %636 = vmatpush1.bf16.msra.mxu0 0
      %637 = vmatprep.subr.bf16.mxu0 0
      %638 = vmatpush1.bf16.msra.mxu0 0
      %639 = vmatprep.mubr.bf16.mxu0 0
      %640 = vmatmul.mubr.bf16.gmra.mrb[0].mxu0 %v605
      %v641 = vpop.f32.mrb[0].mxu0
      %v642 = vadd.f32 %v590, %v641
      %v643 = vpop.f32.mrb[0].mxu0
      %v644 = vpop.f32.mrb[0].mxu0
      %v645 = vadd.f32 %v590, %v644
      %v646 = vpop.f32.mrb[0].mxu0
      %647 = vdwg.mxu0
      %648 = vst.msk [vmem:[%s377] sm:$0xff] %vm505, %v642
      %649 = vst.msk [vmem:[%s377 + $0x8] sm:$0x1] %vm509, %v645
      %p650 = scmp.lt.s32.totalorder %s21, 1
      %s651 = scalar_select %p650, %s21, 1
      %s652 = smul.addr %s651, 2
      %s653 = smul.addr %s652, 8
      %s654 = scalar_lea.vmem %s7, %s653
      %p655 = scmp.lt.s32.totalorder %s21, 1
      %s656 = scalar_select %p655, %s21, 1
      %s657 = smul.addr %s656, 2
      %s658 = smul.addr %s657, 8
      %s659 = scalar_lea.vmem %s8, %s658
      %p660 = scmp.lt.s32.totalorder %s21, 1
      %s661 = scalar_select %p660, %s21, 1
      %s662 = smul.addr %s661, 2
      %s663 = smul.addr %s662, 8
      %s664 = scalar_lea.vmem %s9, %s663
      // Predicated region
      $region49: #{abinet_iter_forward.26} parent=47 // pred_check
        %p665 = pneg %p196
      $region50: #{abinet_iter_forward.26} parent=47 // pred_check_branch
        %667 = sbr.rel (%p665) target = $region52
      $region51: #{abinet_iter_forward.26} parent=47 // pred_region
        _
      $region52: #{abinet_iter_forward.26} parent=47 // pred_fallthru
        _
      // Predicated region
      $region53: #{abinet_iter_forward.26} parent=47 // pred_check
        %p668 = pneg %p222
      $region54: #{abinet_iter_forward.26} parent=47 // pred_check_branch
        %670 = sbr.rel (%p668) target = $region56
      $region55: #{abinet_iter_forward.26} parent=47 // pred_region
        _
      $region56: #{abinet_iter_forward.26} parent=47 // pred_fallthru
        _
      // Predicated region
      $region57: #{abinet_iter_forward.26} parent=47 // pred_check
        %p671 = pneg %p248
      $region58: #{abinet_iter_forward.26} parent=47 // pred_check_branch
        %673 = sbr.rel (%p671) target = $region60
      $region59: #{abinet_iter_forward.26} parent=47 // pred_region
        _
      $region60: #{abinet_iter_forward.26} parent=47 // pred_fallthru
        _
    $region48: #{abinet_iter_forward.26} parent=5 // pred_fallthru
      _
    %p674 = scmp.le.s32.totalorder 2, %s16
    // Predicated region
    $region61: #{abinet_iter_forward.26} parent=5 // pred_check
      %p675 = pneg %p674
    $region62: #{abinet_iter_forward.26} parent=5 // pred_check_branch
      %677 = sbr.rel (%p675) target = $region64
    $region63: #{abinet_iter_forward.26} parent=5 // pred_region
      %s678 = ssub.s32 %s16, 2
      // Predicated region
      $region65: #{abinet_iter_forward.26} parent=63 // pred_check
        %p679 = pneg %p202
      $region66: #{abinet_iter_forward.26} parent=63 // pred_check_branch
        %681 = sbr.rel (%p679) target = $region68
      $region67: #{abinet_iter_forward.26} parent=63 // pred_region
        %p682 = scmp.lt.s32.totalorder %s22, 1
        %s683 = scalar_select %p682, %s22, 1
        %s684 = smul.addr %s683, 2
        %s685 = smul.addr %s684, 8
        %s686 = scalar_lea.vmem %s7, %s685
      $region68: #{abinet_iter_forward.26} parent=63 // pred_fallthru
        _
      // Predicated region
      $region69: #{abinet_iter_forward.26} parent=63 // pred_check
        %p687 = pneg %p228
      $region70: #{abinet_iter_forward.26} parent=63 // pred_check_branch
        %689 = sbr.rel (%p687) target = $region72
      $region71: #{abinet_iter_forward.26} parent=63 // pred_region
        %p690 = scmp.lt.s32.totalorder %s22, 1
        %s691 = scalar_select %p690, %s22, 1
        %s692 = smul.addr %s691, 2
        %s693 = smul.addr %s692, 8
        %s694 = scalar_lea.vmem %s8, %s693
      $region72: #{abinet_iter_forward.26} parent=63 // pred_fallthru
        _
      // Predicated region
      $region73: #{abinet_iter_forward.26} parent=63 // pred_check
        %p695 = pneg %p254
      $region74: #{abinet_iter_forward.26} parent=63 // pred_check_branch
        %697 = sbr.rel (%p695) target = $region76
      $region75: #{abinet_iter_forward.26} parent=63 // pred_region
        %p698 = scmp.lt.s32.totalorder %s22, 1
        %s699 = scalar_select %p698, %s22, 1
        %s700 = smul.addr %s699, 2
        %s701 = smul.addr %s700, 8
        %s702 = scalar_lea.vmem %s9, %s701
      $region76: #{abinet_iter_forward.26} parent=63 // pred_fallthru
        _
    $region64: #{abinet_iter_forward.26} parent=5 // pred_fallthru
      _
  $region6: #{abinet_iter_forward.26} parent=0 // loop_footer
    %s20 = sadd.s32 1, %s16
  $region7: #{abinet_iter_forward.26} parent=0 // loop_footer_branch
    %15 = sbr.rel target = $region3
  $region8: #{abinet_iter_forward.26} parent=0 // loop_exit
    _

// kernel: abinet_iter_forward.27
$region0: #{abinet_iter_forward.27}
  #allocation0 [shape = 'u32[]', space=smem, size = 0x4, offset = 0x4, fixed_abs, tag = 'smem constant byte address 0x4 - core index']
  #allocation1 [shape = 'u32[144,128]{1,0:T(1,128)}', space=vmem, size = 0x12000, scoped, tag = 'internal scratch']
  %s0 = inlined_call_operand.vmem [shape: f32[18,16], index: 0, kind: input, shape index: {}]
  %s1 = inlined_call_operand.vmem [shape: bf16[16,32], index: 1, kind: input, shape index: {}]
  %s2 = inlined_call_operand.vmem [shape: f32[18,32], index: 2, kind: input, shape index: {}]
  %s3 = inlined_call_operand.vmem [shape: f32[18,32], index: 3, kind: output, shape index: {}]
  %s4 = sld [smem:[#allocation0]]
  $region22: #{abinet_iter_forward.27} parent=0
    _
  %s6 = ssub.s32 1, %s4
  %s7 = scalar_select 0, %s6, %s4
  // Predicated region
  $region2: #{abinet_iter_forward.27} parent=0 // pred_check
    _
  $region3: #{abinet_iter_forward.27} parent=0 // pred_check_branch
    %9 = sbr.rel (0) target = $region5
  $region4: #{abinet_iter_forward.27} parent=0 // pred_region
    _
  $region5: #{abinet_iter_forward.27} parent=0 // pred_fallthru
    _
  // Predicated region
  $region6: #{abinet_iter_forward.27} parent=0 // pred_check
    _
  $region7: #{abinet_iter_forward.27} parent=0 // pred_check_branch
    %11 = sbr.rel (0) target = $region9
  $region8: #{abinet_iter_forward.27} parent=0 // pred_region
    _
  $region9: #{abinet_iter_forward.27} parent=0 // pred_fallthru
    _
  // Predicated region
  $region10: #{abinet_iter_forward.27} parent=0 // pred_check
    _
  $region11: #{abinet_iter_forward.27} parent=0 // pred_check_branch
    %13 = sbr.rel (0) target = $region13
  $region12: #{abinet_iter_forward.27} parent=0 // pred_region
    _
  $region13: #{abinet_iter_forward.27} parent=0 // pred_fallthru
    _
  %v15 = vld [vmem:[%s0] sm:$0xff]
  %v16 = vld [vmem:[%s0 + $0x8] sm:$0xff]
  %v17 = vld [vmem:[%s0 + $0x10] sm:$0x3]
  %vm18 = vcmask 130048
  %v19 = vsel %vm18, %v15, -inf
  %20 = vmax.xlane.f32.xlu0 %v19
  %v21 = vpop.xlane.xlu0 %20
  %v22 = vsel %vm18, %v16, -inf
  %23 = vmax.xlane.f32.xlu0 %v22
  %v24 = vpop.xlane.xlu0 %23
  %vm25 = vcmask 123904
  %v26 = vsel %vm25, %v17, -inf
  %27 = vmax.xlane.f32.xlu0 %v26
  %v28 = vpop.xlane.xlu0 %27
  %v29 = vsub.f32 %v15, %v21
  %v30 = vsub.f32 %v16, %v24
  %v31 = vsub.f32 %v17, %v28
  %v32 = vmul.f32 %v29, 1.442695
  %v33 = vpow.pop %v32
  %v34 = vmul.f32 %v30, 1.442695
  %v35 = vpow.pop %v34
  %v36 = vmul.f32 %v31, 1.442695
  %v37 = vpow.pop %v36
  %v38 = vsel %vm18, %v33, 0.0
  %39 = vadd.xlane.f32.xlu0 %v38
  %v40 = vpop.xlane.xlu0 %39
  %v41 = vsel %vm18, %v35, 0.0
  %42 = vadd.xlane.f32.xlu0 %v41
  %v43 = vpop.xlane.xlu0 %42
  %v44 = vsel %vm25, %v37, 0.0
  %45 = vadd.xlane.f32.xlu0 %v44
  %v46 = vpop.xlane.xlu0 %45
  %v47 = vrcp.pop %v40
  %v48 = vrcp.pop %v43
  %v49 = vrcp.pop %v46
  %v50 = vmul.f32 %v33, %v47
  %v51 = vmul.f32 %v35, %v48
  %v52 = vmul.f32 %v37, %v49
  %v53 = vpack.c.bf16 %v51, %v50
  %v54 = vpack.c.bf16 %v52, %v52
  %v55 = vld [vmem:[%s1] sm:$0xf]
  %v56 = vld [vmem:[%s1 + $0x4] sm:$0xf]
  %v57 = vld [vmem:[%s2] sm:$0xff]
  %v58 = vld [vmem:[%s2 + $0x8] sm:$0xff]
  %v59 = vld [vmem:[%s2 + $0x10] sm:$0x3]
  %v62 = vunpack.c.l.b16 %v55
  %v63 = vunpack.c.l.b16 %v56
  %v64 = vpack.c.b16 %v63, %v62
  %v67 = vsel %vm18, %v53, 0
  %v70 = vsel %vm18, %v54, 0
  %72 = vmatprep.subr.bf16.mxu0 0
  %73 = vmatpush1.bf16.msra.mxu0 %v64
  %74 = vmatprep.subr.bf16.mxu0 0
  %75 = vmatpush1.bf16.msra.mxu0 0
  %76 = vmatprep.subr.bf16.mxu0 0
  %77 = vmatpush1.bf16.msra.mxu0 0
  %78 = vmatprep.subr.bf16.mxu0 0
  %79 = vmatpush1.bf16.msra.mxu0 0
  %80 = vmatprep.subr.bf16.mxu0 0
  %81 = vmatpush1.bf16.msra.mxu0 0
  %82 = vmatprep.subr.bf16.mxu0 0
  %83 = vmatpush1.bf16.msra.mxu0 0
  %84 = vmatprep.subr.bf16.mxu0 0
  %85 = vmatpush1.bf16.msra.mxu0 0
  %86 = vmatprep.subr.bf16.mxu0 0
  %87 = vmatpush1.bf16.msra.mxu0 0
  %88 = vmatprep.subr.bf16.mxu0 0
  %89 = vmatpush1.bf16.msra.mxu0 0
  %90 = vmatprep.subr.bf16.mxu0 0
  %91 = vmatpush1.bf16.msra.mxu0 0
  %92 = vmatprep.subr.bf16.mxu0 0
  %93 = vmatpush1.bf16.msra.mxu0 0
  %94 = vmatprep.subr.bf16.mxu0 0
  %95 = vmatpush1.bf16.msra.mxu0 0
  %96 = vmatprep.subr.bf16.mxu0 0
  %97 = vmatpush1.bf16.msra.mxu0 0
  %98 = vmatprep.subr.bf16.mxu0 0
  %99 = vmatpush1.bf16.msra.mxu0 0
  %100 = vmatprep.subr.bf16.mxu0 0
  %101 = vmatpush1.bf16.msra.mxu0 0
  %102 = vmatprep.subr.bf16.mxu0 0
  %103 = vmatpush1.bf16.msra.mxu0 0
  %104 = vmatprep.mubr.bf16.mxu0 0
  %105 = vmatmul.mubr.bf16.gmra.mrb[0].mxu0 %v67
  %v106 = vpop.f32.mrb[0].mxu0
  %v107 = vadd.f32 %v57, %v106
  %v108 = vpop.f32.mrb[0].mxu0
  %v109 = vpop.f32.mrb[0].mxu0
  %v110 = vadd.f32 %v58, %v109
  %v111 = vpop.f32.mrb[0].mxu0
  %112 = vmatprep.mubr.bf16.mxu0 0
  %113 = vmatmul.mubr.bf16.gmra.mrb[0].mxu0 %v70
  %v114 = vpop.f32.mrb[0].mxu0
  %v115 = vadd.f32 %v59, %v114
  %v116 = vpop.f32.mrb[0].mxu0
  %v117 = vpop.f32.mrb[0].mxu0
  %v118 = vpop.f32.mrb[0].mxu0
  %119 = vdwg.mxu0
  %vm120 = vcmask 261120
  %121 = vst.msk [vmem:[%s3] sm:$0xff] %vm120, %v107
  %122 = vst.msk [vmem:[%s3 + $0x8] sm:$0xff] %vm120, %v110
  %vm123 = vcmask 254976
  %124 = vst.msk [vmem:[%s3 + $0x10] sm:$0x3] %vm123, %v115
  // Predicated region
  $region14: #{abinet_iter_forward.27} parent=0 // pred_check
    _
  $region15: #{abinet_iter_forward.27} parent=0 // pred_check_branch
    %126 = sbr.rel (0) target = $region17
  $region16: #{abinet_iter_forward.27} parent=0 // pred_region
    _
  $region17: #{abinet_iter_forward.27} parent=0 // pred_fallthru
    _
  // Predicated region
  $region18: #{abinet_iter_forward.27} parent=0 // pred_check
    _
  $region19: #{abinet_iter_forward.27} parent=0 // pred_check_branch
    %128 = sbr.rel (0) target = $region21
  $region20: #{abinet_iter_forward.27} parent=0 // pred_region
    _
  $region21: #{abinet_iter_forward.27} parent=0 // pred_fallthru
    _

// kernel: abinet_iter_forward.30
$region0: #{abinet_iter_forward.30}
  #allocation0 [shape = 'u32[]', space=smem, size = 0x4, offset = 0x4, fixed_abs, tag = 'smem constant byte address 0x4 - core index']
  #allocation1 [shape = 'u32[144,128]{1,0:T(1,128)}', space=vmem, size = 0x12000, scoped, tag = 'internal scratch']
  %s0 = inlined_call_operand.vmem [shape: f32[18,32], index: 0, kind: input, shape index: {}]
  %s1 = inlined_call_operand.vmem [shape: f32[18,32], index: 1, kind: input, shape index: {}]
  %s2 = inlined_call_operand.vmem [shape: bf16[32,32], index: 2, kind: input, shape index: {}]
  %s3 = inlined_call_operand.vmem [shape: bf16[32,32], index: 3, kind: input, shape index: {}]
  %s4 = inlined_call_operand.vmem [shape: f32[1,32], index: 4, kind: input, shape index: {}]
  %s5 = inlined_call_operand.vmem [shape: bf16[32,16], index: 5, kind: input, shape index: {}]
  %s6 = inlined_call_operand.vmem [shape: f32[1,16], index: 6, kind: input, shape index: {}]
  %s7 = inlined_call_operand.vmem [shape: f32[18,16], index: 7, kind: output, shape index: {}]
  %s8 = sld [smem:[#allocation0]]
  $region38: #{abinet_iter_forward.30} parent=0
    _
  %s10 = ssub.s32 1, %s8
  %s11 = scalar_select 0, %s10, %s8
  // Predicated region
  $region2: #{abinet_iter_forward.30} parent=0 // pred_check
    _
  $region3: #{abinet_iter_forward.30} parent=0 // pred_check_branch
    %13 = sbr.rel (0) target = $region5
  $region4: #{abinet_iter_forward.30} parent=0 // pred_region
    _
  $region5: #{abinet_iter_forward.30} parent=0 // pred_fallthru
    _
  // Predicated region
  $region6: #{abinet_iter_forward.30} parent=0 // pred_check
    _
  $region7: #{abinet_iter_forward.30} parent=0 // pred_check_branch
    %15 = sbr.rel (0) target = $region9
  $region8: #{abinet_iter_forward.30} parent=0 // pred_region
    _
  $region9: #{abinet_iter_forward.30} parent=0 // pred_fallthru
    _
  // Predicated region
  $region10: #{abinet_iter_forward.30} parent=0 // pred_check
    _
  $region11: #{abinet_iter_forward.30} parent=0 // pred_check_branch
    %17 = sbr.rel (0) target = $region13
  $region12: #{abinet_iter_forward.30} parent=0 // pred_region
    _
  $region13: #{abinet_iter_forward.30} parent=0 // pred_fallthru
    _
  // Predicated region
  $region14: #{abinet_iter_forward.30} parent=0 // pred_check
    _
  $region15: #{abinet_iter_forward.30} parent=0 // pred_check_branch
    %19 = sbr.rel (0) target = $region17
  $region16: #{abinet_iter_forward.30} parent=0 // pred_region
    _
  $region17: #{abinet_iter_forward.30} parent=0 // pred_fallthru
    _
  // Predicated region
  $region18: #{abinet_iter_forward.30} parent=0 // pred_check
    _
  $region19: #{abinet_iter_forward.30} parent=0 // pred_check_branch
    %21 = sbr.rel (0) target = $region21
  $region20: #{abinet_iter_forward.30} parent=0 // pred_region
    _
  $region21: #{abinet_iter_forward.30} parent=0 // pred_fallthru
    _
  // Predicated region
  $region22: #{abinet_iter_forward.30} parent=0 // pred_check
    _
  $region23: #{abinet_iter_forward.30} parent=0 // pred_check_branch
    %23 = sbr.rel (0) target = $region25
  $region24: #{abinet_iter_forward.30} parent=0 // pred_region
    _
  $region25: #{abinet_iter_forward.30} parent=0 // pred_fallthru
    _
  // Predicated region
  $region26: #{abinet_iter_forward.30} parent=0 // pred_check
    _
  $region27: #{abinet_iter_forward.30} parent=0 // pred_check_branch
    %25 = sbr.rel (0) target = $region29
  $region28: #{abinet_iter_forward.30} parent=0 // pred_region
    _
  $region29: #{abinet_iter_forward.30} parent=0 // pred_fallthru
    _
  %v27 = vld [vmem:[%s0] sm:$0xff]
  %v28 = vld [vmem:[%s0 + $0x8] sm:$0xff]
  %v29 = vld [vmem:[%s0 + $0x10] sm:$0x3]
  %v30 = vld [vmem:[%s1] sm:$0xff]
  %v31 = vld [vmem:[%s1 + $0x8] sm:$0xff]
  %v32 = vld [vmem:[%s1 + $0x10] sm:$0x3]
  %v33 = vpack.c.bf16 %v28, %v27
  %v34 = vpack.c.bf16 %v29, %v29
  %v35 = vld [vmem:[%s2] sm:$0xf]
  %v36 = vld [vmem:[%s2 + $0x4] sm:$0xf]
  %v37 = vld [vmem:[%s2 + $0x8] sm:$0xf]
  %v38 = vld [vmem:[%s2 + $0xc] sm:$0xf]
  %v39 = vpack.c.bf16 %v31, %v30
  %v40 = vpack.c.bf16 %v32, %v32
  %v41 = vld [vmem:[%s3] sm:$0xf]
  %v42 = vld [vmem:[%s3 + $0x4] sm:$0xf]
  %v43 = vld [vmem:[%s3 + $0x8] sm:$0xf]
  %v44 = vld [vmem:[%s3 + $0xc] sm:$0xf]
  %v49 = vunpack.c.l.b16 %v41
  %v50 = vunpack.c.l.b16 %v42
  %v51 = vunpack.c.l.b16 %v43
  %v52 = vunpack.c.l.b16 %v44
  %v53 = vpack.c.b16 %v50, %v49
  %v54 = vpack.c.b16 %v52, %v51
  %vm57 = vcmask 261120
  %v59 = vsel %vm57, %v39, 0
  %v62 = vsel %vm57, %v40, 0
  %64 = vmatprep.subr.bf16.mxu0 0
  %65 = vmatpush1.bf16.msra.mxu0 %v53
  %66 = vmatprep.subr.bf16.mxu0 0
  %67 = vmatpush1.bf16.msra.mxu0 %v54
  %68 = vmatprep.subr.bf16.mxu0 0
  %69 = vmatpush1.bf16.msra.mxu0 0
  %70 = vmatprep.subr.bf16.mxu0 0
  %71 = vmatpush1.bf16.msra.mxu0 0
  %72 = vmatprep.subr.bf16.mxu0 0
  %73 = vmatpush1.bf16.msra.mxu0 0
  %74 = vmatprep.subr.bf16.mxu0 0
  %75 = vmatpush1.bf16.msra.mxu0 0
  %76 = vmatprep.subr.bf16.mxu0 0
  %77 = vmatpush1.bf16.msra.mxu0 0
  %78 = vmatprep.subr.bf16.mxu0 0
  %79 = vmatpush1.bf16.msra.mxu0 0
  %80 = vmatprep.subr.bf16.mxu0 0
  %81 = vmatpush1.bf16.msra.mxu0 0
  %82 = vmatprep.subr.bf16.mxu0 0
  %83 = vmatpush1.bf16.msra.mxu0 0
  %84 = vmatprep.subr.bf16.mxu0 0
  %85 = vmatpush1.bf16.msra.mxu0 0
  %86 = vmatprep.subr.bf16.mxu0 0
  %87 = vmatpush1.bf16.msra.mxu0 0
  %88 = vmatprep.subr.bf16.mxu0 0
  %89 = vmatpush1.bf16.msra.mxu0 0
  %90 = vmatprep.subr.bf16.mxu0 0
  %91 = vmatpush1.bf16.msra.mxu0 0
  %92 = vmatprep.subr.bf16.mxu0 0
  %93 = vmatpush1.bf16.msra.mxu0 0
  %94 = vmatprep.subr.bf16.mxu0 0
  %95 = vmatpush1.bf16.msra.mxu0 0
  %96 = vmatprep.mubr.bf16.mxu0 0
  %97 = vmatmul.mubr.bf16.gmra.mrb[0].mxu0 %v59
  %v98 = vpop.f32.mrb[0].mxu0
  %v99 = vadd.f32 0.0, %v98
  %v100 = vpop.f32.mrb[0].mxu0
  %v101 = vpop.f32.mrb[0].mxu0
  %v102 = vadd.f32 0.0, %v101
  %v103 = vpop.f32.mrb[0].mxu0
  %104 = vmatprep.mubr.bf16.mxu0 0
  %105 = vmatmul.mubr.bf16.gmra.mrb[0].mxu0 %v62
  %v106 = vpop.f32.mrb[0].mxu0
  %v107 = vadd.f32 0.0, %v106
  %v108 = vpop.f32.mrb[0].mxu0
  %v109 = vpop.f32.mrb[0].mxu0
  %v110 = vpop.f32.mrb[0].mxu0
  %111 = vdwg.mxu0
  %v116 = vunpack.c.l.b16 %v35
  %v117 = vunpack.c.l.b16 %v36
  %v118 = vunpack.c.l.b16 %v37
  %v119 = vunpack.c.l.b16 %v38
  %v120 = vpack.c.b16 %v117, %v116
  %v121 = vpack.c.b16 %v119, %v118
  %v125 = vsel %vm57, %v33, 0
  %v128 = vsel %vm57, %v34, 0
  %130 = vmatprep.subr.bf16.mxu0 0
  %131 = vmatpush1.bf16.msra.mxu0 %v120
  %132 = vmatprep.subr.bf16.mxu0 0
  %133 = vmatpush1.bf16.msra.mxu0 %v121
  %134 = vmatprep.subr.bf16.mxu0 0
  %135 = vmatpush1.bf16.msra.mxu0 0
  %136 = vmatprep.subr.bf16.mxu0 0
  %137 = vmatpush1.bf16.msra.mxu0 0
  %138 = vmatprep.subr.bf16.mxu0 0
  %139 = vmatpush1.bf16.msra.mxu0 0
  %140 = vmatprep.subr.bf16.mxu0 0
  %141 = vmatpush1.bf16.msra.mxu0 0
  %142 = vmatprep.subr.bf16.mxu0 0
  %143 = vmatpush1.bf16.msra.mxu0 0
  %144 = vmatprep.subr.bf16.mxu0 0
  %145 = vmatpush1.bf16.msra.mxu0 0
  %146 = vmatprep.subr.bf16.mxu0 0
  %147 = vmatpush1.bf16.msra.mxu0 0
  %148 = vmatprep.subr.bf16.mxu0 0
  %149 = vmatpush1.bf16.msra.mxu0 0
  %150 = vmatprep.subr.bf16.mxu0 0
  %151 = vmatpush1.bf16.msra.mxu0 0
  %152 = vmatprep.subr.bf16.mxu0 0
  %153 = vmatpush1.bf16.msra.mxu0 0
  %154 = vmatprep.subr.bf16.mxu0 0
  %155 = vmatpush1.bf16.msra.mxu0 0
  %156 = vmatprep.subr.bf16.mxu0 0
  %157 = vmatpush1.bf16.msra.mxu0 0
  %158 = vmatprep.subr.bf16.mxu0 0
  %159 = vmatpush1.bf16.msra.mxu0 0
  %160 = vmatprep.subr.bf16.mxu0 0
  %161 = vmatpush1.bf16.msra.mxu0 0
  %162 = vmatprep.mubr.bf16.mxu0 0
  %163 = vmatmul.mubr.bf16.gmra.mrb[0].mxu0 %v125
  %v164 = vpop.f32.mrb[0].mxu0
  %v165 = vadd.f32 %v99, %v164
  %v166 = vpop.f32.mrb[0].mxu0
  %v167 = vpop.f32.mrb[0].mxu0
  %v168 = vadd.f32 %v102, %v167
  %v169 = vpop.f32.mrb[0].mxu0
  %170 = vmatprep.mubr.bf16.mxu0 0
  %171 = vmatmul.mubr.bf16.gmra.mrb[0].mxu0 %v128
  %v172 = vpop.f32.mrb[0].mxu0
  %v173 = vadd.f32 %v107, %v172
  %v174 = vpop.f32.mrb[0].mxu0
  %v175 = vpop.f32.mrb[0].mxu0
  %v176 = vpop.f32.mrb[0].mxu0
  %177 = vdwg.mxu0
  %v178 = vld [vmem:[%s4] sm:$0x1]
  %v180 = vlaneseq
  %v181 = vshrl.u32 %v180, 7
  %v182 = vsub.s32 0, %v181
  %v183 = vrot.slane %v178, %v182
  %v185 = vadd.f32 %v165, %v183
  %v186 = vadd.f32 %v168, %v183
  %v187 = vadd.f32 %v173, %v183
  %v188 = vxor.u32 %v185, 2147483648
  %v189 = vxor.u32 %v186, 2147483648
  %v190 = vxor.u32 %v187, 2147483648
  %v191 = vmul.f32 %v188, 1.442695
  %v192 = vpow.pop %v191
  %v193 = vmul.f32 %v189, 1.442695
  %v194 = vpow.pop %v193
  %v195 = vmul.f32 %v190, 1.442695
  %v196 = vpow.pop %v195
  %v197 = vadd.f32 %v192, 1.0
  %v198 = vadd.f32 %v194, 1.0
  %v199 = vadd.f32 %v196, 1.0
  %v200 = vrcp.pop %v197
  %v201 = vmul.f32 1.0, %v200
  %v202 = vrcp.pop %v198
  %v203 = vmul.f32 1.0, %v202
  %v204 = vrcp.pop %v199
  %v205 = vmul.f32 1.0, %v204
  %v206 = vmul.f32 %v201, %v30
  %v207 = vmul.f32 %v203, %v31
  %v208 = vmul.f32 %v205, %v32
  %v209 = vsub.f32 1.0, %v201
  %v210 = vsub.f32 1.0, %v203
  %v211 = vsub.f32 1.0, %v205
  %v212 = vmul.f32 %v209, %v27
  %v213 = vmul.f32 %v210, %v28
  %v214 = vmul.f32 %v211, %v29
  %v215 = vadd.f32 %v206, %v212
  %v216 = vadd.f32 %v207, %v213
  %v217 = vadd.f32 %v208, %v214
  %v218 = vpack.c.bf16 %v216, %v215
  %v219 = vpack.c.bf16 %v217, %v217
  %v220 = vld [vmem:[%s5] sm:$0xf]
  %v221 = vld [vmem:[%s5 + $0x4] sm:$0xf]
  %v222 = vld [vmem:[%s5 + $0x8] sm:$0xf]
  %v223 = vld [vmem:[%s5 + $0xc] sm:$0xf]
  %v224 = vld [vmem:[%s6] sm:$0x1]
  %v226 = vlaneseq
  %v227 = vshrl.u32 %v226, 7
  %v228 = vsub.s32 0, %v227
  %v229 = vrot.slane %v224, %v228
  %v235 = vunpack.c.l.b16 %v220
  %v236 = vunpack.c.l.b16 %v221
  %v237 = vunpack.c.l.b16 %v222
  %v238 = vunpack.c.l.b16 %v223
  %v239 = vpack.c.b16 %v236, %v235
  %v240 = vpack.c.b16 %v238, %v237
  %v244 = vsel %vm57, %v218, 0
  %v247 = vsel %vm57, %v219, 0
  %249 = vmatprep.subr.bf16.mxu0 0
  %250 = vmatpush1.bf16.msra.mxu0 %v239
  %251 = vmatprep.subr.bf16.mxu0 0
  %252 = vmatpush1.bf16.msra.mxu0 %v240
  %253 = vmatprep.subr.bf16.mxu0 0
  %254 = vmatpush1.bf16.msra.mxu0 0
  %255 = vmatprep.subr.bf16.mxu0 0
  %256 = vmatpush1.bf16.msra.mxu0 0
  %257 = vmatprep.subr.bf16.mxu0 0
  %258 = vmatpush1.bf16.msra.mxu0 0
  %259 = vmatprep.subr.bf16.mxu0 0
  %260 = vmatpush1.bf16.msra.mxu0 0
  %261 = vmatprep.subr.bf16.mxu0 0
  %262 = vmatpush1.bf16.msra.mxu0 0
  %263 = vmatprep.subr.bf16.mxu0 0
  %264 = vmatpush1.bf16.msra.mxu0 0
  %265 = vmatprep.subr.bf16.mxu0 0
  %266 = vmatpush1.bf16.msra.mxu0 0
  %267 = vmatprep.subr.bf16.mxu0 0
  %268 = vmatpush1.bf16.msra.mxu0 0
  %269 = vmatprep.subr.bf16.mxu0 0
  %270 = vmatpush1.bf16.msra.mxu0 0
  %271 = vmatprep.subr.bf16.mxu0 0
  %272 = vmatpush1.bf16.msra.mxu0 0
  %273 = vmatprep.subr.bf16.mxu0 0
  %274 = vmatpush1.bf16.msra.mxu0 0
  %275 = vmatprep.subr.bf16.mxu0 0
  %276 = vmatpush1.bf16.msra.mxu0 0
  %277 = vmatprep.subr.bf16.mxu0 0
  %278 = vmatpush1.bf16.msra.mxu0 0
  %279 = vmatprep.subr.bf16.mxu0 0
  %280 = vmatpush1.bf16.msra.mxu0 0
  %281 = vmatprep.mubr.bf16.mxu0 0
  %282 = vmatmul.mubr.bf16.gmra.mrb[0].mxu0 %v244
  %v283 = vpop.f32.mrb[0].mxu0
  %v284 = vadd.f32 %v229, %v283
  %v285 = vpop.f32.mrb[0].mxu0
  %v286 = vpop.f32.mrb[0].mxu0
  %v287 = vadd.f32 %v229, %v286
  %v288 = vpop.f32.mrb[0].mxu0
  %289 = vmatprep.mubr.bf16.mxu0 0
  %290 = vmatmul.mubr.bf16.gmra.mrb[0].mxu0 %v247
  %v291 = vpop.f32.mrb[0].mxu0
  %v292 = vadd.f32 %v229, %v291
  %v293 = vpop.f32.mrb[0].mxu0
  %v294 = vpop.f32.mrb[0].mxu0
  %v295 = vpop.f32.mrb[0].mxu0
  %296 = vdwg.mxu0
  %vm297 = vcmask 130048
  %298 = vst.msk [vmem:[%s7] sm:$0xff] %vm297, %v284
  %299 = vst.msk [vmem:[%s7 + $0x8] sm:$0xff] %vm297, %v287
  %vm300 = vcmask 123904
  %301 = vst.msk [vmem:[%s7 + $0x10] sm:$0x3] %vm300, %v292
  // Predicated region
  $region30: #{abinet_iter_forward.30} parent=0 // pred_check
    _
  $region31: #{abinet_iter_forward.30} parent=0 // pred_check_branch
    %303 = sbr.rel (0) target = $region33
  $region32: #{abinet_iter_forward.30} parent=0 // pred_region
    _
  $region33: #{abinet_iter_forward.30} parent=0 // pred_fallthru
    _
  // Predicated region
  $region34: #{abinet_iter_forward.30} parent=0 // pred_check
    _
  $region35: #{abinet_iter_forward.30} parent=0 // pred_check_branch
    %305 = sbr.rel (0) target = $region37
  $region36: #{abinet_iter_forward.30} parent=0 // pred_region
    _
  $region37: #{abinet_iter_forward.30} parent=0 // pred_fallthru
    _

// kernel: abinet_iter_forward.34
$region0: #{abinet_iter_forward.34}
  #allocation0 [shape = 'u32[]', space=smem, size = 0x4, offset = 0x4, fixed_abs, tag = 'smem constant byte address 0x4 - core index']
  #allocation1 [shape = 'u32[144,128]{1,0:T(1,128)}', space=vmem, size = 0x12000, scoped, tag = 'internal scratch']
  %s0 = inlined_call_operand.vmem [shape: f32[18,32], index: 0, kind: input, shape index: {}]
  %s1 = inlined_call_operand.vmem [shape: bf16[32,16], index: 1, kind: input, shape index: {}]
  %s2 = inlined_call_operand.vmem [shape: f32[1,16], index: 2, kind: input, shape index: {}]
  %s3 = inlined_call_operand.vmem [shape: f32[18,16], index: 3, kind: output, shape index: {}]
  %s4 = sld [smem:[#allocation0]]
  $region22: #{abinet_iter_forward.34} parent=0
    _
  %s6 = ssub.s32 1, %s4
  %s7 = scalar_select 0, %s6, %s4
  // Predicated region
  $region2: #{abinet_iter_forward.34} parent=0 // pred_check
    _
  $region3: #{abinet_iter_forward.34} parent=0 // pred_check_branch
    %9 = sbr.rel (0) target = $region5
  $region4: #{abinet_iter_forward.34} parent=0 // pred_region
    _
  $region5: #{abinet_iter_forward.34} parent=0 // pred_fallthru
    _
  // Predicated region
  $region6: #{abinet_iter_forward.34} parent=0 // pred_check
    _
  $region7: #{abinet_iter_forward.34} parent=0 // pred_check_branch
    %11 = sbr.rel (0) target = $region9
  $region8: #{abinet_iter_forward.34} parent=0 // pred_region
    _
  $region9: #{abinet_iter_forward.34} parent=0 // pred_fallthru
    _
  // Predicated region
  $region10: #{abinet_iter_forward.34} parent=0 // pred_check
    _
  $region11: #{abinet_iter_forward.34} parent=0 // pred_check_branch
    %13 = sbr.rel (0) target = $region13
  $region12: #{abinet_iter_forward.34} parent=0 // pred_region
    _
  $region13: #{abinet_iter_forward.34} parent=0 // pred_fallthru
    _
  %v15 = vld [vmem:[%s0] sm:$0xff]
  %v16 = vld [vmem:[%s0 + $0x8] sm:$0xff]
  %v17 = vld [vmem:[%s0 + $0x10] sm:$0x3]
  %v18 = vpack.c.bf16 %v16, %v15
  %v19 = vpack.c.bf16 %v17, %v17
  %v20 = vld [vmem:[%s1] sm:$0xf]
  %v21 = vld [vmem:[%s1 + $0x4] sm:$0xf]
  %v22 = vld [vmem:[%s1 + $0x8] sm:$0xf]
  %v23 = vld [vmem:[%s1 + $0xc] sm:$0xf]
  %v24 = vld [vmem:[%s2] sm:$0x1]
  %v26 = vlaneseq
  %v27 = vshrl.u32 %v26, 7
  %v28 = vsub.s32 0, %v27
  %v29 = vrot.slane %v24, %v28
  %v35 = vunpack.c.l.b16 %v20
  %v36 = vunpack.c.l.b16 %v21
  %v37 = vunpack.c.l.b16 %v22
  %v38 = vunpack.c.l.b16 %v23
  %v39 = vpack.c.b16 %v36, %v35
  %v40 = vpack.c.b16 %v38, %v37
  %vm43 = vcmask 261120
  %v45 = vsel %vm43, %v18, 0
  %v48 = vsel %vm43, %v19, 0
  %50 = vmatprep.subr.bf16.mxu0 0
  %51 = vmatpush1.bf16.msra.mxu0 %v39
  %52 = vmatprep.subr.bf16.mxu0 0
  %53 = vmatpush1.bf16.msra.mxu0 %v40
  %54 = vmatprep.subr.bf16.mxu0 0
  %55 = vmatpush1.bf16.msra.mxu0 0
  %56 = vmatprep.subr.bf16.mxu0 0
  %57 = vmatpush1.bf16.msra.mxu0 0
  %58 = vmatprep.subr.bf16.mxu0 0
  %59 = vmatpush1.bf16.msra.mxu0 0
  %60 = vmatprep.subr.bf16.mxu0 0
  %61 = vmatpush1.bf16.msra.mxu0 0
  %62 = vmatprep.subr.bf16.mxu0 0
  %63 = vmatpush1.bf16.msra.mxu0 0
  %64 = vmatprep.subr.bf16.mxu0 0
  %65 = vmatpush1.bf16.msra.mxu0 0
  %66 = vmatprep.subr.bf16.mxu0 0
  %67 = vmatpush1.bf16.msra.mxu0 0
  %68 = vmatprep.subr.bf16.mxu0 0
  %69 = vmatpush1.bf16.msra.mxu0 0
  %70 = vmatprep.subr.bf16.mxu0 0
  %71 = vmatpush1.bf16.msra.mxu0 0
  %72 = vmatprep.subr.bf16.mxu0 0
  %73 = vmatpush1.bf16.msra.mxu0 0
  %74 = vmatprep.subr.bf16.mxu0 0
  %75 = vmatpush1.bf16.msra.mxu0 0
  %76 = vmatprep.subr.bf16.mxu0 0
  %77 = vmatpush1.bf16.msra.mxu0 0
  %78 = vmatprep.subr.bf16.mxu0 0
  %79 = vmatpush1.bf16.msra.mxu0 0
  %80 = vmatprep.subr.bf16.mxu0 0
  %81 = vmatpush1.bf16.msra.mxu0 0
  %82 = vmatprep.mubr.bf16.mxu0 0
  %83 = vmatmul.mubr.bf16.gmra.mrb[0].mxu0 %v45
  %v84 = vpop.f32.mrb[0].mxu0
  %v85 = vadd.f32 %v29, %v84
  %v86 = vpop.f32.mrb[0].mxu0
  %v87 = vpop.f32.mrb[0].mxu0
  %v88 = vadd.f32 %v29, %v87
  %v89 = vpop.f32.mrb[0].mxu0
  %90 = vmatprep.mubr.bf16.mxu0 0
  %91 = vmatmul.mubr.bf16.gmra.mrb[0].mxu0 %v48
  %v92 = vpop.f32.mrb[0].mxu0
  %v93 = vadd.f32 %v29, %v92
  %v94 = vpop.f32.mrb[0].mxu0
  %v95 = vpop.f32.mrb[0].mxu0
  %v96 = vpop.f32.mrb[0].mxu0
  %97 = vdwg.mxu0
  %vm98 = vcmask 130048
  %99 = vst.msk [vmem:[%s3] sm:$0xff] %vm98, %v85
  %100 = vst.msk [vmem:[%s3 + $0x8] sm:$0xff] %vm98, %v88
  %vm101 = vcmask 123904
  %102 = vst.msk [vmem:[%s3 + $0x10] sm:$0x3] %vm101, %v93
  // Predicated region
  $region14: #{abinet_iter_forward.34} parent=0 // pred_check
    _
  $region15: #{abinet_iter_forward.34} parent=0 // pred_check_branch
    %104 = sbr.rel (0) target = $region17
  $region16: #{abinet_iter_forward.34} parent=0 // pred_region
    _
  $region17: #{abinet_iter_forward.34} parent=0 // pred_fallthru
    _
  // Predicated region
  $region18: #{abinet_iter_forward.34} parent=0 // pred_check
    _
  $region19: #{abinet_iter_forward.34} parent=0 // pred_check_branch
    %106 = sbr.rel (0) target = $region21
  $region20: #{abinet_iter_forward.34} parent=0 // pred_region
    _
  $region21: #{abinet_iter_forward.34} parent=0 // pred_fallthru
    _

// kernel: abinet_iter_forward.28
$region0: #{abinet_iter_forward.28}
  #allocation0 [shape = 'u32[]', space=smem, size = 0x4, offset = 0x4, fixed_abs, tag = 'smem constant byte address 0x4 - core index']
  #allocation1 [shape = 'u32[144,128]{1,0:T(1,128)}', space=vmem, size = 0x12000, scoped, tag = 'internal scratch']
  %s0 = inlined_call_operand.vmem [shape: s32[2], index: 0, kind: input, shape index: {}]
  %s1 = inlined_call_operand.vmem [shape: f32[2,9,32], index: 1, kind: input, shape index: {}]
  %s2 = inlined_call_operand.vmem [shape: f32[2,9,32], index: 2, kind: input, shape index: {}]
  %s3 = inlined_call_operand.vmem [shape: bf16[32,96], index: 3, kind: input, shape index: {}]
  %s4 = inlined_call_operand.vmem [shape: f32[1,96], index: 4, kind: input, shape index: {}]
  %s5 = inlined_call_operand.vmem [shape: bf16[32,32], index: 5, kind: input, shape index: {}]
  %s6 = inlined_call_operand.vmem [shape: f32[1,32], index: 6, kind: input, shape index: {}]
  %s7 = inlined_call_operand.vmem [shape: f32[1,32], index: 7, kind: input, shape index: {}]
  %s8 = inlined_call_operand.vmem [shape: f32[1,32], index: 8, kind: input, shape index: {}]
  %s9 = inlined_call_operand.vmem [shape: bf16[32,64], index: 9, kind: input, shape index: {}]
  %s10 = inlined_call_operand.vmem [shape: f32[1,64], index: 10, kind: input, shape index: {}]
  %s11 = inlined_call_operand.vmem [shape: bf16[64,32], index: 11, kind: input, shape index: {}]
  %s12 = inlined_call_operand.vmem [shape: f32[1,32], index: 12, kind: input, shape index: {}]
  %s13 = inlined_call_operand.vmem [shape: f32[1,32], index: 13, kind: input, shape index: {}]
  %s14 = inlined_call_operand.vmem [shape: f32[1,32], index: 14, kind: input, shape index: {}]
  %s15 = inlined_call_operand.vmem [shape: f32[2,9,32], index: 15, kind: output, shape index: {}]
  %s16 = sld [smem:[#allocation0]]
  $region97: #{abinet_iter_forward.28} parent=0
    _
  %s18 = ssub.s32 1, %s16
  %s19 = scalar_select 0, %s18, %s16
  $region1: #{abinet_iter_forward.28} parent=0
    #allocation2 [shape = 'u8[512]{0}', space=smem, size = 0x200, scoped, tag = 'input window, operand 0, single buffered']
    #allocation3 [shape = 's32[2]{0}', space=sflag, size = 0x8, scoped, tag = 'scoped memory for abinet_iter_forward.28']
    %20 = vsyncpa [#allocation3], 0
    loop: start=0, step=1, limit=4
    $region2: #{abinet_iter_forward.28} parent=1 // loop_pre_header
      _
    $region3: #{abinet_iter_forward.28} parent=1 // loop_header
      %s22 = sphi 0, %s26
      %p23 = scmp.ge.s32.totalorder %s22, 4
      %s30 = sphi 0, %s30
      %s32 = sphi 0, %s30
      %s33 = sphi 0, %s32
      %s47 = sphi 0, %s33
      %s53 = sphi 0, %s55
      %s56 = sphi 0, %s53
      %s57 = sphi 0, %s56
      %s73 = sphi 0, %s57
      %s79 = sphi 0, %s81
      %s82 = sphi 0, %s79
      %s83 = sphi 0, %s82
      %s99 = sphi 0, %s83
      %s103 = sphi 0, %s103
      %s105 = sphi 0, %s103
      %s106 = sphi 0, %s105
      %s120 = sphi 0, %s106
      %s124 = sphi 0, %s124
      %s126 = sphi 0, %s124
      %s127 = sphi 0, %s126
      %s141 = sphi 0, %s127
      %s145 = sphi 0, %s145
      %s147 = sphi 0, %s145
      %s148 = sphi 0, %s147
      %s162 = sphi 0, %s148
      %s166 = sphi 0, %s166
      %s168 = sphi 0, %s166
      %s169 = sphi 0, %s168
      %s183 = sphi 0, %s169
      %s187 = sphi 0, %s187
      %s189 = sphi 0, %s187
      %s190 = sphi 0, %s189
      %s204 = sphi 0, %s190
      %s208 = sphi 0, %s208
      %s210 = sphi 0, %s208
      %s211 = sphi 0, %s210
      %s225 = sphi 0, %s211
      %s229 = sphi 0, %s229
      %s231 = sphi 0, %s229
      %s232 = sphi 0, %s231
      %s246 = sphi 0, %s232
      %s250 = sphi 0, %s250
      %s252 = sphi 0, %s250
      %s253 = sphi 0, %s252
      %s267 = sphi 0, %s253
      %s271 = sphi 0, %s271
      %s273 = sphi 0, %s271
      %s274 = sphi 0, %s273
      %s288 = sphi 0, %s274
      %s292 = sphi 0, %s292
      %s294 = sphi 0, %s292
      %s295 = sphi 0, %s294
      %s309 = sphi 0, %s295
      %s313 = sphi 0, %s313
      %s315 = sphi 0, %s313
      %s316 = sphi 0, %s315
      %s330 = sphi 0, %s316
      %s334 = sphi 0, %s334
      %s336 = sphi 0, %s334
      %s337 = sphi 0, %s336
      %s351 = sphi 0, %s337
      %s357 = sphi 0, %s359
      %s360 = sphi 0, %s357
      %s361 = sphi 0, %s360
      %s377 = sphi 0, %s361
    $region4: #{abinet_iter_forward.28} parent=1 // loop_header_branch
      %25 = sbr.rel (%p23) target = $region8
    $region5: #{abinet_iter_forward.28} parent=1 // loop_body
      %s27 = ssub.s32 %s22, 1
      %s28 = ssub.s32 %s22, 2
      %s29 = sadd.s32 %s22, 1
      %s31 = sadd.s32 %s30, 1
      %p34 = scmp.eq.s32.totalorder %s22, 1
      %p35 = scmp.ne.s32.totalorder %s30, %s32
      %p36 = scmp.eq.s32.totalorder %s22, 0
      %p37 = por %p35, %p36
      %p38 = scmp.ne.s32.totalorder %s30, %s32
      %p39 = scmp.eq.s32.totalorder %s27, 1
      %p40 = por %p38, %p39
      %p41 = scmp.ne.s32.totalorder %s32, %s33
      %p42 = scmp.eq.s32.totalorder %s27, 0
      %p43 = por %p41, %p42
      %p44 = scmp.ne.s32.totalorder %s32, %s33
      %p45 = scmp.eq.s32.totalorder %s28, 1
      %p46 = por %p44, %p45
      %p48 = scmp.ne.s32.totalorder %s33, %s47
      %p49 = scmp.eq.s32.totalorder %s28, 0
      %p50 = por %p48, %p49
      %s51 = ssub.s32 %s22, %s29
      %p52 = scmp.eq.s32.totalorder %s51, 0
      %s54 = sadd.s32 %s53, 1
      %s55 = scalar_select %p52, %s53, %s54
      %p58 = pneg %p52
      %p59 = scmp.eq.s32.totalorder %s22, 1
      %p60 = por %p58, %p59
      %p61 = scmp.ne.s32.totalorder %s53, %s56
      %p62 = scmp.eq.s32.totalorder %s22, 0
      %p63 = por %p61, %p62
      %p64 = scmp.ne.s32.totalorder %s53, %s56
      %p65 = scmp.eq.s32.totalorder %s27, 1
      %p66 = por %p64, %p65
      %p67 = scmp.ne.s32.totalorder %s56, %s57
      %p68 = scmp.eq.s32.totalorder %s27, 0
      %p69 = por %p67, %p68
      %p70 = scmp.ne.s32.totalorder %s56, %s57
      %p71 = scmp.eq.s32.totalorder %s28, 1
      %p72 = por %p70, %p71
      %p74 = scmp.ne.s32.totalorder %s57, %s73
      %p75 = scmp.eq.s32.totalorder %s28, 0
      %p76 = por %p74, %p75
      %s77 = ssub.s32 %s22, %s29
      %p78 = scmp.eq.s32.totalorder %s77, 0
      %s80 = sadd.s32 %s79, 1
      %s81 = scalar_select %p78, %s79, %s80
      %p84 = pneg %p78
      %p85 = scmp.eq.s32.totalorder %s22, 1
      %p86 = por %p84, %p85
      %p87 = scmp.ne.s32.totalorder %s79, %s82
      %p88 = scmp.eq.s32.totalorder %s22, 0
      %p89 = por %p87, %p88
      %p90 = scmp.ne.s32.totalorder %s79, %s82
      %p91 = scmp.eq.s32.totalorder %s27, 1
      %p92 = por %p90, %p91
      %p93 = scmp.ne.s32.totalorder %s82, %s83
      %p94 = scmp.eq.s32.totalorder %s27, 0
      %p95 = por %p93, %p94
      %p96 = scmp.ne.s32.totalorder %s82, %s83
      %p97 = scmp.eq.s32.totalorder %s28, 1
      %p98 = por %p96, %p97
      %p100 = scmp.ne.s32.totalorder %s83, %s99
      %p101 = scmp.eq.s32.totalorder %s28, 0
      %p102 = por %p100, %p101
      %s104 = sadd.s32 %s103, 1
      %p107 = scmp.eq.s32.totalorder %s22, 1
      %p108 = scmp.ne.s32.totalorder %s103, %s105
      %p109 = scmp.eq.s32.totalorder %s22, 0
      %p110 = por %p108, %p109
      %p111 = scmp.ne.s32.totalorder %s103, %s105
      %p112 = scmp.eq.s32.totalorder %s27, 1
      %p113 = por %p111, %p112
      %p114 = scmp.ne.s32.totalorder %s105, %s106
      %p115 = scmp.eq.s32.totalorder %s27, 0
      %p116 = por %p114, %p115
      %p117 = scmp.ne.s32.totalorder %s105, %s106
      %p118 = scmp.eq.s32.totalorder %s28, 1
      %p119 = por %p117, %p118
      %p121 = scmp.ne.s32.totalorder %s106, %s120
      %p122 = scmp.eq.s32.totalorder %s28, 0
      %p123 = por %p121, %p122
      %s125 = sadd.s32 %s124, 1
      %p128 = scmp.eq.s32.totalorder %s22, 1
      %p129 = scmp.ne.s32.totalorder %s124, %s126
      %p130 = scmp.eq.s32.totalorder %s22, 0
      %p131 = por %p129, %p130
      %p132 = scmp.ne.s32.totalorder %s124, %s126
      %p133 = scmp.eq.s32.totalorder %s27, 1
      %p134 = por %p132, %p133
      %p135 = scmp.ne.s32.totalorder %s126, %s127
      %p136 = scmp.eq.s32.totalorder %s27, 0
      %p137 = por %p135, %p136
      %p138 = scmp.ne.s32.totalorder %s126, %s127
      %p139 = scmp.eq.s32.totalorder %s28, 1
      %p140 = por %p138, %p139
      %p142 = scmp.ne.s32.totalorder %s127, %s141
      %p143 = scmp.eq.s32.totalorder %s28, 0
      %p144 = por %p142, %p143
      %s146 = sadd.s32 %s145, 1
      %p149 = scmp.eq.s32.totalorder %s22, 1
      %p150 = scmp.ne.s32.totalorder %s145, %s147
      %p151 = scmp.eq.s32.totalorder %s22, 0
      %p152 = por %p150, %p151
      %p153 = scmp.ne.s32.totalorder %s145, %s147
      %p154 = scmp.eq.s32.totalorder %s27, 1
      %p155 = por %p153, %p154
      %p156 = scmp.ne.s32.totalorder %s147, %s148
      %p157 = scmp.eq.s32.totalorder %s27, 0
      %p158 = por %p156, %p157
      %p159 = scmp.ne.s32.totalorder %s147, %s148
      %p160 = scmp.eq.s32.totalorder %s28, 1
      %p161 = por %p159, %p160
      %p163 = scmp.ne.s32.totalorder %s148, %s162
      %p164 = scmp.eq.s32.totalorder %s28, 0
      %p165 = por %p163, %p164
      %s167 = sadd.s32 %s166, 1
      %p170 = scmp.eq.s32.totalorder %s22, 1
      %p171 = scmp.ne.s32.totalorder %s166, %s168
      %p172 = scmp.eq.s32.totalorder %s22, 0
      %p173 = por %p171, %p172
      %p174 = scmp.ne.s32.totalorder %s166, %s168
      %p175 = scmp.eq.s32.totalorder %s27, 1
      %p176 = por %p174, %p175
      %p177 = scmp.ne.s32.totalorder %s168, %s169
      %p178 = scmp.eq.s32.totalorder %s27, 0
      %p179 = por %p177, %p178
      %p180 = scmp.ne.s32.totalorder %s168, %s169
      %p181 = scmp.eq.s32.totalorder %s28, 1
      %p182 = por %p180, %p181
      %p184 = scmp.ne.s32.totalorder %s169, %s183
      %p185 = scmp.eq.s32.totalorder %s28, 0
      %p186 = por %p184, %p185
      %s188 = sadd.s32 %s187, 1
      %p191 = scmp.eq.s32.totalorder %s22, 1
      %p192 = scmp.ne.s32.totalorder %s187, %s189
      %p193 = scmp.eq.s32.totalorder %s22, 0
      %p194 = por %p192, %p193
      %p195 = scmp.ne.s32.totalorder %s187, %s189
      %p196 = scmp.eq.s32.totalorder %s27, 1
      %p197 = por %p195, %p196
      %p198 = scmp.ne.s32.totalorder %s189, %s190
      %p199 = scmp.eq.s32.totalorder %s27, 0
      %p200 = por %p198, %p199
      %p201 = scmp.ne.s32.totalorder %s189, %s190
      %p202 = scmp.eq.s32.totalorder %s28, 1
      %p203 = por %p201, %p202
      %p205 = scmp.ne.s32.totalorder %s190, %s204
      %p206 = scmp.eq.s32.totalorder %s28, 0
      %p207 = por %p205, %p206
      %s209 = sadd.s32 %s208, 1
      %p212 = scmp.eq.s32.totalorder %s22, 1
      %p213 = scmp.ne.s32.totalorder %s208, %s210
      %p214 = scmp.eq.s32.totalorder %s22, 0
      %p215 = por %p213, %p214
      %p216 = scmp.ne.s32.totalorder %s208, %s210
      %p217 = scmp.eq.s32.totalorder %s27, 1
      %p218 = por %p216, %p217
      %p219 = scmp.ne.s32.totalorder %s210, %s211
      %p220 = scmp.eq.s32.totalorder %s27, 0
      %p221 = por %p219, %p220
      %p222 = scmp.ne.s32.totalorder %s210, %s211
      %p223 = scmp.eq.s32.totalorder %s28, 1
      %p224 = por %p222, %p223
      %p226 = scmp.ne.s32.totalorder %s211, %s225
      %p227 = scmp.eq.s32.totalorder %s28, 0
      %p228 = por %p226, %p227
      %s230 = sadd.s32 %s229, 1
      %p233 = scmp.eq.s32.totalorder %s22, 1
      %p234 = scmp.ne.s32.totalorder %s229, %s231
      %p235 = scmp.eq.s32.totalorder %s22, 0
      %p236 = por %p234, %p235
      %p237 = scmp.ne.s32.totalorder %s229, %s231
      %p238 = scmp.eq.s32.totalorder %s27, 1
      %p239 = por %p237, %p238
      %p240 = scmp.ne.s32.totalorder %s231, %s232
      %p241 = scmp.eq.s32.totalorder %s27, 0
      %p242 = por %p240, %p241
      %p243 = scmp.ne.s32.totalorder %s231, %s232
      %p244 = scmp.eq.s32.totalorder %s28, 1
      %p245 = por %p243, %p244
      %p247 = scmp.ne.s32.totalorder %s232, %s246
      %p248 = scmp.eq.s32.totalorder %s28, 0
      %p249 = por %p247, %p248
      %s251 = sadd.s32 %s250, 1
      %p254 = scmp.eq.s32.totalorder %s22, 1
      %p255 = scmp.ne.s32.totalorder %s250, %s252
      %p256 = scmp.eq.s32.totalorder %s22, 0
      %p257 = por %p255, %p256
      %p258 = scmp.ne.s32.totalorder %s250, %s252
      %p259 = scmp.eq.s32.totalorder %s27, 1
      %p260 = por %p258, %p259
      %p261 = scmp.ne.s32.totalorder %s252, %s253
      %p262 = scmp.eq.s32.totalorder %s27, 0
      %p263 = por %p261, %p262
      %p264 = scmp.ne.s32.totalorder %s252, %s253
      %p265 = scmp.eq.s32.totalorder %s28, 1
      %p266 = por %p264, %p265
      %p268 = scmp.ne.s32.totalorder %s253, %s267
      %p269 = scmp.eq.s32.totalorder %s28, 0
      %p270 = por %p268, %p269
      %s272 = sadd.s32 %s271, 1
      %p275 = scmp.eq.s32.totalorder %s22, 1
      %p276 = scmp.ne.s32.totalorder %s271, %s273
      %p277 = scmp.eq.s32.totalorder %s22, 0
      %p278 = por %p276, %p277
      %p279 = scmp.ne.s32.totalorder %s271, %s273
      %p280 = scmp.eq.s32.totalorder %s27, 1
      %p281 = por %p279, %p280
      %p282 = scmp.ne.s32.totalorder %s273, %s274
      %p283 = scmp.eq.s32.totalorder %s27, 0
      %p284 = por %p282, %p283
      %p285 = scmp.ne.s32.totalorder %s273, %s274
      %p286 = scmp.eq.s32.totalorder %s28, 1
      %p287 = por %p285, %p286
      %p289 = scmp.ne.s32.totalorder %s274, %s288
      %p290 = scmp.eq.s32.totalorder %s28, 0
      %p291 = por %p289, %p290
      %s293 = sadd.s32 %s292, 1
      %p296 = scmp.eq.s32.totalorder %s22, 1
      %p297 = scmp.ne.s32.totalorder %s292, %s294
      %p298 = scmp.eq.s32.totalorder %s22, 0
      %p299 = por %p297, %p298
      %p300 = scmp.ne.s32.totalorder %s292, %s294
      %p301 = scmp.eq.s32.totalorder %s27, 1
      %p302 = por %p300, %p301
      %p303 = scmp.ne.s32.totalorder %s294, %s295
      %p304 = scmp.eq.s32.totalorder %s27, 0
      %p305 = por %p303, %p304
      %p306 = scmp.ne.s32.totalorder %s294, %s295
      %p307 = scmp.eq.s32.totalorder %s28, 1
      %p308 = por %p306, %p307
      %p310 = scmp.ne.s32.totalorder %s295, %s309
      %p311 = scmp.eq.s32.totalorder %s28, 0
      %p312 = por %p310, %p311
      %s314 = sadd.s32 %s313, 1
      %p317 = scmp.eq.s32.totalorder %s22, 1
      %p318 = scmp.ne.s32.totalorder %s313, %s315
      %p319 = scmp.eq.s32.totalorder %s22, 0
      %p320 = por %p318, %p319
      %p321 = scmp.ne.s32.totalorder %s313, %s315
      %p322 = scmp.eq.s32.totalorder %s27, 1
      %p323 = por %p321, %p322
      %p324 = scmp.ne.s32.totalorder %s315, %s316
      %p325 = scmp.eq.s32.totalorder %s27, 0
      %p326 = por %p324, %p325
      %p327 = scmp.ne.s32.totalorder %s315, %s316
      %p328 = scmp.eq.s32.totalorder %s28, 1
      %p329 = por %p327, %p328
      %p331 = scmp.ne.s32.totalorder %s316, %s330
      %p332 = scmp.eq.s32.totalorder %s28, 0
      %p333 = por %p331, %p332
      %s335 = sadd.s32 %s334, 1
      %p338 = scmp.eq.s32.totalorder %s22, 1
      %p339 = scmp.ne.s32.totalorder %s334, %s336
      %p340 = scmp.eq.s32.totalorder %s22, 0
      %p341 = por %p339, %p340
      %p342 = scmp.ne.s32.totalorder %s334, %s336
      %p343 = scmp.eq.s32.totalorder %s27, 1
      %p344 = por %p342, %p343
      %p345 = scmp.ne.s32.totalorder %s336, %s337
      %p346 = scmp.eq.s32.totalorder %s27, 0
      %p347 = por %p345, %p346
      %p348 = scmp.ne.s32.totalorder %s336, %s337
      %p349 = scmp.eq.s32.totalorder %s28, 1
      %p350 = por %p348, %p349
      %p352 = scmp.ne.s32.totalorder %s337, %s351
      %p353 = scmp.eq.s32.totalorder %s28, 0
      %p354 = por %p352, %p353
      %s355 = ssub.s32 %s22, %s29
      %p356 = scmp.eq.s32.totalorder %s355, 0
      %s358 = sadd.s32 %s357, 1
      %s359 = scalar_select %p356, %s357, %s358
      %p362 = pneg %p356
      %p363 = scmp.eq.s32.totalorder %s22, 1
      %p364 = por %p362, %p363
      %p365 = scmp.ne.s32.totalorder %s357, %s360
      %p366 = scmp.eq.s32.totalorder %s22, 0
      %p367 = por %p365, %p366
      %p368 = scmp.ne.s32.totalorder %s357, %s360
      %p369 = scmp.eq.s32.totalorder %s27, 1
      %p370 = por %p368, %p369
      %p371 = scmp.ne.s32.totalorder %s360, %s361
      %p372 = scmp.eq.s32.totalorder %s27, 0
      %p373 = por %p371, %p372
      %p374 = scmp.ne.s32.totalorder %s360, %s361
      %p375 = scmp.eq.s32.totalorder %s28, 1
      %p376 = por %p374, %p375
      %p378 = scmp.ne.s32.totalorder %s361, %s377
      %p379 = scmp.eq.s32.totalorder %s28, 0
      %p380 = por %p378, %p379
      %p381 = scmp.le.s32.totalorder 1, %s22
      %p382 = scmp.lt.s32.totalorder %s22, 3
      %p383 = pnand %p381, %p382
      %p384 = pneg %p383
      // Predicated region
      $region9: #{abinet_iter_forward.28} parent=5 // pred_check
        _
      $region10: #{abinet_iter_forward.28} parent=5 // pred_check_branch
        %386 = sbr.rel (%p383) target = $region12
      $region11: #{abinet_iter_forward.28} parent=5 // pred_region
        %s387 = ssub.s32 %s22, 1
        // Predicated region
        $region13: #{abinet_iter_forward.28} parent=11 // pred_check
          %p388 = pneg %p43
        $region14: #{abinet_iter_forward.28} parent=11 // pred_check_branch
          %390 = sbr.rel (%p388) target = $region16
        $region15: #{abinet_iter_forward.28} parent=11 // pred_region
          %s392 = ssub.s32 16, 16
          %393 = vsyncadd [#allocation3], %s392
          %s395 = sshll.u32 %s0, 4
          %s396 = int_to_ptr.vmem [resolvable:$true] %s395
          %398 = dma.vmem_to_smem %s396, 16, [#allocation2], [#allocation3]
        $region16: #{abinet_iter_forward.28} parent=11 // pred_fallthru
          _
        // Predicated region
        $region17: #{abinet_iter_forward.28} parent=11 // pred_check
          %p399 = pneg %p116
        $region18: #{abinet_iter_forward.28} parent=11 // pred_check_branch
          %401 = sbr.rel (%p399) target = $region20
        $region19: #{abinet_iter_forward.28} parent=11 // pred_region
          _
        $region20: #{abinet_iter_forward.28} parent=11 // pred_fallthru
          _
        // Predicated region
        $region21: #{abinet_iter_forward.28} parent=11 // pred_check
          %p402 = pneg %p137
        $region22: #{abinet_iter_forward.28} parent=11 // pred_check_branch
          %404 = sbr.rel (%p402) target = $region24
        $region23: #{abinet_iter_forward.28} parent=11 // pred_region
          _
        $region24: #{abinet_iter_forward.28} parent=11 // pred_fallthru
          _
        // Predicated region
        $region25: #{abinet_iter_forward.28} parent=11 // pred_check
          %p405 = pneg %p158
        $region26: #{abinet_iter_forward.28} parent=11 // pred_check_branch
          %407 = sbr.rel (%p405) target = $region28
        $region27: #{abinet_iter_forward.28} parent=11 // pred_region
          _
        $region28: #{abinet_iter_forward.28} parent=11 // pred_fallthru
          _
        // Predicated region
        $region29: #{abinet_iter_forward.28} parent=11 // pred_check
          %p408 = pneg %p179
        $region30: #{abinet_iter_forward.28} parent=11 // pred_check_branch
          %410 = sbr.rel (%p408) target = $region32
        $region31: #{abinet_iter_forward.28} parent=11 // pred_region
          _
        $region32: #{abinet_iter_forward.28} parent=11 // pred_fallthru
          _
        // Predicated region
        $region33: #{abinet_iter_forward.28} parent=11 // pred_check
          %p411 = pneg %p200
        $region34: #{abinet_iter_forward.28} parent=11 // pred_check_branch
          %413 = sbr.rel (%p411) target = $region36
        $region35: #{abinet_iter_forward.28} parent=11 // pred_region
          _
        $region36: #{abinet_iter_forward.28} parent=11 // pred_fallthru
          _
        // Predicated region
        $region37: #{abinet_iter_forward.28} parent=11 // pred_check
          %p414 = pneg %p221
        $region38: #{abinet_iter_forward.28} parent=11 // pred_check_branch
          %416 = sbr.rel (%p414) target = $region40
        $region39: #{abinet_iter_forward.28} parent=11 // pred_region
          _
        $region40: #{abinet_iter_forward.28} parent=11 // pred_fallthru
          _
        // Predicated region
        $region41: #{abinet_iter_forward.28} parent=11 // pred_check
          %p417 = pneg %p242
        $region42: #{abinet_iter_forward.28} parent=11 // pred_check_branch
          %419 = sbr.rel (%p417) target = $region44
        $region43: #{abinet_iter_forward.28} parent=11 // pred_region
          _
        $region44: #{abinet_iter_forward.28} parent=11 // pred_fallthru
          _
        // Predicated region
        $region45: #{abinet_iter_forward.28} parent=11 // pred_check
          %p420 = pneg %p263
        $region46: #{abinet_iter_forward.28} parent=11 // pred_check_branch
          %422 = sbr.rel (%p420) target = $region48
        $region47: #{abinet_iter_forward.28} parent=11 // pred_region
          _
        $region48: #{abinet_iter_forward.28} parent=11 // pred_fallthru
          _
        // Predicated region
        $region49: #{abinet_iter_forward.28} parent=11 // pred_check
          %p423 = pneg %p284
        $region50: #{abinet_iter_forward.28} parent=11 // pred_check_branch
          %425 = sbr.rel (%p423) target = $region52
        $region51: #{abinet_iter_forward.28} parent=11 // pred_region
          _
        $region52: #{abinet_iter_forward.28} parent=11 // pred_fallthru
          _
        // Predicated region
        $region53: #{abinet_iter_forward.28} parent=11 // pred_check
          %p426 = pneg %p305
        $region54: #{abinet_iter_forward.28} parent=11 // pred_check_branch
          %428 = sbr.rel (%p426) target = $region56
        $region55: #{abinet_iter_forward.28} parent=11 // pred_region
          _
        $region56: #{abinet_iter_forward.28} parent=11 // pred_fallthru
          _
        // Predicated region
        $region57: #{abinet_iter_forward.28} parent=11 // pred_check
          %p429 = pneg %p326
        $region58: #{abinet_iter_forward.28} parent=11 // pred_check_branch
          %431 = sbr.rel (%p429) target = $region60
        $region59: #{abinet_iter_forward.28} parent=11 // pred_region
          _
        $region60: #{abinet_iter_forward.28} parent=11 // pred_fallthru
          _
        // Predicated region
        $region61: #{abinet_iter_forward.28} parent=11 // pred_check
          %p432 = pneg %p347
        $region62: #{abinet_iter_forward.28} parent=11 // pred_check_branch
          %434 = sbr.rel (%p432) target = $region64
        $region63: #{abinet_iter_forward.28} parent=11 // pred_region
          _
        $region64: #{abinet_iter_forward.28} parent=11 // pred_fallthru
          _
      $region12: #{abinet_iter_forward.28} parent=5 // pred_fallthru
        _
      %p435 = scmp.lt.s32.totalorder %s22, 2
      // Predicated region
      $region65: #{abinet_iter_forward.28} parent=5 // pred_check
        %p436 = pneg %p435
      $region66: #{abinet_iter_forward.28} parent=5 // pred_check_branch
        %438 = sbr.rel (%p436) target = $region68
      $region67: #{abinet_iter_forward.28} parent=5 // pred_region
        // Predicated region
        $region69: #{abinet_iter_forward.28} parent=67 // pred_check
          %p439 = pneg %p63
        $region70: #{abinet_iter_forward.28} parent=67 // pred_check_branch
          %441 = sbr.rel (%p439) target = $region72
        $region71: #{abinet_iter_forward.28} parent=67 // pred_region
          %p442 = scmp.lt.s32.totalorder %s22, 1
          %s443 = scalar_select %p442, %s22, 1
          %s444 = smul.addr %s443, 2
          %s445 = smul.addr %s444, 8
          %s446 = scalar_lea.vmem %s1, %s445
        $region72: #{abinet_iter_forward.28} parent=67 // pred_fallthru
          _
        // Predicated region
        $region73: #{abinet_iter_forward.28} parent=67 // pred_check
          %p447 = pneg %p89
        $region74: #{abinet_iter_forward.28} parent=67 // pred_check_branch
          %449 = sbr.rel (%p447) target = $region76
        $region75: #{abinet_iter_forward.28} parent=67 // pred_region
          %p450 = scmp.lt.s32.totalorder %s22, 1
          %s451 = scalar_select %p450, %s22, 1
          %s452 = smul.addr %s451, 2
          %s453 = smul.addr %s452, 8
          %s454 = scalar_lea.vmem %s2, %s453
        $region76: #{abinet_iter_forward.28} parent=67 // pred_fallthru
          _
      $region68: #{abinet_iter_forward.28} parent=5 // pred_fallthru
        _
      %p455 = scmp.le.s32.totalorder 1, %s22
      %p456 = scmp.lt.s32.totalorder %s22, 3
      %p457 = pnand %p455, %p456
      %p458 = pneg %p457
      // Predicated region
      $region77: #{abinet_iter_forward.28} parent=5 // pred_check
        _
      $region78: #{abinet_iter_forward.28} parent=5 // pred_check_branch
        %460 = sbr.rel (%p457) target = $region80
      $region79: #{abinet_iter_forward.28} parent=5 // pred_region
        %s461 = ssub.s32 %s22, 1
        // Predicated region
        $region81: #{abinet_iter_forward.28} parent=79 // pred_check
          %p462 = pneg %p43
        $region82: #{abinet_iter_forward.28} parent=79 // pred_check_branch
          %464 = sbr.rel (%p462) target = $region84
        $region83: #{abinet_iter_forward.28} parent=79 // pred_region
          %465 = dma.done [#allocation3], 16
        $region84: #{abinet_iter_forward.28} parent=79 // pred_fallthru
          _
        %466 = sfence
        %p467 = pneg %p43
        %p468 = pneg %p40
        %p469 = scmp.lt.s32.totalorder %s27, 1
        %s470 = scalar_select %p469, %s27, 1
        %s471 = smul.addr %s470, 2
        %s472 = smul.addr %s471, 8
        %s473 = scalar_lea.vmem %s1, %s472
        %p474 = pneg %p69
        %p475 = pneg %p66
        %p476 = scmp.lt.s32.totalorder %s27, 1
        %s477 = scalar_select %p476, %s27, 1
        %s478 = smul.addr %s477, 2
        %s479 = smul.addr %s478, 8
        %s480 = scalar_lea.vmem %s2, %s479
        %p481 = pneg %p95
        %p482 = pneg %p92
        %p483 = pneg %p116
        %p484 = pneg %p113
        %p485 = pneg %p137
        %p486 = pneg %p134
        %p487 = pneg %p158
        %p488 = pneg %p155
        %p489 = pneg %p179
        %p490 = pneg %p176
        %p491 = pneg %p200
        %p492 = pneg %p197
        %p493 = pneg %p221
        %p494 = pneg %p218
        %p495 = pneg %p242
        %p496 = pneg %p239
        %p497 = pneg %p263
        %p498 = pneg %p260
        %p499 = pneg %p284
        %p500 = pneg %p281
        %p501 = pneg %p305
        %p502 = pneg %p302
        %p503 = pneg %p326
        %p504 = pneg %p323
        %p505 = pneg %p347
        %p506 = pneg %p344
        %p507 = pneg %p373
        %p508 = pneg %p370
        %p509 = scmp.lt.s32.totalorder %s27, 1
        %s510 = scalar_select %p509, %s27, 1
        %s511 = smul.addr %s510, 2
        %s512 = smul.addr %s511, 8
        %s513 = scalar_lea.vmem %s15, %s512
        %p514 = scmp.lt.s32.totalorder %s27, 1
        %s515 = scalar_select %p514, %s27, 1
        %s516 = smul.addr %s515, 2
        %s517 = smul.addr %s516, 8
        %s518 = scalar_lea.vmem %s1, %s517
        %p519 = scmp.lt.s32.totalorder %s27, 1
        %s520 = scalar_select %p519, %s27, 1
        %s521 = smul.addr %s520, 2
        %s522 = smul.addr %s521, 8
        %s523 = scalar_lea.vmem %s2, %s522
        %p524 = scmp.lt.s32.totalorder %s27, 1
        %s525 = scalar_select %p524, %s27, 1
        %s526 = smul.addr %s525, 2
        %s527 = smul.addr %s526, 8
        %s528 = scalar_lea.vmem %s15, %s527
        %v530 = vld [vmem:[%s518] sm:$0xff]
        %v531 = vld [vmem:[%s518 + $0x8] sm:$0x1]
        %v532 = vld [vmem:[%s3] sm:$0xf]
        %v533 = vld [vmem:[%s3 + $0x4] sm:$0xf]
        %v534 = vld [vmem:[%s3 + $0x8] sm:$0xf]
        %v535 = vld [vmem:[%s3 + $0xc] sm:$0xf]
        %v536 = vld [vmem:[%s4] sm:$0x1]
        %v537 = vld [vmem:[%s523] sm:$0xff]
        %v538 = vld [vmem:[%s523 + $0x8] sm:$0x1]
        %v539 = vpack.c.bf16 %v531, %v530
        %v541 = vlaneseq
        %v542 = vshrl.u32 %v541, 7
        %v543 = vsub.s32 0, %v542
        %v544 = vrot.slane %v536, %v543
        %v550 = vunpack.c.l.b16 %v532
        %v551 = vunpack.c.l.b16 %v533
        %v552 = vunpack.c.l.b16 %v534
        %v553 = vunpack.c.l.b16 %v535
        %v554 = vpack.c.b16 %v551, %v550
        %v555 = vpack.c.b16 %v553, %v552
        %vm558 = vcmask 261120
        %v560 = vsel %vm558, %v539, 0
        %562 = vmatprep.subr.bf16.mxu0 0
        %563 = vmatpush1.bf16.msra.mxu0 %v554
        %564 = vmatprep.subr.bf16.mxu0 0
        %565 = vmatpush1.bf16.msra.mxu0 %v555
        %566 = vmatprep.subr.bf16.mxu0 0
        %567 = vmatpush1.bf16.msra.mxu0 0
        %568 = vmatprep.subr.bf16.mxu0 0
        %569 = vmatpush1.bf16.msra.mxu0 0
        %570 = vmatprep.subr.bf16.mxu0 0
        %571 = vmatpush1.bf16.msra.mxu0 0
        %572 = vmatprep.subr.bf16.mxu0 0
        %573 = vmatpush1.bf16.msra.mxu0 0
        %574 = vmatprep.subr.bf16.mxu0 0
        %575 = vmatpush1.bf16.msra.mxu0 0
        %576 = vmatprep.subr.bf16.mxu0 0
        %577 = vmatpush1.bf16.msra.mxu0 0
        %578 = vmatprep.subr.bf16.mxu0 0
        %579 = vmatpush1.bf16.msra.mxu0 0
        %580 = vmatprep.subr.bf16.mxu0 0
        %581 = vmatpush1.bf16.msra.mxu0 0
        %582 = vmatprep.subr.bf16.mxu0 0
        %583 = vmatpush1.bf16.msra.mxu0 0
        %584 = vmatprep.subr.bf16.mxu0 0
        %585 = vmatpush1.bf16.msra.mxu0 0
        %586 = vmatprep.subr.bf16.mxu0 0
        %587 = vmatpush1.bf16.msra.mxu0 0
        %588 = vmatprep.subr.bf16.mxu0 0
        %589 = vmatpush1.bf16.msra.mxu0 0
        %590 = vmatprep.subr.bf16.mxu0 0
        %591 = vmatpush1.bf16.msra.mxu0 0
        %592 = vmatprep.subr.bf16.mxu0 0
        %593 = vmatpush1.bf16.msra.mxu0 0
        %594 = vmatprep.mubr.bf16.mxu0 0
        %595 = vmatmul.mubr.bf16.gmra.mrb[0].mxu0 %v560
        %v596 = vpop.f32.mrb[0].mxu0
        %v597 = vadd.f32 %v544, %v596
        %v598 = vpop.f32.mrb[0].mxu0
        %v599 = vpop.f32.mrb[0].mxu0
        %v600 = vadd.f32 %v544, %v599
        %v601 = vpop.f32.mrb[0].mxu0
        %602 = vdwg.mxu0
        %v603 = vpack.c.bf16 %v538, %v537
        %604 = vrot.lane.b32.xlu0 %v554, 96
        %v605 = vpop.permute.xlu0 %604
        %606 = vrot.lane.b32.xlu0 %v555, 96
        %v607 = vpop.permute.xlu0 %606
        %610 = vrot.lane.b32.xlu0 %v544, 96
        %v611 = vpop.permute.xlu0 %610
        %v614 = vsel %vm558, %v603, 0
        %616 = vmatprep.subr.bf16.mxu0 0
        %617 = vmatpush1.bf16.msra.mxu0 %v605
        %618 = vmatprep.subr.bf16.mxu0 0
        %619 = vmatpush1.bf16.msra.mxu0 %v607
        %620 = vmatprep.subr.bf16.mxu0 0
        %621 = vmatpush1.bf16.msra.mxu0 0
        %622 = vmatprep.subr.bf16.mxu0 0
        %623 = vmatpush1.bf16.msra.mxu0 0
        %624 = vmatprep.subr.bf16.mxu0 0
        %625 = vmatpush1.bf16.msra.mxu0 0
        %626 = vmatprep.subr.bf16.mxu0 0
        %627 = vmatpush1.bf16.msra.mxu0 0
        %628 = vmatprep.subr.bf16.mxu0 0
        %629 = vmatpush1.bf16.msra.mxu0 0
        %630 = vmatprep.subr.bf16.mxu0 0
        %631 = vmatpush1.bf16.msra.mxu0 0
        %632 = vmatprep.subr.bf16.mxu0 0
        %633 = vmatpush1.bf16.msra.mxu0 0
        %634 = vmatprep.subr.bf16.mxu0 0
        %635 = vmatpush1.bf16.msra.mxu0 0
        %636 = vmatprep.subr.bf16.mxu0 0
        %637 = vmatpush1.bf16.msra.mxu0 0
        %638 = vmatprep.subr.bf16.mxu0 0
        %639 = vmatpush1.bf16.msra.mxu0 0
        %640 = vmatprep.subr.bf16.mxu0 0
        %641 = vmatpush1.bf16.msra.mxu0 0
        %642 = vmatprep.subr.bf16.mxu0 0
        %643 = vmatpush1.bf16.msra.mxu0 0
        %644 = vmatprep.subr.bf16.mxu0 0
        %645 = vmatpush1.bf16.msra.mxu0 0
        %646 = vmatprep.subr.bf16.mxu0 0
        %647 = vmatpush1.bf16.msra.mxu0 0
        %648 = vmatprep.mubr.bf16.mxu0 0
        %649 = vmatmul.mubr.bf16.gmra.mrb[0].mxu0 %v614
        %v650 = vpop.f32.mrb[0].mxu0
        %v651 = vadd.f32 %v611, %v650
        %v652 = vpop.f32.mrb[0].mxu0
        %v653 = vpop.f32.mrb[0].mxu0
        %v654 = vadd.f32 %v611, %v653
        %v655 = vpop.f32.mrb[0].mxu0
        %656 = vdwg.mxu0
        %s657 = sld [smem:[#allocation2 + %s27]]
        %v658 = vlaneseq
        %v659 = vshrl.u32 %v658, 7
        %v660 = vadd.s32 %v659, 8
        %v661 = vlaneseq
        %v662 = vand.u32 %v661, 127
        %vm663 = vcmp.eq.s32.totalorder %v659, %v662
        %vm664 = vcmp.eq.s32.totalorder %v660, %v662
        %v665 = vsel %vm663, -1e+30, 0.0
        %v666 = vsel %vm664, -1e+30, 0.0
        %v667 = vstv %s657
        %vm668 = vcmp.ge.s32.totalorder %v662, %v667
        %v669 = vsel %vm668, -1e+30, 0.0
        %v670 = vadd.f32 %v665, %v669
        %v671 = vadd.f32 %v666, %v669
        %v672 = vpack.c.bf16 %v600, %v597
        %v673 = vpack.c.bf16 %v654, %v651
        %vm674 = vcmask 64512
        %v676 = vsel %vm674, %v672, 0
        %v679 = vsel %vm674, %v673, 0
        %681 = vmatprep.subr.bf16.mxu0 0
        %682 = vmatpush1.bf16.xpose.msra.mxu0 %v679
        %683 = vmatprep.subr.bf16.mxu0 0
        %684 = vmatpush1.bf16.xpose.msra.mxu0 0
        %685 = vmatprep.subr.bf16.mxu0 0
        %686 = vmatpush1.bf16.xpose.msra.mxu0 0
        %687 = vmatprep.subr.bf16.mxu0 0
        %688 = vmatpush1.bf16.xpose.msra.mxu0 0
        %689 = vmatprep.subr.bf16.mxu0 0
        %690 = vmatpush1.bf16.xpose.msra.mxu0 0
        %691 = vmatprep.subr.bf16.mxu0 0
        %692 = vmatpush1.bf16.xpose.msra.mxu0 0
        %693 = vmatprep.subr.bf16.mxu0 0
        %694 = vmatpush1.bf16.xpose.msra.mxu0 0
        %695 = vmatprep.subr.bf16.mxu0 0
        %696 = vmatpush1.bf16.xpose.msra.mxu0 0
        %697 = vmatprep.subr.bf16.mxu0 0
        %698 = vmatpush1.bf16.xpose.msra.mxu0 0
        %699 = vmatprep.subr.bf16.mxu0 0
        %700 = vmatpush1.bf16.xpose.msra.mxu0 0
        %701 = vmatprep.subr.bf16.mxu0 0
        %702 = vmatpush1.bf16.xpose.msra.mxu0 0
        %703 = vmatprep.subr.bf16.mxu0 0
        %704 = vmatpush1.bf16.xpose.msra.mxu0 0
        %705 = vmatprep.subr.bf16.mxu0 0
        %706 = vmatpush1.bf16.xpose.msra.mxu0 0
        %707 = vmatprep.subr.bf16.mxu0 0
        %708 = vmatpush1.bf16.xpose.msra.mxu0 0
        %709 = vmatprep.subr.bf16.mxu0 0
        %710 = vmatpush1.bf16.xpose.msra.mxu0 0
        %711 = vmatprep.subr.bf16.mxu0 0
        %712 = vmatpush1.bf16.xpose.msra.mxu0 0
        %713 = vmatprep.mubr.bf16.mxu0 0
        %714 = vmatmul.mubr.bf16.gmra.mrb[0].mxu0 %v676
        %v715 = vpop.f32.mrb[0].mxu0
        %v716 = vadd.f32 0.0, %v715
        %v717 = vpop.f32.mrb[0].mxu0
        %v718 = vpop.f32.mrb[0].mxu0
        %v719 = vadd.f32 0.0, %v718
        %v720 = vpop.f32.mrb[0].mxu0
        %721 = vdwg.mxu0
        %v722 = vmul.f32 %v716, 0.35355338
        %v723 = vmul.f32 %v719, 0.35355338
        %v724 = vadd.f32 %v722, %v670
        %v725 = vadd.f32 %v723, %v671
        %vm726 = vcmask 72704
        %v727 = vsel %vm726, %v724, -inf
        %728 = vmax.xlane.f32.xlu0 %v727
        %v729 = vpop.xlane.xlu0 %728
        %vm730 = vcmask 65536
        %v731 = vsel %vm730, %v725, -inf
        %732 = vmax.xlane.f32.xlu0 %v731
        %v733 = vpop.xlane.xlu0 %732
        %v734 = vsub.f32 %v724, %v729
        %v735 = vsub.f32 %v725, %v733
        %v736 = vmul.f32 %v734, 1.442695
        %v737 = vpow.pop %v736
        %v738 = vmul.f32 %v735, 1.442695
        %v739 = vpow.pop %v738
        %v740 = vsel %vm726, %v737, 0.0
        %741 = vadd.xlane.f32.xlu0 %v740
        %v742 = vpop.xlane.xlu0 %741
        %v743 = vsel %vm730, %v739, 0.0
        %744 = vadd.xlane.f32.xlu0 %v743
        %v745 = vpop.xlane.xlu0 %744
        %v746 = vrcp.pop %v742
        %v747 = vrcp.pop %v745
        %v748 = vmul.f32 %v737, %v746
        %v749 = vmul.f32 %v739, %v747
        %v750 = vpack.c.bf16 %v749, %v748
        %752 = vrot.lane.b32.xlu0 %v673, 96
        %v753 = vpop.permute.xlu0 %752
        %v755 = vsel %vm726, %v750, 0
        %vm757 = vcmask 1043456
        %vm758 = vcmask 1044480
        %v759 = vsel %vm757, 4294967295, 65535
        %v760 = vsel %vm758, %v759, 0
        %v762 = vand.u32 %v753, %v760
        %764 = vmatprep.subr.bf16.mxu0 0
        %765 = vmatpush1.bf16.msra.mxu0 %v762
        %766 = vmatprep.subr.bf16.mxu0 0
        %767 = vmatpush1.bf16.msra.mxu0 0
        %768 = vmatprep.subr.bf16.mxu0 0
        %769 = vmatpush1.bf16.msra.mxu0 0
        %770 = vmatprep.subr.bf16.mxu0 0
        %771 = vmatpush1.bf16.msra.mxu0 0
        %772 = vmatprep.subr.bf16.mxu0 0
        %773 = vmatpush1.bf16.msra.mxu0 0
        %774 = vmatprep.subr.bf16.mxu0 0
        %775 = vmatpush1.bf16.msra.mxu0 0
        %776 = vmatprep.subr.bf16.mxu0 0
        %777 = vmatpush1.bf16.msra.mxu0 0
        %778 = vmatprep.subr.bf16.mxu0 0
        %779 = vmatpush1.bf16.msra.mxu0 0
        %780 = vmatprep.subr.bf16.mxu0 0
        %781 = vmatpush1.bf16.msra.mxu0 0
        %782 = vmatprep.subr.bf16.mxu0 0
        %783 = vmatpush1.bf16.msra.mxu0 0
        %784 = vmatprep.subr.bf16.mxu0 0
        %785 = vmatpush1.bf16.msra.mxu0 0
        %786 = vmatprep.subr.bf16.mxu0 0
        %787 = vmatpush1.bf16.msra.mxu0 0
        %788 = vmatprep.subr.bf16.mxu0 0
        %789 = vmatpush1.bf16.msra.mxu0 0
        %790 = vmatprep.subr.bf16.mxu0 0
        %791 = vmatpush1.bf16.msra.mxu0 0
        %792 = vmatprep.subr.bf16.mxu0 0
        %793 = vmatpush1.bf16.msra.mxu0 0
        %794 = vmatprep.subr.bf16.mxu0 0
        %795 = vmatpush1.bf16.msra.mxu0 0
        %796 = vmatprep.mubr.bf16.mxu0 0
        %797 = vmatmul.mubr.bf16.gmra.mrb[0].mxu0 %v755
        %v798 = vpop.f32.mrb[0].mxu0
        %v799 = vadd.f32 0.0, %v798
        %v800 = vpop.f32.mrb[0].mxu0
        %v801 = vpop.f32.mrb[0].mxu0
        %v802 = vadd.f32 0.0, %v801
        %v803 = vpop.f32.mrb[0].mxu0
        %804 = vdwg.mxu0
        %806 = vrot.lane.b32.xlu0 %v672, 120
        %v807 = vpop.permute.xlu0 %806
        %808 = vrot.lane.b32.xlu0 %v673, 120
        %v809 = vpop.permute.xlu0 %808
        %v811 = vsel %vm674, %v807, 0
        %v814 = vsel %vm674, %v809, 0
        %816 = vmatprep.subr.bf16.mxu0 0
        %817 = vmatpush1.bf16.xpose.msra.mxu0 %v814
        %818 = vmatprep.subr.bf16.mxu0 0
        %819 = vmatpush1.bf16.xpose.msra.mxu0 0
        %820 = vmatprep.subr.bf16.mxu0 0
        %821 = vmatpush1.bf16.xpose.msra.mxu0 0
        %822 = vmatprep.subr.bf16.mxu0 0
        %823 = vmatpush1.bf16.xpose.msra.mxu0 0
        %824 = vmatprep.subr.bf16.mxu0 0
        %825 = vmatpush1.bf16.xpose.msra.mxu0 0
        %826 = vmatprep.subr.bf16.mxu0 0
        %827 = vmatpush1.bf16.xpose.msra.mxu0 0
        %828 = vmatprep.subr.bf16.mxu0 0
        %829 = vmatpush1.bf16.xpose.msra.mxu0 0
        %830 = vmatprep.subr.bf16.mxu0 0
        %831 = vmatpush1.bf16.xpose.msra.mxu0 0
        %832 = vmatprep.subr.bf16.mxu0 0
        %833 = vmatpush1.bf16.xpose.msra.mxu0 0
        %834 = vmatprep.subr.bf16.mxu0 0
        %835 = vmatpush1.bf16.xpose.msra.mxu0 0
        %836 = vmatprep.subr.bf16.mxu0 0
        %837 = vmatpush1.bf16.xpose.msra.mxu0 0
        %838 = vmatprep.subr.bf16.mxu0 0
        %839 = vmatpush1.bf16.xpose.msra.mxu0 0
        %840 = vmatprep.subr.bf16.mxu0 0
        %841 = vmatpush1.bf16.xpose.msra.mxu0 0
        %842 = vmatprep.subr.bf16.mxu0 0
        %843 = vmatpush1.bf16.xpose.msra.mxu0 0
        %844 = vmatprep.subr.bf16.mxu0 0
        %845 = vmatpush1.bf16.xpose.msra.mxu0 0
        %846 = vmatprep.subr.bf16.mxu0 0
        %847 = vmatpush1.bf16.xpose.msra.mxu0 0
        %848 = vmatprep.mubr.bf16.mxu0 0
        %849 = vmatmul.mubr.bf16.gmra.mrb[0].mxu0 %v811
        %v850 = vpop.f32.mrb[0].mxu0
        %v851 = vadd.f32 0.0, %v850
        %v852 = vpop.f32.mrb[0].mxu0
        %v853 = vpop.f32.mrb[0].mxu0
        %v854 = vadd.f32 0.0, %v853
        %v855 = vpop.f32.mrb[0].mxu0
        %856 = vdwg.mxu0
        %v857 = vmul.f32 %v851, 0.35355338
        %v858 = vmul.f32 %v854, 0.35355338
        %v859 = vadd.f32 %v857, %v670
        %v860 = vadd.f32 %v858, %v671
        %v861 = vsel %vm726, %v859, -inf
        %862 = vmax.xlane.f32.xlu0 %v861
        %v863 = vpop.xlane.xlu0 %862
        %v864 = vsel %vm730, %v860, -inf
        %865 = vmax.xlane.f32.xlu0 %v864
        %v866 = vpop.xlane.xlu0 %865
        %v867 = vsub.f32 %v859, %v863
        %v868 = vsub.f32 %v860, %v866
        %v869 = vmul.f32 %v867, 1.442695
        %v870 = vpow.pop %v869
        %v871 = vmul.f32 %v868, 1.442695
        %v872 = vpow.pop %v871
        %v873 = vsel %vm726, %v870, 0.0
        %874 = vadd.xlane.f32.xlu0 %v873
        %v875 = vpop.xlane.xlu0 %874
        %v876 = vsel %vm730, %v872, 0.0
        %877 = vadd.xlane.f32.xlu0 %v876
        %v878 = vpop.xlane.xlu0 %877
        %v879 = vrcp.pop %v875
        %v880 = vrcp.pop %v878
        %v881 = vmul.f32 %v870, %v879
        %v882 = vmul.f32 %v872, %v880
        %v883 = vpack.c.bf16 %v882, %v881
        %884 = vrot.lane.b32.xlu0 %v673, 88
        %v885 = vpop.permute.xlu0 %884
        %v887 = vsel %vm726, %v883, 0
        %v890 = vand.u32 %v885, %v760
        %892 = vmatprep.subr.bf16.mxu0 0
        %893 = vmatpush1.bf16.msra.mxu0 %v890
        %894 = vmatprep.subr.bf16.mxu0 0
        %895 = vmatpush1.bf16.msra.mxu0 0
        %896 = vmatprep.subr.bf16.mxu0 0
        %897 = vmatpush1.bf16.msra.mxu0 0
        %898 = vmatprep.subr.bf16.mxu0 0
        %899 = vmatpush1.bf16.msra.mxu0 0
        %900 = vmatprep.subr.bf16.mxu0 0
        %901 = vmatpush1.bf16.msra.mxu0 0
        %902 = vmatprep.subr.bf16.mxu0 0
        %903 = vmatpush1.bf16.msra.mxu0 0
        %904 = vmatprep.subr.bf16.mxu0 0
        %905 = vmatpush1.bf16.msra.mxu0 0
        %906 = vmatprep.subr.bf16.mxu0 0
        %907 = vmatpush1.bf16.msra.mxu0 0
        %908 = vmatprep.subr.bf16.mxu0 0
        %909 = vmatpush1.bf16.msra.mxu0 0
        %910 = vmatprep.subr.bf16.mxu0 0
        %911 = vmatpush1.bf16.msra.mxu0 0
        %912 = vmatprep.subr.bf16.mxu0 0
        %913 = vmatpush1.bf16.msra.mxu0 0
        %914 = vmatprep.subr.bf16.mxu0 0
        %915 = vmatpush1.bf16.msra.mxu0 0
        %916 = vmatprep.subr.bf16.mxu0 0
        %917 = vmatpush1.bf16.msra.mxu0 0
        %918 = vmatprep.subr.bf16.mxu0 0
        %919 = vmatpush1.bf16.msra.mxu0 0
        %920 = vmatprep.subr.bf16.mxu0 0
        %921 = vmatpush1.bf16.msra.mxu0 0
        %922 = vmatprep.subr.bf16.mxu0 0
        %923 = vmatpush1.bf16.msra.mxu0 0
        %924 = vmatprep.mubr.bf16.mxu0 0
        %925 = vmatmul.mubr.bf16.gmra.mrb[0].mxu0 %v887
        %v926 = vpop.f32.mrb[0].mxu0
        %v927 = vadd.f32 0.0, %v926
        %v928 = vpop.f32.mrb[0].mxu0
        %v929 = vpop.f32.mrb[0].mxu0
        %v930 = vadd.f32 0.0, %v929
        %v931 = vpop.f32.mrb[0].mxu0
        %932 = vdwg.mxu0
        %933 = vrot.lane.b32.xlu0 %v672, 112
        %v934 = vpop.permute.xlu0 %933
        %935 = vrot.lane.b32.xlu0 %v673, 112
        %v936 = vpop.permute.xlu0 %935
        %v938 = vsel %vm674, %v934, 0
        %v941 = vsel %vm674, %v936, 0
        %943 = vmatprep.subr.bf16.mxu0 0
        %944 = vmatpush1.bf16.xpose.msra.mxu0 %v941
        %945 = vmatprep.subr.bf16.mxu0 0
        %946 = vmatpush1.bf16.xpose.msra.mxu0 0
        %947 = vmatprep.subr.bf16.mxu0 0
        %948 = vmatpush1.bf16.xpose.msra.mxu0 0
        %949 = vmatprep.subr.bf16.mxu0 0
        %950 = vmatpush1.bf16.xpose.msra.mxu0 0
        %951 = vmatprep.subr.bf16.mxu0 0
        %952 = vmatpush1.bf16.xpose.msra.mxu0 0
        %953 = vmatprep.subr.bf16.mxu0 0
        %954 = vmatpush1.bf16.xpose.msra.mxu0 0
        %955 = vmatprep.subr.bf16.mxu0 0
        %956 = vmatpush1.bf16.xpose.msra.mxu0 0
        %957 = vmatprep.subr.bf16.mxu0 0
        %958 = vmatpush1.bf16.xpose.msra.mxu0 0
        %959 = vmatprep.subr.bf16.mxu0 0
        %960 = vmatpush1.bf16.xpose.msra.mxu0 0
        %961 = vmatprep.subr.bf16.mxu0 0
        %962 = vmatpush1.bf16.xpose.msra.mxu0 0
        %963 = vmatprep.subr.bf16.mxu0 0
        %964 = vmatpush1.bf16.xpose.msra.mxu0 0
        %965 = vmatprep.subr.bf16.mxu0 0
        %966 = vmatpush1.bf16.xpose.msra.mxu0 0
        %967 = vmatprep.subr.bf16.mxu0 0
        %968 = vmatpush1.bf16.xpose.msra.mxu0 0
        %969 = vmatprep.subr.bf16.mxu0 0
        %970 = vmatpush1.bf16.xpose.msra.mxu0 0
        %971 = vmatprep.subr.bf16.mxu0 0
        %972 = vmatpush1.bf16.xpose.msra.mxu0 0
        %973 = vmatprep.subr.bf16.mxu0 0
        %974 = vmatpush1.bf16.xpose.msra.mxu0 0
        %975 = vmatprep.mubr.bf16.mxu0 0
        %976 = vmatmul.mubr.bf16.gmra.mrb[0].mxu0 %v938
        %v977 = vpop.f32.mrb[0].mxu0
        %v978 = vadd.f32 0.0, %v977
        %v979 = vpop.f32.mrb[0].mxu0
        %v980 = vpop.f32.mrb[0].mxu0
        %v981 = vadd.f32 0.0, %v980
        %v982 = vpop.f32.mrb[0].mxu0
        %983 = vdwg.mxu0
        %v984 = vmul.f32 %v978, 0.35355338
        %v985 = vmul.f32 %v981, 0.35355338
        %v986 = vadd.f32 %v984, %v670
        %v987 = vadd.f32 %v985, %v671
        %v988 = vsel %vm726, %v986, -inf
        %989 = vmax.xlane.f32.xlu0 %v988
        %v990 = vpop.xlane.xlu0 %989
        %v991 = vsel %vm730, %v987, -inf
        %992 = vmax.xlane.f32.xlu0 %v991
        %v993 = vpop.xlane.xlu0 %992
        %v994 = vsub.f32 %v986, %v990
        %v995 = vsub.f32 %v987, %v993
        %v996 = vmul.f32 %v994, 1.442695
        %v997 = vpow.pop %v996
        %v998 = vmul.f32 %v995, 1.442695
        %v999 = vpow.pop %v998
        %v1000 = vsel %vm726, %v997, 0.0
        %1001 = vadd.xlane.f32.xlu0 %v1000
        %v1002 = vpop.xlane.xlu0 %1001
        %v1003 = vsel %vm730, %v999, 0.0
        %1004 = vadd.xlane.f32.xlu0 %v1003
        %v1005 = vpop.xlane.xlu0 %1004
        %v1006 = vrcp.pop %v1002
        %v1007 = vrcp.pop %v1005
        %v1008 = vmul.f32 %v997, %v1006
        %v1009 = vmul.f32 %v999, %v1007
        %v1010 = vpack.c.bf16 %v1009, %v1008
        %1011 = vrot.lane.b32.xlu0 %v673, 80
        %v1012 = vpop.permute.xlu0 %1011
        %v1014 = vsel %vm726, %v1010, 0
        %v1017 = vand.u32 %v1012, %v760
        %1019 = vmatprep.subr.bf16.mxu0 0
        %1020 = vmatpush1.bf16.msra.mxu0 %v1017
        %1021 = vmatprep.subr.bf16.mxu0 0
        %1022 = vmatpush1.bf16.msra.mxu0 0
        %1023 = vmatprep.subr.bf16.mxu0 0
        %1024 = vmatpush1.bf16.msra.mxu0 0
        %1025 = vmatprep.subr.bf16.mxu0 0
        %1026 = vmatpush1.bf16.msra.mxu0 0
        %1027 = vmatprep.subr.bf16.mxu0 0
        %1028 = vmatpush1.bf16.msra.mxu0 0
        %1029 = vmatprep.subr.bf16.mxu0 0
        %1030 = vmatpush1.bf16.msra.mxu0 0
        %1031 = vmatprep.subr.bf16.mxu0 0
        %1032 = vmatpush1.bf16.msra.mxu0 0
        %1033 = vmatprep.subr.bf16.mxu0 0
        %1034 = vmatpush1.bf16.msra.mxu0 0
        %1035 = vmatprep.subr.bf16.mxu0 0
        %1036 = vmatpush1.bf16.msra.mxu0 0
        %1037 = vmatprep.subr.bf16.mxu0 0
        %1038 = vmatpush1.bf16.msra.mxu0 0
        %1039 = vmatprep.subr.bf16.mxu0 0
        %1040 = vmatpush1.bf16.msra.mxu0 0
        %1041 = vmatprep.subr.bf16.mxu0 0
        %1042 = vmatpush1.bf16.msra.mxu0 0
        %1043 = vmatprep.subr.bf16.mxu0 0
        %1044 = vmatpush1.bf16.msra.mxu0 0
        %1045 = vmatprep.subr.bf16.mxu0 0
        %1046 = vmatpush1.bf16.msra.mxu0 0
        %1047 = vmatprep.subr.bf16.mxu0 0
        %1048 = vmatpush1.bf16.msra.mxu0 0
        %1049 = vmatprep.subr.bf16.mxu0 0
        %1050 = vmatpush1.bf16.msra.mxu0 0
        %1051 = vmatprep.mubr.bf16.mxu0 0
        %1052 = vmatmul.mubr.bf16.gmra.mrb[0].mxu0 %v1014
        %v1053 = vpop.f32.mrb[0].mxu0
        %v1054 = vadd.f32 0.0, %v1053
        %v1055 = vpop.f32.mrb[0].mxu0
        %v1056 = vpop.f32.mrb[0].mxu0
        %v1057 = vadd.f32 0.0, %v1056
        %v1058 = vpop.f32.mrb[0].mxu0
        %1059 = vdwg.mxu0
        %1060 = vrot.lane.b32.xlu0 %v672, 104
        %v1061 = vpop.permute.xlu0 %1060
        %1062 = vrot.lane.b32.xlu0 %v673, 104
        %v1063 = vpop.permute.xlu0 %1062
        %v1065 = vsel %vm674, %v1061, 0
        %v1068 = vsel %vm674, %v1063, 0
        %1070 = vmatprep.subr.bf16.mxu0 0
        %1071 = vmatpush1.bf16.xpose.msra.mxu0 %v1068
        %1072 = vmatprep.subr.bf16.mxu0 0
        %1073 = vmatpush1.bf16.xpose.msra.mxu0 0
        %1074 = vmatprep.subr.bf16.mxu0 0
        %1075 = vmatpush1.bf16.xpose.msra.mxu0 0
        %1076 = vmatprep.subr.bf16.mxu0 0
        %1077 = vmatpush1.bf16.xpose.msra.mxu0 0
        %1078 = vmatprep.subr.bf16.mxu0 0
        %1079 = vmatpush1.bf16.xpose.msra.mxu0 0
        %1080 = vmatprep.subr.bf16.mxu0 0
        %1081 = vmatpush1.bf16.xpose.msra.mxu0 0
        %1082 = vmatprep.subr.bf16.mxu0 0
        %1083 = vmatpush1.bf16.xpose.msra.mxu0 0
        %1084 = vmatprep.subr.bf16.mxu0 0
        %1085 = vmatpush1.bf16.xpose.msra.mxu0 0
        %1086 = vmatprep.subr.bf16.mxu0 0
        %1087 = vmatpush1.bf16.xpose.msra.mxu0 0
        %1088 = vmatprep.subr.bf16.mxu0 0
        %1089 = vmatpush1.bf16.xpose.msra.mxu0 0
        %1090 = vmatprep.subr.bf16.mxu0 0
        %1091 = vmatpush1.bf16.xpose.msra.mxu0 0
        %1092 = vmatprep.subr.bf16.mxu0 0
        %1093 = vmatpush1.bf16.xpose.msra.mxu0 0
        %1094 = vmatprep.subr.bf16.mxu0 0
        %1095 = vmatpush1.bf16.xpose.msra.mxu0 0
        %1096 = vmatprep.subr.bf16.mxu0 0
        %1097 = vmatpush1.bf16.xpose.msra.mxu0 0
        %1098 = vmatprep.subr.bf16.mxu0 0
        %1099 = vmatpush1.bf16.xpose.msra.mxu0 0
        %1100 = vmatprep.subr.bf16.mxu0 0
        %1101 = vmatpush1.bf16.xpose.msra.mxu0 0
        %1102 = vmatprep.mubr.bf16.mxu0 0
        %1103 = vmatmul.mubr.bf16.gmra.mrb[0].mxu0 %v1065
        %v1104 = vpop.f32.mrb[0].mxu0
        %v1105 = vadd.f32 0.0, %v1104
        %v1106 = vpop.f32.mrb[0].mxu0
        %v1107 = vpop.f32.mrb[0].mxu0
        %v1108 = vadd.f32 0.0, %v1107
        %v1109 = vpop.f32.mrb[0].mxu0
        %1110 = vdwg.mxu0
        %v1111 = vmul.f32 %v1105, 0.35355338
        %v1112 = vmul.f32 %v1108, 0.35355338
        %v1113 = vadd.f32 %v1111, %v670
        %v1114 = vadd.f32 %v1112, %v671
        %v1115 = vsel %vm726, %v1113, -inf
        %1116 = vmax.xlane.f32.xlu0 %v1115
        %v1117 = vpop.xlane.xlu0 %1116
        %v1118 = vsel %vm730, %v1114, -inf
        %1119 = vmax.xlane.f32.xlu0 %v1118
        %v1120 = vpop.xlane.xlu0 %1119
        %v1121 = vsub.f32 %v1113, %v1117
        %v1122 = vsub.f32 %v1114, %v1120
        %v1123 = vmul.f32 %v1121, 1.442695
        %v1124 = vpow.pop %v1123
        %v1125 = vmul.f32 %v1122, 1.442695
        %v1126 = vpow.pop %v1125
        %v1127 = vsel %vm726, %v1124, 0.0
        %1128 = vadd.xlane.f32.xlu0 %v1127
        %v1129 = vpop.xlane.xlu0 %1128
        %v1130 = vsel %vm730, %v1126, 0.0
        %1131 = vadd.xlane.f32.xlu0 %v1130
        %v1132 = vpop.xlane.xlu0 %1131
        %v1133 = vrcp.pop %v1129
        %v1134 = vrcp.pop %v1132
        %v1135 = vmul.f32 %v1124, %v1133
        %v1136 = vmul.f32 %v1126, %v1134
        %v1137 = vpack.c.bf16 %v1136, %v1135
        %1138 = vrot.lane.b32.xlu0 %v673, 72
        %v1139 = vpop.permute.xlu0 %1138
        %v1141 = vsel %vm726, %v1137, 0
        %v1144 = vand.u32 %v1139, %v760
        %1146 = vmatprep.subr.bf16.mxu0 0
        %1147 = vmatpush1.bf16.msra.mxu0 %v1144
        %1148 = vmatprep.subr.bf16.mxu0 0
        %1149 = vmatpush1.bf16.msra.mxu0 0
        %1150 = vmatprep.subr.bf16.mxu0 0
        %1151 = vmatpush1.bf16.msra.mxu0 0
        %1152 = vmatprep.subr.bf16.mxu0 0
        %1153 = vmatpush1.bf16.msra.mxu0 0
        %1154 = vmatprep.subr.bf16.mxu0 0
        %1155 = vmatpush1.bf16.msra.mxu0 0
        %1156 = vmatprep.subr.bf16.mxu0 0
        %1157 = vmatpush1.bf16.msra.mxu0 0
        %1158 = vmatprep.subr.bf16.mxu0 0
        %1159 = vmatpush1.bf16.msra.mxu0 0
        %1160 = vmatprep.subr.bf16.mxu0 0
        %1161 = vmatpush1.bf16.msra.mxu0 0
        %1162 = vmatprep.subr.bf16.mxu0 0
        %1163 = vmatpush1.bf16.msra.mxu0 0
        %1164 = vmatprep.subr.bf16.mxu0 0
        %1165 = vmatpush1.bf16.msra.mxu0 0
        %1166 = vmatprep.subr.bf16.mxu0 0
        %1167 = vmatpush1.bf16.msra.mxu0 0
        %1168 = vmatprep.subr.bf16.mxu0 0
        %1169 = vmatpush1.bf16.msra.mxu0 0
        %1170 = vmatprep.subr.bf16.mxu0 0
        %1171 = vmatpush1.bf16.msra.mxu0 0
        %1172 = vmatprep.subr.bf16.mxu0 0
        %1173 = vmatpush1.bf16.msra.mxu0 0
        %1174 = vmatprep.subr.bf16.mxu0 0
        %1175 = vmatpush1.bf16.msra.mxu0 0
        %1176 = vmatprep.subr.bf16.mxu0 0
        %1177 = vmatpush1.bf16.msra.mxu0 0
        %1178 = vmatprep.mubr.bf16.mxu0 0
        %1179 = vmatmul.mubr.bf16.gmra.mrb[0].mxu0 %v1141
        %v1180 = vpop.f32.mrb[0].mxu0
        %v1181 = vadd.f32 0.0, %v1180
        %v1182 = vpop.f32.mrb[0].mxu0
        %v1183 = vpop.f32.mrb[0].mxu0
        %v1184 = vadd.f32 0.0, %v1183
        %v1185 = vpop.f32.mrb[0].mxu0
        %1186 = vdwg.mxu0
        %1189 = vrot.lane.b32.xlu0 %v927, 8
        %v1190 = vpop.permute.xlu0 %1189
        %1191 = vrot.lane.b32.xlu0 %v930, 8
        %v1192 = vpop.permute.xlu0 %1191
        %1197 = vrot.lane.b32.xlu0 %v1054, 16
        %v1198 = vpop.permute.xlu0 %1197
        %1199 = vrot.lane.b32.xlu0 %v1057, 16
        %v1200 = vpop.permute.xlu0 %1199
        %1205 = vrot.lane.b32.xlu0 %v1181, 24
        %v1206 = vpop.permute.xlu0 %1205
        %1207 = vrot.lane.b32.xlu0 %v1184, 24
        %v1208 = vpop.permute.xlu0 %1207
        %v1211 = vsel %vm674, %v799, %v1190
        %v1212 = vsel %vm674, %v802, %v1192
        %vm1213 = vcmask 130048
        %v1214 = vsel %vm1213, %v1211, %v1198
        %v1215 = vsel %vm1213, %v1212, %v1200
        %vm1216 = vcmask 195584
        %v1217 = vsel %vm1216, %v1214, %v1206
        %v1218 = vsel %vm1216, %v1215, %v1208
        %v1219 = vpack.c.bf16 %v1218, %v1217
        %v1220 = vld [vmem:[%s5] sm:$0xf]
        %v1221 = vld [vmem:[%s5 + $0x4] sm:$0xf]
        %v1222 = vld [vmem:[%s5 + $0x8] sm:$0xf]
        %v1223 = vld [vmem:[%s5 + $0xc] sm:$0xf]
        %v1224 = vld [vmem:[%s6] sm:$0x1]
        %v1226 = vlaneseq
        %v1227 = vshrl.u32 %v1226, 7
        %v1228 = vsub.s32 0, %v1227
        %v1229 = vrot.slane %v1224, %v1228
        %v1235 = vunpack.c.l.b16 %v1220
        %v1236 = vunpack.c.l.b16 %v1221
        %v1237 = vunpack.c.l.b16 %v1222
        %v1238 = vunpack.c.l.b16 %v1223
        %v1239 = vpack.c.b16 %v1236, %v1235
        %v1240 = vpack.c.b16 %v1238, %v1237
        %v1244 = vsel %vm558, %v1219, 0
        %1246 = vmatprep.subr.bf16.mxu0 0
        %1247 = vmatpush1.bf16.msra.mxu0 %v1239
        %1248 = vmatprep.subr.bf16.mxu0 0
        %1249 = vmatpush1.bf16.msra.mxu0 %v1240
        %1250 = vmatprep.subr.bf16.mxu0 0
        %1251 = vmatpush1.bf16.msra.mxu0 0
        %1252 = vmatprep.subr.bf16.mxu0 0
        %1253 = vmatpush1.bf16.msra.mxu0 0
        %1254 = vmatprep.subr.bf16.mxu0 0
        %1255 = vmatpush1.bf16.msra.mxu0 0
        %1256 = vmatprep.subr.bf16.mxu0 0
        %1257 = vmatpush1.bf16.msra.mxu0 0
        %1258 = vmatprep.subr.bf16.mxu0 0
        %1259 = vmatpush1.bf16.msra.mxu0 0
        %1260 = vmatprep.subr.bf16.mxu0 0
        %1261 = vmatpush1.bf16.msra.mxu0 0
        %1262 = vmatprep.subr.bf16.mxu0 0
        %1263 = vmatpush1.bf16.msra.mxu0 0
        %1264 = vmatprep.subr.bf16.mxu0 0
        %1265 = vmatpush1.bf16.msra.mxu0 0
        %1266 = vmatprep.subr.bf16.mxu0 0
        %1267 = vmatpush1.bf16.msra.mxu0 0
        %1268 = vmatprep.subr.bf16.mxu0 0
        %1269 = vmatpush1.bf16.msra.mxu0 0
        %1270 = vmatprep.subr.bf16.mxu0 0
        %1271 = vmatpush1.bf16.msra.mxu0 0
        %1272 = vmatprep.subr.bf16.mxu0 0
        %1273 = vmatpush1.bf16.msra.mxu0 0
        %1274 = vmatprep.subr.bf16.mxu0 0
        %1275 = vmatpush1.bf16.msra.mxu0 0
        %1276 = vmatprep.subr.bf16.mxu0 0
        %1277 = vmatpush1.bf16.msra.mxu0 0
        %1278 = vmatprep.mubr.bf16.mxu0 0
        %1279 = vmatmul.mubr.bf16.gmra.mrb[0].mxu0 %v1244
        %v1280 = vpop.f32.mrb[0].mxu0
        %v1281 = vadd.f32 %v1229, %v1280
        %v1282 = vpop.f32.mrb[0].mxu0
        %v1283 = vpop.f32.mrb[0].mxu0
        %v1284 = vadd.f32 %v1229, %v1283
        %v1285 = vpop.f32.mrb[0].mxu0
        %1286 = vdwg.mxu0
        %v1287 = vadd.f32 %v530, %v1281
        %v1288 = vadd.f32 %v531, %v1284
        %v1289 = vsel %vm558, %v1287, 0.0
        %1290 = vadd.xlane.f32.xlu0 %v1289
        %v1291 = vpop.xlane.xlu0 %1290
        %vm1292 = vcmask 253952
        %v1293 = vsel %vm1292, %v1288, 0.0
        %1294 = vadd.xlane.f32.xlu0 %v1293
        %v1295 = vpop.xlane.xlu0 %1294
        %v1296 = vrcp.pop 32.0
        %v1297 = vmul.f32 %v1291, %v1296
        %v1298 = vmul.f32 %v1295, %v1296
        %v1299 = vsub.f32 %v1287, %v1297
        %v1300 = vsub.f32 %v1288, %v1298
        %v1301 = vmul.f32 %v1299, %v1299
        %v1302 = vmul.f32 %v1300, %v1300
        %v1303 = vsel %vm558, %v1301, 0.0
        %1304 = vadd.xlane.f32.xlu0 %v1303
        %v1305 = vpop.xlane.xlu0 %1304
        %v1306 = vsel %vm1292, %v1302, 0.0
        %1307 = vadd.xlane.f32.xlu0 %v1306
        %v1308 = vpop.xlane.xlu0 %1307
        %v1309 = vmul.f32 %v1305, %v1296
        %v1310 = vmul.f32 %v1308, %v1296
        %v1311 = vadd.f32 %v1309, 1e-05
        %v1312 = vadd.f32 %v1310, 1e-05
        %v1313 = vrsqrt.pop %v1311
        %v1314 = vrsqrt.pop %v1312
        %v1315 = vmul.f32 %v1299, %v1313
        %v1316 = vmul.f32 %v1300, %v1314
        %v1317 = vld [vmem:[%s7] sm:$0x1]
        %v1319 = vlaneseq
        %v1320 = vshrl.u32 %v1319, 7
        %v1321 = vsub.s32 0, %v1320
        %v1322 = vrot.slane %v1317, %v1321
        %v1324 = vmul.f32 %v1315, %v1322
        %v1325 = vmul.f32 %v1316, %v1322
        %v1326 = vld [vmem:[%s8] sm:$0x1]
        %v1328 = vlaneseq
        %v1329 = vshrl.u32 %v1328, 7
        %v1330 = vsub.s32 0, %v1329
        %v1331 = vrot.slane %v1326, %v1330
        %v1333 = vadd.f32 %v1324, %v1331
        %v1334 = vadd.f32 %v1325, %v1331
        %v1335 = vpack.c.bf16 %v1334, %v1333
        %v1336 = vld [vmem:[%s9] sm:$0xf]
        %v1337 = vld [vmem:[%s9 + $0x4] sm:$0xf]
        %v1338 = vld [vmem:[%s9 + $0x8] sm:$0xf]
        %v1339 = vld [vmem:[%s9 + $0xc] sm:$0xf]
        %v1340 = vld [vmem:[%s10] sm:$0x1]
        %v1342 = vlaneseq
        %v1343 = vshrl.u32 %v1342, 7
        %v1344 = vsub.s32 0, %v1343
        %v1345 = vrot.slane %v1340, %v1344
        %v1351 = vunpack.c.l.b16 %v1336
        %v1352 = vunpack.c.l.b16 %v1337
        %v1353 = vunpack.c.l.b16 %v1338
        %v1354 = vunpack.c.l.b16 %v1339
        %v1355 = vpack.c.b16 %v1352, %v1351
        %v1356 = vpack.c.b16 %v1354, %v1353
        %v1360 = vsel %vm558, %v1335, 0
        %1362 = vmatprep.subr.bf16.mxu0 0
        %1363 = vmatpush1.bf16.msra.mxu0 %v1355
        %1364 = vmatprep.subr.bf16.mxu0 0
        %1365 = vmatpush1.bf16.msra.mxu0 %v1356
        %1366 = vmatprep.subr.bf16.mxu0 0
        %1367 = vmatpush1.bf16.msra.mxu0 0
        %1368 = vmatprep.subr.bf16.mxu0 0
        %1369 = vmatpush1.bf16.msra.mxu0 0
        %1370 = vmatprep.subr.bf16.mxu0 0
        %1371 = vmatpush1.bf16.msra.mxu0 0
        %1372 = vmatprep.subr.bf16.mxu0 0
        %1373 = vmatpush1.bf16.msra.mxu0 0
        %1374 = vmatprep.subr.bf16.mxu0 0
        %1375 = vmatpush1.bf16.msra.mxu0 0
        %1376 = vmatprep.subr.bf16.mxu0 0
        %1377 = vmatpush1.bf16.msra.mxu0 0
        %1378 = vmatprep.subr.bf16.mxu0 0
        %1379 = vmatpush1.bf16.msra.mxu0 0
        %1380 = vmatprep.subr.bf16.mxu0 0
        %1381 = vmatpush1.bf16.msra.mxu0 0
        %1382 = vmatprep.subr.bf16.mxu0 0
        %1383 = vmatpush1.bf16.msra.mxu0 0
        %1384 = vmatprep.subr.bf16.mxu0 0
        %1385 = vmatpush1.bf16.msra.mxu0 0
        %1386 = vmatprep.subr.bf16.mxu0 0
        %1387 = vmatpush1.bf16.msra.mxu0 0
        %1388 = vmatprep.subr.bf16.mxu0 0
        %1389 = vmatpush1.bf16.msra.mxu0 0
        %1390 = vmatprep.subr.bf16.mxu0 0
        %1391 = vmatpush1.bf16.msra.mxu0 0
        %1392 = vmatprep.subr.bf16.mxu0 0
        %1393 = vmatpush1.bf16.msra.mxu0 0
        %1394 = vmatprep.mubr.bf16.mxu0 0
        %1395 = vmatmul.mubr.bf16.gmra.mrb[0].mxu0 %v1360
        %v1396 = vpop.f32.mrb[0].mxu0
        %v1397 = vadd.f32 %v1345, %v1396
        %v1398 = vpop.f32.mrb[0].mxu0
        %v1399 = vpop.f32.mrb[0].mxu0
        %v1400 = vadd.f32 %v1345, %v1399
        %v1401 = vpop.f32.mrb[0].mxu0
        %1402 = vdwg.mxu0
        %v1403 = vmax.f32 %v1397, 0.0
        %v1404 = vmax.f32 %v1400, 0.0
        %v1405 = vpack.c.bf16 %v1404, %v1403
        %v1406 = vld [vmem:[%s11] sm:$0xf]
        %v1407 = vld [vmem:[%s11 + $0x4] sm:$0xf]
        %v1408 = vld [vmem:[%s11 + $0x8] sm:$0xf]
        %v1409 = vld [vmem:[%s11 + $0xc] sm:$0xf]
        %v1410 = vld [vmem:[%s11 + $0x10] sm:$0xf]
        %v1411 = vld [vmem:[%s11 + $0x14] sm:$0xf]
        %v1412 = vld [vmem:[%s11 + $0x18] sm:$0xf]
        %v1413 = vld [vmem:[%s11 + $0x1c] sm:$0xf]
        %v1414 = vld [vmem:[%s12] sm:$0x1]
        %v1416 = vlaneseq
        %v1417 = vshrl.u32 %v1416, 7
        %v1418 = vsub.s32 0, %v1417
        %v1419 = vrot.slane %v1414, %v1418
        %v1429 = vunpack.c.l.b16 %v1406
        %v1430 = vunpack.c.l.b16 %v1407
        %v1431 = vunpack.c.l.b16 %v1408
        %v1432 = vunpack.c.l.b16 %v1409
        %v1433 = vunpack.c.l.b16 %v1410
        %v1434 = vunpack.c.l.b16 %v1411
        %v1435 = vunpack.c.l.b16 %v1412
        %v1436 = vunpack.c.l.b16 %v1413
        %v1437 = vpack.c.b16 %v1430, %v1429
        %v1438 = vpack.c.b16 %v1432, %v1431
        %v1439 = vpack.c.b16 %v1434, %v1433
        %v1440 = vpack.c.b16 %v1436, %v1435
        %vm1445 = vcmask 523264
        %v1447 = vsel %vm1445, %v1405, 0
        %1449 = vmatprep.subr.bf16.mxu0 0
        %1450 = vmatpush1.bf16.msra.mxu0 %v1437
        %1451 = vmatprep.subr.bf16.mxu0 0
        %1452 = vmatpush1.bf16.msra.mxu0 %v1438
        %1453 = vmatprep.subr.bf16.mxu0 0
        %1454 = vmatpush1.bf16.msra.mxu0 %v1439
        %1455 = vmatprep.subr.bf16.mxu0 0
        %1456 = vmatpush1.bf16.msra.mxu0 %v1440
        %1457 = vmatprep.subr.bf16.mxu0 0
        %1458 = vmatpush1.bf16.msra.mxu0 0
        %1459 = vmatprep.subr.bf16.mxu0 0
        %1460 = vmatpush1.bf16.msra.mxu0 0
        %1461 = vmatprep.subr.bf16.mxu0 0
        %1462 = vmatpush1.bf16.msra.mxu0 0
        %1463 = vmatprep.subr.bf16.mxu0 0
        %1464 = vmatpush1.bf16.msra.mxu0 0
        %1465 = vmatprep.subr.bf16.mxu0 0
        %1466 = vmatpush1.bf16.msra.mxu0 0
        %1467 = vmatprep.subr.bf16.mxu0 0
        %1468 = vmatpush1.bf16.msra.mxu0 0
        %1469 = vmatprep.subr.bf16.mxu0 0
        %1470 = vmatpush1.bf16.msra.mxu0 0
        %1471 = vmatprep.subr.bf16.mxu0 0
        %1472 = vmatpush1.bf16.msra.mxu0 0
        %1473 = vmatprep.subr.bf16.mxu0 0
        %1474 = vmatpush1.bf16.msra.mxu0 0
        %1475 = vmatprep.subr.bf16.mxu0 0
        %1476 = vmatpush1.bf16.msra.mxu0 0
        %1477 = vmatprep.subr.bf16.mxu0 0
        %1478 = vmatpush1.bf16.msra.mxu0 0
        %1479 = vmatprep.subr.bf16.mxu0 0
        %1480 = vmatpush1.bf16.msra.mxu0 0
        %1481 = vmatprep.mubr.bf16.mxu0 0
        %1482 = vmatmul.mubr.bf16.gmra.mrb[0].mxu0 %v1447
        %v1483 = vpop.f32.mrb[0].mxu0
        %v1484 = vadd.f32 %v1419, %v1483
        %v1485 = vpop.f32.mrb[0].mxu0
        %v1486 = vpop.f32.mrb[0].mxu0
        %v1487 = vadd.f32 %v1419, %v1486
        %v1488 = vpop.f32.mrb[0].mxu0
        %1489 = vdwg.mxu0
        %v1490 = vadd.f32 %v1333, %v1484
        %v1491 = vadd.f32 %v1334, %v1487
        %v1492 = vsel %vm558, %v1490, 0.0
        %1493 = vadd.xlane.f32.xlu0 %v1492
        %v1494 = vpop.xlane.xlu0 %1493
        %v1495 = vsel %vm1292, %v1491, 0.0
        %1496 = vadd.xlane.f32.xlu0 %v1495
        %v1497 = vpop.xlane.xlu0 %1496
        %v1498 = vmul.f32 %v1494, %v1296
        %v1499 = vmul.f32 %v1497, %v1296
        %v1500 = vsub.f32 %v1490, %v1498
        %v1501 = vsub.f32 %v1491, %v1499
        %v1502 = vmul.f32 %v1500, %v1500
        %v1503 = vmul.f32 %v1501, %v1501
        %v1504 = vsel %vm558, %v1502, 0.0
        %1505 = vadd.xlane.f32.xlu0 %v1504
        %v1506 = vpop.xlane.xlu0 %1505
        %v1507 = vsel %vm1292, %v1503, 0.0
        %1508 = vadd.xlane.f32.xlu0 %v1507
        %v1509 = vpop.xlane.xlu0 %1508
        %v1510 = vmul.f32 %v1506, %v1296
        %v1511 = vmul.f32 %v1509, %v1296
        %v1512 = vadd.f32 %v1510, 1e-05
        %v1513 = vadd.f32 %v1511, 1e-05
        %v1514 = vrsqrt.pop %v1512
        %v1515 = vrsqrt.pop %v1513
        %v1516 = vmul.f32 %v1500, %v1514
        %v1517 = vmul.f32 %v1501, %v1515
        %v1518 = vld [vmem:[%s13] sm:$0x1]
        %v1520 = vlaneseq
        %v1521 = vshrl.u32 %v1520, 7
        %v1522 = vsub.s32 0, %v1521
        %v1523 = vrot.slane %v1518, %v1522
        %v1525 = vmul.f32 %v1516, %v1523
        %v1526 = vmul.f32 %v1517, %v1523
        %v1527 = vld [vmem:[%s14] sm:$0x1]
        %v1529 = vlaneseq
        %v1530 = vshrl.u32 %v1529, 7
        %v1531 = vsub.s32 0, %v1530
        %v1532 = vrot.slane %v1527, %v1531
        %v1534 = vadd.f32 %v1525, %v1532
        %v1535 = vadd.f32 %v1526, %v1532
        %1536 = vst.msk [vmem:[%s528] sm:$0xff] %vm558, %v1534
        %1537 = vst.msk [vmem:[%s528 + $0x8] sm:$0x1] %vm1292, %v1535
        %p1538 = scmp.lt.s32.totalorder %s27, 1
        %s1539 = scalar_select %p1538, %s27, 1
        %s1540 = smul.addr %s1539, 2
        %s1541 = smul.addr %s1540, 8
        %s1542 = scalar_lea.vmem %s15, %s1541
        // Predicated region
        $region85: #{abinet_iter_forward.28} parent=79 // pred_check
          %p1543 = pneg %p370
        $region86: #{abinet_iter_forward.28} parent=79 // pred_check_branch
          %1545 = sbr.rel (%p1543) target = $region88
        $region87: #{abinet_iter_forward.28} parent=79 // pred_region
          _
        $region88: #{abinet_iter_forward.28} parent=79 // pred_fallthru
          _
      $region80: #{abinet_iter_forward.28} parent=5 // pred_fallthru
        _
      %p1546 = scmp.le.s32.totalorder 2, %s22
      // Predicated region
      $region89: #{abinet_iter_forward.28} parent=5 // pred_check
        %p1547 = pneg %p1546
      $region90: #{abinet_iter_forward.28} parent=5 // pred_check_branch
        %1549 = sbr.rel (%p1547) target = $region92
      $region91: #{abinet_iter_forward.28} parent=5 // pred_region
        %s1550 = ssub.s32 %s22, 2
        // Predicated region
        $region93: #{abinet_iter_forward.28} parent=91 // pred_check
          %p1551 = pneg %p376
        $region94: #{abinet_iter_forward.28} parent=91 // pred_check_branch
          %1553 = sbr.rel (%p1551) target = $region96
        $region95: #{abinet_iter_forward.28} parent=91 // pred_region
          %p1554 = scmp.lt.s32.totalorder %s28, 1
          %s1555 = scalar_select %p1554, %s28, 1
          %s1556 = smul.addr %s1555, 2
          %s1557 = smul.addr %s1556, 8
          %s1558 = scalar_lea.vmem %s15, %s1557
        $region96: #{abinet_iter_forward.28} parent=91 // pred_fallthru
          _
      $region92: #{abinet_iter_forward.28} parent=5 // pred_fallthru
        _
    $region6: #{abinet_iter_forward.28} parent=1 // loop_footer
      %s26 = sadd.s32 1, %s22
    $region7: #{abinet_iter_forward.28} parent=1 // loop_footer_branch
      %21 = sbr.rel target = $region3
    $region8: #{abinet_iter_forward.28} parent=1 // loop_exit
      _
    %1559 = vsyncpa [#allocation3], 1
    %s1560 = scalar_lea.sflag [#allocation3], 1
    %1561 = vsyncpa %s1560, 1

</llo_original>
